<compile_context>
chip_gen: v7x
topology: tpu7x:2x2x1
jax: 0.10.0
libtpu: 0.0.40
codegen_flags: <defaults>
</compile_context>

<pallas_src>
import numpy as np

import jax
import jax.numpy as jnp
from jax import lax
from jax.experimental import pallas as pl
from jax.experimental.pallas import tpu as pltpu

CPAD = 128   # canonical lane-padded channel dimension (set once, kept throughout)


# ---------------------------------------------------------------------------
# Host-side constant builders: conv-tap / pool-shift gather matrices (0/1).
# ---------------------------------------------------------------------------
def _conv_gather_mats(hin, win, k, stride):
    """Per-tap gather matrices S_t with S_t[o, i] = 1 iff input pixel i is the
    (ky,kx) tap of output pixel o (zero row when the tap lands in the padding,
    which is exactly the conv's zero padding)."""
    pad = k // 2
    hout = (hin + 2 * pad - k) // stride + 1
    wout = (win + 2 * pad - k) // stride + 1
    mats = np.zeros((k * k, hout * wout, hin * win), np.float32)
    for ky in range(k):
        for kx in range(k):
            t = ky * k + kx
            for oy in range(hout):
                for ox in range(wout):
                    iy = stride * oy + ky - pad
                    ix = stride * ox + kx - pad
                    if 0 <= iy < hin and 0 <= ix < win:
                        mats[t, oy * wout + ox, iy * win + ix] = 1.0
    return jnp.asarray(mats), hout, wout


def _pool_shift_mats(h, w):
    """Separable 5x5/stride-1/pad-2 max pool: 4 W-direction shift matrices then
    4 H-direction shift matrices (offsets -2,-1,+1,+2); zero rows when the
    shifted pixel is out of bounds."""
    mats = np.zeros((8, h * w, h * w), np.float32)
    for n, d in enumerate((-2, -1, 1, 2)):          # W direction
        for y in range(h):
            for x in range(w):
                if 0 <= x + d < w:
                    mats[n, y * w + x, y * w + (x + d)] = 1.0
    for n, d in enumerate((-2, -1, 1, 2)):          # H direction
        for y in range(h):
            for x in range(w):
                if 0 <= y + d < h:
                    mats[4 + n, y * w + x, (y + d) * w + x] = 1.0
    return jnp.asarray(mats)


# ---------------------------------------------------------------------------
# Deterministic parameter construction (synthetic weights; BN eps=1e-3 as set by
# initialize_weights()).  Raw params drive the plain-JAX reference; the packed
# params drive the Pallas kernel.
# ---------------------------------------------------------------------------
def _init_conv(key, cin, cout, k):
    kw, kg, kb, km, kv = jax.random.split(key, 5)
    w = jax.random.normal(kw, (k, k, cin, cout), jnp.float32) / jnp.sqrt(float(k * k * cin))
    gamma = 1.0 + 0.1 * jax.random.normal(kg, (cout,), jnp.float32)
    beta = 0.1 * jax.random.normal(kb, (cout,), jnp.float32)
    mean = 0.1 * jax.random.normal(km, (cout,), jnp.float32)
    var = 1.0 + 0.1 * jax.random.uniform(kv, (cout,), jnp.float32)
    eps = 1e-3
    scale = gamma / jnp.sqrt(var + eps)
    bias = beta - mean * scale
    return {'w': w, 'scale': scale, 'bias': bias}


def build_raw_params(key, ch_in=4):
    ks = jax.random.split(key, 9)
    return {
        'conv0':    _init_conv(ks[0], ch_in, 8, 3),
        'conv1':    _init_conv(ks[1], 8, 16, 3),
        'c3_cv1':   _init_conv(ks[2], 16, 8, 1),
        'c3_cv2':   _init_conv(ks[3], 16, 8, 1),
        'c3_cv3':   _init_conv(ks[4], 16, 16, 1),
        'c3_b_cv1': _init_conv(ks[5], 8, 8, 1),
        'c3_b_cv2': _init_conv(ks[6], 8, 8, 3),
        'sppf_cv1': _init_conv(ks[7], 16, 8, 1),
        'sppf_cv2': _init_conv(ks[8], 32, 16, 1),
    }


def _folded(p):
    # inference-time BN fold: scale goes into the conv weight, bias stays
    return p['w'] * p['scale'][None, None, None, :], p['bias']


def _pack_1x1(p, in_off=0, out_off=0):
    w, b = _folded(p)
    w = w[0, 0]                                              # (cin, cout)
    cin, cout = w.shape
    wm = jnp.zeros((CPAD, CPAD), jnp.float32).at[in_off:in_off + cin,
                                                 out_off:out_off + cout].set(w)
    bm = jnp.zeros((CPAD,), jnp.float32).at[out_off:out_off + cout].set(b)
    return wm, bm


def _pack_3x3(p):
    w, b = _folded(p)
    k, _, cin, cout = w.shape
    wm = jnp.zeros((k * k, CPAD, CPAD), jnp.float32).at[:, :cin, :cout].set(
        w.reshape(k * k, cin, cout))
    bm = jnp.zeros((CPAD,), jnp.float32).at[:cout].set(b)
    return wm, bm


def pack_kernel_params(raw, h=16, w=16):
    g0, h1, w1 = _conv_gather_mats(h, w, 3, 2)               # conv0 taps
    g1, h2, w2 = _conv_gather_mats(h1, w1, 3, 2)             # conv1 taps
    g2, _, _ = _conv_gather_mats(h2, w2, 3, 1)               # bottleneck cv2 taps
    gp = _pool_shift_mats(h2, w2)                            # SPPF pool shifts

    w0, b0 = _pack_3x3(raw['conv0'])
    w1m, b1 = _pack_3x3(raw['conv1'])
    wb2, bb2 = _pack_3x3(raw['c3_b_cv2'])

    # C3.cv1 / C3.cv2 fused into one 1x1 matmul: cv1 -> lanes [0:8], cv2 -> [8:16]
    wa, ba = _pack_1x1(raw['c3_cv1'], 0, 0)
    wb, bb = _pack_1x1(raw['c3_cv2'], 0, 8)
    w12, b12 = wa + wb, ba + bb

    wbc1, bbc1 = _pack_1x1(raw['c3_b_cv1'], 0, 0)
    wcv3, bcv3 = _pack_1x1(raw['c3_cv3'], 0, 0)
    wsp1, bsp1 = _pack_1x1(raw['sppf_cv1'], 0, 0)

    # SPPF.cv2 (32->16) split by 8-channel input group so that
    # concat([s, p1, p2, p3]) @ W == s@Wg0 + p1@Wg1 + p2@Wg2 + p3@Wg3
    wsp2_full, bsp2_raw = _folded(raw['sppf_cv2'])
    wsp2_full = wsp2_full[0, 0]                              # (32, 16)
    wsp2 = []
    for g in range(4):
        m = jnp.zeros((CPAD, CPAD), jnp.float32).at[0:8, 0:16].set(
            wsp2_full[8 * g:8 * (g + 1), :])
        wsp2.append(m)
    bsp2 = jnp.zeros((CPAD,), jnp.float32).at[:16].set(bsp2_raw)

    w1x1 = jnp.stack([w12, wbc1, wcv3, wsp1] + wsp2)                       # (8,128,128)
    bias = jnp.stack([b0, b1, b12, bbc1, bb2, bcv3, bsp1, bsp2])[:, None]  # (8,1,128)

    return {'g0': g0, 'w0': w0, 'g1': g1, 'w1': w1m, 'g2': g2, 'wb2': wb2,
            'gp': gp, 'w1x1': w1x1, 'bias': bias}


# ---------------------------------------------------------------------------
# Pallas kernel: whole backbone for one batch element.
# ---------------------------------------------------------------------------
def _silu(y):
    # numerically-stable y * sigmoid(y); the divide runs on the EUP (approx vrcp)
    ey = jnp.exp(-jnp.abs(y))
    inv = pl.reciprocal(1.0 + ey, approx=True)
    return y * inv * jnp.where(y >= 0.0, 1.0, ey)


def _yolo_backbone_kernel(x_ref, g0_ref, w0_ref, g1_ref, w1_ref, g2_ref, wb2_ref,
                          gp_ref, w1x1_ref, b_ref, o_ref):
    f32 = jnp.float32

    def conv3x3(x, g_ref, w_ref, b_idx):
        # sum over 9 taps of (gather @ x) @ W_tap, f32 accumulation on the MXU
        acc = None
        for t in range(g_ref.shape[0]):
            patch = jnp.dot(g_ref[t], x, preferred_element_type=f32)
            term = jnp.dot(patch, w_ref[t], preferred_element_type=f32)
            acc = term if acc is None else acc + term
        return _silu(acc + b_ref[b_idx])

    def conv1x1(x, w_idx, b_idx):
        y = jnp.dot(x, w1x1_ref[w_idx], preferred_element_type=f32) + b_ref[b_idx]
        return _silu(y)

    def maxpool5(z):
        # 5x5 / stride 1 / pad 2, separable (W pass then H pass).  Inputs are
        # SiLU outputs (> -0.279), so the +1 shift makes out-of-bounds taps
        # (returned as 0 by the zero rows of the shift matrices) strictly lose,
        # matching PyTorch MaxPool2d's -inf padding.  Padded lanes stay 0.
        zp = z + 1.0
        zw = zp
        for t in range(4):
            zw = jnp.maximum(zw, jnp.dot(gp_ref[t], zp, preferred_element_type=f32))
        zh = zw
        for t in range(4, 8):
            zh = jnp.maximum(zh, jnp.dot(gp_ref[t], zw, preferred_element_type=f32))
        return zh - 1.0

    x0 = x_ref[0]                                    # (H*W, 128), real ch [0:4]

    # layers 0/1: Conv(3x3, s=2) + BN + SiLU
    x1 = conv3x3(x0, g0_ref, w0_ref, 0)              # (H/2*W/2, 128), ch [0:8]
    x2 = conv3x3(x1, g1_ref, w1_ref, 1)              # (H/4*W/4, 128), ch [0:16]

    # layer 2: C3(16, 16, n=1, shortcut=True)
    y12 = conv1x1(x2, 0, 2)                          # cv1 -> ch [0:8], cv2 -> ch [8:16]
    bk = conv1x1(y12, 1, 3)                          # bottleneck cv1 (reads ch [0:8] only)
    bk = conv3x3(bk, g2_ref, wb2_ref, 4)             # bottleneck cv2 (3x3, s=1)
    cat = y12 + bk                                   # [0:8]=y1+bk (residual), [8:16]=y2 == concat
    x3 = conv1x1(cat, 2, 5)                          # c3_cv3 -> ch [0:16]

    # layer 3: SPPF(16, 16, k=5)
    s = conv1x1(x3, 3, 6)                            # sppf_cv1 -> ch [0:8]
    p1 = maxpool5(s)
    p2 = maxpool5(p1)
    p3 = maxpool5(p2)
    # concat([s, p1, p2, p3]) followed by the 1x1 conv == sum of per-group matmuls
    y = (jnp.dot(s,  w1x1_ref[4], preferred_element_type=f32)
         + jnp.dot(p1, w1x1_ref[5], preferred_element_type=f32)
         + jnp.dot(p2, w1x1_ref[6], preferred_element_type=f32)
         + jnp.dot(p3, w1x1_ref[7], preferred_element_type=f32))
    o_ref[0] = _silu(y + b_ref[7])


def _const_spec(a):
    nd = a.ndim
    return pl.BlockSpec(a.shape, lambda i: (0,) * nd)


def yolo_backbone_forward(x_nchw, kp):
    """NCHW in, NCHW out.  Single fused pallas_call over the whole backbone."""
    n, cin, h, w = x_nchw.shape
    assert h % 4 == 0 and w % 4 == 0
    s0 = h * w
    s2 = kp['g1'].shape[1]                           # (h/4) * (w/4)
    h2, w2 = h // 4, w // 4
    cout = 16

    # one-time layout prep at the network boundary:
    # NCHW -> flattened NHWC rows, channels lane-padded to the canonical 128
    x = jnp.transpose(x_nchw, (0, 2, 3, 1)).reshape(n, s0, cin)
    x = jnp.pad(x, ((0, 0), (0, 0), (0, CPAD - cin)))

    consts = (kp['g0'], kp['w0'], kp['g1'], kp['w1'], kp['g2'], kp['wb2'],
              kp['gp'], kp['w1x1'], kp['bias'])

    out = pl.pallas_call(
        _yolo_backbone_kernel,
        out_shape=jax.ShapeDtypeStruct((n, s2, CPAD), jnp.float32),
        grid=(n,),
        in_specs=[pl.BlockSpec((1, s0, CPAD), lambda i: (i, 0, 0))]
                 + [_const_spec(a) for a in consts],
        out_specs=pl.BlockSpec((1, s2, CPAD), lambda i: (i, 0, 0)),
        compiler_params=pltpu.CompilerParams(
            dimension_semantics=("parallel",),
            vmem_limit_bytes=32 * 1024 * 1024),
    )(x, *consts)

    # network-boundary un-pad: take the 16 real channels of the last feature map
    y = out[:, :, :cout].reshape(n, h2, w2, cout)
    return jnp.transpose(y, (0, 3, 1, 2))            # NHWC -> NCHW


# ---------------------------------------------------------------------------
# Plain-JAX reference of the same module (for correctness verification).
# ---------------------------------------------------------------------------
def _ref_conv_bn_silu(x, p, stride):
    k = p['w'].shape[0]
    pad = k // 2
    y = lax.conv_general_dilated(
        x, p['w'], window_strides=(stride, stride),
        padding=((pad, pad), (pad, pad)),
        dimension_numbers=('NHWC', 'HWIO', 'NHWC'))
    y = y * p['scale'] + p['bias']
    return y * jax.nn.sigmoid(y)


def _ref_maxpool5(x):
    return lax.reduce_window(x, -jnp.inf, lax.max, (1, 5, 5, 1), (1, 1, 1, 1),
                             [(0, 0), (2, 2), (2, 2), (0, 0)])


def yolo_backbone_reference(x_nchw, raw):
    x = jnp.transpose(x_nchw, (0, 2, 3, 1))
    x = _ref_conv_bn_silu(x, raw['conv0'], 2)
    x = _ref_conv_bn_silu(x, raw['conv1'], 2)
    y1 = _ref_conv_bn_silu(x, raw['c3_cv1'], 1)
    y2 = _ref_conv_bn_silu(x, raw['c3_cv2'], 1)
    b = _ref_conv_bn_silu(y1, raw['c3_b_cv1'], 1)
    b = _ref_conv_bn_silu(b, raw['c3_b_cv2'], 1)
    x = _ref_conv_bn_silu(jnp.concatenate([y1 + b, y2], axis=-1), raw['c3_cv3'], 1)
    s = _ref_conv_bn_silu(x, raw['sppf_cv1'], 1)
    p1 = _ref_maxpool5(s)
    p2 = _ref_maxpool5(p1)
    p3 = _ref_maxpool5(p2)
    x = _ref_conv_bn_silu(jnp.concatenate([s, p1, p2, p3], axis=-1), raw['sppf_cv2'], 1)
    return jnp.transpose(x, (0, 3, 1, 2))


if __name__ == "__main__":
    key = jax.random.PRNGKey(0)
    k_x, k_p = jax.random.split(key)
    x = jax.random.normal(k_x, (2, 4, 16, 16), jnp.float32)   # NCHW, ch=4
    raw = build_raw_params(k_p, ch_in=4)
    kp = pack_kernel_params(raw, h=16, w=16)

    fwd = jax.jit(yolo_backbone_forward)
    out = fwd(x, kp)
    jax.block_until_ready(out)
    assert out.shape == (2, 16, 4, 4), out.shape

    # correctness check against a plain-JAX (XLA) reference of the same module
    ref = jax.jit(yolo_backbone_reference)(x, raw)
    jax.block_until_ready(ref)
    np.testing.assert_allclose(np.asarray(out), np.asarray(ref), rtol=5e-2, atol=5e-2)

    print("KERNEL_OK")
</pallas_src>

<mosaic_0001>
module attributes {stable_mosaic.version = 11 : i64} {
  func.func @_yolo_backbone_kernel(%arg0: i32, %arg1: memref<1x256x128xf32, #tpu.memory_space<vmem>>, %arg2: memref<9x64x256xf32, #tpu.memory_space<vmem>>, %arg3: memref<9x128x128xf32, #tpu.memory_space<vmem>>, %arg4: memref<9x16x64xf32, #tpu.memory_space<vmem>>, %arg5: memref<9x128x128xf32, #tpu.memory_space<vmem>>, %arg6: memref<9x16x16xf32, #tpu.memory_space<vmem>>, %arg7: memref<9x128x128xf32, #tpu.memory_space<vmem>>, %arg8: memref<8x16x16xf32, #tpu.memory_space<vmem>>, %arg9: memref<8x128x128xf32, #tpu.memory_space<vmem>>, %arg10: memref<8x1x128xf32, #tpu.memory_space<vmem>>, %arg11: memref<1x16x128xf32, #tpu.memory_space<vmem>>) attributes {dimension_semantics = [#tpu.dimension_semantics<parallel>], iteration_bounds = array<i64: 2>, scalar_prefetch = 0 : i64, scratch_operands = 0 : i64, tpu.core_type = #tpu.core_type<tc>, window_params = [{transform_indices = @transform_0, window_bounds = array<i64: 1, 256, 128>}, {pipeline_mode = #tpu.pipeline_mode<synchronous>, transform_indices = @transform_1, window_bounds = array<i64: 9, 64, 256>}, {pipeline_mode = #tpu.pipeline_mode<synchronous>, transform_indices = @transform_2, window_bounds = array<i64: 9, 128, 128>}, {pipeline_mode = #tpu.pipeline_mode<synchronous>, transform_indices = @transform_3, window_bounds = array<i64: 9, 16, 64>}, {pipeline_mode = #tpu.pipeline_mode<synchronous>, transform_indices = @transform_4, window_bounds = array<i64: 9, 128, 128>}, {pipeline_mode = #tpu.pipeline_mode<synchronous>, transform_indices = @transform_5, window_bounds = array<i64: 9, 16, 16>}, {pipeline_mode = #tpu.pipeline_mode<synchronous>, transform_indices = @transform_6, window_bounds = array<i64: 9, 128, 128>}, {pipeline_mode = #tpu.pipeline_mode<synchronous>, transform_indices = @transform_7, window_bounds = array<i64: 8, 16, 16>}, {pipeline_mode = #tpu.pipeline_mode<synchronous>, transform_indices = @transform_8, window_bounds = array<i64: 8, 128, 128>}, {pipeline_mode = #tpu.pipeline_mode<synchronous>, transform_indices = @transform_9, window_bounds = array<i64: 8, 1, 128>}, {transform_indices = @transform_10, window_bounds = array<i64: 1, 16, 128>}]} {
    %c0 = arith.constant 0 : index
    %c0_0 = arith.constant 0 : index
    %c0_1 = arith.constant 0 : index
    %0 = vector.load %arg1[%c0, %c0_0, %c0_1] : memref<1x256x128xf32, #tpu.memory_space<vmem>>, vector<1x256x128xf32>
    %1 = vector.shape_cast %0 : vector<1x256x128xf32> to vector<256x128xf32>
    %c0_2 = arith.constant 0 : index
    %c0_3 = arith.constant 0 : index
    %c0_4 = arith.constant 0 : index
    %2 = vector.load %arg2[%c0_2, %c0_3, %c0_4] : memref<9x64x256xf32, #tpu.memory_space<vmem>>, vector<1x64x256xf32>
    %3 = vector.shape_cast %2 : vector<1x64x256xf32> to vector<64x256xf32>
    %cst = arith.constant dense<0.000000e+00> : vector<64x128xf32>
    %4 = tpu.matmul %3, %1, %cst {dimension_numbers = #tpu.dot_dimension_numbers<[1], [0], [0], [1], [0, 0, 1, 1], [], []>} : vector<64x256xf32>, vector<256x128xf32>, vector<64x128xf32> -> vector<64x128xf32>
    %c0_5 = arith.constant 0 : index
    %c0_6 = arith.constant 0 : index
    %c0_7 = arith.constant 0 : index
    %5 = vector.load %arg3[%c0_5, %c0_6, %c0_7] : memref<9x128x128xf32, #tpu.memory_space<vmem>>, vector<1x128x128xf32>
    %6 = vector.shape_cast %5 : vector<1x128x128xf32> to vector<128x128xf32>
    %cst_8 = arith.constant dense<0.000000e+00> : vector<64x128xf32>
    %7 = tpu.matmul %4, %6, %cst_8 {dimension_numbers = #tpu.dot_dimension_numbers<[1], [0], [0], [1], [0, 0, 1, 1], [], []>} : vector<64x128xf32>, vector<128x128xf32>, vector<64x128xf32> -> vector<64x128xf32>
    %c1 = arith.constant 1 : index
    %c0_9 = arith.constant 0 : index
    %c0_10 = arith.constant 0 : index
    %8 = vector.load %arg2[%c1, %c0_9, %c0_10] : memref<9x64x256xf32, #tpu.memory_space<vmem>>, vector<1x64x256xf32>
    %9 = vector.shape_cast %8 : vector<1x64x256xf32> to vector<64x256xf32>
    %cst_11 = arith.constant dense<0.000000e+00> : vector<64x128xf32>
    %10 = tpu.matmul %9, %1, %cst_11 {dimension_numbers = #tpu.dot_dimension_numbers<[1], [0], [0], [1], [0, 0, 1, 1], [], []>} : vector<64x256xf32>, vector<256x128xf32>, vector<64x128xf32> -> vector<64x128xf32>
    %c1_12 = arith.constant 1 : index
    %c0_13 = arith.constant 0 : index
    %c0_14 = arith.constant 0 : index
    %11 = vector.load %arg3[%c1_12, %c0_13, %c0_14] : memref<9x128x128xf32, #tpu.memory_space<vmem>>, vector<1x128x128xf32>
    %12 = vector.shape_cast %11 : vector<1x128x128xf32> to vector<128x128xf32>
    %cst_15 = arith.constant dense<0.000000e+00> : vector<64x128xf32>
    %13 = tpu.matmul %10, %12, %cst_15 {dimension_numbers = #tpu.dot_dimension_numbers<[1], [0], [0], [1], [0, 0, 1, 1], [], []>} : vector<64x128xf32>, vector<128x128xf32>, vector<64x128xf32> -> vector<64x128xf32>
    %14 = arith.addf %7, %13 : vector<64x128xf32>
    %c2 = arith.constant 2 : index
    %c0_16 = arith.constant 0 : index
    %c0_17 = arith.constant 0 : index
    %15 = vector.load %arg2[%c2, %c0_16, %c0_17] : memref<9x64x256xf32, #tpu.memory_space<vmem>>, vector<1x64x256xf32>
    %16 = vector.shape_cast %15 : vector<1x64x256xf32> to vector<64x256xf32>
    %cst_18 = arith.constant dense<0.000000e+00> : vector<64x128xf32>
    %17 = tpu.matmul %16, %1, %cst_18 {dimension_numbers = #tpu.dot_dimension_numbers<[1], [0], [0], [1], [0, 0, 1, 1], [], []>} : vector<64x256xf32>, vector<256x128xf32>, vector<64x128xf32> -> vector<64x128xf32>
    %c2_19 = arith.constant 2 : index
    %c0_20 = arith.constant 0 : index
    %c0_21 = arith.constant 0 : index
    %18 = vector.load %arg3[%c2_19, %c0_20, %c0_21] : memref<9x128x128xf32, #tpu.memory_space<vmem>>, vector<1x128x128xf32>
    %19 = vector.shape_cast %18 : vector<1x128x128xf32> to vector<128x128xf32>
    %cst_22 = arith.constant dense<0.000000e+00> : vector<64x128xf32>
    %20 = tpu.matmul %17, %19, %cst_22 {dimension_numbers = #tpu.dot_dimension_numbers<[1], [0], [0], [1], [0, 0, 1, 1], [], []>} : vector<64x128xf32>, vector<128x128xf32>, vector<64x128xf32> -> vector<64x128xf32>
    %21 = arith.addf %14, %20 : vector<64x128xf32>
    %c3 = arith.constant 3 : index
    %c0_23 = arith.constant 0 : index
    %c0_24 = arith.constant 0 : index
    %22 = vector.load %arg2[%c3, %c0_23, %c0_24] : memref<9x64x256xf32, #tpu.memory_space<vmem>>, vector<1x64x256xf32>
    %23 = vector.shape_cast %22 : vector<1x64x256xf32> to vector<64x256xf32>
    %cst_25 = arith.constant dense<0.000000e+00> : vector<64x128xf32>
    %24 = tpu.matmul %23, %1, %cst_25 {dimension_numbers = #tpu.dot_dimension_numbers<[1], [0], [0], [1], [0, 0, 1, 1], [], []>} : vector<64x256xf32>, vector<256x128xf32>, vector<64x128xf32> -> vector<64x128xf32>
    %c3_26 = arith.constant 3 : index
    %c0_27 = arith.constant 0 : index
    %c0_28 = arith.constant 0 : index
    %25 = vector.load %arg3[%c3_26, %c0_27, %c0_28] : memref<9x128x128xf32, #tpu.memory_space<vmem>>, vector<1x128x128xf32>
    %26 = vector.shape_cast %25 : vector<1x128x128xf32> to vector<128x128xf32>
    %cst_29 = arith.constant dense<0.000000e+00> : vector<64x128xf32>
    %27 = tpu.matmul %24, %26, %cst_29 {dimension_numbers = #tpu.dot_dimension_numbers<[1], [0], [0], [1], [0, 0, 1, 1], [], []>} : vector<64x128xf32>, vector<128x128xf32>, vector<64x128xf32> -> vector<64x128xf32>
    %28 = arith.addf %21, %27 : vector<64x128xf32>
    %c4 = arith.constant 4 : index
    %c0_30 = arith.constant 0 : index
    %c0_31 = arith.constant 0 : index
    %29 = vector.load %arg2[%c4, %c0_30, %c0_31] : memref<9x64x256xf32, #tpu.memory_space<vmem>>, vector<1x64x256xf32>
    %30 = vector.shape_cast %29 : vector<1x64x256xf32> to vector<64x256xf32>
    %cst_32 = arith.constant dense<0.000000e+00> : vector<64x128xf32>
    %31 = tpu.matmul %30, %1, %cst_32 {dimension_numbers = #tpu.dot_dimension_numbers<[1], [0], [0], [1], [0, 0, 1, 1], [], []>} : vector<64x256xf32>, vector<256x128xf32>, vector<64x128xf32> -> vector<64x128xf32>
    %c4_33 = arith.constant 4 : index
    %c0_34 = arith.constant 0 : index
    %c0_35 = arith.constant 0 : index
    %32 = vector.load %arg3[%c4_33, %c0_34, %c0_35] : memref<9x128x128xf32, #tpu.memory_space<vmem>>, vector<1x128x128xf32>
    %33 = vector.shape_cast %32 : vector<1x128x128xf32> to vector<128x128xf32>
    %cst_36 = arith.constant dense<0.000000e+00> : vector<64x128xf32>
    %34 = tpu.matmul %31, %33, %cst_36 {dimension_numbers = #tpu.dot_dimension_numbers<[1], [0], [0], [1], [0, 0, 1, 1], [], []>} : vector<64x128xf32>, vector<128x128xf32>, vector<64x128xf32> -> vector<64x128xf32>
    %35 = arith.addf %28, %34 : vector<64x128xf32>
    %c5 = arith.constant 5 : index
    %c0_37 = arith.constant 0 : index
    %c0_38 = arith.constant 0 : index
    %36 = vector.load %arg2[%c5, %c0_37, %c0_38] : memref<9x64x256xf32, #tpu.memory_space<vmem>>, vector<1x64x256xf32>
    %37 = vector.shape_cast %36 : vector<1x64x256xf32> to vector<64x256xf32>
    %cst_39 = arith.constant dense<0.000000e+00> : vector<64x128xf32>
    %38 = tpu.matmul %37, %1, %cst_39 {dimension_numbers = #tpu.dot_dimension_numbers<[1], [0], [0], [1], [0, 0, 1, 1], [], []>} : vector<64x256xf32>, vector<256x128xf32>, vector<64x128xf32> -> vector<64x128xf32>
    %c5_40 = arith.constant 5 : index
    %c0_41 = arith.constant 0 : index
    %c0_42 = arith.constant 0 : index
    %39 = vector.load %arg3[%c5_40, %c0_41, %c0_42] : memref<9x128x128xf32, #tpu.memory_space<vmem>>, vector<1x128x128xf32>
    %40 = vector.shape_cast %39 : vector<1x128x128xf32> to vector<128x128xf32>
    %cst_43 = arith.constant dense<0.000000e+00> : vector<64x128xf32>
    %41 = tpu.matmul %38, %40, %cst_43 {dimension_numbers = #tpu.dot_dimension_numbers<[1], [0], [0], [1], [0, 0, 1, 1], [], []>} : vector<64x128xf32>, vector<128x128xf32>, vector<64x128xf32> -> vector<64x128xf32>
    %42 = arith.addf %35, %41 : vector<64x128xf32>
    %c6 = arith.constant 6 : index
    %c0_44 = arith.constant 0 : index
    %c0_45 = arith.constant 0 : index
    %43 = vector.load %arg2[%c6, %c0_44, %c0_45] : memref<9x64x256xf32, #tpu.memory_space<vmem>>, vector<1x64x256xf32>
    %44 = vector.shape_cast %43 : vector<1x64x256xf32> to vector<64x256xf32>
    %cst_46 = arith.constant dense<0.000000e+00> : vector<64x128xf32>
    %45 = tpu.matmul %44, %1, %cst_46 {dimension_numbers = #tpu.dot_dimension_numbers<[1], [0], [0], [1], [0, 0, 1, 1], [], []>} : vector<64x256xf32>, vector<256x128xf32>, vector<64x128xf32> -> vector<64x128xf32>
    %c6_47 = arith.constant 6 : index
    %c0_48 = arith.constant 0 : index
    %c0_49 = arith.constant 0 : index
    %46 = vector.load %arg3[%c6_47, %c0_48, %c0_49] : memref<9x128x128xf32, #tpu.memory_space<vmem>>, vector<1x128x128xf32>
    %47 = vector.shape_cast %46 : vector<1x128x128xf32> to vector<128x128xf32>
    %cst_50 = arith.constant dense<0.000000e+00> : vector<64x128xf32>
    %48 = tpu.matmul %45, %47, %cst_50 {dimension_numbers = #tpu.dot_dimension_numbers<[1], [0], [0], [1], [0, 0, 1, 1], [], []>} : vector<64x128xf32>, vector<128x128xf32>, vector<64x128xf32> -> vector<64x128xf32>
    %49 = arith.addf %42, %48 : vector<64x128xf32>
    %c7 = arith.constant 7 : index
    %c0_51 = arith.constant 0 : index
    %c0_52 = arith.constant 0 : index
    %50 = vector.load %arg2[%c7, %c0_51, %c0_52] : memref<9x64x256xf32, #tpu.memory_space<vmem>>, vector<1x64x256xf32>
    %51 = vector.shape_cast %50 : vector<1x64x256xf32> to vector<64x256xf32>
    %cst_53 = arith.constant dense<0.000000e+00> : vector<64x128xf32>
    %52 = tpu.matmul %51, %1, %cst_53 {dimension_numbers = #tpu.dot_dimension_numbers<[1], [0], [0], [1], [0, 0, 1, 1], [], []>} : vector<64x256xf32>, vector<256x128xf32>, vector<64x128xf32> -> vector<64x128xf32>
    %c7_54 = arith.constant 7 : index
    %c0_55 = arith.constant 0 : index
    %c0_56 = arith.constant 0 : index
    %53 = vector.load %arg3[%c7_54, %c0_55, %c0_56] : memref<9x128x128xf32, #tpu.memory_space<vmem>>, vector<1x128x128xf32>
    %54 = vector.shape_cast %53 : vector<1x128x128xf32> to vector<128x128xf32>
    %cst_57 = arith.constant dense<0.000000e+00> : vector<64x128xf32>
    %55 = tpu.matmul %52, %54, %cst_57 {dimension_numbers = #tpu.dot_dimension_numbers<[1], [0], [0], [1], [0, 0, 1, 1], [], []>} : vector<64x128xf32>, vector<128x128xf32>, vector<64x128xf32> -> vector<64x128xf32>
    %56 = arith.addf %49, %55 : vector<64x128xf32>
    %c8 = arith.constant 8 : index
    %c0_58 = arith.constant 0 : index
    %c0_59 = arith.constant 0 : index
    %57 = vector.load %arg2[%c8, %c0_58, %c0_59] : memref<9x64x256xf32, #tpu.memory_space<vmem>>, vector<1x64x256xf32>
    %58 = vector.shape_cast %57 : vector<1x64x256xf32> to vector<64x256xf32>
    %cst_60 = arith.constant dense<0.000000e+00> : vector<64x128xf32>
    %59 = tpu.matmul %58, %1, %cst_60 {dimension_numbers = #tpu.dot_dimension_numbers<[1], [0], [0], [1], [0, 0, 1, 1], [], []>} : vector<64x256xf32>, vector<256x128xf32>, vector<64x128xf32> -> vector<64x128xf32>
    %c8_61 = arith.constant 8 : index
    %c0_62 = arith.constant 0 : index
    %c0_63 = arith.constant 0 : index
    %60 = vector.load %arg3[%c8_61, %c0_62, %c0_63] : memref<9x128x128xf32, #tpu.memory_space<vmem>>, vector<1x128x128xf32>
    %61 = vector.shape_cast %60 : vector<1x128x128xf32> to vector<128x128xf32>
    %cst_64 = arith.constant dense<0.000000e+00> : vector<64x128xf32>
    %62 = tpu.matmul %59, %61, %cst_64 {dimension_numbers = #tpu.dot_dimension_numbers<[1], [0], [0], [1], [0, 0, 1, 1], [], []>} : vector<64x128xf32>, vector<128x128xf32>, vector<64x128xf32> -> vector<64x128xf32>
    %63 = arith.addf %56, %62 : vector<64x128xf32>
    %c0_65 = arith.constant 0 : index
    %c0_66 = arith.constant 0 : index
    %c0_67 = arith.constant 0 : index
    %64 = vector.load %arg10[%c0_65, %c0_66, %c0_67] : memref<8x1x128xf32, #tpu.memory_space<vmem>>, vector<1x1x128xf32>
    %65 = vector.shape_cast %64 : vector<1x1x128xf32> to vector<1x128xf32>
    %66 = vector.broadcast %65 : vector<1x128xf32> to vector<64x128xf32>
    %67 = arith.addf %63, %66 : vector<64x128xf32>
    %68 = math.absf %67 : vector<64x128xf32>
    %cst_68 = arith.constant 0.000000e+00 : f32
    %69 = vector.broadcast %cst_68 : f32 to vector<64x128xf32>
    %70 = arith.subf %69, %68 : vector<64x128xf32>
    %71 = math.exp %70 : vector<64x128xf32>
    %cst_69 = arith.constant 1.000000e+00 : f32
    %72 = vector.broadcast %cst_69 : f32 to vector<64x128xf32>
    %73 = arith.addf %72, %71 : vector<64x128xf32>
    %74 = tpu.reciprocal %73 {approx = true} : vector<64x128xf32> -> vector<64x128xf32>
    %75 = arith.mulf %67, %74 : vector<64x128xf32>
    %cst_70 = arith.constant 0.000000e+00 : f32
    %76 = vector.broadcast %cst_70 : f32 to vector<64x128xf32>
    %77 = arith.cmpf oge, %67, %76 : vector<64x128xf32>
    %cst_71 = arith.constant 1.000000e+00 : f32
    %78 = vector.broadcast %cst_71 : f32 to vector<64x128xf32>
    %79 = arith.select %77, %78, %71 : vector<64x128xi1>, vector<64x128xf32>
    %80 = arith.mulf %75, %79 : vector<64x128xf32>
    %c0_72 = arith.constant 0 : index
    %c0_73 = arith.constant 0 : index
    %c0_74 = arith.constant 0 : index
    %81 = vector.load %arg4[%c0_72, %c0_73, %c0_74] : memref<9x16x64xf32, #tpu.memory_space<vmem>>, vector<1x16x64xf32>
    %82 = vector.shape_cast %81 : vector<1x16x64xf32> to vector<16x64xf32>
    %cst_75 = arith.constant dense<0.000000e+00> : vector<16x128xf32>
    %83 = tpu.matmul %82, %80, %cst_75 {dimension_numbers = #tpu.dot_dimension_numbers<[1], [0], [0], [1], [0, 0, 1, 1], [], []>} : vector<16x64xf32>, vector<64x128xf32>, vector<16x128xf32> -> vector<16x128xf32>
    %c0_76 = arith.constant 0 : index
    %c0_77 = arith.constant 0 : index
    %c0_78 = arith.constant 0 : index
    %84 = vector.load %arg5[%c0_76, %c0_77, %c0_78] : memref<9x128x128xf32, #tpu.memory_space<vmem>>, vector<1x128x128xf32>
    %85 = vector.shape_cast %84 : vector<1x128x128xf32> to vector<128x128xf32>
    %cst_79 = arith.constant dense<0.000000e+00> : vector<16x128xf32>
    %86 = tpu.matmul %83, %85, %cst_79 {dimension_numbers = #tpu.dot_dimension_numbers<[1], [0], [0], [1], [0, 0, 1, 1], [], []>} : vector<16x128xf32>, vector<128x128xf32>, vector<16x128xf32> -> vector<16x128xf32>
    %c1_80 = arith.constant 1 : index
    %c0_81 = arith.constant 0 : index
    %c0_82 = arith.constant 0 : index
    %87 = vector.load %arg4[%c1_80, %c0_81, %c0_82] : memref<9x16x64xf32, #tpu.memory_space<vmem>>, vector<1x16x64xf32>
    %88 = vector.shape_cast %87 : vector<1x16x64xf32> to vector<16x64xf32>
    %cst_83 = arith.constant dense<0.000000e+00> : vector<16x128xf32>
    %89 = tpu.matmul %88, %80, %cst_83 {dimension_numbers = #tpu.dot_dimension_numbers<[1], [0], [0], [1], [0, 0, 1, 1], [], []>} : vector<16x64xf32>, vector<64x128xf32>, vector<16x128xf32> -> vector<16x128xf32>
    %c1_84 = arith.constant 1 : index
    %c0_85 = arith.constant 0 : index
    %c0_86 = arith.constant 0 : index
    %90 = vector.load %arg5[%c1_84, %c0_85, %c0_86] : memref<9x128x128xf32, #tpu.memory_space<vmem>>, vector<1x128x128xf32>
    %91 = vector.shape_cast %90 : vector<1x128x128xf32> to vector<128x128xf32>
    %cst_87 = arith.constant dense<0.000000e+00> : vector<16x128xf32>
    %92 = tpu.matmul %89, %91, %cst_87 {dimension_numbers = #tpu.dot_dimension_numbers<[1], [0], [0], [1], [0, 0, 1, 1], [], []>} : vector<16x128xf32>, vector<128x128xf32>, vector<16x128xf32> -> vector<16x128xf32>
    %93 = arith.addf %86, %92 : vector<16x128xf32>
    %c2_88 = arith.constant 2 : index
    %c0_89 = arith.constant 0 : index
    %c0_90 = arith.constant 0 : index
    %94 = vector.load %arg4[%c2_88, %c0_89, %c0_90] : memref<9x16x64xf32, #tpu.memory_space<vmem>>, vector<1x16x64xf32>
    %95 = vector.shape_cast %94 : vector<1x16x64xf32> to vector<16x64xf32>
    %cst_91 = arith.constant dense<0.000000e+00> : vector<16x128xf32>
    %96 = tpu.matmul %95, %80, %cst_91 {dimension_numbers = #tpu.dot_dimension_numbers<[1], [0], [0], [1], [0, 0, 1, 1], [], []>} : vector<16x64xf32>, vector<64x128xf32>, vector<16x128xf32> -> vector<16x128xf32>
    %c2_92 = arith.constant 2 : index
    %c0_93 = arith.constant 0 : index
    %c0_94 = arith.constant 0 : index
    %97 = vector.load %arg5[%c2_92, %c0_93, %c0_94] : memref<9x128x128xf32, #tpu.memory_space<vmem>>, vector<1x128x128xf32>
    %98 = vector.shape_cast %97 : vector<1x128x128xf32> to vector<128x128xf32>
    %cst_95 = arith.constant dense<0.000000e+00> : vector<16x128xf32>
    %99 = tpu.matmul %96, %98, %cst_95 {dimension_numbers = #tpu.dot_dimension_numbers<[1], [0], [0], [1], [0, 0, 1, 1], [], []>} : vector<16x128xf32>, vector<128x128xf32>, vector<16x128xf32> -> vector<16x128xf32>
    %100 = arith.addf %93, %99 : vector<16x128xf32>
    %c3_96 = arith.constant 3 : index
    %c0_97 = arith.constant 0 : index
    %c0_98 = arith.constant 0 : index
    %101 = vector.load %arg4[%c3_96, %c0_97, %c0_98] : memref<9x16x64xf32, #tpu.memory_space<vmem>>, vector<1x16x64xf32>
    %102 = vector.shape_cast %101 : vector<1x16x64xf32> to vector<16x64xf32>
    %cst_99 = arith.constant dense<0.000000e+00> : vector<16x128xf32>
    %103 = tpu.matmul %102, %80, %cst_99 {dimension_numbers = #tpu.dot_dimension_numbers<[1], [0], [0], [1], [0, 0, 1, 1], [], []>} : vector<16x64xf32>, vector<64x128xf32>, vector<16x128xf32> -> vector<16x128xf32>
    %c3_100 = arith.constant 3 : index
    %c0_101 = arith.constant 0 : index
    %c0_102 = arith.constant 0 : index
    %104 = vector.load %arg5[%c3_100, %c0_101, %c0_102] : memref<9x128x128xf32, #tpu.memory_space<vmem>>, vector<1x128x128xf32>
    %105 = vector.shape_cast %104 : vector<1x128x128xf32> to vector<128x128xf32>
    %cst_103 = arith.constant dense<0.000000e+00> : vector<16x128xf32>
    %106 = tpu.matmul %103, %105, %cst_103 {dimension_numbers = #tpu.dot_dimension_numbers<[1], [0], [0], [1], [0, 0, 1, 1], [], []>} : vector<16x128xf32>, vector<128x128xf32>, vector<16x128xf32> -> vector<16x128xf32>
    %107 = arith.addf %100, %106 : vector<16x128xf32>
    %c4_104 = arith.constant 4 : index
    %c0_105 = arith.constant 0 : index
    %c0_106 = arith.constant 0 : index
    %108 = vector.load %arg4[%c4_104, %c0_105, %c0_106] : memref<9x16x64xf32, #tpu.memory_space<vmem>>, vector<1x16x64xf32>
    %109 = vector.shape_cast %108 : vector<1x16x64xf32> to vector<16x64xf32>
    %cst_107 = arith.constant dense<0.000000e+00> : vector<16x128xf32>
    %110 = tpu.matmul %109, %80, %cst_107 {dimension_numbers = #tpu.dot_dimension_numbers<[1], [0], [0], [1], [0, 0, 1, 1], [], []>} : vector<16x64xf32>, vector<64x128xf32>, vector<16x128xf32> -> vector<16x128xf32>
    %c4_108 = arith.constant 4 : index
    %c0_109 = arith.constant 0 : index
    %c0_110 = arith.constant 0 : index
    %111 = vector.load %arg5[%c4_108, %c0_109, %c0_110] : memref<9x128x128xf32, #tpu.memory_space<vmem>>, vector<1x128x128xf32>
    %112 = vector.shape_cast %111 : vector<1x128x128xf32> to vector<128x128xf32>
    %cst_111 = arith.constant dense<0.000000e+00> : vector<16x128xf32>
    %113 = tpu.matmul %110, %112, %cst_111 {dimension_numbers = #tpu.dot_dimension_numbers<[1], [0], [0], [1], [0, 0, 1, 1], [], []>} : vector<16x128xf32>, vector<128x128xf32>, vector<16x128xf32> -> vector<16x128xf32>
    %114 = arith.addf %107, %113 : vector<16x128xf32>
    %c5_112 = arith.constant 5 : index
    %c0_113 = arith.constant 0 : index
    %c0_114 = arith.constant 0 : index
    %115 = vector.load %arg4[%c5_112, %c0_113, %c0_114] : memref<9x16x64xf32, #tpu.memory_space<vmem>>, vector<1x16x64xf32>
    %116 = vector.shape_cast %115 : vector<1x16x64xf32> to vector<16x64xf32>
    %cst_115 = arith.constant dense<0.000000e+00> : vector<16x128xf32>
    %117 = tpu.matmul %116, %80, %cst_115 {dimension_numbers = #tpu.dot_dimension_numbers<[1], [0], [0], [1], [0, 0, 1, 1], [], []>} : vector<16x64xf32>, vector<64x128xf32>, vector<16x128xf32> -> vector<16x128xf32>
    %c5_116 = arith.constant 5 : index
    %c0_117 = arith.constant 0 : index
    %c0_118 = arith.constant 0 : index
    %118 = vector.load %arg5[%c5_116, %c0_117, %c0_118] : memref<9x128x128xf32, #tpu.memory_space<vmem>>, vector<1x128x128xf32>
    %119 = vector.shape_cast %118 : vector<1x128x128xf32> to vector<128x128xf32>
    %cst_119 = arith.constant dense<0.000000e+00> : vector<16x128xf32>
    %120 = tpu.matmul %117, %119, %cst_119 {dimension_numbers = #tpu.dot_dimension_numbers<[1], [0], [0], [1], [0, 0, 1, 1], [], []>} : vector<16x128xf32>, vector<128x128xf32>, vector<16x128xf32> -> vector<16x128xf32>
    %121 = arith.addf %114, %120 : vector<16x128xf32>
    %c6_120 = arith.constant 6 : index
    %c0_121 = arith.constant 0 : index
    %c0_122 = arith.constant 0 : index
    %122 = vector.load %arg4[%c6_120, %c0_121, %c0_122] : memref<9x16x64xf32, #tpu.memory_space<vmem>>, vector<1x16x64xf32>
    %123 = vector.shape_cast %122 : vector<1x16x64xf32> to vector<16x64xf32>
    %cst_123 = arith.constant dense<0.000000e+00> : vector<16x128xf32>
    %124 = tpu.matmul %123, %80, %cst_123 {dimension_numbers = #tpu.dot_dimension_numbers<[1], [0], [0], [1], [0, 0, 1, 1], [], []>} : vector<16x64xf32>, vector<64x128xf32>, vector<16x128xf32> -> vector<16x128xf32>
    %c6_124 = arith.constant 6 : index
    %c0_125 = arith.constant 0 : index
    %c0_126 = arith.constant 0 : index
    %125 = vector.load %arg5[%c6_124, %c0_125, %c0_126] : memref<9x128x128xf32, #tpu.memory_space<vmem>>, vector<1x128x128xf32>
    %126 = vector.shape_cast %125 : vector<1x128x128xf32> to vector<128x128xf32>
    %cst_127 = arith.constant dense<0.000000e+00> : vector<16x128xf32>
    %127 = tpu.matmul %124, %126, %cst_127 {dimension_numbers = #tpu.dot_dimension_numbers<[1], [0], [0], [1], [0, 0, 1, 1], [], []>} : vector<16x128xf32>, vector<128x128xf32>, vector<16x128xf32> -> vector<16x128xf32>
    %128 = arith.addf %121, %127 : vector<16x128xf32>
    %c7_128 = arith.constant 7 : index
    %c0_129 = arith.constant 0 : index
    %c0_130 = arith.constant 0 : index
    %129 = vector.load %arg4[%c7_128, %c0_129, %c0_130] : memref<9x16x64xf32, #tpu.memory_space<vmem>>, vector<1x16x64xf32>
    %130 = vector.shape_cast %129 : vector<1x16x64xf32> to vector<16x64xf32>
    %cst_131 = arith.constant dense<0.000000e+00> : vector<16x128xf32>
    %131 = tpu.matmul %130, %80, %cst_131 {dimension_numbers = #tpu.dot_dimension_numbers<[1], [0], [0], [1], [0, 0, 1, 1], [], []>} : vector<16x64xf32>, vector<64x128xf32>, vector<16x128xf32> -> vector<16x128xf32>
    %c7_132 = arith.constant 7 : index
    %c0_133 = arith.constant 0 : index
    %c0_134 = arith.constant 0 : index
    %132 = vector.load %arg5[%c7_132, %c0_133, %c0_134] : memref<9x128x128xf32, #tpu.memory_space<vmem>>, vector<1x128x128xf32>
    %133 = vector.shape_cast %132 : vector<1x128x128xf32> to vector<128x128xf32>
    %cst_135 = arith.constant dense<0.000000e+00> : vector<16x128xf32>
    %134 = tpu.matmul %131, %133, %cst_135 {dimension_numbers = #tpu.dot_dimension_numbers<[1], [0], [0], [1], [0, 0, 1, 1], [], []>} : vector<16x128xf32>, vector<128x128xf32>, vector<16x128xf32> -> vector<16x128xf32>
    %135 = arith.addf %128, %134 : vector<16x128xf32>
    %c8_136 = arith.constant 8 : index
    %c0_137 = arith.constant 0 : index
    %c0_138 = arith.constant 0 : index
    %136 = vector.load %arg4[%c8_136, %c0_137, %c0_138] : memref<9x16x64xf32, #tpu.memory_space<vmem>>, vector<1x16x64xf32>
    %137 = vector.shape_cast %136 : vector<1x16x64xf32> to vector<16x64xf32>
    %cst_139 = arith.constant dense<0.000000e+00> : vector<16x128xf32>
    %138 = tpu.matmul %137, %80, %cst_139 {dimension_numbers = #tpu.dot_dimension_numbers<[1], [0], [0], [1], [0, 0, 1, 1], [], []>} : vector<16x64xf32>, vector<64x128xf32>, vector<16x128xf32> -> vector<16x128xf32>
    %c8_140 = arith.constant 8 : index
    %c0_141 = arith.constant 0 : index
    %c0_142 = arith.constant 0 : index
    %139 = vector.load %arg5[%c8_140, %c0_141, %c0_142] : memref<9x128x128xf32, #tpu.memory_space<vmem>>, vector<1x128x128xf32>
    %140 = vector.shape_cast %139 : vector<1x128x128xf32> to vector<128x128xf32>
    %cst_143 = arith.constant dense<0.000000e+00> : vector<16x128xf32>
    %141 = tpu.matmul %138, %140, %cst_143 {dimension_numbers = #tpu.dot_dimension_numbers<[1], [0], [0], [1], [0, 0, 1, 1], [], []>} : vector<16x128xf32>, vector<128x128xf32>, vector<16x128xf32> -> vector<16x128xf32>
    %142 = arith.addf %135, %141 : vector<16x128xf32>
    %c1_144 = arith.constant 1 : index
    %c0_145 = arith.constant 0 : index
    %c0_146 = arith.constant 0 : index
    %143 = vector.load %arg10[%c1_144, %c0_145, %c0_146] : memref<8x1x128xf32, #tpu.memory_space<vmem>>, vector<1x1x128xf32>
    %144 = vector.shape_cast %143 : vector<1x1x128xf32> to vector<1x128xf32>
    %145 = vector.broadcast %144 : vector<1x128xf32> to vector<16x128xf32>
    %146 = arith.addf %142, %145 : vector<16x128xf32>
    %147 = math.absf %146 : vector<16x128xf32>
    %cst_147 = arith.constant 0.000000e+00 : f32
    %148 = vector.broadcast %cst_147 : f32 to vector<16x128xf32>
    %149 = arith.subf %148, %147 : vector<16x128xf32>
    %150 = math.exp %149 : vector<16x128xf32>
    %cst_148 = arith.constant 1.000000e+00 : f32
    %151 = vector.broadcast %cst_148 : f32 to vector<16x128xf32>
    %152 = arith.addf %151, %150 : vector<16x128xf32>
    %153 = tpu.reciprocal %152 {approx = true} : vector<16x128xf32> -> vector<16x128xf32>
    %154 = arith.mulf %146, %153 : vector<16x128xf32>
    %cst_149 = arith.constant 0.000000e+00 : f32
    %155 = vector.broadcast %cst_149 : f32 to vector<16x128xf32>
    %156 = arith.cmpf oge, %146, %155 : vector<16x128xf32>
    %cst_150 = arith.constant 1.000000e+00 : f32
    %157 = vector.broadcast %cst_150 : f32 to vector<16x128xf32>
    %158 = arith.select %156, %157, %150 : vector<16x128xi1>, vector<16x128xf32>
    %159 = arith.mulf %154, %158 : vector<16x128xf32>
    %c0_151 = arith.constant 0 : index
    %c0_152 = arith.constant 0 : index
    %c0_153 = arith.constant 0 : index
    %160 = vector.load %arg9[%c0_151, %c0_152, %c0_153] : memref<8x128x128xf32, #tpu.memory_space<vmem>>, vector<1x128x128xf32>
    %161 = vector.shape_cast %160 : vector<1x128x128xf32> to vector<128x128xf32>
    %cst_154 = arith.constant dense<0.000000e+00> : vector<16x128xf32>
    %162 = tpu.matmul %159, %161, %cst_154 {dimension_numbers = #tpu.dot_dimension_numbers<[1], [0], [0], [1], [0, 0, 1, 1], [], []>} : vector<16x128xf32>, vector<128x128xf32>, vector<16x128xf32> -> vector<16x128xf32>
    %c2_155 = arith.constant 2 : index
    %c0_156 = arith.constant 0 : index
    %c0_157 = arith.constant 0 : index
    %163 = vector.load %arg10[%c2_155, %c0_156, %c0_157] : memref<8x1x128xf32, #tpu.memory_space<vmem>>, vector<1x1x128xf32>
    %164 = vector.shape_cast %163 : vector<1x1x128xf32> to vector<1x128xf32>
    %165 = vector.broadcast %164 : vector<1x128xf32> to vector<16x128xf32>
    %166 = arith.addf %162, %165 : vector<16x128xf32>
    %167 = math.absf %166 : vector<16x128xf32>
    %cst_158 = arith.constant 0.000000e+00 : f32
    %168 = vector.broadcast %cst_158 : f32 to vector<16x128xf32>
    %169 = arith.subf %168, %167 : vector<16x128xf32>
    %170 = math.exp %169 : vector<16x128xf32>
    %cst_159 = arith.constant 1.000000e+00 : f32
    %171 = vector.broadcast %cst_159 : f32 to vector<16x128xf32>
    %172 = arith.addf %171, %170 : vector<16x128xf32>
    %173 = tpu.reciprocal %172 {approx = true} : vector<16x128xf32> -> vector<16x128xf32>
    %174 = arith.mulf %166, %173 : vector<16x128xf32>
    %cst_160 = arith.constant 0.000000e+00 : f32
    %175 = vector.broadcast %cst_160 : f32 to vector<16x128xf32>
    %176 = arith.cmpf oge, %166, %175 : vector<16x128xf32>
    %cst_161 = arith.constant 1.000000e+00 : f32
    %177 = vector.broadcast %cst_161 : f32 to vector<16x128xf32>
    %178 = arith.select %176, %177, %170 : vector<16x128xi1>, vector<16x128xf32>
    %179 = arith.mulf %174, %178 : vector<16x128xf32>
    %c1_162 = arith.constant 1 : index
    %c0_163 = arith.constant 0 : index
    %c0_164 = arith.constant 0 : index
    %180 = vector.load %arg9[%c1_162, %c0_163, %c0_164] : memref<8x128x128xf32, #tpu.memory_space<vmem>>, vector<1x128x128xf32>
    %181 = vector.shape_cast %180 : vector<1x128x128xf32> to vector<128x128xf32>
    %cst_165 = arith.constant dense<0.000000e+00> : vector<16x128xf32>
    %182 = tpu.matmul %179, %181, %cst_165 {dimension_numbers = #tpu.dot_dimension_numbers<[1], [0], [0], [1], [0, 0, 1, 1], [], []>} : vector<16x128xf32>, vector<128x128xf32>, vector<16x128xf32> -> vector<16x128xf32>
    %c3_166 = arith.constant 3 : index
    %c0_167 = arith.constant 0 : index
    %c0_168 = arith.constant 0 : index
    %183 = vector.load %arg10[%c3_166, %c0_167, %c0_168] : memref<8x1x128xf32, #tpu.memory_space<vmem>>, vector<1x1x128xf32>
    %184 = vector.shape_cast %183 : vector<1x1x128xf32> to vector<1x128xf32>
    %185 = vector.broadcast %184 : vector<1x128xf32> to vector<16x128xf32>
    %186 = arith.addf %182, %185 : vector<16x128xf32>
    %187 = math.absf %186 : vector<16x128xf32>
    %cst_169 = arith.constant 0.000000e+00 : f32
    %188 = vector.broadcast %cst_169 : f32 to vector<16x128xf32>
    %189 = arith.subf %188, %187 : vector<16x128xf32>
    %190 = math.exp %189 : vector<16x128xf32>
    %cst_170 = arith.constant 1.000000e+00 : f32
    %191 = vector.broadcast %cst_170 : f32 to vector<16x128xf32>
    %192 = arith.addf %191, %190 : vector<16x128xf32>
    %193 = tpu.reciprocal %192 {approx = true} : vector<16x128xf32> -> vector<16x128xf32>
    %194 = arith.mulf %186, %193 : vector<16x128xf32>
    %cst_171 = arith.constant 0.000000e+00 : f32
    %195 = vector.broadcast %cst_171 : f32 to vector<16x128xf32>
    %196 = arith.cmpf oge, %186, %195 : vector<16x128xf32>
    %cst_172 = arith.constant 1.000000e+00 : f32
    %197 = vector.broadcast %cst_172 : f32 to vector<16x128xf32>
    %198 = arith.select %196, %197, %190 : vector<16x128xi1>, vector<16x128xf32>
    %199 = arith.mulf %194, %198 : vector<16x128xf32>
    %c0_173 = arith.constant 0 : index
    %c0_174 = arith.constant 0 : index
    %c0_175 = arith.constant 0 : index
    %200 = vector.load %arg6[%c0_173, %c0_174, %c0_175] : memref<9x16x16xf32, #tpu.memory_space<vmem>>, vector<1x16x16xf32>
    %201 = vector.shape_cast %200 : vector<1x16x16xf32> to vector<16x16xf32>
    %cst_176 = arith.constant dense<0.000000e+00> : vector<16x128xf32>
    %202 = tpu.matmul %201, %199, %cst_176 {dimension_numbers = #tpu.dot_dimension_numbers<[1], [0], [0], [1], [0, 0, 1, 1], [], []>} : vector<16x16xf32>, vector<16x128xf32>, vector<16x128xf32> -> vector<16x128xf32>
    %c0_177 = arith.constant 0 : index
    %c0_178 = arith.constant 0 : index
    %c0_179 = arith.constant 0 : index
    %203 = vector.load %arg7[%c0_177, %c0_178, %c0_179] : memref<9x128x128xf32, #tpu.memory_space<vmem>>, vector<1x128x128xf32>
    %204 = vector.shape_cast %203 : vector<1x128x128xf32> to vector<128x128xf32>
    %cst_180 = arith.constant dense<0.000000e+00> : vector<16x128xf32>
    %205 = tpu.matmul %202, %204, %cst_180 {dimension_numbers = #tpu.dot_dimension_numbers<[1], [0], [0], [1], [0, 0, 1, 1], [], []>} : vector<16x128xf32>, vector<128x128xf32>, vector<16x128xf32> -> vector<16x128xf32>
    %c1_181 = arith.constant 1 : index
    %c0_182 = arith.constant 0 : index
    %c0_183 = arith.constant 0 : index
    %206 = vector.load %arg6[%c1_181, %c0_182, %c0_183] : memref<9x16x16xf32, #tpu.memory_space<vmem>>, vector<1x16x16xf32>
    %207 = vector.shape_cast %206 : vector<1x16x16xf32> to vector<16x16xf32>
    %cst_184 = arith.constant dense<0.000000e+00> : vector<16x128xf32>
    %208 = tpu.matmul %207, %199, %cst_184 {dimension_numbers = #tpu.dot_dimension_numbers<[1], [0], [0], [1], [0, 0, 1, 1], [], []>} : vector<16x16xf32>, vector<16x128xf32>, vector<16x128xf32> -> vector<16x128xf32>
    %c1_185 = arith.constant 1 : index
    %c0_186 = arith.constant 0 : index
    %c0_187 = arith.constant 0 : index
    %209 = vector.load %arg7[%c1_185, %c0_186, %c0_187] : memref<9x128x128xf32, #tpu.memory_space<vmem>>, vector<1x128x128xf32>
    %210 = vector.shape_cast %209 : vector<1x128x128xf32> to vector<128x128xf32>
    %cst_188 = arith.constant dense<0.000000e+00> : vector<16x128xf32>
    %211 = tpu.matmul %208, %210, %cst_188 {dimension_numbers = #tpu.dot_dimension_numbers<[1], [0], [0], [1], [0, 0, 1, 1], [], []>} : vector<16x128xf32>, vector<128x128xf32>, vector<16x128xf32> -> vector<16x128xf32>
    %212 = arith.addf %205, %211 : vector<16x128xf32>
    %c2_189 = arith.constant 2 : index
    %c0_190 = arith.constant 0 : index
    %c0_191 = arith.constant 0 : index
    %213 = vector.load %arg6[%c2_189, %c0_190, %c0_191] : memref<9x16x16xf32, #tpu.memory_space<vmem>>, vector<1x16x16xf32>
    %214 = vector.shape_cast %213 : vector<1x16x16xf32> to vector<16x16xf32>
    %cst_192 = arith.constant dense<0.000000e+00> : vector<16x128xf32>
    %215 = tpu.matmul %214, %199, %cst_192 {dimension_numbers = #tpu.dot_dimension_numbers<[1], [0], [0], [1], [0, 0, 1, 1], [], []>} : vector<16x16xf32>, vector<16x128xf32>, vector<16x128xf32> -> vector<16x128xf32>
    %c2_193 = arith.constant 2 : index
    %c0_194 = arith.constant 0 : index
    %c0_195 = arith.constant 0 : index
    %216 = vector.load %arg7[%c2_193, %c0_194, %c0_195] : memref<9x128x128xf32, #tpu.memory_space<vmem>>, vector<1x128x128xf32>
    %217 = vector.shape_cast %216 : vector<1x128x128xf32> to vector<128x128xf32>
    %cst_196 = arith.constant dense<0.000000e+00> : vector<16x128xf32>
    %218 = tpu.matmul %215, %217, %cst_196 {dimension_numbers = #tpu.dot_dimension_numbers<[1], [0], [0], [1], [0, 0, 1, 1], [], []>} : vector<16x128xf32>, vector<128x128xf32>, vector<16x128xf32> -> vector<16x128xf32>
    %219 = arith.addf %212, %218 : vector<16x128xf32>
    %c3_197 = arith.constant 3 : index
    %c0_198 = arith.constant 0 : index
    %c0_199 = arith.constant 0 : index
    %220 = vector.load %arg6[%c3_197, %c0_198, %c0_199] : memref<9x16x16xf32, #tpu.memory_space<vmem>>, vector<1x16x16xf32>
    %221 = vector.shape_cast %220 : vector<1x16x16xf32> to vector<16x16xf32>
    %cst_200 = arith.constant dense<0.000000e+00> : vector<16x128xf32>
    %222 = tpu.matmul %221, %199, %cst_200 {dimension_numbers = #tpu.dot_dimension_numbers<[1], [0], [0], [1], [0, 0, 1, 1], [], []>} : vector<16x16xf32>, vector<16x128xf32>, vector<16x128xf32> -> vector<16x128xf32>
    %c3_201 = arith.constant 3 : index
    %c0_202 = arith.constant 0 : index
    %c0_203 = arith.constant 0 : index
    %223 = vector.load %arg7[%c3_201, %c0_202, %c0_203] : memref<9x128x128xf32, #tpu.memory_space<vmem>>, vector<1x128x128xf32>
    %224 = vector.shape_cast %223 : vector<1x128x128xf32> to vector<128x128xf32>
    %cst_204 = arith.constant dense<0.000000e+00> : vector<16x128xf32>
    %225 = tpu.matmul %222, %224, %cst_204 {dimension_numbers = #tpu.dot_dimension_numbers<[1], [0], [0], [1], [0, 0, 1, 1], [], []>} : vector<16x128xf32>, vector<128x128xf32>, vector<16x128xf32> -> vector<16x128xf32>
    %226 = arith.addf %219, %225 : vector<16x128xf32>
    %c4_205 = arith.constant 4 : index
    %c0_206 = arith.constant 0 : index
    %c0_207 = arith.constant 0 : index
    %227 = vector.load %arg6[%c4_205, %c0_206, %c0_207] : memref<9x16x16xf32, #tpu.memory_space<vmem>>, vector<1x16x16xf32>
    %228 = vector.shape_cast %227 : vector<1x16x16xf32> to vector<16x16xf32>
    %cst_208 = arith.constant dense<0.000000e+00> : vector<16x128xf32>
    %229 = tpu.matmul %228, %199, %cst_208 {dimension_numbers = #tpu.dot_dimension_numbers<[1], [0], [0], [1], [0, 0, 1, 1], [], []>} : vector<16x16xf32>, vector<16x128xf32>, vector<16x128xf32> -> vector<16x128xf32>
    %c4_209 = arith.constant 4 : index
    %c0_210 = arith.constant 0 : index
    %c0_211 = arith.constant 0 : index
    %230 = vector.load %arg7[%c4_209, %c0_210, %c0_211] : memref<9x128x128xf32, #tpu.memory_space<vmem>>, vector<1x128x128xf32>
    %231 = vector.shape_cast %230 : vector<1x128x128xf32> to vector<128x128xf32>
    %cst_212 = arith.constant dense<0.000000e+00> : vector<16x128xf32>
    %232 = tpu.matmul %229, %231, %cst_212 {dimension_numbers = #tpu.dot_dimension_numbers<[1], [0], [0], [1], [0, 0, 1, 1], [], []>} : vector<16x128xf32>, vector<128x128xf32>, vector<16x128xf32> -> vector<16x128xf32>
    %233 = arith.addf %226, %232 : vector<16x128xf32>
    %c5_213 = arith.constant 5 : index
    %c0_214 = arith.constant 0 : index
    %c0_215 = arith.constant 0 : index
    %234 = vector.load %arg6[%c5_213, %c0_214, %c0_215] : memref<9x16x16xf32, #tpu.memory_space<vmem>>, vector<1x16x16xf32>
    %235 = vector.shape_cast %234 : vector<1x16x16xf32> to vector<16x16xf32>
    %cst_216 = arith.constant dense<0.000000e+00> : vector<16x128xf32>
    %236 = tpu.matmul %235, %199, %cst_216 {dimension_numbers = #tpu.dot_dimension_numbers<[1], [0], [0], [1], [0, 0, 1, 1], [], []>} : vector<16x16xf32>, vector<16x128xf32>, vector<16x128xf32> -> vector<16x128xf32>
    %c5_217 = arith.constant 5 : index
    %c0_218 = arith.constant 0 : index
    %c0_219 = arith.constant 0 : index
    %237 = vector.load %arg7[%c5_217, %c0_218, %c0_219] : memref<9x128x128xf32, #tpu.memory_space<vmem>>, vector<1x128x128xf32>
    %238 = vector.shape_cast %237 : vector<1x128x128xf32> to vector<128x128xf32>
    %cst_220 = arith.constant dense<0.000000e+00> : vector<16x128xf32>
    %239 = tpu.matmul %236, %238, %cst_220 {dimension_numbers = #tpu.dot_dimension_numbers<[1], [0], [0], [1], [0, 0, 1, 1], [], []>} : vector<16x128xf32>, vector<128x128xf32>, vector<16x128xf32> -> vector<16x128xf32>
    %240 = arith.addf %233, %239 : vector<16x128xf32>
    %c6_221 = arith.constant 6 : index
    %c0_222 = arith.constant 0 : index
    %c0_223 = arith.constant 0 : index
    %241 = vector.load %arg6[%c6_221, %c0_222, %c0_223] : memref<9x16x16xf32, #tpu.memory_space<vmem>>, vector<1x16x16xf32>
    %242 = vector.shape_cast %241 : vector<1x16x16xf32> to vector<16x16xf32>
    %cst_224 = arith.constant dense<0.000000e+00> : vector<16x128xf32>
    %243 = tpu.matmul %242, %199, %cst_224 {dimension_numbers = #tpu.dot_dimension_numbers<[1], [0], [0], [1], [0, 0, 1, 1], [], []>} : vector<16x16xf32>, vector<16x128xf32>, vector<16x128xf32> -> vector<16x128xf32>
    %c6_225 = arith.constant 6 : index
    %c0_226 = arith.constant 0 : index
    %c0_227 = arith.constant 0 : index
    %244 = vector.load %arg7[%c6_225, %c0_226, %c0_227] : memref<9x128x128xf32, #tpu.memory_space<vmem>>, vector<1x128x128xf32>
    %245 = vector.shape_cast %244 : vector<1x128x128xf32> to vector<128x128xf32>
    %cst_228 = arith.constant dense<0.000000e+00> : vector<16x128xf32>
    %246 = tpu.matmul %243, %245, %cst_228 {dimension_numbers = #tpu.dot_dimension_numbers<[1], [0], [0], [1], [0, 0, 1, 1], [], []>} : vector<16x128xf32>, vector<128x128xf32>, vector<16x128xf32> -> vector<16x128xf32>
    %247 = arith.addf %240, %246 : vector<16x128xf32>
    %c7_229 = arith.constant 7 : index
    %c0_230 = arith.constant 0 : index
    %c0_231 = arith.constant 0 : index
    %248 = vector.load %arg6[%c7_229, %c0_230, %c0_231] : memref<9x16x16xf32, #tpu.memory_space<vmem>>, vector<1x16x16xf32>
    %249 = vector.shape_cast %248 : vector<1x16x16xf32> to vector<16x16xf32>
    %cst_232 = arith.constant dense<0.000000e+00> : vector<16x128xf32>
    %250 = tpu.matmul %249, %199, %cst_232 {dimension_numbers = #tpu.dot_dimension_numbers<[1], [0], [0], [1], [0, 0, 1, 1], [], []>} : vector<16x16xf32>, vector<16x128xf32>, vector<16x128xf32> -> vector<16x128xf32>
    %c7_233 = arith.constant 7 : index
    %c0_234 = arith.constant 0 : index
    %c0_235 = arith.constant 0 : index
    %251 = vector.load %arg7[%c7_233, %c0_234, %c0_235] : memref<9x128x128xf32, #tpu.memory_space<vmem>>, vector<1x128x128xf32>
    %252 = vector.shape_cast %251 : vector<1x128x128xf32> to vector<128x128xf32>
    %cst_236 = arith.constant dense<0.000000e+00> : vector<16x128xf32>
    %253 = tpu.matmul %250, %252, %cst_236 {dimension_numbers = #tpu.dot_dimension_numbers<[1], [0], [0], [1], [0, 0, 1, 1], [], []>} : vector<16x128xf32>, vector<128x128xf32>, vector<16x128xf32> -> vector<16x128xf32>
    %254 = arith.addf %247, %253 : vector<16x128xf32>
    %c8_237 = arith.constant 8 : index
    %c0_238 = arith.constant 0 : index
    %c0_239 = arith.constant 0 : index
    %255 = vector.load %arg6[%c8_237, %c0_238, %c0_239] : memref<9x16x16xf32, #tpu.memory_space<vmem>>, vector<1x16x16xf32>
    %256 = vector.shape_cast %255 : vector<1x16x16xf32> to vector<16x16xf32>
    %cst_240 = arith.constant dense<0.000000e+00> : vector<16x128xf32>
    %257 = tpu.matmul %256, %199, %cst_240 {dimension_numbers = #tpu.dot_dimension_numbers<[1], [0], [0], [1], [0, 0, 1, 1], [], []>} : vector<16x16xf32>, vector<16x128xf32>, vector<16x128xf32> -> vector<16x128xf32>
    %c8_241 = arith.constant 8 : index
    %c0_242 = arith.constant 0 : index
    %c0_243 = arith.constant 0 : index
    %258 = vector.load %arg7[%c8_241, %c0_242, %c0_243] : memref<9x128x128xf32, #tpu.memory_space<vmem>>, vector<1x128x128xf32>
    %259 = vector.shape_cast %258 : vector<1x128x128xf32> to vector<128x128xf32>
    %cst_244 = arith.constant dense<0.000000e+00> : vector<16x128xf32>
    %260 = tpu.matmul %257, %259, %cst_244 {dimension_numbers = #tpu.dot_dimension_numbers<[1], [0], [0], [1], [0, 0, 1, 1], [], []>} : vector<16x128xf32>, vector<128x128xf32>, vector<16x128xf32> -> vector<16x128xf32>
    %261 = arith.addf %254, %260 : vector<16x128xf32>
    %c4_245 = arith.constant 4 : index
    %c0_246 = arith.constant 0 : index
    %c0_247 = arith.constant 0 : index
    %262 = vector.load %arg10[%c4_245, %c0_246, %c0_247] : memref<8x1x128xf32, #tpu.memory_space<vmem>>, vector<1x1x128xf32>
    %263 = vector.shape_cast %262 : vector<1x1x128xf32> to vector<1x128xf32>
    %264 = vector.broadcast %263 : vector<1x128xf32> to vector<16x128xf32>
    %265 = arith.addf %261, %264 : vector<16x128xf32>
    %266 = math.absf %265 : vector<16x128xf32>
    %cst_248 = arith.constant 0.000000e+00 : f32
    %267 = vector.broadcast %cst_248 : f32 to vector<16x128xf32>
    %268 = arith.subf %267, %266 : vector<16x128xf32>
    %269 = math.exp %268 : vector<16x128xf32>
    %cst_249 = arith.constant 1.000000e+00 : f32
    %270 = vector.broadcast %cst_249 : f32 to vector<16x128xf32>
    %271 = arith.addf %270, %269 : vector<16x128xf32>
    %272 = tpu.reciprocal %271 {approx = true} : vector<16x128xf32> -> vector<16x128xf32>
    %273 = arith.mulf %265, %272 : vector<16x128xf32>
    %cst_250 = arith.constant 0.000000e+00 : f32
    %274 = vector.broadcast %cst_250 : f32 to vector<16x128xf32>
    %275 = arith.cmpf oge, %265, %274 : vector<16x128xf32>
    %cst_251 = arith.constant 1.000000e+00 : f32
    %276 = vector.broadcast %cst_251 : f32 to vector<16x128xf32>
    %277 = arith.select %275, %276, %269 : vector<16x128xi1>, vector<16x128xf32>
    %278 = arith.mulf %273, %277 : vector<16x128xf32>
    %279 = arith.addf %179, %278 : vector<16x128xf32>
    %c2_252 = arith.constant 2 : index
    %c0_253 = arith.constant 0 : index
    %c0_254 = arith.constant 0 : index
    %280 = vector.load %arg9[%c2_252, %c0_253, %c0_254] : memref<8x128x128xf32, #tpu.memory_space<vmem>>, vector<1x128x128xf32>
    %281 = vector.shape_cast %280 : vector<1x128x128xf32> to vector<128x128xf32>
    %cst_255 = arith.constant dense<0.000000e+00> : vector<16x128xf32>
    %282 = tpu.matmul %279, %281, %cst_255 {dimension_numbers = #tpu.dot_dimension_numbers<[1], [0], [0], [1], [0, 0, 1, 1], [], []>} : vector<16x128xf32>, vector<128x128xf32>, vector<16x128xf32> -> vector<16x128xf32>
    %c5_256 = arith.constant 5 : index
    %c0_257 = arith.constant 0 : index
    %c0_258 = arith.constant 0 : index
    %283 = vector.load %arg10[%c5_256, %c0_257, %c0_258] : memref<8x1x128xf32, #tpu.memory_space<vmem>>, vector<1x1x128xf32>
    %284 = vector.shape_cast %283 : vector<1x1x128xf32> to vector<1x128xf32>
    %285 = vector.broadcast %284 : vector<1x128xf32> to vector<16x128xf32>
    %286 = arith.addf %282, %285 : vector<16x128xf32>
    %287 = math.absf %286 : vector<16x128xf32>
    %cst_259 = arith.constant 0.000000e+00 : f32
    %288 = vector.broadcast %cst_259 : f32 to vector<16x128xf32>
    %289 = arith.subf %288, %287 : vector<16x128xf32>
    %290 = math.exp %289 : vector<16x128xf32>
    %cst_260 = arith.constant 1.000000e+00 : f32
    %291 = vector.broadcast %cst_260 : f32 to vector<16x128xf32>
    %292 = arith.addf %291, %290 : vector<16x128xf32>
    %293 = tpu.reciprocal %292 {approx = true} : vector<16x128xf32> -> vector<16x128xf32>
    %294 = arith.mulf %286, %293 : vector<16x128xf32>
    %cst_261 = arith.constant 0.000000e+00 : f32
    %295 = vector.broadcast %cst_261 : f32 to vector<16x128xf32>
    %296 = arith.cmpf oge, %286, %295 : vector<16x128xf32>
    %cst_262 = arith.constant 1.000000e+00 : f32
    %297 = vector.broadcast %cst_262 : f32 to vector<16x128xf32>
    %298 = arith.select %296, %297, %290 : vector<16x128xi1>, vector<16x128xf32>
    %299 = arith.mulf %294, %298 : vector<16x128xf32>
    %c3_263 = arith.constant 3 : index
    %c0_264 = arith.constant 0 : index
    %c0_265 = arith.constant 0 : index
    %300 = vector.load %arg9[%c3_263, %c0_264, %c0_265] : memref<8x128x128xf32, #tpu.memory_space<vmem>>, vector<1x128x128xf32>
    %301 = vector.shape_cast %300 : vector<1x128x128xf32> to vector<128x128xf32>
    %cst_266 = arith.constant dense<0.000000e+00> : vector<16x128xf32>
    %302 = tpu.matmul %299, %301, %cst_266 {dimension_numbers = #tpu.dot_dimension_numbers<[1], [0], [0], [1], [0, 0, 1, 1], [], []>} : vector<16x128xf32>, vector<128x128xf32>, vector<16x128xf32> -> vector<16x128xf32>
    %c6_267 = arith.constant 6 : index
    %c0_268 = arith.constant 0 : index
    %c0_269 = arith.constant 0 : index
    %303 = vector.load %arg10[%c6_267, %c0_268, %c0_269] : memref<8x1x128xf32, #tpu.memory_space<vmem>>, vector<1x1x128xf32>
    %304 = vector.shape_cast %303 : vector<1x1x128xf32> to vector<1x128xf32>
    %305 = vector.broadcast %304 : vector<1x128xf32> to vector<16x128xf32>
    %306 = arith.addf %302, %305 : vector<16x128xf32>
    %307 = math.absf %306 : vector<16x128xf32>
    %cst_270 = arith.constant 0.000000e+00 : f32
    %308 = vector.broadcast %cst_270 : f32 to vector<16x128xf32>
    %309 = arith.subf %308, %307 : vector<16x128xf32>
    %310 = math.exp %309 : vector<16x128xf32>
    %cst_271 = arith.constant 1.000000e+00 : f32
    %311 = vector.broadcast %cst_271 : f32 to vector<16x128xf32>
    %312 = arith.addf %311, %310 : vector<16x128xf32>
    %313 = tpu.reciprocal %312 {approx = true} : vector<16x128xf32> -> vector<16x128xf32>
    %314 = arith.mulf %306, %313 : vector<16x128xf32>
    %cst_272 = arith.constant 0.000000e+00 : f32
    %315 = vector.broadcast %cst_272 : f32 to vector<16x128xf32>
    %316 = arith.cmpf oge, %306, %315 : vector<16x128xf32>
    %cst_273 = arith.constant 1.000000e+00 : f32
    %317 = vector.broadcast %cst_273 : f32 to vector<16x128xf32>
    %318 = arith.select %316, %317, %310 : vector<16x128xi1>, vector<16x128xf32>
    %319 = arith.mulf %314, %318 : vector<16x128xf32>
    %cst_274 = arith.constant 1.000000e+00 : f32
    %320 = vector.broadcast %cst_274 : f32 to vector<16x128xf32>
    %321 = arith.addf %319, %320 : vector<16x128xf32>
    %c0_275 = arith.constant 0 : index
    %c0_276 = arith.constant 0 : index
    %c0_277 = arith.constant 0 : index
    %322 = vector.load %arg8[%c0_275, %c0_276, %c0_277] : memref<8x16x16xf32, #tpu.memory_space<vmem>>, vector<1x16x16xf32>
    %323 = vector.shape_cast %322 : vector<1x16x16xf32> to vector<16x16xf32>
    %cst_278 = arith.constant dense<0.000000e+00> : vector<16x128xf32>
    %324 = tpu.matmul %323, %321, %cst_278 {dimension_numbers = #tpu.dot_dimension_numbers<[1], [0], [0], [1], [0, 0, 1, 1], [], []>} : vector<16x16xf32>, vector<16x128xf32>, vector<16x128xf32> -> vector<16x128xf32>
    %325 = arith.maximumf %321, %324 : vector<16x128xf32>
    %c1_279 = arith.constant 1 : index
    %c0_280 = arith.constant 0 : index
    %c0_281 = arith.constant 0 : index
    %326 = vector.load %arg8[%c1_279, %c0_280, %c0_281] : memref<8x16x16xf32, #tpu.memory_space<vmem>>, vector<1x16x16xf32>
    %327 = vector.shape_cast %326 : vector<1x16x16xf32> to vector<16x16xf32>
    %cst_282 = arith.constant dense<0.000000e+00> : vector<16x128xf32>
    %328 = tpu.matmul %327, %321, %cst_282 {dimension_numbers = #tpu.dot_dimension_numbers<[1], [0], [0], [1], [0, 0, 1, 1], [], []>} : vector<16x16xf32>, vector<16x128xf32>, vector<16x128xf32> -> vector<16x128xf32>
    %329 = arith.maximumf %325, %328 : vector<16x128xf32>
    %c2_283 = arith.constant 2 : index
    %c0_284 = arith.constant 0 : index
    %c0_285 = arith.constant 0 : index
    %330 = vector.load %arg8[%c2_283, %c0_284, %c0_285] : memref<8x16x16xf32, #tpu.memory_space<vmem>>, vector<1x16x16xf32>
    %331 = vector.shape_cast %330 : vector<1x16x16xf32> to vector<16x16xf32>
    %cst_286 = arith.constant dense<0.000000e+00> : vector<16x128xf32>
    %332 = tpu.matmul %331, %321, %cst_286 {dimension_numbers = #tpu.dot_dimension_numbers<[1], [0], [0], [1], [0, 0, 1, 1], [], []>} : vector<16x16xf32>, vector<16x128xf32>, vector<16x128xf32> -> vector<16x128xf32>
    %333 = arith.maximumf %329, %332 : vector<16x128xf32>
    %c3_287 = arith.constant 3 : index
    %c0_288 = arith.constant 0 : index
    %c0_289 = arith.constant 0 : index
    %334 = vector.load %arg8[%c3_287, %c0_288, %c0_289] : memref<8x16x16xf32, #tpu.memory_space<vmem>>, vector<1x16x16xf32>
    %335 = vector.shape_cast %334 : vector<1x16x16xf32> to vector<16x16xf32>
    %cst_290 = arith.constant dense<0.000000e+00> : vector<16x128xf32>
    %336 = tpu.matmul %335, %321, %cst_290 {dimension_numbers = #tpu.dot_dimension_numbers<[1], [0], [0], [1], [0, 0, 1, 1], [], []>} : vector<16x16xf32>, vector<16x128xf32>, vector<16x128xf32> -> vector<16x128xf32>
    %337 = arith.maximumf %333, %336 : vector<16x128xf32>
    %c4_291 = arith.constant 4 : index
    %c0_292 = arith.constant 0 : index
    %c0_293 = arith.constant 0 : index
    %338 = vector.load %arg8[%c4_291, %c0_292, %c0_293] : memref<8x16x16xf32, #tpu.memory_space<vmem>>, vector<1x16x16xf32>
    %339 = vector.shape_cast %338 : vector<1x16x16xf32> to vector<16x16xf32>
    %cst_294 = arith.constant dense<0.000000e+00> : vector<16x128xf32>
    %340 = tpu.matmul %339, %337, %cst_294 {dimension_numbers = #tpu.dot_dimension_numbers<[1], [0], [0], [1], [0, 0, 1, 1], [], []>} : vector<16x16xf32>, vector<16x128xf32>, vector<16x128xf32> -> vector<16x128xf32>
    %341 = arith.maximumf %337, %340 : vector<16x128xf32>
    %c5_295 = arith.constant 5 : index
    %c0_296 = arith.constant 0 : index
    %c0_297 = arith.constant 0 : index
    %342 = vector.load %arg8[%c5_295, %c0_296, %c0_297] : memref<8x16x16xf32, #tpu.memory_space<vmem>>, vector<1x16x16xf32>
    %343 = vector.shape_cast %342 : vector<1x16x16xf32> to vector<16x16xf32>
    %cst_298 = arith.constant dense<0.000000e+00> : vector<16x128xf32>
    %344 = tpu.matmul %343, %337, %cst_298 {dimension_numbers = #tpu.dot_dimension_numbers<[1], [0], [0], [1], [0, 0, 1, 1], [], []>} : vector<16x16xf32>, vector<16x128xf32>, vector<16x128xf32> -> vector<16x128xf32>
    %345 = arith.maximumf %341, %344 : vector<16x128xf32>
    %c6_299 = arith.constant 6 : index
    %c0_300 = arith.constant 0 : index
    %c0_301 = arith.constant 0 : index
    %346 = vector.load %arg8[%c6_299, %c0_300, %c0_301] : memref<8x16x16xf32, #tpu.memory_space<vmem>>, vector<1x16x16xf32>
    %347 = vector.shape_cast %346 : vector<1x16x16xf32> to vector<16x16xf32>
    %cst_302 = arith.constant dense<0.000000e+00> : vector<16x128xf32>
    %348 = tpu.matmul %347, %337, %cst_302 {dimension_numbers = #tpu.dot_dimension_numbers<[1], [0], [0], [1], [0, 0, 1, 1], [], []>} : vector<16x16xf32>, vector<16x128xf32>, vector<16x128xf32> -> vector<16x128xf32>
    %349 = arith.maximumf %345, %348 : vector<16x128xf32>
    %c7_303 = arith.constant 7 : index
    %c0_304 = arith.constant 0 : index
    %c0_305 = arith.constant 0 : index
    %350 = vector.load %arg8[%c7_303, %c0_304, %c0_305] : memref<8x16x16xf32, #tpu.memory_space<vmem>>, vector<1x16x16xf32>
    %351 = vector.shape_cast %350 : vector<1x16x16xf32> to vector<16x16xf32>
    %cst_306 = arith.constant dense<0.000000e+00> : vector<16x128xf32>
    %352 = tpu.matmul %351, %337, %cst_306 {dimension_numbers = #tpu.dot_dimension_numbers<[1], [0], [0], [1], [0, 0, 1, 1], [], []>} : vector<16x16xf32>, vector<16x128xf32>, vector<16x128xf32> -> vector<16x128xf32>
    %353 = arith.maximumf %349, %352 : vector<16x128xf32>
    %cst_307 = arith.constant 1.000000e+00 : f32
    %354 = vector.broadcast %cst_307 : f32 to vector<16x128xf32>
    %355 = arith.subf %353, %354 : vector<16x128xf32>
    %cst_308 = arith.constant 1.000000e+00 : f32
    %356 = vector.broadcast %cst_308 : f32 to vector<16x128xf32>
    %357 = arith.addf %355, %356 : vector<16x128xf32>
    %c0_309 = arith.constant 0 : index
    %c0_310 = arith.constant 0 : index
    %c0_311 = arith.constant 0 : index
    %358 = vector.load %arg8[%c0_309, %c0_310, %c0_311] : memref<8x16x16xf32, #tpu.memory_space<vmem>>, vector<1x16x16xf32>
    %359 = vector.shape_cast %358 : vector<1x16x16xf32> to vector<16x16xf32>
    %cst_312 = arith.constant dense<0.000000e+00> : vector<16x128xf32>
    %360 = tpu.matmul %359, %357, %cst_312 {dimension_numbers = #tpu.dot_dimension_numbers<[1], [0], [0], [1], [0, 0, 1, 1], [], []>} : vector<16x16xf32>, vector<16x128xf32>, vector<16x128xf32> -> vector<16x128xf32>
    %361 = arith.maximumf %357, %360 : vector<16x128xf32>
    %c1_313 = arith.constant 1 : index
    %c0_314 = arith.constant 0 : index
    %c0_315 = arith.constant 0 : index
    %362 = vector.load %arg8[%c1_313, %c0_314, %c0_315] : memref<8x16x16xf32, #tpu.memory_space<vmem>>, vector<1x16x16xf32>
    %363 = vector.shape_cast %362 : vector<1x16x16xf32> to vector<16x16xf32>
    %cst_316 = arith.constant dense<0.000000e+00> : vector<16x128xf32>
    %364 = tpu.matmul %363, %357, %cst_316 {dimension_numbers = #tpu.dot_dimension_numbers<[1], [0], [0], [1], [0, 0, 1, 1], [], []>} : vector<16x16xf32>, vector<16x128xf32>, vector<16x128xf32> -> vector<16x128xf32>
    %365 = arith.maximumf %361, %364 : vector<16x128xf32>
    %c2_317 = arith.constant 2 : index
    %c0_318 = arith.constant 0 : index
    %c0_319 = arith.constant 0 : index
    %366 = vector.load %arg8[%c2_317, %c0_318, %c0_319] : memref<8x16x16xf32, #tpu.memory_space<vmem>>, vector<1x16x16xf32>
    %367 = vector.shape_cast %366 : vector<1x16x16xf32> to vector<16x16xf32>
    %cst_320 = arith.constant dense<0.000000e+00> : vector<16x128xf32>
    %368 = tpu.matmul %367, %357, %cst_320 {dimension_numbers = #tpu.dot_dimension_numbers<[1], [0], [0], [1], [0, 0, 1, 1], [], []>} : vector<16x16xf32>, vector<16x128xf32>, vector<16x128xf32> -> vector<16x128xf32>
    %369 = arith.maximumf %365, %368 : vector<16x128xf32>
    %c3_321 = arith.constant 3 : index
    %c0_322 = arith.constant 0 : index
    %c0_323 = arith.constant 0 : index
    %370 = vector.load %arg8[%c3_321, %c0_322, %c0_323] : memref<8x16x16xf32, #tpu.memory_space<vmem>>, vector<1x16x16xf32>
    %371 = vector.shape_cast %370 : vector<1x16x16xf32> to vector<16x16xf32>
    %cst_324 = arith.constant dense<0.000000e+00> : vector<16x128xf32>
    %372 = tpu.matmul %371, %357, %cst_324 {dimension_numbers = #tpu.dot_dimension_numbers<[1], [0], [0], [1], [0, 0, 1, 1], [], []>} : vector<16x16xf32>, vector<16x128xf32>, vector<16x128xf32> -> vector<16x128xf32>
    %373 = arith.maximumf %369, %372 : vector<16x128xf32>
    %c4_325 = arith.constant 4 : index
    %c0_326 = arith.constant 0 : index
    %c0_327 = arith.constant 0 : index
    %374 = vector.load %arg8[%c4_325, %c0_326, %c0_327] : memref<8x16x16xf32, #tpu.memory_space<vmem>>, vector<1x16x16xf32>
    %375 = vector.shape_cast %374 : vector<1x16x16xf32> to vector<16x16xf32>
    %cst_328 = arith.constant dense<0.000000e+00> : vector<16x128xf32>
    %376 = tpu.matmul %375, %373, %cst_328 {dimension_numbers = #tpu.dot_dimension_numbers<[1], [0], [0], [1], [0, 0, 1, 1], [], []>} : vector<16x16xf32>, vector<16x128xf32>, vector<16x128xf32> -> vector<16x128xf32>
    %377 = arith.maximumf %373, %376 : vector<16x128xf32>
    %c5_329 = arith.constant 5 : index
    %c0_330 = arith.constant 0 : index
    %c0_331 = arith.constant 0 : index
    %378 = vector.load %arg8[%c5_329, %c0_330, %c0_331] : memref<8x16x16xf32, #tpu.memory_space<vmem>>, vector<1x16x16xf32>
    %379 = vector.shape_cast %378 : vector<1x16x16xf32> to vector<16x16xf32>
    %cst_332 = arith.constant dense<0.000000e+00> : vector<16x128xf32>
    %380 = tpu.matmul %379, %373, %cst_332 {dimension_numbers = #tpu.dot_dimension_numbers<[1], [0], [0], [1], [0, 0, 1, 1], [], []>} : vector<16x16xf32>, vector<16x128xf32>, vector<16x128xf32> -> vector<16x128xf32>
    %381 = arith.maximumf %377, %380 : vector<16x128xf32>
    %c6_333 = arith.constant 6 : index
    %c0_334 = arith.constant 0 : index
    %c0_335 = arith.constant 0 : index
    %382 = vector.load %arg8[%c6_333, %c0_334, %c0_335] : memref<8x16x16xf32, #tpu.memory_space<vmem>>, vector<1x16x16xf32>
    %383 = vector.shape_cast %382 : vector<1x16x16xf32> to vector<16x16xf32>
    %cst_336 = arith.constant dense<0.000000e+00> : vector<16x128xf32>
    %384 = tpu.matmul %383, %373, %cst_336 {dimension_numbers = #tpu.dot_dimension_numbers<[1], [0], [0], [1], [0, 0, 1, 1], [], []>} : vector<16x16xf32>, vector<16x128xf32>, vector<16x128xf32> -> vector<16x128xf32>
    %385 = arith.maximumf %381, %384 : vector<16x128xf32>
    %c7_337 = arith.constant 7 : index
    %c0_338 = arith.constant 0 : index
    %c0_339 = arith.constant 0 : index
    %386 = vector.load %arg8[%c7_337, %c0_338, %c0_339] : memref<8x16x16xf32, #tpu.memory_space<vmem>>, vector<1x16x16xf32>
    %387 = vector.shape_cast %386 : vector<1x16x16xf32> to vector<16x16xf32>
    %cst_340 = arith.constant dense<0.000000e+00> : vector<16x128xf32>
    %388 = tpu.matmul %387, %373, %cst_340 {dimension_numbers = #tpu.dot_dimension_numbers<[1], [0], [0], [1], [0, 0, 1, 1], [], []>} : vector<16x16xf32>, vector<16x128xf32>, vector<16x128xf32> -> vector<16x128xf32>
    %389 = arith.maximumf %385, %388 : vector<16x128xf32>
    %cst_341 = arith.constant 1.000000e+00 : f32
    %390 = vector.broadcast %cst_341 : f32 to vector<16x128xf32>
    %391 = arith.subf %389, %390 : vector<16x128xf32>
    %cst_342 = arith.constant 1.000000e+00 : f32
    %392 = vector.broadcast %cst_342 : f32 to vector<16x128xf32>
    %393 = arith.addf %391, %392 : vector<16x128xf32>
    %c0_343 = arith.constant 0 : index
    %c0_344 = arith.constant 0 : index
    %c0_345 = arith.constant 0 : index
    %394 = vector.load %arg8[%c0_343, %c0_344, %c0_345] : memref<8x16x16xf32, #tpu.memory_space<vmem>>, vector<1x16x16xf32>
    %395 = vector.shape_cast %394 : vector<1x16x16xf32> to vector<16x16xf32>
    %cst_346 = arith.constant dense<0.000000e+00> : vector<16x128xf32>
    %396 = tpu.matmul %395, %393, %cst_346 {dimension_numbers = #tpu.dot_dimension_numbers<[1], [0], [0], [1], [0, 0, 1, 1], [], []>} : vector<16x16xf32>, vector<16x128xf32>, vector<16x128xf32> -> vector<16x128xf32>
    %397 = arith.maximumf %393, %396 : vector<16x128xf32>
    %c1_347 = arith.constant 1 : index
    %c0_348 = arith.constant 0 : index
    %c0_349 = arith.constant 0 : index
    %398 = vector.load %arg8[%c1_347, %c0_348, %c0_349] : memref<8x16x16xf32, #tpu.memory_space<vmem>>, vector<1x16x16xf32>
    %399 = vector.shape_cast %398 : vector<1x16x16xf32> to vector<16x16xf32>
    %cst_350 = arith.constant dense<0.000000e+00> : vector<16x128xf32>
    %400 = tpu.matmul %399, %393, %cst_350 {dimension_numbers = #tpu.dot_dimension_numbers<[1], [0], [0], [1], [0, 0, 1, 1], [], []>} : vector<16x16xf32>, vector<16x128xf32>, vector<16x128xf32> -> vector<16x128xf32>
    %401 = arith.maximumf %397, %400 : vector<16x128xf32>
    %c2_351 = arith.constant 2 : index
    %c0_352 = arith.constant 0 : index
    %c0_353 = arith.constant 0 : index
    %402 = vector.load %arg8[%c2_351, %c0_352, %c0_353] : memref<8x16x16xf32, #tpu.memory_space<vmem>>, vector<1x16x16xf32>
    %403 = vector.shape_cast %402 : vector<1x16x16xf32> to vector<16x16xf32>
    %cst_354 = arith.constant dense<0.000000e+00> : vector<16x128xf32>
    %404 = tpu.matmul %403, %393, %cst_354 {dimension_numbers = #tpu.dot_dimension_numbers<[1], [0], [0], [1], [0, 0, 1, 1], [], []>} : vector<16x16xf32>, vector<16x128xf32>, vector<16x128xf32> -> vector<16x128xf32>
    %405 = arith.maximumf %401, %404 : vector<16x128xf32>
    %c3_355 = arith.constant 3 : index
    %c0_356 = arith.constant 0 : index
    %c0_357 = arith.constant 0 : index
    %406 = vector.load %arg8[%c3_355, %c0_356, %c0_357] : memref<8x16x16xf32, #tpu.memory_space<vmem>>, vector<1x16x16xf32>
    %407 = vector.shape_cast %406 : vector<1x16x16xf32> to vector<16x16xf32>
    %cst_358 = arith.constant dense<0.000000e+00> : vector<16x128xf32>
    %408 = tpu.matmul %407, %393, %cst_358 {dimension_numbers = #tpu.dot_dimension_numbers<[1], [0], [0], [1], [0, 0, 1, 1], [], []>} : vector<16x16xf32>, vector<16x128xf32>, vector<16x128xf32> -> vector<16x128xf32>
    %409 = arith.maximumf %405, %408 : vector<16x128xf32>
    %c4_359 = arith.constant 4 : index
    %c0_360 = arith.constant 0 : index
    %c0_361 = arith.constant 0 : index
    %410 = vector.load %arg8[%c4_359, %c0_360, %c0_361] : memref<8x16x16xf32, #tpu.memory_space<vmem>>, vector<1x16x16xf32>
    %411 = vector.shape_cast %410 : vector<1x16x16xf32> to vector<16x16xf32>
    %cst_362 = arith.constant dense<0.000000e+00> : vector<16x128xf32>
    %412 = tpu.matmul %411, %409, %cst_362 {dimension_numbers = #tpu.dot_dimension_numbers<[1], [0], [0], [1], [0, 0, 1, 1], [], []>} : vector<16x16xf32>, vector<16x128xf32>, vector<16x128xf32> -> vector<16x128xf32>
    %413 = arith.maximumf %409, %412 : vector<16x128xf32>
    %c5_363 = arith.constant 5 : index
    %c0_364 = arith.constant 0 : index
    %c0_365 = arith.constant 0 : index
    %414 = vector.load %arg8[%c5_363, %c0_364, %c0_365] : memref<8x16x16xf32, #tpu.memory_space<vmem>>, vector<1x16x16xf32>
    %415 = vector.shape_cast %414 : vector<1x16x16xf32> to vector<16x16xf32>
    %cst_366 = arith.constant dense<0.000000e+00> : vector<16x128xf32>
    %416 = tpu.matmul %415, %409, %cst_366 {dimension_numbers = #tpu.dot_dimension_numbers<[1], [0], [0], [1], [0, 0, 1, 1], [], []>} : vector<16x16xf32>, vector<16x128xf32>, vector<16x128xf32> -> vector<16x128xf32>
    %417 = arith.maximumf %413, %416 : vector<16x128xf32>
    %c6_367 = arith.constant 6 : index
    %c0_368 = arith.constant 0 : index
    %c0_369 = arith.constant 0 : index
    %418 = vector.load %arg8[%c6_367, %c0_368, %c0_369] : memref<8x16x16xf32, #tpu.memory_space<vmem>>, vector<1x16x16xf32>
    %419 = vector.shape_cast %418 : vector<1x16x16xf32> to vector<16x16xf32>
    %cst_370 = arith.constant dense<0.000000e+00> : vector<16x128xf32>
    %420 = tpu.matmul %419, %409, %cst_370 {dimension_numbers = #tpu.dot_dimension_numbers<[1], [0], [0], [1], [0, 0, 1, 1], [], []>} : vector<16x16xf32>, vector<16x128xf32>, vector<16x128xf32> -> vector<16x128xf32>
    %421 = arith.maximumf %417, %420 : vector<16x128xf32>
    %c7_371 = arith.constant 7 : index
    %c0_372 = arith.constant 0 : index
    %c0_373 = arith.constant 0 : index
    %422 = vector.load %arg8[%c7_371, %c0_372, %c0_373] : memref<8x16x16xf32, #tpu.memory_space<vmem>>, vector<1x16x16xf32>
    %423 = vector.shape_cast %422 : vector<1x16x16xf32> to vector<16x16xf32>
    %cst_374 = arith.constant dense<0.000000e+00> : vector<16x128xf32>
    %424 = tpu.matmul %423, %409, %cst_374 {dimension_numbers = #tpu.dot_dimension_numbers<[1], [0], [0], [1], [0, 0, 1, 1], [], []>} : vector<16x16xf32>, vector<16x128xf32>, vector<16x128xf32> -> vector<16x128xf32>
    %425 = arith.maximumf %421, %424 : vector<16x128xf32>
    %cst_375 = arith.constant 1.000000e+00 : f32
    %426 = vector.broadcast %cst_375 : f32 to vector<16x128xf32>
    %427 = arith.subf %425, %426 : vector<16x128xf32>
    %c4_376 = arith.constant 4 : index
    %c0_377 = arith.constant 0 : index
    %c0_378 = arith.constant 0 : index
    %428 = vector.load %arg9[%c4_376, %c0_377, %c0_378] : memref<8x128x128xf32, #tpu.memory_space<vmem>>, vector<1x128x128xf32>
    %429 = vector.shape_cast %428 : vector<1x128x128xf32> to vector<128x128xf32>
    %cst_379 = arith.constant dense<0.000000e+00> : vector<16x128xf32>
    %430 = tpu.matmul %319, %429, %cst_379 {dimension_numbers = #tpu.dot_dimension_numbers<[1], [0], [0], [1], [0, 0, 1, 1], [], []>} : vector<16x128xf32>, vector<128x128xf32>, vector<16x128xf32> -> vector<16x128xf32>
    %c5_380 = arith.constant 5 : index
    %c0_381 = arith.constant 0 : index
    %c0_382 = arith.constant 0 : index
    %431 = vector.load %arg9[%c5_380, %c0_381, %c0_382] : memref<8x128x128xf32, #tpu.memory_space<vmem>>, vector<1x128x128xf32>
    %432 = vector.shape_cast %431 : vector<1x128x128xf32> to vector<128x128xf32>
    %cst_383 = arith.constant dense<0.000000e+00> : vector<16x128xf32>
    %433 = tpu.matmul %355, %432, %cst_383 {dimension_numbers = #tpu.dot_dimension_numbers<[1], [0], [0], [1], [0, 0, 1, 1], [], []>} : vector<16x128xf32>, vector<128x128xf32>, vector<16x128xf32> -> vector<16x128xf32>
    %434 = arith.addf %430, %433 : vector<16x128xf32>
    %c6_384 = arith.constant 6 : index
    %c0_385 = arith.constant 0 : index
    %c0_386 = arith.constant 0 : index
    %435 = vector.load %arg9[%c6_384, %c0_385, %c0_386] : memref<8x128x128xf32, #tpu.memory_space<vmem>>, vector<1x128x128xf32>
    %436 = vector.shape_cast %435 : vector<1x128x128xf32> to vector<128x128xf32>
    %cst_387 = arith.constant dense<0.000000e+00> : vector<16x128xf32>
    %437 = tpu.matmul %391, %436, %cst_387 {dimension_numbers = #tpu.dot_dimension_numbers<[1], [0], [0], [1], [0, 0, 1, 1], [], []>} : vector<16x128xf32>, vector<128x128xf32>, vector<16x128xf32> -> vector<16x128xf32>
    %438 = arith.addf %434, %437 : vector<16x128xf32>
    %c7_388 = arith.constant 7 : index
    %c0_389 = arith.constant 0 : index
    %c0_390 = arith.constant 0 : index
    %439 = vector.load %arg9[%c7_388, %c0_389, %c0_390] : memref<8x128x128xf32, #tpu.memory_space<vmem>>, vector<1x128x128xf32>
    %440 = vector.shape_cast %439 : vector<1x128x128xf32> to vector<128x128xf32>
    %cst_391 = arith.constant dense<0.000000e+00> : vector<16x128xf32>
    %441 = tpu.matmul %427, %440, %cst_391 {dimension_numbers = #tpu.dot_dimension_numbers<[1], [0], [0], [1], [0, 0, 1, 1], [], []>} : vector<16x128xf32>, vector<128x128xf32>, vector<16x128xf32> -> vector<16x128xf32>
    %442 = arith.addf %438, %441 : vector<16x128xf32>
    %c7_392 = arith.constant 7 : index
    %c0_393 = arith.constant 0 : index
    %c0_394 = arith.constant 0 : index
    %443 = vector.load %arg10[%c7_392, %c0_393, %c0_394] : memref<8x1x128xf32, #tpu.memory_space<vmem>>, vector<1x1x128xf32>
    %444 = vector.shape_cast %443 : vector<1x1x128xf32> to vector<1x128xf32>
    %445 = vector.broadcast %444 : vector<1x128xf32> to vector<16x128xf32>
    %446 = arith.addf %442, %445 : vector<16x128xf32>
    %447 = math.absf %446 : vector<16x128xf32>
    %cst_395 = arith.constant 0.000000e+00 : f32
    %448 = vector.broadcast %cst_395 : f32 to vector<16x128xf32>
    %449 = arith.subf %448, %447 : vector<16x128xf32>
    %450 = math.exp %449 : vector<16x128xf32>
    %cst_396 = arith.constant 1.000000e+00 : f32
    %451 = vector.broadcast %cst_396 : f32 to vector<16x128xf32>
    %452 = arith.addf %451, %450 : vector<16x128xf32>
    %453 = tpu.reciprocal %452 {approx = true} : vector<16x128xf32> -> vector<16x128xf32>
    %454 = arith.mulf %446, %453 : vector<16x128xf32>
    %cst_397 = arith.constant 0.000000e+00 : f32
    %455 = vector.broadcast %cst_397 : f32 to vector<16x128xf32>
    %456 = arith.cmpf oge, %446, %455 : vector<16x128xf32>
    %cst_398 = arith.constant 1.000000e+00 : f32
    %457 = vector.broadcast %cst_398 : f32 to vector<16x128xf32>
    %458 = arith.select %456, %457, %450 : vector<16x128xi1>, vector<16x128xf32>
    %459 = arith.mulf %454, %458 : vector<16x128xf32>
    %c0_399 = arith.constant 0 : index
    %c0_400 = arith.constant 0 : index
    %c0_401 = arith.constant 0 : index
    %460 = vector.load %arg11[%c0_399, %c0_400, %c0_401] : memref<1x16x128xf32, #tpu.memory_space<vmem>>, vector<1x16x128xf32>
    %461 = vector.shape_cast %460 : vector<1x16x128xf32> to vector<16x128xf32>
    %462 = vector.shape_cast %459 : vector<16x128xf32> to vector<1x16x128xf32>
    tpu.vector_store %arg11[%c0_399, %c0_400, %c0_401], %462 {strides = array<i32>} : memref<1x16x128xf32, #tpu.memory_space<vmem>>, vector<1x16x128xf32>,
    return
  }
  func.func @transform_0(%arg0: i32) -> (i32, i32, i32) {
    %c0_i32 = arith.constant 0 : i32
    %c0_i32_0 = arith.constant 0 : i32
    %c0_i32_1 = arith.constant 0 : i32
    return %arg0, %c0_i32, %c0_i32_0 : i32, i32, i32
  }
  func.func @transform_1(%arg0: i32) -> (i32, i32, i32) {
    %c0_i32 = arith.constant 0 : i32
    %c0_i32_0 = arith.constant 0 : i32
    %c0_i32_1 = arith.constant 0 : i32
    %c0_i32_2 = arith.constant 0 : i32
    return %c0_i32, %c0_i32_0, %c0_i32_1 : i32, i32, i32
  }
  func.func @transform_2(%arg0: i32) -> (i32, i32, i32) {
    %c0_i32 = arith.constant 0 : i32
    %c0_i32_0 = arith.constant 0 : i32
    %c0_i32_1 = arith.constant 0 : i32
    %c0_i32_2 = arith.constant 0 : i32
    return %c0_i32, %c0_i32_0, %c0_i32_1 : i32, i32, i32
  }
  func.func @transform_3(%arg0: i32) -> (i32, i32, i32) {
    %c0_i32 = arith.constant 0 : i32
    %c0_i32_0 = arith.constant 0 : i32
    %c0_i32_1 = arith.constant 0 : i32
    %c0_i32_2 = arith.constant 0 : i32
    return %c0_i32, %c0_i32_0, %c0_i32_1 : i32, i32, i32
  }
  func.func @transform_4(%arg0: i32) -> (i32, i32, i32) {
    %c0_i32 = arith.constant 0 : i32
    %c0_i32_0 = arith.constant 0 : i32
    %c0_i32_1 = arith.constant 0 : i32
    %c0_i32_2 = arith.constant 0 : i32
    return %c0_i32, %c0_i32_0, %c0_i32_1 : i32, i32, i32
  }
  func.func @transform_5(%arg0: i32) -> (i32, i32, i32) {
    %c0_i32 = arith.constant 0 : i32
    %c0_i32_0 = arith.constant 0 : i32
    %c0_i32_1 = arith.constant 0 : i32
    %c0_i32_2 = arith.constant 0 : i32
    return %c0_i32, %c0_i32_0, %c0_i32_1 : i32, i32, i32
  }
  func.func @transform_6(%arg0: i32) -> (i32, i32, i32) {
    %c0_i32 = arith.constant 0 : i32
    %c0_i32_0 = arith.constant 0 : i32
    %c0_i32_1 = arith.constant 0 : i32
    %c0_i32_2 = arith.constant 0 : i32
    return %c0_i32, %c0_i32_0, %c0_i32_1 : i32, i32, i32
  }
  func.func @transform_7(%arg0: i32) -> (i32, i32, i32) {
    %c0_i32 = arith.constant 0 : i32
    %c0_i32_0 = arith.constant 0 : i32
    %c0_i32_1 = arith.constant 0 : i32
    %c0_i32_2 = arith.constant 0 : i32
    return %c0_i32, %c0_i32_0, %c0_i32_1 : i32, i32, i32
  }
  func.func @transform_8(%arg0: i32) -> (i32, i32, i32) {
    %c0_i32 = arith.constant 0 : i32
    %c0_i32_0 = arith.constant 0 : i32
    %c0_i32_1 = arith.constant 0 : i32
    %c0_i32_2 = arith.constant 0 : i32
    return %c0_i32, %c0_i32_0, %c0_i32_1 : i32, i32, i32
  }
  func.func @transform_9(%arg0: i32) -> (i32, i32, i32) {
    %c0_i32 = arith.constant 0 : i32
    %c0_i32_0 = arith.constant 0 : i32
    %c0_i32_1 = arith.constant 0 : i32
    %c0_i32_2 = arith.constant 0 : i32
    return %c0_i32, %c0_i32_0, %c0_i32_1 : i32, i32, i32
  }
  func.func @transform_10(%arg0: i32) -> (i32, i32, i32) {
    %c0_i32 = arith.constant 0 : i32
    %c0_i32_0 = arith.constant 0 : i32
    %c0_i32_1 = arith.constant 0 : i32
    return %arg0, %c0_i32, %c0_i32_0 : i32, i32, i32
  }
}

</mosaic_0001>

<llo_original>
// kernel: yolo_backbone_forward.1
$region0: #{yolo_backbone_forward.1}
  #allocation0 [shape = 'u32[]', space=smem, size = 0x4, offset = 0x4, fixed_abs, tag = 'smem constant byte address 0x4 - core index']
  #allocation1 [shape = 'u32[144,128]{1,0:T(1,128)}', space=vmem, size = 0x12000, scoped, tag = 'internal scratch']
  %s0 = inlined_call_operand.vmem [shape: f32[2,256,128], index: 0, kind: input, shape index: {}]
  %s1 = inlined_call_operand.vmem [shape: f32[9,64,256], index: 1, kind: input, shape index: {}]
  %s2 = inlined_call_operand.hbm [shape: f32[9,128,128], index: 2, kind: input, shape index: {}]
  %s3 = inlined_call_operand.vmem [shape: f32[9,16,64], index: 3, kind: input, shape index: {}]
  %s4 = inlined_call_operand.hbm [shape: f32[9,128,128], index: 4, kind: input, shape index: {}]
  %s5 = inlined_call_operand.vmem [shape: f32[9,16,16], index: 5, kind: input, shape index: {}]
  %s6 = inlined_call_operand.hbm [shape: f32[9,128,128], index: 6, kind: input, shape index: {}]
  %s7 = inlined_call_operand.vmem [shape: f32[8,16,16], index: 7, kind: input, shape index: {}]
  %s8 = inlined_call_operand.hbm [shape: f32[8,128,128], index: 8, kind: input, shape index: {}]
  %s9 = inlined_call_operand.vmem [shape: f32[8,1,128], index: 9, kind: input, shape index: {}]
  %s10 = inlined_call_operand.hbm [shape: f32[2,16,128], index: 10, kind: output, shape index: {}]
  %s11 = sld [smem:[#allocation0]]
  $region89: #{yolo_backbone_forward.1} parent=0
    _
  %s13 = ssub.s32 1, %s11
  %s14 = scalar_select 0, %s13, %s11
  $region1: #{yolo_backbone_forward.1} parent=0
    #allocation2 [shape = 'u8[589824]{0}', space=vmem, size = 0x90000, scoped, tag = 'input window, operand 2, single buffered']
    #allocation3 [shape = 's32[2]{0}', space=sflag, size = 0x8, scoped, tag = 'scoped memory for yolo_backbone_forward.1']
    #allocation4 [shape = 's32[2]{0}', space=sflag, size = 0x8, scoped, tag = 'scoped memory for yolo_backbone_forward.1']
    #allocation5 [shape = 'u8[589824]{0}', space=vmem, size = 0x90000, scoped, tag = 'input window, operand 4, single buffered']
    #allocation6 [shape = 's32[1]{0}', space=sflag, size = 0x4, scoped, tag = 'scoped memory for yolo_backbone_forward.1']
    #allocation7 [shape = 'u8[589824]{0}', space=vmem, size = 0x90000, scoped, tag = 'input window, operand 6, single buffered']
    #allocation8 [shape = 'u8[524288]{0}', space=vmem, size = 0x80000, scoped, tag = 'input window, operand 8, single buffered']
    #allocation9 [shape = 's32[1]{0}', space=sflag, size = 0x4, scoped, tag = 'scoped memory for yolo_backbone_forward.1']
    #allocation10 [shape = 'u8[16384]{0}', space=vmem, size = 0x4000, scoped, tag = 'output window, operand 0']
    %15 = vsyncpa [#allocation3], 0
    %16 = vsyncpa [#allocation6], 0
    %17 = vsyncpa [#allocation9], 0
    %18 = vsyncpa [#allocation4], 0
    %s19 = scalar_lea.sflag [#allocation4], 1
    %20 = vsyncpa %s19, 0
    loop: start=0, step=1, limit=4
    $region2: #{yolo_backbone_forward.1} parent=1 // loop_pre_header
      _
    $region3: #{yolo_backbone_forward.1} parent=1 // loop_header
      %s22 = sphi 0, %s26
      %p23 = scmp.ge.s32.totalorder %s22, 4
      %s32 = sphi 0, %s34
      %s35 = sphi 0, %s32
      %s36 = sphi 0, %s35
      %s52 = sphi 0, %s36
      %s56 = sphi 0, %s56
      %s58 = sphi 0, %s56
      %s59 = sphi 0, %s58
      %s73 = sphi 0, %s59
      %s77 = sphi 0, %s77
      %s79 = sphi 0, %s77
      %s80 = sphi 0, %s79
      %s94 = sphi 0, %s80
      %s98 = sphi 0, %s98
      %s100 = sphi 0, %s98
      %s101 = sphi 0, %s100
      %s115 = sphi 0, %s101
      %s119 = sphi 0, %s119
      %s121 = sphi 0, %s119
      %s122 = sphi 0, %s121
      %s136 = sphi 0, %s122
      %s140 = sphi 0, %s140
      %s142 = sphi 0, %s140
      %s143 = sphi 0, %s142
      %s157 = sphi 0, %s143
      %s161 = sphi 0, %s161
      %s163 = sphi 0, %s161
      %s164 = sphi 0, %s163
      %s178 = sphi 0, %s164
      %s182 = sphi 0, %s182
      %s184 = sphi 0, %s182
      %s185 = sphi 0, %s184
      %s199 = sphi 0, %s185
      %s203 = sphi 0, %s203
      %s205 = sphi 0, %s203
      %s206 = sphi 0, %s205
      %s220 = sphi 0, %s206
      %s224 = sphi 0, %s224
      %s226 = sphi 0, %s224
      %s227 = sphi 0, %s226
      %s241 = sphi 0, %s227
      %s247 = sphi 0, %s249
      %s250 = sphi 0, %s247
      %s251 = sphi 0, %s250
      %s267 = sphi 0, %s251
    $region4: #{yolo_backbone_forward.1} parent=1 // loop_header_branch
      %25 = sbr.rel (%p23) target = $region8
    $region5: #{yolo_backbone_forward.1} parent=1 // loop_body
      %s27 = ssub.s32 %s22, 1
      %s28 = ssub.s32 %s22, 2
      %s29 = sadd.s32 %s22, 1
      %s30 = ssub.s32 %s22, %s29
      %p31 = scmp.eq.s32.totalorder %s30, 0
      %s33 = sadd.s32 %s32, 1
      %s34 = scalar_select %p31, %s32, %s33
      %p37 = pneg %p31
      %p38 = scmp.eq.s32.totalorder %s22, 1
      %p39 = por %p37, %p38
      %p40 = scmp.ne.s32.totalorder %s32, %s35
      %p41 = scmp.eq.s32.totalorder %s22, 0
      %p42 = por %p40, %p41
      %p43 = scmp.ne.s32.totalorder %s32, %s35
      %p44 = scmp.eq.s32.totalorder %s27, 1
      %p45 = por %p43, %p44
      %p46 = scmp.ne.s32.totalorder %s35, %s36
      %p47 = scmp.eq.s32.totalorder %s27, 0
      %p48 = por %p46, %p47
      %p49 = scmp.ne.s32.totalorder %s35, %s36
      %p50 = scmp.eq.s32.totalorder %s28, 1
      %p51 = por %p49, %p50
      %p53 = scmp.ne.s32.totalorder %s36, %s52
      %p54 = scmp.eq.s32.totalorder %s28, 0
      %p55 = por %p53, %p54
      %s57 = sadd.s32 %s56, 1
      %p60 = scmp.eq.s32.totalorder %s22, 1
      %p61 = scmp.ne.s32.totalorder %s56, %s58
      %p62 = scmp.eq.s32.totalorder %s22, 0
      %p63 = por %p61, %p62
      %p64 = scmp.ne.s32.totalorder %s56, %s58
      %p65 = scmp.eq.s32.totalorder %s27, 1
      %p66 = por %p64, %p65
      %p67 = scmp.ne.s32.totalorder %s58, %s59
      %p68 = scmp.eq.s32.totalorder %s27, 0
      %p69 = por %p67, %p68
      %p70 = scmp.ne.s32.totalorder %s58, %s59
      %p71 = scmp.eq.s32.totalorder %s28, 1
      %p72 = por %p70, %p71
      %p74 = scmp.ne.s32.totalorder %s59, %s73
      %p75 = scmp.eq.s32.totalorder %s28, 0
      %p76 = por %p74, %p75
      %s78 = sadd.s32 %s77, 1
      %p81 = scmp.eq.s32.totalorder %s22, 1
      %p82 = scmp.ne.s32.totalorder %s77, %s79
      %p83 = scmp.eq.s32.totalorder %s22, 0
      %p84 = por %p82, %p83
      %p85 = scmp.ne.s32.totalorder %s77, %s79
      %p86 = scmp.eq.s32.totalorder %s27, 1
      %p87 = por %p85, %p86
      %p88 = scmp.ne.s32.totalorder %s79, %s80
      %p89 = scmp.eq.s32.totalorder %s27, 0
      %p90 = por %p88, %p89
      %p91 = scmp.ne.s32.totalorder %s79, %s80
      %p92 = scmp.eq.s32.totalorder %s28, 1
      %p93 = por %p91, %p92
      %p95 = scmp.ne.s32.totalorder %s80, %s94
      %p96 = scmp.eq.s32.totalorder %s28, 0
      %p97 = por %p95, %p96
      %s99 = sadd.s32 %s98, 1
      %p102 = scmp.eq.s32.totalorder %s22, 1
      %p103 = scmp.ne.s32.totalorder %s98, %s100
      %p104 = scmp.eq.s32.totalorder %s22, 0
      %p105 = por %p103, %p104
      %p106 = scmp.ne.s32.totalorder %s98, %s100
      %p107 = scmp.eq.s32.totalorder %s27, 1
      %p108 = por %p106, %p107
      %p109 = scmp.ne.s32.totalorder %s100, %s101
      %p110 = scmp.eq.s32.totalorder %s27, 0
      %p111 = por %p109, %p110
      %p112 = scmp.ne.s32.totalorder %s100, %s101
      %p113 = scmp.eq.s32.totalorder %s28, 1
      %p114 = por %p112, %p113
      %p116 = scmp.ne.s32.totalorder %s101, %s115
      %p117 = scmp.eq.s32.totalorder %s28, 0
      %p118 = por %p116, %p117
      %s120 = sadd.s32 %s119, 1
      %p123 = scmp.eq.s32.totalorder %s22, 1
      %p124 = scmp.ne.s32.totalorder %s119, %s121
      %p125 = scmp.eq.s32.totalorder %s22, 0
      %p126 = por %p124, %p125
      %p127 = scmp.ne.s32.totalorder %s119, %s121
      %p128 = scmp.eq.s32.totalorder %s27, 1
      %p129 = por %p127, %p128
      %p130 = scmp.ne.s32.totalorder %s121, %s122
      %p131 = scmp.eq.s32.totalorder %s27, 0
      %p132 = por %p130, %p131
      %p133 = scmp.ne.s32.totalorder %s121, %s122
      %p134 = scmp.eq.s32.totalorder %s28, 1
      %p135 = por %p133, %p134
      %p137 = scmp.ne.s32.totalorder %s122, %s136
      %p138 = scmp.eq.s32.totalorder %s28, 0
      %p139 = por %p137, %p138
      %s141 = sadd.s32 %s140, 1
      %p144 = scmp.eq.s32.totalorder %s22, 1
      %p145 = scmp.ne.s32.totalorder %s140, %s142
      %p146 = scmp.eq.s32.totalorder %s22, 0
      %p147 = por %p145, %p146
      %p148 = scmp.ne.s32.totalorder %s140, %s142
      %p149 = scmp.eq.s32.totalorder %s27, 1
      %p150 = por %p148, %p149
      %p151 = scmp.ne.s32.totalorder %s142, %s143
      %p152 = scmp.eq.s32.totalorder %s27, 0
      %p153 = por %p151, %p152
      %p154 = scmp.ne.s32.totalorder %s142, %s143
      %p155 = scmp.eq.s32.totalorder %s28, 1
      %p156 = por %p154, %p155
      %p158 = scmp.ne.s32.totalorder %s143, %s157
      %p159 = scmp.eq.s32.totalorder %s28, 0
      %p160 = por %p158, %p159
      %s162 = sadd.s32 %s161, 1
      %p165 = scmp.eq.s32.totalorder %s22, 1
      %p166 = scmp.ne.s32.totalorder %s161, %s163
      %p167 = scmp.eq.s32.totalorder %s22, 0
      %p168 = por %p166, %p167
      %p169 = scmp.ne.s32.totalorder %s161, %s163
      %p170 = scmp.eq.s32.totalorder %s27, 1
      %p171 = por %p169, %p170
      %p172 = scmp.ne.s32.totalorder %s163, %s164
      %p173 = scmp.eq.s32.totalorder %s27, 0
      %p174 = por %p172, %p173
      %p175 = scmp.ne.s32.totalorder %s163, %s164
      %p176 = scmp.eq.s32.totalorder %s28, 1
      %p177 = por %p175, %p176
      %p179 = scmp.ne.s32.totalorder %s164, %s178
      %p180 = scmp.eq.s32.totalorder %s28, 0
      %p181 = por %p179, %p180
      %s183 = sadd.s32 %s182, 1
      %p186 = scmp.eq.s32.totalorder %s22, 1
      %p187 = scmp.ne.s32.totalorder %s182, %s184
      %p188 = scmp.eq.s32.totalorder %s22, 0
      %p189 = por %p187, %p188
      %p190 = scmp.ne.s32.totalorder %s182, %s184
      %p191 = scmp.eq.s32.totalorder %s27, 1
      %p192 = por %p190, %p191
      %p193 = scmp.ne.s32.totalorder %s184, %s185
      %p194 = scmp.eq.s32.totalorder %s27, 0
      %p195 = por %p193, %p194
      %p196 = scmp.ne.s32.totalorder %s184, %s185
      %p197 = scmp.eq.s32.totalorder %s28, 1
      %p198 = por %p196, %p197
      %p200 = scmp.ne.s32.totalorder %s185, %s199
      %p201 = scmp.eq.s32.totalorder %s28, 0
      %p202 = por %p200, %p201
      %s204 = sadd.s32 %s203, 1
      %p207 = scmp.eq.s32.totalorder %s22, 1
      %p208 = scmp.ne.s32.totalorder %s203, %s205
      %p209 = scmp.eq.s32.totalorder %s22, 0
      %p210 = por %p208, %p209
      %p211 = scmp.ne.s32.totalorder %s203, %s205
      %p212 = scmp.eq.s32.totalorder %s27, 1
      %p213 = por %p211, %p212
      %p214 = scmp.ne.s32.totalorder %s205, %s206
      %p215 = scmp.eq.s32.totalorder %s27, 0
      %p216 = por %p214, %p215
      %p217 = scmp.ne.s32.totalorder %s205, %s206
      %p218 = scmp.eq.s32.totalorder %s28, 1
      %p219 = por %p217, %p218
      %p221 = scmp.ne.s32.totalorder %s206, %s220
      %p222 = scmp.eq.s32.totalorder %s28, 0
      %p223 = por %p221, %p222
      %s225 = sadd.s32 %s224, 1
      %p228 = scmp.eq.s32.totalorder %s22, 1
      %p229 = scmp.ne.s32.totalorder %s224, %s226
      %p230 = scmp.eq.s32.totalorder %s22, 0
      %p231 = por %p229, %p230
      %p232 = scmp.ne.s32.totalorder %s224, %s226
      %p233 = scmp.eq.s32.totalorder %s27, 1
      %p234 = por %p232, %p233
      %p235 = scmp.ne.s32.totalorder %s226, %s227
      %p236 = scmp.eq.s32.totalorder %s27, 0
      %p237 = por %p235, %p236
      %p238 = scmp.ne.s32.totalorder %s226, %s227
      %p239 = scmp.eq.s32.totalorder %s28, 1
      %p240 = por %p238, %p239
      %p242 = scmp.ne.s32.totalorder %s227, %s241
      %p243 = scmp.eq.s32.totalorder %s28, 0
      %p244 = por %p242, %p243
      %s245 = ssub.s32 %s22, %s29
      %p246 = scmp.eq.s32.totalorder %s245, 0
      %s248 = sadd.s32 %s247, 1
      %s249 = scalar_select %p246, %s247, %s248
      %p252 = pneg %p246
      %p253 = scmp.eq.s32.totalorder %s22, 1
      %p254 = por %p252, %p253
      %p255 = scmp.ne.s32.totalorder %s247, %s250
      %p256 = scmp.eq.s32.totalorder %s22, 0
      %p257 = por %p255, %p256
      %p258 = scmp.ne.s32.totalorder %s247, %s250
      %p259 = scmp.eq.s32.totalorder %s27, 1
      %p260 = por %p258, %p259
      %p261 = scmp.ne.s32.totalorder %s250, %s251
      %p262 = scmp.eq.s32.totalorder %s27, 0
      %p263 = por %p261, %p262
      %p264 = scmp.ne.s32.totalorder %s250, %s251
      %p265 = scmp.eq.s32.totalorder %s28, 1
      %p266 = por %p264, %p265
      %p268 = scmp.ne.s32.totalorder %s251, %s267
      %p269 = scmp.eq.s32.totalorder %s28, 0
      %p270 = por %p268, %p269
      %p271 = scmp.le.s32.totalorder 1, %s22
      %p272 = scmp.lt.s32.totalorder %s22, 3
      %p273 = pnand %p271, %p272
      %p274 = pneg %p273
      // Predicated region
      $region9: #{yolo_backbone_forward.1} parent=5 // pred_check
        _
      $region10: #{yolo_backbone_forward.1} parent=5 // pred_check_branch
        %276 = sbr.rel (%p273) target = $region12
      $region11: #{yolo_backbone_forward.1} parent=5 // pred_region
        %s277 = ssub.s32 %s22, 1
        // Predicated region
        $region13: #{yolo_backbone_forward.1} parent=11 // pred_check
          %p278 = pneg %p69
        $region14: #{yolo_backbone_forward.1} parent=11 // pred_check_branch
          %280 = sbr.rel (%p278) target = $region16
        $region15: #{yolo_backbone_forward.1} parent=11 // pred_region
          _
        $region16: #{yolo_backbone_forward.1} parent=11 // pred_fallthru
          _
        // Predicated region
        $region17: #{yolo_backbone_forward.1} parent=11 // pred_check
          %p281 = pneg %p90
        $region18: #{yolo_backbone_forward.1} parent=11 // pred_check_branch
          %283 = sbr.rel (%p281) target = $region20
        $region19: #{yolo_backbone_forward.1} parent=11 // pred_region
          %s285 = ssub.s32 18432, 18432
          %286 = vsyncadd [#allocation3], %s285
          %s287 = sshll.u32 [#allocation2], 4
          %s288 = int_to_ptr.vmem [resolvable:$true] %s287
          %293 = dma.hbm_to_vmem [thread:$0]  %s2, 18432, %s288, [#allocation3], 128, 128, 8
        $region20: #{yolo_backbone_forward.1} parent=11 // pred_fallthru
          _
        // Predicated region
        $region21: #{yolo_backbone_forward.1} parent=11 // pred_check
          %p294 = pneg %p111
        $region22: #{yolo_backbone_forward.1} parent=11 // pred_check_branch
          %296 = sbr.rel (%p294) target = $region24
        $region23: #{yolo_backbone_forward.1} parent=11 // pred_region
          _
        $region24: #{yolo_backbone_forward.1} parent=11 // pred_fallthru
          _
        // Predicated region
        $region25: #{yolo_backbone_forward.1} parent=11 // pred_check
          %p297 = pneg %p132
        $region26: #{yolo_backbone_forward.1} parent=11 // pred_check_branch
          %299 = sbr.rel (%p297) target = $region28
        $region27: #{yolo_backbone_forward.1} parent=11 // pred_region
          %s301 = ssub.s32 18432, 18432
          %302 = vsyncadd [#allocation6], %s301
          %s303 = sshll.u32 [#allocation5], 4
          %s304 = int_to_ptr.vmem [resolvable:$true] %s303
          %309 = dma.hbm_to_vmem [thread:$0]  %s4, 18432, %s304, [#allocation6], 128, 128, 8
        $region28: #{yolo_backbone_forward.1} parent=11 // pred_fallthru
          _
        // Predicated region
        $region29: #{yolo_backbone_forward.1} parent=11 // pred_check
          %p310 = pneg %p153
        $region30: #{yolo_backbone_forward.1} parent=11 // pred_check_branch
          %312 = sbr.rel (%p310) target = $region32
        $region31: #{yolo_backbone_forward.1} parent=11 // pred_region
          _
        $region32: #{yolo_backbone_forward.1} parent=11 // pred_fallthru
          _
        // Predicated region
        $region33: #{yolo_backbone_forward.1} parent=11 // pred_check
          %p313 = pneg %p174
        $region34: #{yolo_backbone_forward.1} parent=11 // pred_check_branch
          %315 = sbr.rel (%p313) target = $region36
        $region35: #{yolo_backbone_forward.1} parent=11 // pred_region
          %s317 = ssub.s32 18432, 18432
          %318 = vsyncadd [#allocation6], %s317
          %s319 = sshll.u32 [#allocation7], 4
          %s320 = int_to_ptr.vmem [resolvable:$true] %s319
          %325 = dma.hbm_to_vmem [thread:$0]  %s6, 18432, %s320, [#allocation6], 128, 128, 8
        $region36: #{yolo_backbone_forward.1} parent=11 // pred_fallthru
          _
        // Predicated region
        $region37: #{yolo_backbone_forward.1} parent=11 // pred_check
          %p326 = pneg %p195
        $region38: #{yolo_backbone_forward.1} parent=11 // pred_check_branch
          %328 = sbr.rel (%p326) target = $region40
        $region39: #{yolo_backbone_forward.1} parent=11 // pred_region
          _
        $region40: #{yolo_backbone_forward.1} parent=11 // pred_fallthru
          _
        // Predicated region
        $region41: #{yolo_backbone_forward.1} parent=11 // pred_check
          %p329 = pneg %p216
        $region42: #{yolo_backbone_forward.1} parent=11 // pred_check_branch
          %331 = sbr.rel (%p329) target = $region44
        $region43: #{yolo_backbone_forward.1} parent=11 // pred_region
          %s333 = ssub.s32 16384, 16384
          %334 = vsyncadd [#allocation9], %s333
          %s335 = sshll.u32 [#allocation8], 4
          %s336 = int_to_ptr.vmem [resolvable:$true] %s335
          %341 = dma.hbm_to_vmem [thread:$0]  %s8, 16384, %s336, [#allocation9], 128, 128, 8
        $region44: #{yolo_backbone_forward.1} parent=11 // pred_fallthru
          _
        // Predicated region
        $region45: #{yolo_backbone_forward.1} parent=11 // pred_check
          %p342 = pneg %p237
        $region46: #{yolo_backbone_forward.1} parent=11 // pred_check_branch
          %344 = sbr.rel (%p342) target = $region48
        $region47: #{yolo_backbone_forward.1} parent=11 // pred_region
          _
        $region48: #{yolo_backbone_forward.1} parent=11 // pred_fallthru
          _
      $region12: #{yolo_backbone_forward.1} parent=5 // pred_fallthru
        _
      %p345 = scmp.lt.s32.totalorder %s22, 2
      // Predicated region
      $region49: #{yolo_backbone_forward.1} parent=5 // pred_check
        %p346 = pneg %p345
      $region50: #{yolo_backbone_forward.1} parent=5 // pred_check_branch
        %348 = sbr.rel (%p346) target = $region52
      $region51: #{yolo_backbone_forward.1} parent=5 // pred_region
        // Predicated region
        $region53: #{yolo_backbone_forward.1} parent=51 // pred_check
          %p349 = pneg %p42
        $region54: #{yolo_backbone_forward.1} parent=51 // pred_check_branch
          %351 = sbr.rel (%p349) target = $region56
        $region55: #{yolo_backbone_forward.1} parent=51 // pred_region
          %p352 = scmp.lt.s32.totalorder %s22, 1
          %s353 = scalar_select %p352, %s22, 1
          %s354 = smul.addr %s353, 32
          %s355 = smul.addr %s354, 8
          %s356 = scalar_lea.vmem %s0, %s355
        $region56: #{yolo_backbone_forward.1} parent=51 // pred_fallthru
          _
      $region52: #{yolo_backbone_forward.1} parent=5 // pred_fallthru
        _
      %p357 = scmp.le.s32.totalorder 1, %s22
      %p358 = scmp.lt.s32.totalorder %s22, 3
      %p359 = pnand %p357, %p358
      %p360 = pneg %p359
      // Predicated region
      $region57: #{yolo_backbone_forward.1} parent=5 // pred_check
        _
      $region58: #{yolo_backbone_forward.1} parent=5 // pred_check_branch
        %362 = sbr.rel (%p359) target = $region60
      $region59: #{yolo_backbone_forward.1} parent=5 // pred_region
        %s363 = ssub.s32 %s22, 1
        // Predicated region
        $region61: #{yolo_backbone_forward.1} parent=59 // pred_check
          %p364 = pneg %p90
        $region62: #{yolo_backbone_forward.1} parent=59 // pred_check_branch
          %366 = sbr.rel (%p364) target = $region64
        $region63: #{yolo_backbone_forward.1} parent=59 // pred_region
          %367 = dma.done [#allocation3], 18432
        $region64: #{yolo_backbone_forward.1} parent=59 // pred_fallthru
          _
        // Predicated region
        $region65: #{yolo_backbone_forward.1} parent=59 // pred_check
          %p368 = pneg %p132
        $region66: #{yolo_backbone_forward.1} parent=59 // pred_check_branch
          %370 = sbr.rel (%p368) target = $region68
        $region67: #{yolo_backbone_forward.1} parent=59 // pred_region
          %371 = dma.done [#allocation6], 18432
        $region68: #{yolo_backbone_forward.1} parent=59 // pred_fallthru
          _
        // Predicated region
        $region69: #{yolo_backbone_forward.1} parent=59 // pred_check
          %p372 = pneg %p174
        $region70: #{yolo_backbone_forward.1} parent=59 // pred_check_branch
          %374 = sbr.rel (%p372) target = $region72
        $region71: #{yolo_backbone_forward.1} parent=59 // pred_region
          %375 = dma.done [#allocation6], 18432
        $region72: #{yolo_backbone_forward.1} parent=59 // pred_fallthru
          _
        // Predicated region
        $region73: #{yolo_backbone_forward.1} parent=59 // pred_check
          %p376 = pneg %p216
        $region74: #{yolo_backbone_forward.1} parent=59 // pred_check_branch
          %378 = sbr.rel (%p376) target = $region76
        $region75: #{yolo_backbone_forward.1} parent=59 // pred_region
          %379 = dma.done [#allocation9], 16384
        $region76: #{yolo_backbone_forward.1} parent=59 // pred_fallthru
          _
        %p380 = scmp.lt.s32.totalorder %s27, 1
        %s381 = scalar_select %p380, %s27, 1
        %s382 = smul.addr %s381, 32
        %s383 = smul.addr %s382, 8
        %s384 = scalar_lea.vmem %s0, %s383
        %p385 = pneg %p48
        %p386 = pneg %p45
        %p387 = pneg %p69
        %p388 = pneg %p66
        %p389 = pneg %p90
        %p390 = pneg %p87
        %p391 = pneg %p111
        %p392 = pneg %p108
        %p393 = pneg %p132
        %p394 = pneg %p129
        %p395 = pneg %p153
        %p396 = pneg %p150
        %p397 = pneg %p174
        %p398 = pneg %p171
        %p399 = pneg %p195
        %p400 = pneg %p192
        %p401 = pneg %p216
        %p402 = pneg %p213
        %p403 = pneg %p237
        %p404 = pneg %p234
        %p405 = pneg %p263
        %p406 = pneg %p260
        %s407 = sand.u32 %s250, 1
        %s408 = scalar_lea.sflag [#allocation4], %s407
        %s409 = sand.u32 %s250, 1
        %s410 = smul.addr %s409, 16
        %s411 = scalar_lea.vmem [#allocation10], %s410
        %p412 = scmp.lt.s32.totalorder %s27, 1
        %s413 = scalar_select %p412, %s27, 1
        %s414 = smul.addr %s413, 32
        %s415 = smul.addr %s414, 8
        %s416 = scalar_lea.vmem %s0, %s415
        %v417 = vld [vmem:[%s416] sm:$0xff]
        %v418 = vld [vmem:[%s416 + $0x8] sm:$0xff]
        %v419 = vld [vmem:[%s416 + $0x10] sm:$0xff]
        %v420 = vld [vmem:[%s416 + $0x18] sm:$0xff]
        %v421 = vld [vmem:[%s416 + $0x20] sm:$0xff]
        %v422 = vld [vmem:[%s416 + $0x28] sm:$0xff]
        %v423 = vld [vmem:[%s416 + $0x30] sm:$0xff]
        %v424 = vld [vmem:[%s416 + $0x38] sm:$0xff]
        %v425 = vld [vmem:[%s416 + $0x40] sm:$0xff]
        %v426 = vld [vmem:[%s416 + $0x48] sm:$0xff]
        %v427 = vld [vmem:[%s416 + $0x50] sm:$0xff]
        %v428 = vld [vmem:[%s416 + $0x58] sm:$0xff]
        %v429 = vld [vmem:[%s416 + $0x60] sm:$0xff]
        %v430 = vld [vmem:[%s416 + $0x68] sm:$0xff]
        %v431 = vld [vmem:[%s416 + $0x70] sm:$0xff]
        %v432 = vld [vmem:[%s416 + $0x78] sm:$0xff]
        %v433 = vld [vmem:[%s416 + $0x80] sm:$0xff]
        %v434 = vld [vmem:[%s416 + $0x88] sm:$0xff]
        %v435 = vld [vmem:[%s416 + $0x90] sm:$0xff]
        %v436 = vld [vmem:[%s416 + $0x98] sm:$0xff]
        %v437 = vld [vmem:[%s416 + $0xa0] sm:$0xff]
        %v438 = vld [vmem:[%s416 + $0xa8] sm:$0xff]
        %v439 = vld [vmem:[%s416 + $0xb0] sm:$0xff]
        %v440 = vld [vmem:[%s416 + $0xb8] sm:$0xff]
        %v441 = vld [vmem:[%s416 + $0xc0] sm:$0xff]
        %v442 = vld [vmem:[%s416 + $0xc8] sm:$0xff]
        %v443 = vld [vmem:[%s416 + $0xd0] sm:$0xff]
        %v444 = vld [vmem:[%s416 + $0xd8] sm:$0xff]
        %v445 = vld [vmem:[%s416 + $0xe0] sm:$0xff]
        %v446 = vld [vmem:[%s416 + $0xe8] sm:$0xff]
        %v447 = vld [vmem:[%s416 + $0xf0] sm:$0xff]
        %v448 = vld [vmem:[%s416 + $0xf8] sm:$0xff]
        %v449 = vld [vmem:[%s1] sm:$0xff]
        %v450 = vld [vmem:[%s1 + $0x8] sm:$0xff]
        %v451 = vld [vmem:[%s1 + $0x10] sm:$0xff]
        %v452 = vld [vmem:[%s1 + $0x18] sm:$0xff]
        %v453 = vld [vmem:[%s1 + $0x20] sm:$0xff]
        %v454 = vld [vmem:[%s1 + $0x28] sm:$0xff]
        %v455 = vld [vmem:[%s1 + $0x30] sm:$0xff]
        %v456 = vld [vmem:[%s1 + $0x38] sm:$0xff]
        %v457 = vld [vmem:[%s1 + $0x40] sm:$0xff]
        %v458 = vld [vmem:[%s1 + $0x48] sm:$0xff]
        %v459 = vld [vmem:[%s1 + $0x50] sm:$0xff]
        %v460 = vld [vmem:[%s1 + $0x58] sm:$0xff]
        %v461 = vld [vmem:[%s1 + $0x60] sm:$0xff]
        %v462 = vld [vmem:[%s1 + $0x68] sm:$0xff]
        %v463 = vld [vmem:[%s1 + $0x70] sm:$0xff]
        %v464 = vld [vmem:[%s1 + $0x78] sm:$0xff]
        %465 = vmatprep.subr.mxu0 0.0
        %466 = vmatpush1.msra.mxu0 %v417
        %467 = vmatprep.subr.mxu0 0.0
        %468 = vmatpush1.msra.mxu0 %v418
        %469 = vmatprep.subr.mxu0 0.0
        %470 = vmatpush1.msra.mxu0 %v419
        %471 = vmatprep.subr.mxu0 0.0
        %472 = vmatpush1.msra.mxu0 %v420
        %473 = vmatprep.subr.mxu0 0.0
        %474 = vmatpush1.msra.mxu0 %v421
        %475 = vmatprep.subr.mxu0 0.0
        %476 = vmatpush1.msra.mxu0 %v422
        %477 = vmatprep.subr.mxu0 0.0
        %478 = vmatpush1.msra.mxu0 %v423
        %479 = vmatprep.subr.mxu0 0.0
        %480 = vmatpush1.msra.mxu0 %v424
        %481 = vmatprep.subr.mxu0 0.0
        %482 = vmatpush1.msra.mxu0 %v425
        %483 = vmatprep.subr.mxu0 0.0
        %484 = vmatpush1.msra.mxu0 %v426
        %485 = vmatprep.subr.mxu0 0.0
        %486 = vmatpush1.msra.mxu0 %v427
        %487 = vmatprep.subr.mxu0 0.0
        %488 = vmatpush1.msra.mxu0 %v428
        %489 = vmatprep.subr.mxu0 0.0
        %490 = vmatpush1.msra.mxu0 %v429
        %491 = vmatprep.subr.mxu0 0.0
        %492 = vmatpush1.msra.mxu0 %v430
        %493 = vmatprep.subr.mxu0 0.0
        %494 = vmatpush1.msra.mxu0 %v431
        %495 = vmatprep.subr.mxu0 0.0
        %496 = vmatpush1.msra.mxu0 %v432
        %497 = vmatprep.subr.mxu0 0.0
        %498 = vmatpush1.msra.mxu0 %v433
        %499 = vmatprep.subr.mxu0 0.0
        %500 = vmatpush1.msra.mxu0 %v434
        %501 = vmatprep.subr.mxu0 0.0
        %502 = vmatpush1.msra.mxu0 %v435
        %503 = vmatprep.subr.mxu0 0.0
        %504 = vmatpush1.msra.mxu0 %v436
        %505 = vmatprep.subr.mxu0 0.0
        %506 = vmatpush1.msra.mxu0 %v437
        %507 = vmatprep.subr.mxu0 0.0
        %508 = vmatpush1.msra.mxu0 %v438
        %509 = vmatprep.subr.mxu0 0.0
        %510 = vmatpush1.msra.mxu0 %v439
        %511 = vmatprep.subr.mxu0 0.0
        %512 = vmatpush1.msra.mxu0 %v440
        %513 = vmatprep.subr.mxu0 0.0
        %514 = vmatpush1.msra.mxu0 %v441
        %515 = vmatprep.subr.mxu0 0.0
        %516 = vmatpush1.msra.mxu0 %v442
        %517 = vmatprep.subr.mxu0 0.0
        %518 = vmatpush1.msra.mxu0 %v443
        %519 = vmatprep.subr.mxu0 0.0
        %520 = vmatpush1.msra.mxu0 %v444
        %521 = vmatprep.subr.mxu0 0.0
        %522 = vmatpush1.msra.mxu0 %v445
        %523 = vmatprep.subr.mxu0 0.0
        %524 = vmatpush1.msra.mxu0 %v446
        %525 = vmatprep.subr.mxu0 0.0
        %526 = vmatpush1.msra.mxu0 %v447
        %527 = vmatprep.subr.mxu0 0.0
        %528 = vmatpush1.msra.mxu0 %v448
        %529 = vmatprep.mubr.f32.mxu0 %v450
        %530 = vmatmul.mubr.f32.gmra.mrb[0].mxu0 %v449
        %v531 = vpop.f32.mrb[0].mxu0
        %v532 = vadd.f32 0.0, %v531
        %v533 = vpop.f32.mrb[0].mxu0
        %534 = vmatprep.mubr.f32.mxu0 %v452
        %535 = vmatmul.mubr.f32.gmra.mrb[0].mxu0 %v451
        %v536 = vpop.f32.mrb[0].mxu0
        %v537 = vadd.f32 0.0, %v536
        %v538 = vpop.f32.mrb[0].mxu0
        %539 = vmatprep.mubr.f32.mxu0 %v454
        %540 = vmatmul.mubr.f32.gmra.mrb[0].mxu0 %v453
        %v541 = vpop.f32.mrb[0].mxu0
        %v542 = vadd.f32 0.0, %v541
        %v543 = vpop.f32.mrb[0].mxu0
        %544 = vmatprep.mubr.f32.mxu0 %v456
        %545 = vmatmul.mubr.f32.gmra.mrb[0].mxu0 %v455
        %v546 = vpop.f32.mrb[0].mxu0
        %v547 = vadd.f32 0.0, %v546
        %v548 = vpop.f32.mrb[0].mxu0
        %549 = vmatprep.mubr.f32.mxu0 %v458
        %550 = vmatmul.mubr.f32.gmra.mrb[0].mxu0 %v457
        %v551 = vpop.f32.mrb[0].mxu0
        %v552 = vadd.f32 0.0, %v551
        %v553 = vpop.f32.mrb[0].mxu0
        %554 = vmatprep.mubr.f32.mxu0 %v460
        %555 = vmatmul.mubr.f32.gmra.mrb[0].mxu0 %v459
        %v556 = vpop.f32.mrb[0].mxu0
        %v557 = vadd.f32 0.0, %v556
        %v558 = vpop.f32.mrb[0].mxu0
        %559 = vmatprep.mubr.f32.mxu0 %v462
        %560 = vmatmul.mubr.f32.gmra.mrb[0].mxu0 %v461
        %v561 = vpop.f32.mrb[0].mxu0
        %v562 = vadd.f32 0.0, %v561
        %v563 = vpop.f32.mrb[0].mxu0
        %564 = vmatprep.mubr.f32.mxu0 %v464
        %565 = vmatmul.mubr.f32.gmra.mrb[0].mxu0 %v463
        %v566 = vpop.f32.mrb[0].mxu0
        %v567 = vadd.f32 0.0, %v566
        %v568 = vpop.f32.mrb[0].mxu0
        %569 = vdwg.mxu0
        %v570 = vld [vmem:[#allocation2] sm:$0xff]
        %v571 = vld [vmem:[#allocation2 + $0x8] sm:$0xff]
        %v572 = vld [vmem:[#allocation2 + $0x10] sm:$0xff]
        %v573 = vld [vmem:[#allocation2 + $0x18] sm:$0xff]
        %v574 = vld [vmem:[#allocation2 + $0x20] sm:$0xff]
        %v575 = vld [vmem:[#allocation2 + $0x28] sm:$0xff]
        %v576 = vld [vmem:[#allocation2 + $0x30] sm:$0xff]
        %v577 = vld [vmem:[#allocation2 + $0x38] sm:$0xff]
        %v578 = vld [vmem:[#allocation2 + $0x40] sm:$0xff]
        %v579 = vld [vmem:[#allocation2 + $0x48] sm:$0xff]
        %v580 = vld [vmem:[#allocation2 + $0x50] sm:$0xff]
        %v581 = vld [vmem:[#allocation2 + $0x58] sm:$0xff]
        %v582 = vld [vmem:[#allocation2 + $0x60] sm:$0xff]
        %v583 = vld [vmem:[#allocation2 + $0x68] sm:$0xff]
        %v584 = vld [vmem:[#allocation2 + $0x70] sm:$0xff]
        %v585 = vld [vmem:[#allocation2 + $0x78] sm:$0xff]
        %s586 = scalar_lea.vmem %s1, 128
        %v587 = vld [vmem:[%s586] sm:$0xff]
        %v588 = vld [vmem:[%s586 + $0x8] sm:$0xff]
        %v589 = vld [vmem:[%s586 + $0x10] sm:$0xff]
        %v590 = vld [vmem:[%s586 + $0x18] sm:$0xff]
        %v591 = vld [vmem:[%s586 + $0x20] sm:$0xff]
        %v592 = vld [vmem:[%s586 + $0x28] sm:$0xff]
        %v593 = vld [vmem:[%s586 + $0x30] sm:$0xff]
        %v594 = vld [vmem:[%s586 + $0x38] sm:$0xff]
        %v595 = vld [vmem:[%s586 + $0x40] sm:$0xff]
        %v596 = vld [vmem:[%s586 + $0x48] sm:$0xff]
        %v597 = vld [vmem:[%s586 + $0x50] sm:$0xff]
        %v598 = vld [vmem:[%s586 + $0x58] sm:$0xff]
        %v599 = vld [vmem:[%s586 + $0x60] sm:$0xff]
        %v600 = vld [vmem:[%s586 + $0x68] sm:$0xff]
        %v601 = vld [vmem:[%s586 + $0x70] sm:$0xff]
        %v602 = vld [vmem:[%s586 + $0x78] sm:$0xff]
        %603 = vmatprep.subr.mxu0 0.0
        %604 = vmatpush1.msra.mxu0 %v417
        %605 = vmatprep.subr.mxu0 0.0
        %606 = vmatpush1.msra.mxu0 %v418
        %607 = vmatprep.subr.mxu0 0.0
        %608 = vmatpush1.msra.mxu0 %v419
        %609 = vmatprep.subr.mxu0 0.0
        %610 = vmatpush1.msra.mxu0 %v420
        %611 = vmatprep.subr.mxu0 0.0
        %612 = vmatpush1.msra.mxu0 %v421
        %613 = vmatprep.subr.mxu0 0.0
        %614 = vmatpush1.msra.mxu0 %v422
        %615 = vmatprep.subr.mxu0 0.0
        %616 = vmatpush1.msra.mxu0 %v423
        %617 = vmatprep.subr.mxu0 0.0
        %618 = vmatpush1.msra.mxu0 %v424
        %619 = vmatprep.subr.mxu0 0.0
        %620 = vmatpush1.msra.mxu0 %v425
        %621 = vmatprep.subr.mxu0 0.0
        %622 = vmatpush1.msra.mxu0 %v426
        %623 = vmatprep.subr.mxu0 0.0
        %624 = vmatpush1.msra.mxu0 %v427
        %625 = vmatprep.subr.mxu0 0.0
        %626 = vmatpush1.msra.mxu0 %v428
        %627 = vmatprep.subr.mxu0 0.0
        %628 = vmatpush1.msra.mxu0 %v429
        %629 = vmatprep.subr.mxu0 0.0
        %630 = vmatpush1.msra.mxu0 %v430
        %631 = vmatprep.subr.mxu0 0.0
        %632 = vmatpush1.msra.mxu0 %v431
        %633 = vmatprep.subr.mxu0 0.0
        %634 = vmatpush1.msra.mxu0 %v432
        %635 = vmatprep.subr.mxu0 0.0
        %636 = vmatpush1.msra.mxu0 %v433
        %637 = vmatprep.subr.mxu0 0.0
        %638 = vmatpush1.msra.mxu0 %v434
        %639 = vmatprep.subr.mxu0 0.0
        %640 = vmatpush1.msra.mxu0 %v435
        %641 = vmatprep.subr.mxu0 0.0
        %642 = vmatpush1.msra.mxu0 %v436
        %643 = vmatprep.subr.mxu0 0.0
        %644 = vmatpush1.msra.mxu0 %v437
        %645 = vmatprep.subr.mxu0 0.0
        %646 = vmatpush1.msra.mxu0 %v438
        %647 = vmatprep.subr.mxu0 0.0
        %648 = vmatpush1.msra.mxu0 %v439
        %649 = vmatprep.subr.mxu0 0.0
        %650 = vmatpush1.msra.mxu0 %v440
        %651 = vmatprep.subr.mxu0 0.0
        %652 = vmatpush1.msra.mxu0 %v441
        %653 = vmatprep.subr.mxu0 0.0
        %654 = vmatpush1.msra.mxu0 %v442
        %655 = vmatprep.subr.mxu0 0.0
        %656 = vmatpush1.msra.mxu0 %v443
        %657 = vmatprep.subr.mxu0 0.0
        %658 = vmatpush1.msra.mxu0 %v444
        %659 = vmatprep.subr.mxu0 0.0
        %660 = vmatpush1.msra.mxu0 %v445
        %661 = vmatprep.subr.mxu0 0.0
        %662 = vmatpush1.msra.mxu0 %v446
        %663 = vmatprep.subr.mxu0 0.0
        %664 = vmatpush1.msra.mxu0 %v447
        %665 = vmatprep.subr.mxu0 0.0
        %666 = vmatpush1.msra.mxu0 %v448
        %667 = vmatprep.mubr.f32.mxu0 %v588
        %668 = vmatmul.mubr.f32.gmra.mrb[0].mxu0 %v587
        %v669 = vpop.f32.mrb[0].mxu0
        %v670 = vadd.f32 0.0, %v669
        %v671 = vpop.f32.mrb[0].mxu0
        %672 = vmatprep.mubr.f32.mxu0 %v590
        %673 = vmatmul.mubr.f32.gmra.mrb[0].mxu0 %v589
        %v674 = vpop.f32.mrb[0].mxu0
        %v675 = vadd.f32 0.0, %v674
        %v676 = vpop.f32.mrb[0].mxu0
        %677 = vmatprep.mubr.f32.mxu0 %v592
        %678 = vmatmul.mubr.f32.gmra.mrb[0].mxu0 %v591
        %v679 = vpop.f32.mrb[0].mxu0
        %v680 = vadd.f32 0.0, %v679
        %v681 = vpop.f32.mrb[0].mxu0
        %682 = vmatprep.mubr.f32.mxu0 %v594
        %683 = vmatmul.mubr.f32.gmra.mrb[0].mxu0 %v593
        %v684 = vpop.f32.mrb[0].mxu0
        %v685 = vadd.f32 0.0, %v684
        %v686 = vpop.f32.mrb[0].mxu0
        %687 = vmatprep.mubr.f32.mxu0 %v596
        %688 = vmatmul.mubr.f32.gmra.mrb[0].mxu0 %v595
        %v689 = vpop.f32.mrb[0].mxu0
        %v690 = vadd.f32 0.0, %v689
        %v691 = vpop.f32.mrb[0].mxu0
        %692 = vmatprep.mubr.f32.mxu0 %v598
        %693 = vmatmul.mubr.f32.gmra.mrb[0].mxu0 %v597
        %v694 = vpop.f32.mrb[0].mxu0
        %v695 = vadd.f32 0.0, %v694
        %v696 = vpop.f32.mrb[0].mxu0
        %697 = vmatprep.mubr.f32.mxu0 %v600
        %698 = vmatmul.mubr.f32.gmra.mrb[0].mxu0 %v599
        %v699 = vpop.f32.mrb[0].mxu0
        %v700 = vadd.f32 0.0, %v699
        %v701 = vpop.f32.mrb[0].mxu0
        %702 = vmatprep.mubr.f32.mxu0 %v602
        %703 = vmatmul.mubr.f32.gmra.mrb[0].mxu0 %v601
        %v704 = vpop.f32.mrb[0].mxu0
        %v705 = vadd.f32 0.0, %v704
        %v706 = vpop.f32.mrb[0].mxu0
        %707 = vdwg.mxu0
        %s708 = scalar_lea.vmem [#allocation2], 128
        %v709 = vld [vmem:[%s708] sm:$0xff]
        %v710 = vld [vmem:[%s708 + $0x8] sm:$0xff]
        %v711 = vld [vmem:[%s708 + $0x10] sm:$0xff]
        %v712 = vld [vmem:[%s708 + $0x18] sm:$0xff]
        %v713 = vld [vmem:[%s708 + $0x20] sm:$0xff]
        %v714 = vld [vmem:[%s708 + $0x28] sm:$0xff]
        %v715 = vld [vmem:[%s708 + $0x30] sm:$0xff]
        %v716 = vld [vmem:[%s708 + $0x38] sm:$0xff]
        %v717 = vld [vmem:[%s708 + $0x40] sm:$0xff]
        %v718 = vld [vmem:[%s708 + $0x48] sm:$0xff]
        %v719 = vld [vmem:[%s708 + $0x50] sm:$0xff]
        %v720 = vld [vmem:[%s708 + $0x58] sm:$0xff]
        %v721 = vld [vmem:[%s708 + $0x60] sm:$0xff]
        %v722 = vld [vmem:[%s708 + $0x68] sm:$0xff]
        %v723 = vld [vmem:[%s708 + $0x70] sm:$0xff]
        %v724 = vld [vmem:[%s708 + $0x78] sm:$0xff]
        %725 = vmatprep.subr.mxu0 0.0
        %726 = vmatpush1.msra.mxu0 %v709
        %727 = vmatprep.subr.mxu0 0.0
        %728 = vmatpush1.msra.mxu0 %v710
        %729 = vmatprep.subr.mxu0 0.0
        %730 = vmatpush1.msra.mxu0 %v711
        %731 = vmatprep.subr.mxu0 0.0
        %732 = vmatpush1.msra.mxu0 %v712
        %733 = vmatprep.subr.mxu0 0.0
        %734 = vmatpush1.msra.mxu0 %v713
        %735 = vmatprep.subr.mxu0 0.0
        %736 = vmatpush1.msra.mxu0 %v714
        %737 = vmatprep.subr.mxu0 0.0
        %738 = vmatpush1.msra.mxu0 %v715
        %739 = vmatprep.subr.mxu0 0.0
        %740 = vmatpush1.msra.mxu0 %v716
        %741 = vmatprep.subr.mxu0 0.0
        %742 = vmatpush1.msra.mxu0 %v717
        %743 = vmatprep.subr.mxu0 0.0
        %744 = vmatpush1.msra.mxu0 %v718
        %745 = vmatprep.subr.mxu0 0.0
        %746 = vmatpush1.msra.mxu0 %v719
        %747 = vmatprep.subr.mxu0 0.0
        %748 = vmatpush1.msra.mxu0 %v720
        %749 = vmatprep.subr.mxu0 0.0
        %750 = vmatpush1.msra.mxu0 %v721
        %751 = vmatprep.subr.mxu0 0.0
        %752 = vmatpush1.msra.mxu0 %v722
        %753 = vmatprep.subr.mxu0 0.0
        %754 = vmatpush1.msra.mxu0 %v723
        %755 = vmatprep.subr.mxu0 0.0
        %756 = vmatpush1.msra.mxu0 %v724
        %757 = vmatprep.subr.mxu0 0.0
        %758 = vmatpush1.msra.mxu0 0.0
        %759 = vmatprep.subr.mxu0 0.0
        %760 = vmatpush1.msra.mxu0 0.0
        %761 = vmatprep.subr.mxu0 0.0
        %762 = vmatpush1.msra.mxu0 0.0
        %763 = vmatprep.subr.mxu0 0.0
        %764 = vmatpush1.msra.mxu0 0.0
        %765 = vmatprep.subr.mxu0 0.0
        %766 = vmatpush1.msra.mxu0 0.0
        %767 = vmatprep.subr.mxu0 0.0
        %768 = vmatpush1.msra.mxu0 0.0
        %769 = vmatprep.subr.mxu0 0.0
        %770 = vmatpush1.msra.mxu0 0.0
        %771 = vmatprep.subr.mxu0 0.0
        %772 = vmatpush1.msra.mxu0 0.0
        %773 = vmatprep.subr.mxu0 0.0
        %774 = vmatpush1.msra.mxu0 0.0
        %775 = vmatprep.subr.mxu0 0.0
        %776 = vmatpush1.msra.mxu0 0.0
        %777 = vmatprep.subr.mxu0 0.0
        %778 = vmatpush1.msra.mxu0 0.0
        %779 = vmatprep.subr.mxu0 0.0
        %780 = vmatpush1.msra.mxu0 0.0
        %781 = vmatprep.subr.mxu0 0.0
        %782 = vmatpush1.msra.mxu0 0.0
        %783 = vmatprep.subr.mxu0 0.0
        %784 = vmatpush1.msra.mxu0 0.0
        %785 = vmatprep.subr.mxu0 0.0
        %786 = vmatpush1.msra.mxu0 0.0
        %787 = vmatprep.subr.mxu0 0.0
        %788 = vmatpush1.msra.mxu0 0.0
        %789 = vmatprep.mubr.f32.mxu0 0.0
        %790 = vmatmul.mubr.f32.gmra.mrb[0].mxu0 %v670
        %v791 = vpop.f32.mrb[0].mxu0
        %v792 = vadd.f32 0.0, %v791
        %v793 = vpop.f32.mrb[0].mxu0
        %794 = vmatprep.mubr.f32.mxu0 0.0
        %795 = vmatmul.mubr.f32.gmra.mrb[0].mxu0 %v675
        %v796 = vpop.f32.mrb[0].mxu0
        %v797 = vadd.f32 0.0, %v796
        %v798 = vpop.f32.mrb[0].mxu0
        %799 = vmatprep.mubr.f32.mxu0 0.0
        %800 = vmatmul.mubr.f32.gmra.mrb[0].mxu0 %v680
        %v801 = vpop.f32.mrb[0].mxu0
        %v802 = vadd.f32 0.0, %v801
        %v803 = vpop.f32.mrb[0].mxu0
        %804 = vmatprep.mubr.f32.mxu0 0.0
        %805 = vmatmul.mubr.f32.gmra.mrb[0].mxu0 %v685
        %v806 = vpop.f32.mrb[0].mxu0
        %v807 = vadd.f32 0.0, %v806
        %v808 = vpop.f32.mrb[0].mxu0
        %809 = vmatprep.mubr.f32.mxu0 0.0
        %810 = vmatmul.mubr.f32.gmra.mrb[0].mxu0 %v690
        %v811 = vpop.f32.mrb[0].mxu0
        %v812 = vadd.f32 0.0, %v811
        %v813 = vpop.f32.mrb[0].mxu0
        %814 = vmatprep.mubr.f32.mxu0 0.0
        %815 = vmatmul.mubr.f32.gmra.mrb[0].mxu0 %v695
        %v816 = vpop.f32.mrb[0].mxu0
        %v817 = vadd.f32 0.0, %v816
        %v818 = vpop.f32.mrb[0].mxu0
        %819 = vmatprep.mubr.f32.mxu0 0.0
        %820 = vmatmul.mubr.f32.gmra.mrb[0].mxu0 %v700
        %v821 = vpop.f32.mrb[0].mxu0
        %v822 = vadd.f32 0.0, %v821
        %v823 = vpop.f32.mrb[0].mxu0
        %824 = vmatprep.mubr.f32.mxu0 0.0
        %825 = vmatmul.mubr.f32.gmra.mrb[0].mxu0 %v705
        %v826 = vpop.f32.mrb[0].mxu0
        %v827 = vadd.f32 0.0, %v826
        %v828 = vpop.f32.mrb[0].mxu0
        %829 = vdwg.mxu0
        %830 = vmatprep.subr.mxu0 0.0
        %831 = vmatpush1.msra.mxu0 %v570
        %832 = vmatprep.subr.mxu0 0.0
        %833 = vmatpush1.msra.mxu0 %v571
        %834 = vmatprep.subr.mxu0 0.0
        %835 = vmatpush1.msra.mxu0 %v572
        %836 = vmatprep.subr.mxu0 0.0
        %837 = vmatpush1.msra.mxu0 %v573
        %838 = vmatprep.subr.mxu0 0.0
        %839 = vmatpush1.msra.mxu0 %v574
        %840 = vmatprep.subr.mxu0 0.0
        %841 = vmatpush1.msra.mxu0 %v575
        %842 = vmatprep.subr.mxu0 0.0
        %843 = vmatpush1.msra.mxu0 %v576
        %844 = vmatprep.subr.mxu0 0.0
        %845 = vmatpush1.msra.mxu0 %v577
        %846 = vmatprep.subr.mxu0 0.0
        %847 = vmatpush1.msra.mxu0 %v578
        %848 = vmatprep.subr.mxu0 0.0
        %849 = vmatpush1.msra.mxu0 %v579
        %850 = vmatprep.subr.mxu0 0.0
        %851 = vmatpush1.msra.mxu0 %v580
        %852 = vmatprep.subr.mxu0 0.0
        %853 = vmatpush1.msra.mxu0 %v581
        %854 = vmatprep.subr.mxu0 0.0
        %855 = vmatpush1.msra.mxu0 %v582
        %856 = vmatprep.subr.mxu0 0.0
        %857 = vmatpush1.msra.mxu0 %v583
        %858 = vmatprep.subr.mxu0 0.0
        %859 = vmatpush1.msra.mxu0 %v584
        %860 = vmatprep.subr.mxu0 0.0
        %861 = vmatpush1.msra.mxu0 %v585
        %862 = vmatprep.subr.mxu0 0.0
        %863 = vmatpush1.msra.mxu0 0.0
        %864 = vmatprep.subr.mxu0 0.0
        %865 = vmatpush1.msra.mxu0 0.0
        %866 = vmatprep.subr.mxu0 0.0
        %867 = vmatpush1.msra.mxu0 0.0
        %868 = vmatprep.subr.mxu0 0.0
        %869 = vmatpush1.msra.mxu0 0.0
        %870 = vmatprep.subr.mxu0 0.0
        %871 = vmatpush1.msra.mxu0 0.0
        %872 = vmatprep.subr.mxu0 0.0
        %873 = vmatpush1.msra.mxu0 0.0
        %874 = vmatprep.subr.mxu0 0.0
        %875 = vmatpush1.msra.mxu0 0.0
        %876 = vmatprep.subr.mxu0 0.0
        %877 = vmatpush1.msra.mxu0 0.0
        %878 = vmatprep.subr.mxu0 0.0
        %879 = vmatpush1.msra.mxu0 0.0
        %880 = vmatprep.subr.mxu0 0.0
        %881 = vmatpush1.msra.mxu0 0.0
        %882 = vmatprep.subr.mxu0 0.0
        %883 = vmatpush1.msra.mxu0 0.0
        %884 = vmatprep.subr.mxu0 0.0
        %885 = vmatpush1.msra.mxu0 0.0
        %886 = vmatprep.subr.mxu0 0.0
        %887 = vmatpush1.msra.mxu0 0.0
        %888 = vmatprep.subr.mxu0 0.0
        %889 = vmatpush1.msra.mxu0 0.0
        %890 = vmatprep.subr.mxu0 0.0
        %891 = vmatpush1.msra.mxu0 0.0
        %892 = vmatprep.subr.mxu0 0.0
        %893 = vmatpush1.msra.mxu0 0.0
        %894 = vmatprep.mubr.f32.mxu0 0.0
        %895 = vmatmul.mubr.f32.gmra.mrb[0].mxu0 %v532
        %v896 = vpop.f32.mrb[0].mxu0
        %v897 = vadd.f32 %v792, %v896
        %v898 = vpop.f32.mrb[0].mxu0
        %899 = vmatprep.mubr.f32.mxu0 0.0
        %900 = vmatmul.mubr.f32.gmra.mrb[0].mxu0 %v537
        %v901 = vpop.f32.mrb[0].mxu0
        %v902 = vadd.f32 %v797, %v901
        %v903 = vpop.f32.mrb[0].mxu0
        %904 = vmatprep.mubr.f32.mxu0 0.0
        %905 = vmatmul.mubr.f32.gmra.mrb[0].mxu0 %v542
        %v906 = vpop.f32.mrb[0].mxu0
        %v907 = vadd.f32 %v802, %v906
        %v908 = vpop.f32.mrb[0].mxu0
        %909 = vmatprep.mubr.f32.mxu0 0.0
        %910 = vmatmul.mubr.f32.gmra.mrb[0].mxu0 %v547
        %v911 = vpop.f32.mrb[0].mxu0
        %v912 = vadd.f32 %v807, %v911
        %v913 = vpop.f32.mrb[0].mxu0
        %914 = vmatprep.mubr.f32.mxu0 0.0
        %915 = vmatmul.mubr.f32.gmra.mrb[0].mxu0 %v552
        %v916 = vpop.f32.mrb[0].mxu0
        %v917 = vadd.f32 %v812, %v916
        %v918 = vpop.f32.mrb[0].mxu0
        %919 = vmatprep.mubr.f32.mxu0 0.0
        %920 = vmatmul.mubr.f32.gmra.mrb[0].mxu0 %v557
        %v921 = vpop.f32.mrb[0].mxu0
        %v922 = vadd.f32 %v817, %v921
        %v923 = vpop.f32.mrb[0].mxu0
        %924 = vmatprep.mubr.f32.mxu0 0.0
        %925 = vmatmul.mubr.f32.gmra.mrb[0].mxu0 %v562
        %v926 = vpop.f32.mrb[0].mxu0
        %v927 = vadd.f32 %v822, %v926
        %v928 = vpop.f32.mrb[0].mxu0
        %929 = vmatprep.mubr.f32.mxu0 0.0
        %930 = vmatmul.mubr.f32.gmra.mrb[0].mxu0 %v567
        %v931 = vpop.f32.mrb[0].mxu0
        %v932 = vadd.f32 %v827, %v931
        %v933 = vpop.f32.mrb[0].mxu0
        %934 = vdwg.mxu0
        %s935 = scalar_lea.vmem %s1, 256
        %v936 = vld [vmem:[%s935] sm:$0xff]
        %v937 = vld [vmem:[%s935 + $0x8] sm:$0xff]
        %v938 = vld [vmem:[%s935 + $0x10] sm:$0xff]
        %v939 = vld [vmem:[%s935 + $0x18] sm:$0xff]
        %v940 = vld [vmem:[%s935 + $0x20] sm:$0xff]
        %v941 = vld [vmem:[%s935 + $0x28] sm:$0xff]
        %v942 = vld [vmem:[%s935 + $0x30] sm:$0xff]
        %v943 = vld [vmem:[%s935 + $0x38] sm:$0xff]
        %v944 = vld [vmem:[%s935 + $0x40] sm:$0xff]
        %v945 = vld [vmem:[%s935 + $0x48] sm:$0xff]
        %v946 = vld [vmem:[%s935 + $0x50] sm:$0xff]
        %v947 = vld [vmem:[%s935 + $0x58] sm:$0xff]
        %v948 = vld [vmem:[%s935 + $0x60] sm:$0xff]
        %v949 = vld [vmem:[%s935 + $0x68] sm:$0xff]
        %v950 = vld [vmem:[%s935 + $0x70] sm:$0xff]
        %v951 = vld [vmem:[%s935 + $0x78] sm:$0xff]
        %952 = vmatprep.subr.mxu0 0.0
        %953 = vmatpush1.msra.mxu0 %v417
        %954 = vmatprep.subr.mxu0 0.0
        %955 = vmatpush1.msra.mxu0 %v418
        %956 = vmatprep.subr.mxu0 0.0
        %957 = vmatpush1.msra.mxu0 %v419
        %958 = vmatprep.subr.mxu0 0.0
        %959 = vmatpush1.msra.mxu0 %v420
        %960 = vmatprep.subr.mxu0 0.0
        %961 = vmatpush1.msra.mxu0 %v421
        %962 = vmatprep.subr.mxu0 0.0
        %963 = vmatpush1.msra.mxu0 %v422
        %964 = vmatprep.subr.mxu0 0.0
        %965 = vmatpush1.msra.mxu0 %v423
        %966 = vmatprep.subr.mxu0 0.0
        %967 = vmatpush1.msra.mxu0 %v424
        %968 = vmatprep.subr.mxu0 0.0
        %969 = vmatpush1.msra.mxu0 %v425
        %970 = vmatprep.subr.mxu0 0.0
        %971 = vmatpush1.msra.mxu0 %v426
        %972 = vmatprep.subr.mxu0 0.0
        %973 = vmatpush1.msra.mxu0 %v427
        %974 = vmatprep.subr.mxu0 0.0
        %975 = vmatpush1.msra.mxu0 %v428
        %976 = vmatprep.subr.mxu0 0.0
        %977 = vmatpush1.msra.mxu0 %v429
        %978 = vmatprep.subr.mxu0 0.0
        %979 = vmatpush1.msra.mxu0 %v430
        %980 = vmatprep.subr.mxu0 0.0
        %981 = vmatpush1.msra.mxu0 %v431
        %982 = vmatprep.subr.mxu0 0.0
        %983 = vmatpush1.msra.mxu0 %v432
        %984 = vmatprep.subr.mxu0 0.0
        %985 = vmatpush1.msra.mxu0 %v433
        %986 = vmatprep.subr.mxu0 0.0
        %987 = vmatpush1.msra.mxu0 %v434
        %988 = vmatprep.subr.mxu0 0.0
        %989 = vmatpush1.msra.mxu0 %v435
        %990 = vmatprep.subr.mxu0 0.0
        %991 = vmatpush1.msra.mxu0 %v436
        %992 = vmatprep.subr.mxu0 0.0
        %993 = vmatpush1.msra.mxu0 %v437
        %994 = vmatprep.subr.mxu0 0.0
        %995 = vmatpush1.msra.mxu0 %v438
        %996 = vmatprep.subr.mxu0 0.0
        %997 = vmatpush1.msra.mxu0 %v439
        %998 = vmatprep.subr.mxu0 0.0
        %999 = vmatpush1.msra.mxu0 %v440
        %1000 = vmatprep.subr.mxu0 0.0
        %1001 = vmatpush1.msra.mxu0 %v441
        %1002 = vmatprep.subr.mxu0 0.0
        %1003 = vmatpush1.msra.mxu0 %v442
        %1004 = vmatprep.subr.mxu0 0.0
        %1005 = vmatpush1.msra.mxu0 %v443
        %1006 = vmatprep.subr.mxu0 0.0
        %1007 = vmatpush1.msra.mxu0 %v444
        %1008 = vmatprep.subr.mxu0 0.0
        %1009 = vmatpush1.msra.mxu0 %v445
        %1010 = vmatprep.subr.mxu0 0.0
        %1011 = vmatpush1.msra.mxu0 %v446
        %1012 = vmatprep.subr.mxu0 0.0
        %1013 = vmatpush1.msra.mxu0 %v447
        %1014 = vmatprep.subr.mxu0 0.0
        %1015 = vmatpush1.msra.mxu0 %v448
        %1016 = vmatprep.mubr.f32.mxu0 %v937
        %1017 = vmatmul.mubr.f32.gmra.mrb[0].mxu0 %v936
        %v1018 = vpop.f32.mrb[0].mxu0
        %v1019 = vadd.f32 0.0, %v1018
        %v1020 = vpop.f32.mrb[0].mxu0
        %1021 = vmatprep.mubr.f32.mxu0 %v939
        %1022 = vmatmul.mubr.f32.gmra.mrb[0].mxu0 %v938
        %v1023 = vpop.f32.mrb[0].mxu0
        %v1024 = vadd.f32 0.0, %v1023
        %v1025 = vpop.f32.mrb[0].mxu0
        %1026 = vmatprep.mubr.f32.mxu0 %v941
        %1027 = vmatmul.mubr.f32.gmra.mrb[0].mxu0 %v940
        %v1028 = vpop.f32.mrb[0].mxu0
        %v1029 = vadd.f32 0.0, %v1028
        %v1030 = vpop.f32.mrb[0].mxu0
        %1031 = vmatprep.mubr.f32.mxu0 %v943
        %1032 = vmatmul.mubr.f32.gmra.mrb[0].mxu0 %v942
        %v1033 = vpop.f32.mrb[0].mxu0
        %v1034 = vadd.f32 0.0, %v1033
        %v1035 = vpop.f32.mrb[0].mxu0
        %1036 = vmatprep.mubr.f32.mxu0 %v945
        %1037 = vmatmul.mubr.f32.gmra.mrb[0].mxu0 %v944
        %v1038 = vpop.f32.mrb[0].mxu0
        %v1039 = vadd.f32 0.0, %v1038
        %v1040 = vpop.f32.mrb[0].mxu0
        %1041 = vmatprep.mubr.f32.mxu0 %v947
        %1042 = vmatmul.mubr.f32.gmra.mrb[0].mxu0 %v946
        %v1043 = vpop.f32.mrb[0].mxu0
        %v1044 = vadd.f32 0.0, %v1043
        %v1045 = vpop.f32.mrb[0].mxu0
        %1046 = vmatprep.mubr.f32.mxu0 %v949
        %1047 = vmatmul.mubr.f32.gmra.mrb[0].mxu0 %v948
        %v1048 = vpop.f32.mrb[0].mxu0
        %v1049 = vadd.f32 0.0, %v1048
        %v1050 = vpop.f32.mrb[0].mxu0
        %1051 = vmatprep.mubr.f32.mxu0 %v951
        %1052 = vmatmul.mubr.f32.gmra.mrb[0].mxu0 %v950
        %v1053 = vpop.f32.mrb[0].mxu0
        %v1054 = vadd.f32 0.0, %v1053
        %v1055 = vpop.f32.mrb[0].mxu0
        %1056 = vdwg.mxu0
        %s1057 = scalar_lea.vmem [#allocation2], 256
        %v1058 = vld [vmem:[%s1057] sm:$0xff]
        %v1059 = vld [vmem:[%s1057 + $0x8] sm:$0xff]
        %v1060 = vld [vmem:[%s1057 + $0x10] sm:$0xff]
        %v1061 = vld [vmem:[%s1057 + $0x18] sm:$0xff]
        %v1062 = vld [vmem:[%s1057 + $0x20] sm:$0xff]
        %v1063 = vld [vmem:[%s1057 + $0x28] sm:$0xff]
        %v1064 = vld [vmem:[%s1057 + $0x30] sm:$0xff]
        %v1065 = vld [vmem:[%s1057 + $0x38] sm:$0xff]
        %v1066 = vld [vmem:[%s1057 + $0x40] sm:$0xff]
        %v1067 = vld [vmem:[%s1057 + $0x48] sm:$0xff]
        %v1068 = vld [vmem:[%s1057 + $0x50] sm:$0xff]
        %v1069 = vld [vmem:[%s1057 + $0x58] sm:$0xff]
        %v1070 = vld [vmem:[%s1057 + $0x60] sm:$0xff]
        %v1071 = vld [vmem:[%s1057 + $0x68] sm:$0xff]
        %v1072 = vld [vmem:[%s1057 + $0x70] sm:$0xff]
        %v1073 = vld [vmem:[%s1057 + $0x78] sm:$0xff]
        %1074 = vmatprep.subr.mxu0 0.0
        %1075 = vmatpush1.msra.mxu0 %v1058
        %1076 = vmatprep.subr.mxu0 0.0
        %1077 = vmatpush1.msra.mxu0 %v1059
        %1078 = vmatprep.subr.mxu0 0.0
        %1079 = vmatpush1.msra.mxu0 %v1060
        %1080 = vmatprep.subr.mxu0 0.0
        %1081 = vmatpush1.msra.mxu0 %v1061
        %1082 = vmatprep.subr.mxu0 0.0
        %1083 = vmatpush1.msra.mxu0 %v1062
        %1084 = vmatprep.subr.mxu0 0.0
        %1085 = vmatpush1.msra.mxu0 %v1063
        %1086 = vmatprep.subr.mxu0 0.0
        %1087 = vmatpush1.msra.mxu0 %v1064
        %1088 = vmatprep.subr.mxu0 0.0
        %1089 = vmatpush1.msra.mxu0 %v1065
        %1090 = vmatprep.subr.mxu0 0.0
        %1091 = vmatpush1.msra.mxu0 %v1066
        %1092 = vmatprep.subr.mxu0 0.0
        %1093 = vmatpush1.msra.mxu0 %v1067
        %1094 = vmatprep.subr.mxu0 0.0
        %1095 = vmatpush1.msra.mxu0 %v1068
        %1096 = vmatprep.subr.mxu0 0.0
        %1097 = vmatpush1.msra.mxu0 %v1069
        %1098 = vmatprep.subr.mxu0 0.0
        %1099 = vmatpush1.msra.mxu0 %v1070
        %1100 = vmatprep.subr.mxu0 0.0
        %1101 = vmatpush1.msra.mxu0 %v1071
        %1102 = vmatprep.subr.mxu0 0.0
        %1103 = vmatpush1.msra.mxu0 %v1072
        %1104 = vmatprep.subr.mxu0 0.0
        %1105 = vmatpush1.msra.mxu0 %v1073
        %1106 = vmatprep.subr.mxu0 0.0
        %1107 = vmatpush1.msra.mxu0 0.0
        %1108 = vmatprep.subr.mxu0 0.0
        %1109 = vmatpush1.msra.mxu0 0.0
        %1110 = vmatprep.subr.mxu0 0.0
        %1111 = vmatpush1.msra.mxu0 0.0
        %1112 = vmatprep.subr.mxu0 0.0
        %1113 = vmatpush1.msra.mxu0 0.0
        %1114 = vmatprep.subr.mxu0 0.0
        %1115 = vmatpush1.msra.mxu0 0.0
        %1116 = vmatprep.subr.mxu0 0.0
        %1117 = vmatpush1.msra.mxu0 0.0
        %1118 = vmatprep.subr.mxu0 0.0
        %1119 = vmatpush1.msra.mxu0 0.0
        %1120 = vmatprep.subr.mxu0 0.0
        %1121 = vmatpush1.msra.mxu0 0.0
        %1122 = vmatprep.subr.mxu0 0.0
        %1123 = vmatpush1.msra.mxu0 0.0
        %1124 = vmatprep.subr.mxu0 0.0
        %1125 = vmatpush1.msra.mxu0 0.0
        %1126 = vmatprep.subr.mxu0 0.0
        %1127 = vmatpush1.msra.mxu0 0.0
        %1128 = vmatprep.subr.mxu0 0.0
        %1129 = vmatpush1.msra.mxu0 0.0
        %1130 = vmatprep.subr.mxu0 0.0
        %1131 = vmatpush1.msra.mxu0 0.0
        %1132 = vmatprep.subr.mxu0 0.0
        %1133 = vmatpush1.msra.mxu0 0.0
        %1134 = vmatprep.subr.mxu0 0.0
        %1135 = vmatpush1.msra.mxu0 0.0
        %1136 = vmatprep.subr.mxu0 0.0
        %1137 = vmatpush1.msra.mxu0 0.0
        %1138 = vmatprep.mubr.f32.mxu0 0.0
        %1139 = vmatmul.mubr.f32.gmra.mrb[0].mxu0 %v1019
        %v1140 = vpop.f32.mrb[0].mxu0
        %v1141 = vadd.f32 0.0, %v1140
        %v1142 = vpop.f32.mrb[0].mxu0
        %1143 = vmatprep.mubr.f32.mxu0 0.0
        %1144 = vmatmul.mubr.f32.gmra.mrb[0].mxu0 %v1024
        %v1145 = vpop.f32.mrb[0].mxu0
        %v1146 = vadd.f32 0.0, %v1145
        %v1147 = vpop.f32.mrb[0].mxu0
        %1148 = vmatprep.mubr.f32.mxu0 0.0
        %1149 = vmatmul.mubr.f32.gmra.mrb[0].mxu0 %v1029
        %v1150 = vpop.f32.mrb[0].mxu0
        %v1151 = vadd.f32 0.0, %v1150
        %v1152 = vpop.f32.mrb[0].mxu0
        %1153 = vmatprep.mubr.f32.mxu0 0.0
        %1154 = vmatmul.mubr.f32.gmra.mrb[0].mxu0 %v1034
        %v1155 = vpop.f32.mrb[0].mxu0
        %v1156 = vadd.f32 0.0, %v1155
        %v1157 = vpop.f32.mrb[0].mxu0
        %1158 = vmatprep.mubr.f32.mxu0 0.0
        %1159 = vmatmul.mubr.f32.gmra.mrb[0].mxu0 %v1039
        %v1160 = vpop.f32.mrb[0].mxu0
        %v1161 = vadd.f32 0.0, %v1160
        %v1162 = vpop.f32.mrb[0].mxu0
        %1163 = vmatprep.mubr.f32.mxu0 0.0
        %1164 = vmatmul.mubr.f32.gmra.mrb[0].mxu0 %v1044
        %v1165 = vpop.f32.mrb[0].mxu0
        %v1166 = vadd.f32 0.0, %v1165
        %v1167 = vpop.f32.mrb[0].mxu0
        %1168 = vmatprep.mubr.f32.mxu0 0.0
        %1169 = vmatmul.mubr.f32.gmra.mrb[0].mxu0 %v1049
        %v1170 = vpop.f32.mrb[0].mxu0
        %v1171 = vadd.f32 0.0, %v1170
        %v1172 = vpop.f32.mrb[0].mxu0
        %1173 = vmatprep.mubr.f32.mxu0 0.0
        %1174 = vmatmul.mubr.f32.gmra.mrb[0].mxu0 %v1054
        %v1175 = vpop.f32.mrb[0].mxu0
        %v1176 = vadd.f32 0.0, %v1175
        %v1177 = vpop.f32.mrb[0].mxu0
        %1178 = vdwg.mxu0
        %v1179 = vadd.f32 %v897, %v1141
        %v1180 = vadd.f32 %v902, %v1146
        %v1181 = vadd.f32 %v907, %v1151
        %v1182 = vadd.f32 %v912, %v1156
        %v1183 = vadd.f32 %v917, %v1161
        %v1184 = vadd.f32 %v922, %v1166
        %v1185 = vadd.f32 %v927, %v1171
        %v1186 = vadd.f32 %v932, %v1176
        %s1187 = scalar_lea.vmem %s1, 384
        %v1188 = vld [vmem:[%s1187] sm:$0xff]
        %v1189 = vld [vmem:[%s1187 + $0x8] sm:$0xff]
        %v1190 = vld [vmem:[%s1187 + $0x10] sm:$0xff]
        %v1191 = vld [vmem:[%s1187 + $0x18] sm:$0xff]
        %v1192 = vld [vmem:[%s1187 + $0x20] sm:$0xff]
        %v1193 = vld [vmem:[%s1187 + $0x28] sm:$0xff]
        %v1194 = vld [vmem:[%s1187 + $0x30] sm:$0xff]
        %v1195 = vld [vmem:[%s1187 + $0x38] sm:$0xff]
        %v1196 = vld [vmem:[%s1187 + $0x40] sm:$0xff]
        %v1197 = vld [vmem:[%s1187 + $0x48] sm:$0xff]
        %v1198 = vld [vmem:[%s1187 + $0x50] sm:$0xff]
        %v1199 = vld [vmem:[%s1187 + $0x58] sm:$0xff]
        %v1200 = vld [vmem:[%s1187 + $0x60] sm:$0xff]
        %v1201 = vld [vmem:[%s1187 + $0x68] sm:$0xff]
        %v1202 = vld [vmem:[%s1187 + $0x70] sm:$0xff]
        %v1203 = vld [vmem:[%s1187 + $0x78] sm:$0xff]
        %1204 = vmatprep.subr.mxu0 0.0
        %1205 = vmatpush1.msra.mxu0 %v417
        %1206 = vmatprep.subr.mxu0 0.0
        %1207 = vmatpush1.msra.mxu0 %v418
        %1208 = vmatprep.subr.mxu0 0.0
        %1209 = vmatpush1.msra.mxu0 %v419
        %1210 = vmatprep.subr.mxu0 0.0
        %1211 = vmatpush1.msra.mxu0 %v420
        %1212 = vmatprep.subr.mxu0 0.0
        %1213 = vmatpush1.msra.mxu0 %v421
        %1214 = vmatprep.subr.mxu0 0.0
        %1215 = vmatpush1.msra.mxu0 %v422
        %1216 = vmatprep.subr.mxu0 0.0
        %1217 = vmatpush1.msra.mxu0 %v423
        %1218 = vmatprep.subr.mxu0 0.0
        %1219 = vmatpush1.msra.mxu0 %v424
        %1220 = vmatprep.subr.mxu0 0.0
        %1221 = vmatpush1.msra.mxu0 %v425
        %1222 = vmatprep.subr.mxu0 0.0
        %1223 = vmatpush1.msra.mxu0 %v426
        %1224 = vmatprep.subr.mxu0 0.0
        %1225 = vmatpush1.msra.mxu0 %v427
        %1226 = vmatprep.subr.mxu0 0.0
        %1227 = vmatpush1.msra.mxu0 %v428
        %1228 = vmatprep.subr.mxu0 0.0
        %1229 = vmatpush1.msra.mxu0 %v429
        %1230 = vmatprep.subr.mxu0 0.0
        %1231 = vmatpush1.msra.mxu0 %v430
        %1232 = vmatprep.subr.mxu0 0.0
        %1233 = vmatpush1.msra.mxu0 %v431
        %1234 = vmatprep.subr.mxu0 0.0
        %1235 = vmatpush1.msra.mxu0 %v432
        %1236 = vmatprep.subr.mxu0 0.0
        %1237 = vmatpush1.msra.mxu0 %v433
        %1238 = vmatprep.subr.mxu0 0.0
        %1239 = vmatpush1.msra.mxu0 %v434
        %1240 = vmatprep.subr.mxu0 0.0
        %1241 = vmatpush1.msra.mxu0 %v435
        %1242 = vmatprep.subr.mxu0 0.0
        %1243 = vmatpush1.msra.mxu0 %v436
        %1244 = vmatprep.subr.mxu0 0.0
        %1245 = vmatpush1.msra.mxu0 %v437
        %1246 = vmatprep.subr.mxu0 0.0
        %1247 = vmatpush1.msra.mxu0 %v438
        %1248 = vmatprep.subr.mxu0 0.0
        %1249 = vmatpush1.msra.mxu0 %v439
        %1250 = vmatprep.subr.mxu0 0.0
        %1251 = vmatpush1.msra.mxu0 %v440
        %1252 = vmatprep.subr.mxu0 0.0
        %1253 = vmatpush1.msra.mxu0 %v441
        %1254 = vmatprep.subr.mxu0 0.0
        %1255 = vmatpush1.msra.mxu0 %v442
        %1256 = vmatprep.subr.mxu0 0.0
        %1257 = vmatpush1.msra.mxu0 %v443
        %1258 = vmatprep.subr.mxu0 0.0
        %1259 = vmatpush1.msra.mxu0 %v444
        %1260 = vmatprep.subr.mxu0 0.0
        %1261 = vmatpush1.msra.mxu0 %v445
        %1262 = vmatprep.subr.mxu0 0.0
        %1263 = vmatpush1.msra.mxu0 %v446
        %1264 = vmatprep.subr.mxu0 0.0
        %1265 = vmatpush1.msra.mxu0 %v447
        %1266 = vmatprep.subr.mxu0 0.0
        %1267 = vmatpush1.msra.mxu0 %v448
        %1268 = vmatprep.mubr.f32.mxu0 %v1189
        %1269 = vmatmul.mubr.f32.gmra.mrb[0].mxu0 %v1188
        %v1270 = vpop.f32.mrb[0].mxu0
        %v1271 = vadd.f32 0.0, %v1270
        %v1272 = vpop.f32.mrb[0].mxu0
        %1273 = vmatprep.mubr.f32.mxu0 %v1191
        %1274 = vmatmul.mubr.f32.gmra.mrb[0].mxu0 %v1190
        %v1275 = vpop.f32.mrb[0].mxu0
        %v1276 = vadd.f32 0.0, %v1275
        %v1277 = vpop.f32.mrb[0].mxu0
        %1278 = vmatprep.mubr.f32.mxu0 %v1193
        %1279 = vmatmul.mubr.f32.gmra.mrb[0].mxu0 %v1192
        %v1280 = vpop.f32.mrb[0].mxu0
        %v1281 = vadd.f32 0.0, %v1280
        %v1282 = vpop.f32.mrb[0].mxu0
        %1283 = vmatprep.mubr.f32.mxu0 %v1195
        %1284 = vmatmul.mubr.f32.gmra.mrb[0].mxu0 %v1194
        %v1285 = vpop.f32.mrb[0].mxu0
        %v1286 = vadd.f32 0.0, %v1285
        %v1287 = vpop.f32.mrb[0].mxu0
        %1288 = vmatprep.mubr.f32.mxu0 %v1197
        %1289 = vmatmul.mubr.f32.gmra.mrb[0].mxu0 %v1196
        %v1290 = vpop.f32.mrb[0].mxu0
        %v1291 = vadd.f32 0.0, %v1290
        %v1292 = vpop.f32.mrb[0].mxu0
        %1293 = vmatprep.mubr.f32.mxu0 %v1199
        %1294 = vmatmul.mubr.f32.gmra.mrb[0].mxu0 %v1198
        %v1295 = vpop.f32.mrb[0].mxu0
        %v1296 = vadd.f32 0.0, %v1295
        %v1297 = vpop.f32.mrb[0].mxu0
        %1298 = vmatprep.mubr.f32.mxu0 %v1201
        %1299 = vmatmul.mubr.f32.gmra.mrb[0].mxu0 %v1200
        %v1300 = vpop.f32.mrb[0].mxu0
        %v1301 = vadd.f32 0.0, %v1300
        %v1302 = vpop.f32.mrb[0].mxu0
        %1303 = vmatprep.mubr.f32.mxu0 %v1203
        %1304 = vmatmul.mubr.f32.gmra.mrb[0].mxu0 %v1202
        %v1305 = vpop.f32.mrb[0].mxu0
        %v1306 = vadd.f32 0.0, %v1305
        %v1307 = vpop.f32.mrb[0].mxu0
        %1308 = vdwg.mxu0
        %s1309 = scalar_lea.vmem [#allocation2], 384
        %v1310 = vld [vmem:[%s1309] sm:$0xff]
        %v1311 = vld [vmem:[%s1309 + $0x8] sm:$0xff]
        %v1312 = vld [vmem:[%s1309 + $0x10] sm:$0xff]
        %v1313 = vld [vmem:[%s1309 + $0x18] sm:$0xff]
        %v1314 = vld [vmem:[%s1309 + $0x20] sm:$0xff]
        %v1315 = vld [vmem:[%s1309 + $0x28] sm:$0xff]
        %v1316 = vld [vmem:[%s1309 + $0x30] sm:$0xff]
        %v1317 = vld [vmem:[%s1309 + $0x38] sm:$0xff]
        %v1318 = vld [vmem:[%s1309 + $0x40] sm:$0xff]
        %v1319 = vld [vmem:[%s1309 + $0x48] sm:$0xff]
        %v1320 = vld [vmem:[%s1309 + $0x50] sm:$0xff]
        %v1321 = vld [vmem:[%s1309 + $0x58] sm:$0xff]
        %v1322 = vld [vmem:[%s1309 + $0x60] sm:$0xff]
        %v1323 = vld [vmem:[%s1309 + $0x68] sm:$0xff]
        %v1324 = vld [vmem:[%s1309 + $0x70] sm:$0xff]
        %v1325 = vld [vmem:[%s1309 + $0x78] sm:$0xff]
        %1326 = vmatprep.subr.mxu0 0.0
        %1327 = vmatpush1.msra.mxu0 %v1310
        %1328 = vmatprep.subr.mxu0 0.0
        %1329 = vmatpush1.msra.mxu0 %v1311
        %1330 = vmatprep.subr.mxu0 0.0
        %1331 = vmatpush1.msra.mxu0 %v1312
        %1332 = vmatprep.subr.mxu0 0.0
        %1333 = vmatpush1.msra.mxu0 %v1313
        %1334 = vmatprep.subr.mxu0 0.0
        %1335 = vmatpush1.msra.mxu0 %v1314
        %1336 = vmatprep.subr.mxu0 0.0
        %1337 = vmatpush1.msra.mxu0 %v1315
        %1338 = vmatprep.subr.mxu0 0.0
        %1339 = vmatpush1.msra.mxu0 %v1316
        %1340 = vmatprep.subr.mxu0 0.0
        %1341 = vmatpush1.msra.mxu0 %v1317
        %1342 = vmatprep.subr.mxu0 0.0
        %1343 = vmatpush1.msra.mxu0 %v1318
        %1344 = vmatprep.subr.mxu0 0.0
        %1345 = vmatpush1.msra.mxu0 %v1319
        %1346 = vmatprep.subr.mxu0 0.0
        %1347 = vmatpush1.msra.mxu0 %v1320
        %1348 = vmatprep.subr.mxu0 0.0
        %1349 = vmatpush1.msra.mxu0 %v1321
        %1350 = vmatprep.subr.mxu0 0.0
        %1351 = vmatpush1.msra.mxu0 %v1322
        %1352 = vmatprep.subr.mxu0 0.0
        %1353 = vmatpush1.msra.mxu0 %v1323
        %1354 = vmatprep.subr.mxu0 0.0
        %1355 = vmatpush1.msra.mxu0 %v1324
        %1356 = vmatprep.subr.mxu0 0.0
        %1357 = vmatpush1.msra.mxu0 %v1325
        %1358 = vmatprep.subr.mxu0 0.0
        %1359 = vmatpush1.msra.mxu0 0.0
        %1360 = vmatprep.subr.mxu0 0.0
        %1361 = vmatpush1.msra.mxu0 0.0
        %1362 = vmatprep.subr.mxu0 0.0
        %1363 = vmatpush1.msra.mxu0 0.0
        %1364 = vmatprep.subr.mxu0 0.0
        %1365 = vmatpush1.msra.mxu0 0.0
        %1366 = vmatprep.subr.mxu0 0.0
        %1367 = vmatpush1.msra.mxu0 0.0
        %1368 = vmatprep.subr.mxu0 0.0
        %1369 = vmatpush1.msra.mxu0 0.0
        %1370 = vmatprep.subr.mxu0 0.0
        %1371 = vmatpush1.msra.mxu0 0.0
        %1372 = vmatprep.subr.mxu0 0.0
        %1373 = vmatpush1.msra.mxu0 0.0
        %1374 = vmatprep.subr.mxu0 0.0
        %1375 = vmatpush1.msra.mxu0 0.0
        %1376 = vmatprep.subr.mxu0 0.0
        %1377 = vmatpush1.msra.mxu0 0.0
        %1378 = vmatprep.subr.mxu0 0.0
        %1379 = vmatpush1.msra.mxu0 0.0
        %1380 = vmatprep.subr.mxu0 0.0
        %1381 = vmatpush1.msra.mxu0 0.0
        %1382 = vmatprep.subr.mxu0 0.0
        %1383 = vmatpush1.msra.mxu0 0.0
        %1384 = vmatprep.subr.mxu0 0.0
        %1385 = vmatpush1.msra.mxu0 0.0
        %1386 = vmatprep.subr.mxu0 0.0
        %1387 = vmatpush1.msra.mxu0 0.0
        %1388 = vmatprep.subr.mxu0 0.0
        %1389 = vmatpush1.msra.mxu0 0.0
        %1390 = vmatprep.mubr.f32.mxu0 0.0
        %1391 = vmatmul.mubr.f32.gmra.mrb[0].mxu0 %v1271
        %v1392 = vpop.f32.mrb[0].mxu0
        %v1393 = vadd.f32 0.0, %v1392
        %v1394 = vpop.f32.mrb[0].mxu0
        %1395 = vmatprep.mubr.f32.mxu0 0.0
        %1396 = vmatmul.mubr.f32.gmra.mrb[0].mxu0 %v1276
        %v1397 = vpop.f32.mrb[0].mxu0
        %v1398 = vadd.f32 0.0, %v1397
        %v1399 = vpop.f32.mrb[0].mxu0
        %1400 = vmatprep.mubr.f32.mxu0 0.0
        %1401 = vmatmul.mubr.f32.gmra.mrb[0].mxu0 %v1281
        %v1402 = vpop.f32.mrb[0].mxu0
        %v1403 = vadd.f32 0.0, %v1402
        %v1404 = vpop.f32.mrb[0].mxu0
        %1405 = vmatprep.mubr.f32.mxu0 0.0
        %1406 = vmatmul.mubr.f32.gmra.mrb[0].mxu0 %v1286
        %v1407 = vpop.f32.mrb[0].mxu0
        %v1408 = vadd.f32 0.0, %v1407
        %v1409 = vpop.f32.mrb[0].mxu0
        %1410 = vmatprep.mubr.f32.mxu0 0.0
        %1411 = vmatmul.mubr.f32.gmra.mrb[0].mxu0 %v1291
        %v1412 = vpop.f32.mrb[0].mxu0
        %v1413 = vadd.f32 0.0, %v1412
        %v1414 = vpop.f32.mrb[0].mxu0
        %1415 = vmatprep.mubr.f32.mxu0 0.0
        %1416 = vmatmul.mubr.f32.gmra.mrb[0].mxu0 %v1296
        %v1417 = vpop.f32.mrb[0].mxu0
        %v1418 = vadd.f32 0.0, %v1417
        %v1419 = vpop.f32.mrb[0].mxu0
        %1420 = vmatprep.mubr.f32.mxu0 0.0
        %1421 = vmatmul.mubr.f32.gmra.mrb[0].mxu0 %v1301
        %v1422 = vpop.f32.mrb[0].mxu0
        %v1423 = vadd.f32 0.0, %v1422
        %v1424 = vpop.f32.mrb[0].mxu0
        %1425 = vmatprep.mubr.f32.mxu0 0.0
        %1426 = vmatmul.mubr.f32.gmra.mrb[0].mxu0 %v1306
        %v1427 = vpop.f32.mrb[0].mxu0
        %v1428 = vadd.f32 0.0, %v1427
        %v1429 = vpop.f32.mrb[0].mxu0
        %1430 = vdwg.mxu0
        %v1431 = vadd.f32 %v1179, %v1393
        %v1432 = vadd.f32 %v1180, %v1398
        %v1433 = vadd.f32 %v1181, %v1403
        %v1434 = vadd.f32 %v1182, %v1408
        %v1435 = vadd.f32 %v1183, %v1413
        %v1436 = vadd.f32 %v1184, %v1418
        %v1437 = vadd.f32 %v1185, %v1423
        %v1438 = vadd.f32 %v1186, %v1428
        %s1439 = scalar_lea.vmem %s1, 512
        %v1440 = vld [vmem:[%s1439] sm:$0xff]
        %v1441 = vld [vmem:[%s1439 + $0x8] sm:$0xff]
        %v1442 = vld [vmem:[%s1439 + $0x10] sm:$0xff]
        %v1443 = vld [vmem:[%s1439 + $0x18] sm:$0xff]
        %v1444 = vld [vmem:[%s1439 + $0x20] sm:$0xff]
        %v1445 = vld [vmem:[%s1439 + $0x28] sm:$0xff]
        %v1446 = vld [vmem:[%s1439 + $0x30] sm:$0xff]
        %v1447 = vld [vmem:[%s1439 + $0x38] sm:$0xff]
        %v1448 = vld [vmem:[%s1439 + $0x40] sm:$0xff]
        %v1449 = vld [vmem:[%s1439 + $0x48] sm:$0xff]
        %v1450 = vld [vmem:[%s1439 + $0x50] sm:$0xff]
        %v1451 = vld [vmem:[%s1439 + $0x58] sm:$0xff]
        %v1452 = vld [vmem:[%s1439 + $0x60] sm:$0xff]
        %v1453 = vld [vmem:[%s1439 + $0x68] sm:$0xff]
        %v1454 = vld [vmem:[%s1439 + $0x70] sm:$0xff]
        %v1455 = vld [vmem:[%s1439 + $0x78] sm:$0xff]
        %1456 = vmatprep.subr.mxu0 0.0
        %1457 = vmatpush1.msra.mxu0 %v417
        %1458 = vmatprep.subr.mxu0 0.0
        %1459 = vmatpush1.msra.mxu0 %v418
        %1460 = vmatprep.subr.mxu0 0.0
        %1461 = vmatpush1.msra.mxu0 %v419
        %1462 = vmatprep.subr.mxu0 0.0
        %1463 = vmatpush1.msra.mxu0 %v420
        %1464 = vmatprep.subr.mxu0 0.0
        %1465 = vmatpush1.msra.mxu0 %v421
        %1466 = vmatprep.subr.mxu0 0.0
        %1467 = vmatpush1.msra.mxu0 %v422
        %1468 = vmatprep.subr.mxu0 0.0
        %1469 = vmatpush1.msra.mxu0 %v423
        %1470 = vmatprep.subr.mxu0 0.0
        %1471 = vmatpush1.msra.mxu0 %v424
        %1472 = vmatprep.subr.mxu0 0.0
        %1473 = vmatpush1.msra.mxu0 %v425
        %1474 = vmatprep.subr.mxu0 0.0
        %1475 = vmatpush1.msra.mxu0 %v426
        %1476 = vmatprep.subr.mxu0 0.0
        %1477 = vmatpush1.msra.mxu0 %v427
        %1478 = vmatprep.subr.mxu0 0.0
        %1479 = vmatpush1.msra.mxu0 %v428
        %1480 = vmatprep.subr.mxu0 0.0
        %1481 = vmatpush1.msra.mxu0 %v429
        %1482 = vmatprep.subr.mxu0 0.0
        %1483 = vmatpush1.msra.mxu0 %v430
        %1484 = vmatprep.subr.mxu0 0.0
        %1485 = vmatpush1.msra.mxu0 %v431
        %1486 = vmatprep.subr.mxu0 0.0
        %1487 = vmatpush1.msra.mxu0 %v432
        %1488 = vmatprep.subr.mxu0 0.0
        %1489 = vmatpush1.msra.mxu0 %v433
        %1490 = vmatprep.subr.mxu0 0.0
        %1491 = vmatpush1.msra.mxu0 %v434
        %1492 = vmatprep.subr.mxu0 0.0
        %1493 = vmatpush1.msra.mxu0 %v435
        %1494 = vmatprep.subr.mxu0 0.0
        %1495 = vmatpush1.msra.mxu0 %v436
        %1496 = vmatprep.subr.mxu0 0.0
        %1497 = vmatpush1.msra.mxu0 %v437
        %1498 = vmatprep.subr.mxu0 0.0
        %1499 = vmatpush1.msra.mxu0 %v438
        %1500 = vmatprep.subr.mxu0 0.0
        %1501 = vmatpush1.msra.mxu0 %v439
        %1502 = vmatprep.subr.mxu0 0.0
        %1503 = vmatpush1.msra.mxu0 %v440
        %1504 = vmatprep.subr.mxu0 0.0
        %1505 = vmatpush1.msra.mxu0 %v441
        %1506 = vmatprep.subr.mxu0 0.0
        %1507 = vmatpush1.msra.mxu0 %v442
        %1508 = vmatprep.subr.mxu0 0.0
        %1509 = vmatpush1.msra.mxu0 %v443
        %1510 = vmatprep.subr.mxu0 0.0
        %1511 = vmatpush1.msra.mxu0 %v444
        %1512 = vmatprep.subr.mxu0 0.0
        %1513 = vmatpush1.msra.mxu0 %v445
        %1514 = vmatprep.subr.mxu0 0.0
        %1515 = vmatpush1.msra.mxu0 %v446
        %1516 = vmatprep.subr.mxu0 0.0
        %1517 = vmatpush1.msra.mxu0 %v447
        %1518 = vmatprep.subr.mxu0 0.0
        %1519 = vmatpush1.msra.mxu0 %v448
        %1520 = vmatprep.mubr.f32.mxu0 %v1441
        %1521 = vmatmul.mubr.f32.gmra.mrb[0].mxu0 %v1440
        %v1522 = vpop.f32.mrb[0].mxu0
        %v1523 = vadd.f32 0.0, %v1522
        %v1524 = vpop.f32.mrb[0].mxu0
        %1525 = vmatprep.mubr.f32.mxu0 %v1443
        %1526 = vmatmul.mubr.f32.gmra.mrb[0].mxu0 %v1442
        %v1527 = vpop.f32.mrb[0].mxu0
        %v1528 = vadd.f32 0.0, %v1527
        %v1529 = vpop.f32.mrb[0].mxu0
        %1530 = vmatprep.mubr.f32.mxu0 %v1445
        %1531 = vmatmul.mubr.f32.gmra.mrb[0].mxu0 %v1444
        %v1532 = vpop.f32.mrb[0].mxu0
        %v1533 = vadd.f32 0.0, %v1532
        %v1534 = vpop.f32.mrb[0].mxu0
        %1535 = vmatprep.mubr.f32.mxu0 %v1447
        %1536 = vmatmul.mubr.f32.gmra.mrb[0].mxu0 %v1446
        %v1537 = vpop.f32.mrb[0].mxu0
        %v1538 = vadd.f32 0.0, %v1537
        %v1539 = vpop.f32.mrb[0].mxu0
        %1540 = vmatprep.mubr.f32.mxu0 %v1449
        %1541 = vmatmul.mubr.f32.gmra.mrb[0].mxu0 %v1448
        %v1542 = vpop.f32.mrb[0].mxu0
        %v1543 = vadd.f32 0.0, %v1542
        %v1544 = vpop.f32.mrb[0].mxu0
        %1545 = vmatprep.mubr.f32.mxu0 %v1451
        %1546 = vmatmul.mubr.f32.gmra.mrb[0].mxu0 %v1450
        %v1547 = vpop.f32.mrb[0].mxu0
        %v1548 = vadd.f32 0.0, %v1547
        %v1549 = vpop.f32.mrb[0].mxu0
        %1550 = vmatprep.mubr.f32.mxu0 %v1453
        %1551 = vmatmul.mubr.f32.gmra.mrb[0].mxu0 %v1452
        %v1552 = vpop.f32.mrb[0].mxu0
        %v1553 = vadd.f32 0.0, %v1552
        %v1554 = vpop.f32.mrb[0].mxu0
        %1555 = vmatprep.mubr.f32.mxu0 %v1455
        %1556 = vmatmul.mubr.f32.gmra.mrb[0].mxu0 %v1454
        %v1557 = vpop.f32.mrb[0].mxu0
        %v1558 = vadd.f32 0.0, %v1557
        %v1559 = vpop.f32.mrb[0].mxu0
        %1560 = vdwg.mxu0
        %s1561 = scalar_lea.vmem [#allocation2], 512
        %v1562 = vld [vmem:[%s1561] sm:$0xff]
        %v1563 = vld [vmem:[%s1561 + $0x8] sm:$0xff]
        %v1564 = vld [vmem:[%s1561 + $0x10] sm:$0xff]
        %v1565 = vld [vmem:[%s1561 + $0x18] sm:$0xff]
        %v1566 = vld [vmem:[%s1561 + $0x20] sm:$0xff]
        %v1567 = vld [vmem:[%s1561 + $0x28] sm:$0xff]
        %v1568 = vld [vmem:[%s1561 + $0x30] sm:$0xff]
        %v1569 = vld [vmem:[%s1561 + $0x38] sm:$0xff]
        %v1570 = vld [vmem:[%s1561 + $0x40] sm:$0xff]
        %v1571 = vld [vmem:[%s1561 + $0x48] sm:$0xff]
        %v1572 = vld [vmem:[%s1561 + $0x50] sm:$0xff]
        %v1573 = vld [vmem:[%s1561 + $0x58] sm:$0xff]
        %v1574 = vld [vmem:[%s1561 + $0x60] sm:$0xff]
        %v1575 = vld [vmem:[%s1561 + $0x68] sm:$0xff]
        %v1576 = vld [vmem:[%s1561 + $0x70] sm:$0xff]
        %v1577 = vld [vmem:[%s1561 + $0x78] sm:$0xff]
        %1578 = vmatprep.subr.mxu0 0.0
        %1579 = vmatpush1.msra.mxu0 %v1562
        %1580 = vmatprep.subr.mxu0 0.0
        %1581 = vmatpush1.msra.mxu0 %v1563
        %1582 = vmatprep.subr.mxu0 0.0
        %1583 = vmatpush1.msra.mxu0 %v1564
        %1584 = vmatprep.subr.mxu0 0.0
        %1585 = vmatpush1.msra.mxu0 %v1565
        %1586 = vmatprep.subr.mxu0 0.0
        %1587 = vmatpush1.msra.mxu0 %v1566
        %1588 = vmatprep.subr.mxu0 0.0
        %1589 = vmatpush1.msra.mxu0 %v1567
        %1590 = vmatprep.subr.mxu0 0.0
        %1591 = vmatpush1.msra.mxu0 %v1568
        %1592 = vmatprep.subr.mxu0 0.0
        %1593 = vmatpush1.msra.mxu0 %v1569
        %1594 = vmatprep.subr.mxu0 0.0
        %1595 = vmatpush1.msra.mxu0 %v1570
        %1596 = vmatprep.subr.mxu0 0.0
        %1597 = vmatpush1.msra.mxu0 %v1571
        %1598 = vmatprep.subr.mxu0 0.0
        %1599 = vmatpush1.msra.mxu0 %v1572
        %1600 = vmatprep.subr.mxu0 0.0
        %1601 = vmatpush1.msra.mxu0 %v1573
        %1602 = vmatprep.subr.mxu0 0.0
        %1603 = vmatpush1.msra.mxu0 %v1574
        %1604 = vmatprep.subr.mxu0 0.0
        %1605 = vmatpush1.msra.mxu0 %v1575
        %1606 = vmatprep.subr.mxu0 0.0
        %1607 = vmatpush1.msra.mxu0 %v1576
        %1608 = vmatprep.subr.mxu0 0.0
        %1609 = vmatpush1.msra.mxu0 %v1577
        %1610 = vmatprep.subr.mxu0 0.0
        %1611 = vmatpush1.msra.mxu0 0.0
        %1612 = vmatprep.subr.mxu0 0.0
        %1613 = vmatpush1.msra.mxu0 0.0
        %1614 = vmatprep.subr.mxu0 0.0
        %1615 = vmatpush1.msra.mxu0 0.0
        %1616 = vmatprep.subr.mxu0 0.0
        %1617 = vmatpush1.msra.mxu0 0.0
        %1618 = vmatprep.subr.mxu0 0.0
        %1619 = vmatpush1.msra.mxu0 0.0
        %1620 = vmatprep.subr.mxu0 0.0
        %1621 = vmatpush1.msra.mxu0 0.0
        %1622 = vmatprep.subr.mxu0 0.0
        %1623 = vmatpush1.msra.mxu0 0.0
        %1624 = vmatprep.subr.mxu0 0.0
        %1625 = vmatpush1.msra.mxu0 0.0
        %1626 = vmatprep.subr.mxu0 0.0
        %1627 = vmatpush1.msra.mxu0 0.0
        %1628 = vmatprep.subr.mxu0 0.0
        %1629 = vmatpush1.msra.mxu0 0.0
        %1630 = vmatprep.subr.mxu0 0.0
        %1631 = vmatpush1.msra.mxu0 0.0
        %1632 = vmatprep.subr.mxu0 0.0
        %1633 = vmatpush1.msra.mxu0 0.0
        %1634 = vmatprep.subr.mxu0 0.0
        %1635 = vmatpush1.msra.mxu0 0.0
        %1636 = vmatprep.subr.mxu0 0.0
        %1637 = vmatpush1.msra.mxu0 0.0
        %1638 = vmatprep.subr.mxu0 0.0
        %1639 = vmatpush1.msra.mxu0 0.0
        %1640 = vmatprep.subr.mxu0 0.0
        %1641 = vmatpush1.msra.mxu0 0.0
        %1642 = vmatprep.mubr.f32.mxu0 0.0
        %1643 = vmatmul.mubr.f32.gmra.mrb[0].mxu0 %v1523
        %v1644 = vpop.f32.mrb[0].mxu0
        %v1645 = vadd.f32 0.0, %v1644
        %v1646 = vpop.f32.mrb[0].mxu0
        %1647 = vmatprep.mubr.f32.mxu0 0.0
        %1648 = vmatmul.mubr.f32.gmra.mrb[0].mxu0 %v1528
        %v1649 = vpop.f32.mrb[0].mxu0
        %v1650 = vadd.f32 0.0, %v1649
        %v1651 = vpop.f32.mrb[0].mxu0
        %1652 = vmatprep.mubr.f32.mxu0 0.0
        %1653 = vmatmul.mubr.f32.gmra.mrb[0].mxu0 %v1533
        %v1654 = vpop.f32.mrb[0].mxu0
        %v1655 = vadd.f32 0.0, %v1654
        %v1656 = vpop.f32.mrb[0].mxu0
        %1657 = vmatprep.mubr.f32.mxu0 0.0
        %1658 = vmatmul.mubr.f32.gmra.mrb[0].mxu0 %v1538
        %v1659 = vpop.f32.mrb[0].mxu0
        %v1660 = vadd.f32 0.0, %v1659
        %v1661 = vpop.f32.mrb[0].mxu0
        %1662 = vmatprep.mubr.f32.mxu0 0.0
        %1663 = vmatmul.mubr.f32.gmra.mrb[0].mxu0 %v1543
        %v1664 = vpop.f32.mrb[0].mxu0
        %v1665 = vadd.f32 0.0, %v1664
        %v1666 = vpop.f32.mrb[0].mxu0
        %1667 = vmatprep.mubr.f32.mxu0 0.0
        %1668 = vmatmul.mubr.f32.gmra.mrb[0].mxu0 %v1548
        %v1669 = vpop.f32.mrb[0].mxu0
        %v1670 = vadd.f32 0.0, %v1669
        %v1671 = vpop.f32.mrb[0].mxu0
        %1672 = vmatprep.mubr.f32.mxu0 0.0
        %1673 = vmatmul.mubr.f32.gmra.mrb[0].mxu0 %v1553
        %v1674 = vpop.f32.mrb[0].mxu0
        %v1675 = vadd.f32 0.0, %v1674
        %v1676 = vpop.f32.mrb[0].mxu0
        %1677 = vmatprep.mubr.f32.mxu0 0.0
        %1678 = vmatmul.mubr.f32.gmra.mrb[0].mxu0 %v1558
        %v1679 = vpop.f32.mrb[0].mxu0
        %v1680 = vadd.f32 0.0, %v1679
        %v1681 = vpop.f32.mrb[0].mxu0
        %1682 = vdwg.mxu0
        %v1683 = vadd.f32 %v1431, %v1645
        %v1684 = vadd.f32 %v1432, %v1650
        %v1685 = vadd.f32 %v1433, %v1655
        %v1686 = vadd.f32 %v1434, %v1660
        %v1687 = vadd.f32 %v1435, %v1665
        %v1688 = vadd.f32 %v1436, %v1670
        %v1689 = vadd.f32 %v1437, %v1675
        %v1690 = vadd.f32 %v1438, %v1680
        %s1691 = scalar_lea.vmem %s1, 640
        %v1692 = vld [vmem:[%s1691] sm:$0xff]
        %v1693 = vld [vmem:[%s1691 + $0x8] sm:$0xff]
        %v1694 = vld [vmem:[%s1691 + $0x10] sm:$0xff]
        %v1695 = vld [vmem:[%s1691 + $0x18] sm:$0xff]
        %v1696 = vld [vmem:[%s1691 + $0x20] sm:$0xff]
        %v1697 = vld [vmem:[%s1691 + $0x28] sm:$0xff]
        %v1698 = vld [vmem:[%s1691 + $0x30] sm:$0xff]
        %v1699 = vld [vmem:[%s1691 + $0x38] sm:$0xff]
        %v1700 = vld [vmem:[%s1691 + $0x40] sm:$0xff]
        %v1701 = vld [vmem:[%s1691 + $0x48] sm:$0xff]
        %v1702 = vld [vmem:[%s1691 + $0x50] sm:$0xff]
        %v1703 = vld [vmem:[%s1691 + $0x58] sm:$0xff]
        %v1704 = vld [vmem:[%s1691 + $0x60] sm:$0xff]
        %v1705 = vld [vmem:[%s1691 + $0x68] sm:$0xff]
        %v1706 = vld [vmem:[%s1691 + $0x70] sm:$0xff]
        %v1707 = vld [vmem:[%s1691 + $0x78] sm:$0xff]
        %1708 = vmatprep.subr.mxu0 0.0
        %1709 = vmatpush1.msra.mxu0 %v417
        %1710 = vmatprep.subr.mxu0 0.0
        %1711 = vmatpush1.msra.mxu0 %v418
        %1712 = vmatprep.subr.mxu0 0.0
        %1713 = vmatpush1.msra.mxu0 %v419
        %1714 = vmatprep.subr.mxu0 0.0
        %1715 = vmatpush1.msra.mxu0 %v420
        %1716 = vmatprep.subr.mxu0 0.0
        %1717 = vmatpush1.msra.mxu0 %v421
        %1718 = vmatprep.subr.mxu0 0.0
        %1719 = vmatpush1.msra.mxu0 %v422
        %1720 = vmatprep.subr.mxu0 0.0
        %1721 = vmatpush1.msra.mxu0 %v423
        %1722 = vmatprep.subr.mxu0 0.0
        %1723 = vmatpush1.msra.mxu0 %v424
        %1724 = vmatprep.subr.mxu0 0.0
        %1725 = vmatpush1.msra.mxu0 %v425
        %1726 = vmatprep.subr.mxu0 0.0
        %1727 = vmatpush1.msra.mxu0 %v426
        %1728 = vmatprep.subr.mxu0 0.0
        %1729 = vmatpush1.msra.mxu0 %v427
        %1730 = vmatprep.subr.mxu0 0.0
        %1731 = vmatpush1.msra.mxu0 %v428
        %1732 = vmatprep.subr.mxu0 0.0
        %1733 = vmatpush1.msra.mxu0 %v429
        %1734 = vmatprep.subr.mxu0 0.0
        %1735 = vmatpush1.msra.mxu0 %v430
        %1736 = vmatprep.subr.mxu0 0.0
        %1737 = vmatpush1.msra.mxu0 %v431
        %1738 = vmatprep.subr.mxu0 0.0
        %1739 = vmatpush1.msra.mxu0 %v432
        %1740 = vmatprep.subr.mxu0 0.0
        %1741 = vmatpush1.msra.mxu0 %v433
        %1742 = vmatprep.subr.mxu0 0.0
        %1743 = vmatpush1.msra.mxu0 %v434
        %1744 = vmatprep.subr.mxu0 0.0
        %1745 = vmatpush1.msra.mxu0 %v435
        %1746 = vmatprep.subr.mxu0 0.0
        %1747 = vmatpush1.msra.mxu0 %v436
        %1748 = vmatprep.subr.mxu0 0.0
        %1749 = vmatpush1.msra.mxu0 %v437
        %1750 = vmatprep.subr.mxu0 0.0
        %1751 = vmatpush1.msra.mxu0 %v438
        %1752 = vmatprep.subr.mxu0 0.0
        %1753 = vmatpush1.msra.mxu0 %v439
        %1754 = vmatprep.subr.mxu0 0.0
        %1755 = vmatpush1.msra.mxu0 %v440
        %1756 = vmatprep.subr.mxu0 0.0
        %1757 = vmatpush1.msra.mxu0 %v441
        %1758 = vmatprep.subr.mxu0 0.0
        %1759 = vmatpush1.msra.mxu0 %v442
        %1760 = vmatprep.subr.mxu0 0.0
        %1761 = vmatpush1.msra.mxu0 %v443
        %1762 = vmatprep.subr.mxu0 0.0
        %1763 = vmatpush1.msra.mxu0 %v444
        %1764 = vmatprep.subr.mxu0 0.0
        %1765 = vmatpush1.msra.mxu0 %v445
        %1766 = vmatprep.subr.mxu0 0.0
        %1767 = vmatpush1.msra.mxu0 %v446
        %1768 = vmatprep.subr.mxu0 0.0
        %1769 = vmatpush1.msra.mxu0 %v447
        %1770 = vmatprep.subr.mxu0 0.0
        %1771 = vmatpush1.msra.mxu0 %v448
        %1772 = vmatprep.mubr.f32.mxu0 %v1693
        %1773 = vmatmul.mubr.f32.gmra.mrb[0].mxu0 %v1692
        %v1774 = vpop.f32.mrb[0].mxu0
        %v1775 = vadd.f32 0.0, %v1774
        %v1776 = vpop.f32.mrb[0].mxu0
        %1777 = vmatprep.mubr.f32.mxu0 %v1695
        %1778 = vmatmul.mubr.f32.gmra.mrb[0].mxu0 %v1694
        %v1779 = vpop.f32.mrb[0].mxu0
        %v1780 = vadd.f32 0.0, %v1779
        %v1781 = vpop.f32.mrb[0].mxu0
        %1782 = vmatprep.mubr.f32.mxu0 %v1697
        %1783 = vmatmul.mubr.f32.gmra.mrb[0].mxu0 %v1696
        %v1784 = vpop.f32.mrb[0].mxu0
        %v1785 = vadd.f32 0.0, %v1784
        %v1786 = vpop.f32.mrb[0].mxu0
        %1787 = vmatprep.mubr.f32.mxu0 %v1699
        %1788 = vmatmul.mubr.f32.gmra.mrb[0].mxu0 %v1698
        %v1789 = vpop.f32.mrb[0].mxu0
        %v1790 = vadd.f32 0.0, %v1789
        %v1791 = vpop.f32.mrb[0].mxu0
        %1792 = vmatprep.mubr.f32.mxu0 %v1701
        %1793 = vmatmul.mubr.f32.gmra.mrb[0].mxu0 %v1700
        %v1794 = vpop.f32.mrb[0].mxu0
        %v1795 = vadd.f32 0.0, %v1794
        %v1796 = vpop.f32.mrb[0].mxu0
        %1797 = vmatprep.mubr.f32.mxu0 %v1703
        %1798 = vmatmul.mubr.f32.gmra.mrb[0].mxu0 %v1702
        %v1799 = vpop.f32.mrb[0].mxu0
        %v1800 = vadd.f32 0.0, %v1799
        %v1801 = vpop.f32.mrb[0].mxu0
        %1802 = vmatprep.mubr.f32.mxu0 %v1705
        %1803 = vmatmul.mubr.f32.gmra.mrb[0].mxu0 %v1704
        %v1804 = vpop.f32.mrb[0].mxu0
        %v1805 = vadd.f32 0.0, %v1804
        %v1806 = vpop.f32.mrb[0].mxu0
        %1807 = vmatprep.mubr.f32.mxu0 %v1707
        %1808 = vmatmul.mubr.f32.gmra.mrb[0].mxu0 %v1706
        %v1809 = vpop.f32.mrb[0].mxu0
        %v1810 = vadd.f32 0.0, %v1809
        %v1811 = vpop.f32.mrb[0].mxu0
        %1812 = vdwg.mxu0
        %s1813 = scalar_lea.vmem [#allocation2], 640
        %v1814 = vld [vmem:[%s1813] sm:$0xff]
        %v1815 = vld [vmem:[%s1813 + $0x8] sm:$0xff]
        %v1816 = vld [vmem:[%s1813 + $0x10] sm:$0xff]
        %v1817 = vld [vmem:[%s1813 + $0x18] sm:$0xff]
        %v1818 = vld [vmem:[%s1813 + $0x20] sm:$0xff]
        %v1819 = vld [vmem:[%s1813 + $0x28] sm:$0xff]
        %v1820 = vld [vmem:[%s1813 + $0x30] sm:$0xff]
        %v1821 = vld [vmem:[%s1813 + $0x38] sm:$0xff]
        %v1822 = vld [vmem:[%s1813 + $0x40] sm:$0xff]
        %v1823 = vld [vmem:[%s1813 + $0x48] sm:$0xff]
        %v1824 = vld [vmem:[%s1813 + $0x50] sm:$0xff]
        %v1825 = vld [vmem:[%s1813 + $0x58] sm:$0xff]
        %v1826 = vld [vmem:[%s1813 + $0x60] sm:$0xff]
        %v1827 = vld [vmem:[%s1813 + $0x68] sm:$0xff]
        %v1828 = vld [vmem:[%s1813 + $0x70] sm:$0xff]
        %v1829 = vld [vmem:[%s1813 + $0x78] sm:$0xff]
        %1830 = vmatprep.subr.mxu0 0.0
        %1831 = vmatpush1.msra.mxu0 %v1814
        %1832 = vmatprep.subr.mxu0 0.0
        %1833 = vmatpush1.msra.mxu0 %v1815
        %1834 = vmatprep.subr.mxu0 0.0
        %1835 = vmatpush1.msra.mxu0 %v1816
        %1836 = vmatprep.subr.mxu0 0.0
        %1837 = vmatpush1.msra.mxu0 %v1817
        %1838 = vmatprep.subr.mxu0 0.0
        %1839 = vmatpush1.msra.mxu0 %v1818
        %1840 = vmatprep.subr.mxu0 0.0
        %1841 = vmatpush1.msra.mxu0 %v1819
        %1842 = vmatprep.subr.mxu0 0.0
        %1843 = vmatpush1.msra.mxu0 %v1820
        %1844 = vmatprep.subr.mxu0 0.0
        %1845 = vmatpush1.msra.mxu0 %v1821
        %1846 = vmatprep.subr.mxu0 0.0
        %1847 = vmatpush1.msra.mxu0 %v1822
        %1848 = vmatprep.subr.mxu0 0.0
        %1849 = vmatpush1.msra.mxu0 %v1823
        %1850 = vmatprep.subr.mxu0 0.0
        %1851 = vmatpush1.msra.mxu0 %v1824
        %1852 = vmatprep.subr.mxu0 0.0
        %1853 = vmatpush1.msra.mxu0 %v1825
        %1854 = vmatprep.subr.mxu0 0.0
        %1855 = vmatpush1.msra.mxu0 %v1826
        %1856 = vmatprep.subr.mxu0 0.0
        %1857 = vmatpush1.msra.mxu0 %v1827
        %1858 = vmatprep.subr.mxu0 0.0
        %1859 = vmatpush1.msra.mxu0 %v1828
        %1860 = vmatprep.subr.mxu0 0.0
        %1861 = vmatpush1.msra.mxu0 %v1829
        %1862 = vmatprep.subr.mxu0 0.0
        %1863 = vmatpush1.msra.mxu0 0.0
        %1864 = vmatprep.subr.mxu0 0.0
        %1865 = vmatpush1.msra.mxu0 0.0
        %1866 = vmatprep.subr.mxu0 0.0
        %1867 = vmatpush1.msra.mxu0 0.0
        %1868 = vmatprep.subr.mxu0 0.0
        %1869 = vmatpush1.msra.mxu0 0.0
        %1870 = vmatprep.subr.mxu0 0.0
        %1871 = vmatpush1.msra.mxu0 0.0
        %1872 = vmatprep.subr.mxu0 0.0
        %1873 = vmatpush1.msra.mxu0 0.0
        %1874 = vmatprep.subr.mxu0 0.0
        %1875 = vmatpush1.msra.mxu0 0.0
        %1876 = vmatprep.subr.mxu0 0.0
        %1877 = vmatpush1.msra.mxu0 0.0
        %1878 = vmatprep.subr.mxu0 0.0
        %1879 = vmatpush1.msra.mxu0 0.0
        %1880 = vmatprep.subr.mxu0 0.0
        %1881 = vmatpush1.msra.mxu0 0.0
        %1882 = vmatprep.subr.mxu0 0.0
        %1883 = vmatpush1.msra.mxu0 0.0
        %1884 = vmatprep.subr.mxu0 0.0
        %1885 = vmatpush1.msra.mxu0 0.0
        %1886 = vmatprep.subr.mxu0 0.0
        %1887 = vmatpush1.msra.mxu0 0.0
        %1888 = vmatprep.subr.mxu0 0.0
        %1889 = vmatpush1.msra.mxu0 0.0
        %1890 = vmatprep.subr.mxu0 0.0
        %1891 = vmatpush1.msra.mxu0 0.0
        %1892 = vmatprep.subr.mxu0 0.0
        %1893 = vmatpush1.msra.mxu0 0.0
        %1894 = vmatprep.mubr.f32.mxu0 0.0
        %1895 = vmatmul.mubr.f32.gmra.mrb[0].mxu0 %v1775
        %v1896 = vpop.f32.mrb[0].mxu0
        %v1897 = vadd.f32 0.0, %v1896
        %v1898 = vpop.f32.mrb[0].mxu0
        %1899 = vmatprep.mubr.f32.mxu0 0.0
        %1900 = vmatmul.mubr.f32.gmra.mrb[0].mxu0 %v1780
        %v1901 = vpop.f32.mrb[0].mxu0
        %v1902 = vadd.f32 0.0, %v1901
        %v1903 = vpop.f32.mrb[0].mxu0
        %1904 = vmatprep.mubr.f32.mxu0 0.0
        %1905 = vmatmul.mubr.f32.gmra.mrb[0].mxu0 %v1785
        %v1906 = vpop.f32.mrb[0].mxu0
        %v1907 = vadd.f32 0.0, %v1906
        %v1908 = vpop.f32.mrb[0].mxu0
        %1909 = vmatprep.mubr.f32.mxu0 0.0
        %1910 = vmatmul.mubr.f32.gmra.mrb[0].mxu0 %v1790
        %v1911 = vpop.f32.mrb[0].mxu0
        %v1912 = vadd.f32 0.0, %v1911
        %v1913 = vpop.f32.mrb[0].mxu0
        %1914 = vmatprep.mubr.f32.mxu0 0.0
        %1915 = vmatmul.mubr.f32.gmra.mrb[0].mxu0 %v1795
        %v1916 = vpop.f32.mrb[0].mxu0
        %v1917 = vadd.f32 0.0, %v1916
        %v1918 = vpop.f32.mrb[0].mxu0
        %1919 = vmatprep.mubr.f32.mxu0 0.0
        %1920 = vmatmul.mubr.f32.gmra.mrb[0].mxu0 %v1800
        %v1921 = vpop.f32.mrb[0].mxu0
        %v1922 = vadd.f32 0.0, %v1921
        %v1923 = vpop.f32.mrb[0].mxu0
        %1924 = vmatprep.mubr.f32.mxu0 0.0
        %1925 = vmatmul.mubr.f32.gmra.mrb[0].mxu0 %v1805
        %v1926 = vpop.f32.mrb[0].mxu0
        %v1927 = vadd.f32 0.0, %v1926
        %v1928 = vpop.f32.mrb[0].mxu0
        %1929 = vmatprep.mubr.f32.mxu0 0.0
        %1930 = vmatmul.mubr.f32.gmra.mrb[0].mxu0 %v1810
        %v1931 = vpop.f32.mrb[0].mxu0
        %v1932 = vadd.f32 0.0, %v1931
        %v1933 = vpop.f32.mrb[0].mxu0
        %1934 = vdwg.mxu0
        %v1935 = vadd.f32 %v1683, %v1897
        %v1936 = vadd.f32 %v1684, %v1902
        %v1937 = vadd.f32 %v1685, %v1907
        %v1938 = vadd.f32 %v1686, %v1912
        %v1939 = vadd.f32 %v1687, %v1917
        %v1940 = vadd.f32 %v1688, %v1922
        %v1941 = vadd.f32 %v1689, %v1927
        %v1942 = vadd.f32 %v1690, %v1932
        %s1943 = scalar_lea.vmem %s1, 768
        %v1944 = vld [vmem:[%s1943] sm:$0xff]
        %v1945 = vld [vmem:[%s1943 + $0x8] sm:$0xff]
        %v1946 = vld [vmem:[%s1943 + $0x10] sm:$0xff]
        %v1947 = vld [vmem:[%s1943 + $0x18] sm:$0xff]
        %v1948 = vld [vmem:[%s1943 + $0x20] sm:$0xff]
        %v1949 = vld [vmem:[%s1943 + $0x28] sm:$0xff]
        %v1950 = vld [vmem:[%s1943 + $0x30] sm:$0xff]
        %v1951 = vld [vmem:[%s1943 + $0x38] sm:$0xff]
        %v1952 = vld [vmem:[%s1943 + $0x40] sm:$0xff]
        %v1953 = vld [vmem:[%s1943 + $0x48] sm:$0xff]
        %v1954 = vld [vmem:[%s1943 + $0x50] sm:$0xff]
        %v1955 = vld [vmem:[%s1943 + $0x58] sm:$0xff]
        %v1956 = vld [vmem:[%s1943 + $0x60] sm:$0xff]
        %v1957 = vld [vmem:[%s1943 + $0x68] sm:$0xff]
        %v1958 = vld [vmem:[%s1943 + $0x70] sm:$0xff]
        %v1959 = vld [vmem:[%s1943 + $0x78] sm:$0xff]
        %1960 = vmatprep.subr.mxu0 0.0
        %1961 = vmatpush1.msra.mxu0 %v417
        %1962 = vmatprep.subr.mxu0 0.0
        %1963 = vmatpush1.msra.mxu0 %v418
        %1964 = vmatprep.subr.mxu0 0.0
        %1965 = vmatpush1.msra.mxu0 %v419
        %1966 = vmatprep.subr.mxu0 0.0
        %1967 = vmatpush1.msra.mxu0 %v420
        %1968 = vmatprep.subr.mxu0 0.0
        %1969 = vmatpush1.msra.mxu0 %v421
        %1970 = vmatprep.subr.mxu0 0.0
        %1971 = vmatpush1.msra.mxu0 %v422
        %1972 = vmatprep.subr.mxu0 0.0
        %1973 = vmatpush1.msra.mxu0 %v423
        %1974 = vmatprep.subr.mxu0 0.0
        %1975 = vmatpush1.msra.mxu0 %v424
        %1976 = vmatprep.subr.mxu0 0.0
        %1977 = vmatpush1.msra.mxu0 %v425
        %1978 = vmatprep.subr.mxu0 0.0
        %1979 = vmatpush1.msra.mxu0 %v426
        %1980 = vmatprep.subr.mxu0 0.0
        %1981 = vmatpush1.msra.mxu0 %v427
        %1982 = vmatprep.subr.mxu0 0.0
        %1983 = vmatpush1.msra.mxu0 %v428
        %1984 = vmatprep.subr.mxu0 0.0
        %1985 = vmatpush1.msra.mxu0 %v429
        %1986 = vmatprep.subr.mxu0 0.0
        %1987 = vmatpush1.msra.mxu0 %v430
        %1988 = vmatprep.subr.mxu0 0.0
        %1989 = vmatpush1.msra.mxu0 %v431
        %1990 = vmatprep.subr.mxu0 0.0
        %1991 = vmatpush1.msra.mxu0 %v432
        %1992 = vmatprep.subr.mxu0 0.0
        %1993 = vmatpush1.msra.mxu0 %v433
        %1994 = vmatprep.subr.mxu0 0.0
        %1995 = vmatpush1.msra.mxu0 %v434
        %1996 = vmatprep.subr.mxu0 0.0
        %1997 = vmatpush1.msra.mxu0 %v435
        %1998 = vmatprep.subr.mxu0 0.0
        %1999 = vmatpush1.msra.mxu0 %v436
        %2000 = vmatprep.subr.mxu0 0.0
        %2001 = vmatpush1.msra.mxu0 %v437
        %2002 = vmatprep.subr.mxu0 0.0
        %2003 = vmatpush1.msra.mxu0 %v438
        %2004 = vmatprep.subr.mxu0 0.0
        %2005 = vmatpush1.msra.mxu0 %v439
        %2006 = vmatprep.subr.mxu0 0.0
        %2007 = vmatpush1.msra.mxu0 %v440
        %2008 = vmatprep.subr.mxu0 0.0
        %2009 = vmatpush1.msra.mxu0 %v441
        %2010 = vmatprep.subr.mxu0 0.0
        %2011 = vmatpush1.msra.mxu0 %v442
        %2012 = vmatprep.subr.mxu0 0.0
        %2013 = vmatpush1.msra.mxu0 %v443
        %2014 = vmatprep.subr.mxu0 0.0
        %2015 = vmatpush1.msra.mxu0 %v444
        %2016 = vmatprep.subr.mxu0 0.0
        %2017 = vmatpush1.msra.mxu0 %v445
        %2018 = vmatprep.subr.mxu0 0.0
        %2019 = vmatpush1.msra.mxu0 %v446
        %2020 = vmatprep.subr.mxu0 0.0
        %2021 = vmatpush1.msra.mxu0 %v447
        %2022 = vmatprep.subr.mxu0 0.0
        %2023 = vmatpush1.msra.mxu0 %v448
        %2024 = vmatprep.mubr.f32.mxu0 %v1945
        %2025 = vmatmul.mubr.f32.gmra.mrb[0].mxu0 %v1944
        %v2026 = vpop.f32.mrb[0].mxu0
        %v2027 = vadd.f32 0.0, %v2026
        %v2028 = vpop.f32.mrb[0].mxu0
        %2029 = vmatprep.mubr.f32.mxu0 %v1947
        %2030 = vmatmul.mubr.f32.gmra.mrb[0].mxu0 %v1946
        %v2031 = vpop.f32.mrb[0].mxu0
        %v2032 = vadd.f32 0.0, %v2031
        %v2033 = vpop.f32.mrb[0].mxu0
        %2034 = vmatprep.mubr.f32.mxu0 %v1949
        %2035 = vmatmul.mubr.f32.gmra.mrb[0].mxu0 %v1948
        %v2036 = vpop.f32.mrb[0].mxu0
        %v2037 = vadd.f32 0.0, %v2036
        %v2038 = vpop.f32.mrb[0].mxu0
        %2039 = vmatprep.mubr.f32.mxu0 %v1951
        %2040 = vmatmul.mubr.f32.gmra.mrb[0].mxu0 %v1950
        %v2041 = vpop.f32.mrb[0].mxu0
        %v2042 = vadd.f32 0.0, %v2041
        %v2043 = vpop.f32.mrb[0].mxu0
        %2044 = vmatprep.mubr.f32.mxu0 %v1953
        %2045 = vmatmul.mubr.f32.gmra.mrb[0].mxu0 %v1952
        %v2046 = vpop.f32.mrb[0].mxu0
        %v2047 = vadd.f32 0.0, %v2046
        %v2048 = vpop.f32.mrb[0].mxu0
        %2049 = vmatprep.mubr.f32.mxu0 %v1955
        %2050 = vmatmul.mubr.f32.gmra.mrb[0].mxu0 %v1954
        %v2051 = vpop.f32.mrb[0].mxu0
        %v2052 = vadd.f32 0.0, %v2051
        %v2053 = vpop.f32.mrb[0].mxu0
        %2054 = vmatprep.mubr.f32.mxu0 %v1957
        %2055 = vmatmul.mubr.f32.gmra.mrb[0].mxu0 %v1956
        %v2056 = vpop.f32.mrb[0].mxu0
        %v2057 = vadd.f32 0.0, %v2056
        %v2058 = vpop.f32.mrb[0].mxu0
        %2059 = vmatprep.mubr.f32.mxu0 %v1959
        %2060 = vmatmul.mubr.f32.gmra.mrb[0].mxu0 %v1958
        %v2061 = vpop.f32.mrb[0].mxu0
        %v2062 = vadd.f32 0.0, %v2061
        %v2063 = vpop.f32.mrb[0].mxu0
        %2064 = vdwg.mxu0
        %s2065 = scalar_lea.vmem [#allocation2], 768
        %v2066 = vld [vmem:[%s2065] sm:$0xff]
        %v2067 = vld [vmem:[%s2065 + $0x8] sm:$0xff]
        %v2068 = vld [vmem:[%s2065 + $0x10] sm:$0xff]
        %v2069 = vld [vmem:[%s2065 + $0x18] sm:$0xff]
        %v2070 = vld [vmem:[%s2065 + $0x20] sm:$0xff]
        %v2071 = vld [vmem:[%s2065 + $0x28] sm:$0xff]
        %v2072 = vld [vmem:[%s2065 + $0x30] sm:$0xff]
        %v2073 = vld [vmem:[%s2065 + $0x38] sm:$0xff]
        %v2074 = vld [vmem:[%s2065 + $0x40] sm:$0xff]
        %v2075 = vld [vmem:[%s2065 + $0x48] sm:$0xff]
        %v2076 = vld [vmem:[%s2065 + $0x50] sm:$0xff]
        %v2077 = vld [vmem:[%s2065 + $0x58] sm:$0xff]
        %v2078 = vld [vmem:[%s2065 + $0x60] sm:$0xff]
        %v2079 = vld [vmem:[%s2065 + $0x68] sm:$0xff]
        %v2080 = vld [vmem:[%s2065 + $0x70] sm:$0xff]
        %v2081 = vld [vmem:[%s2065 + $0x78] sm:$0xff]
        %2082 = vmatprep.subr.mxu0 0.0
        %2083 = vmatpush1.msra.mxu0 %v2066
        %2084 = vmatprep.subr.mxu0 0.0
        %2085 = vmatpush1.msra.mxu0 %v2067
        %2086 = vmatprep.subr.mxu0 0.0
        %2087 = vmatpush1.msra.mxu0 %v2068
        %2088 = vmatprep.subr.mxu0 0.0
        %2089 = vmatpush1.msra.mxu0 %v2069
        %2090 = vmatprep.subr.mxu0 0.0
        %2091 = vmatpush1.msra.mxu0 %v2070
        %2092 = vmatprep.subr.mxu0 0.0
        %2093 = vmatpush1.msra.mxu0 %v2071
        %2094 = vmatprep.subr.mxu0 0.0
        %2095 = vmatpush1.msra.mxu0 %v2072
        %2096 = vmatprep.subr.mxu0 0.0
        %2097 = vmatpush1.msra.mxu0 %v2073
        %2098 = vmatprep.subr.mxu0 0.0
        %2099 = vmatpush1.msra.mxu0 %v2074
        %2100 = vmatprep.subr.mxu0 0.0
        %2101 = vmatpush1.msra.mxu0 %v2075
        %2102 = vmatprep.subr.mxu0 0.0
        %2103 = vmatpush1.msra.mxu0 %v2076
        %2104 = vmatprep.subr.mxu0 0.0
        %2105 = vmatpush1.msra.mxu0 %v2077
        %2106 = vmatprep.subr.mxu0 0.0
        %2107 = vmatpush1.msra.mxu0 %v2078
        %2108 = vmatprep.subr.mxu0 0.0
        %2109 = vmatpush1.msra.mxu0 %v2079
        %2110 = vmatprep.subr.mxu0 0.0
        %2111 = vmatpush1.msra.mxu0 %v2080
        %2112 = vmatprep.subr.mxu0 0.0
        %2113 = vmatpush1.msra.mxu0 %v2081
        %2114 = vmatprep.subr.mxu0 0.0
        %2115 = vmatpush1.msra.mxu0 0.0
        %2116 = vmatprep.subr.mxu0 0.0
        %2117 = vmatpush1.msra.mxu0 0.0
        %2118 = vmatprep.subr.mxu0 0.0
        %2119 = vmatpush1.msra.mxu0 0.0
        %2120 = vmatprep.subr.mxu0 0.0
        %2121 = vmatpush1.msra.mxu0 0.0
        %2122 = vmatprep.subr.mxu0 0.0
        %2123 = vmatpush1.msra.mxu0 0.0
        %2124 = vmatprep.subr.mxu0 0.0
        %2125 = vmatpush1.msra.mxu0 0.0
        %2126 = vmatprep.subr.mxu0 0.0
        %2127 = vmatpush1.msra.mxu0 0.0
        %2128 = vmatprep.subr.mxu0 0.0
        %2129 = vmatpush1.msra.mxu0 0.0
        %2130 = vmatprep.subr.mxu0 0.0
        %2131 = vmatpush1.msra.mxu0 0.0
        %2132 = vmatprep.subr.mxu0 0.0
        %2133 = vmatpush1.msra.mxu0 0.0
        %2134 = vmatprep.subr.mxu0 0.0
        %2135 = vmatpush1.msra.mxu0 0.0
        %2136 = vmatprep.subr.mxu0 0.0
        %2137 = vmatpush1.msra.mxu0 0.0
        %2138 = vmatprep.subr.mxu0 0.0
        %2139 = vmatpush1.msra.mxu0 0.0
        %2140 = vmatprep.subr.mxu0 0.0
        %2141 = vmatpush1.msra.mxu0 0.0
        %2142 = vmatprep.subr.mxu0 0.0
        %2143 = vmatpush1.msra.mxu0 0.0
        %2144 = vmatprep.subr.mxu0 0.0
        %2145 = vmatpush1.msra.mxu0 0.0
        %2146 = vmatprep.mubr.f32.mxu0 0.0
        %2147 = vmatmul.mubr.f32.gmra.mrb[0].mxu0 %v2027
        %v2148 = vpop.f32.mrb[0].mxu0
        %v2149 = vadd.f32 0.0, %v2148
        %v2150 = vpop.f32.mrb[0].mxu0
        %2151 = vmatprep.mubr.f32.mxu0 0.0
        %2152 = vmatmul.mubr.f32.gmra.mrb[0].mxu0 %v2032
        %v2153 = vpop.f32.mrb[0].mxu0
        %v2154 = vadd.f32 0.0, %v2153
        %v2155 = vpop.f32.mrb[0].mxu0
        %2156 = vmatprep.mubr.f32.mxu0 0.0
        %2157 = vmatmul.mubr.f32.gmra.mrb[0].mxu0 %v2037
        %v2158 = vpop.f32.mrb[0].mxu0
        %v2159 = vadd.f32 0.0, %v2158
        %v2160 = vpop.f32.mrb[0].mxu0
        %2161 = vmatprep.mubr.f32.mxu0 0.0
        %2162 = vmatmul.mubr.f32.gmra.mrb[0].mxu0 %v2042
        %v2163 = vpop.f32.mrb[0].mxu0
        %v2164 = vadd.f32 0.0, %v2163
        %v2165 = vpop.f32.mrb[0].mxu0
        %2166 = vmatprep.mubr.f32.mxu0 0.0
        %2167 = vmatmul.mubr.f32.gmra.mrb[0].mxu0 %v2047
        %v2168 = vpop.f32.mrb[0].mxu0
        %v2169 = vadd.f32 0.0, %v2168
        %v2170 = vpop.f32.mrb[0].mxu0
        %2171 = vmatprep.mubr.f32.mxu0 0.0
        %2172 = vmatmul.mubr.f32.gmra.mrb[0].mxu0 %v2052
        %v2173 = vpop.f32.mrb[0].mxu0
        %v2174 = vadd.f32 0.0, %v2173
        %v2175 = vpop.f32.mrb[0].mxu0
        %2176 = vmatprep.mubr.f32.mxu0 0.0
        %2177 = vmatmul.mubr.f32.gmra.mrb[0].mxu0 %v2057
        %v2178 = vpop.f32.mrb[0].mxu0
        %v2179 = vadd.f32 0.0, %v2178
        %v2180 = vpop.f32.mrb[0].mxu0
        %2181 = vmatprep.mubr.f32.mxu0 0.0
        %2182 = vmatmul.mubr.f32.gmra.mrb[0].mxu0 %v2062
        %v2183 = vpop.f32.mrb[0].mxu0
        %v2184 = vadd.f32 0.0, %v2183
        %v2185 = vpop.f32.mrb[0].mxu0
        %2186 = vdwg.mxu0
        %v2187 = vadd.f32 %v1935, %v2149
        %v2188 = vadd.f32 %v1936, %v2154
        %v2189 = vadd.f32 %v1937, %v2159
        %v2190 = vadd.f32 %v1938, %v2164
        %v2191 = vadd.f32 %v1939, %v2169
        %v2192 = vadd.f32 %v1940, %v2174
        %v2193 = vadd.f32 %v1941, %v2179
        %v2194 = vadd.f32 %v1942, %v2184
        %s2195 = scalar_lea.vmem %s1, 896
        %v2196 = vld [vmem:[%s2195] sm:$0xff]
        %v2197 = vld [vmem:[%s2195 + $0x8] sm:$0xff]
        %v2198 = vld [vmem:[%s2195 + $0x10] sm:$0xff]
        %v2199 = vld [vmem:[%s2195 + $0x18] sm:$0xff]
        %v2200 = vld [vmem:[%s2195 + $0x20] sm:$0xff]
        %v2201 = vld [vmem:[%s2195 + $0x28] sm:$0xff]
        %v2202 = vld [vmem:[%s2195 + $0x30] sm:$0xff]
        %v2203 = vld [vmem:[%s2195 + $0x38] sm:$0xff]
        %v2204 = vld [vmem:[%s2195 + $0x40] sm:$0xff]
        %v2205 = vld [vmem:[%s2195 + $0x48] sm:$0xff]
        %v2206 = vld [vmem:[%s2195 + $0x50] sm:$0xff]
        %v2207 = vld [vmem:[%s2195 + $0x58] sm:$0xff]
        %v2208 = vld [vmem:[%s2195 + $0x60] sm:$0xff]
        %v2209 = vld [vmem:[%s2195 + $0x68] sm:$0xff]
        %v2210 = vld [vmem:[%s2195 + $0x70] sm:$0xff]
        %v2211 = vld [vmem:[%s2195 + $0x78] sm:$0xff]
        %2212 = vmatprep.subr.mxu0 0.0
        %2213 = vmatpush1.msra.mxu0 %v417
        %2214 = vmatprep.subr.mxu0 0.0
        %2215 = vmatpush1.msra.mxu0 %v418
        %2216 = vmatprep.subr.mxu0 0.0
        %2217 = vmatpush1.msra.mxu0 %v419
        %2218 = vmatprep.subr.mxu0 0.0
        %2219 = vmatpush1.msra.mxu0 %v420
        %2220 = vmatprep.subr.mxu0 0.0
        %2221 = vmatpush1.msra.mxu0 %v421
        %2222 = vmatprep.subr.mxu0 0.0
        %2223 = vmatpush1.msra.mxu0 %v422
        %2224 = vmatprep.subr.mxu0 0.0
        %2225 = vmatpush1.msra.mxu0 %v423
        %2226 = vmatprep.subr.mxu0 0.0
        %2227 = vmatpush1.msra.mxu0 %v424
        %2228 = vmatprep.subr.mxu0 0.0
        %2229 = vmatpush1.msra.mxu0 %v425
        %2230 = vmatprep.subr.mxu0 0.0
        %2231 = vmatpush1.msra.mxu0 %v426
        %2232 = vmatprep.subr.mxu0 0.0
        %2233 = vmatpush1.msra.mxu0 %v427
        %2234 = vmatprep.subr.mxu0 0.0
        %2235 = vmatpush1.msra.mxu0 %v428
        %2236 = vmatprep.subr.mxu0 0.0
        %2237 = vmatpush1.msra.mxu0 %v429
        %2238 = vmatprep.subr.mxu0 0.0
        %2239 = vmatpush1.msra.mxu0 %v430
        %2240 = vmatprep.subr.mxu0 0.0
        %2241 = vmatpush1.msra.mxu0 %v431
        %2242 = vmatprep.subr.mxu0 0.0
        %2243 = vmatpush1.msra.mxu0 %v432
        %2244 = vmatprep.subr.mxu0 0.0
        %2245 = vmatpush1.msra.mxu0 %v433
        %2246 = vmatprep.subr.mxu0 0.0
        %2247 = vmatpush1.msra.mxu0 %v434
        %2248 = vmatprep.subr.mxu0 0.0
        %2249 = vmatpush1.msra.mxu0 %v435
        %2250 = vmatprep.subr.mxu0 0.0
        %2251 = vmatpush1.msra.mxu0 %v436
        %2252 = vmatprep.subr.mxu0 0.0
        %2253 = vmatpush1.msra.mxu0 %v437
        %2254 = vmatprep.subr.mxu0 0.0
        %2255 = vmatpush1.msra.mxu0 %v438
        %2256 = vmatprep.subr.mxu0 0.0
        %2257 = vmatpush1.msra.mxu0 %v439
        %2258 = vmatprep.subr.mxu0 0.0
        %2259 = vmatpush1.msra.mxu0 %v440
        %2260 = vmatprep.subr.mxu0 0.0
        %2261 = vmatpush1.msra.mxu0 %v441
        %2262 = vmatprep.subr.mxu0 0.0
        %2263 = vmatpush1.msra.mxu0 %v442
        %2264 = vmatprep.subr.mxu0 0.0
        %2265 = vmatpush1.msra.mxu0 %v443
        %2266 = vmatprep.subr.mxu0 0.0
        %2267 = vmatpush1.msra.mxu0 %v444
        %2268 = vmatprep.subr.mxu0 0.0
        %2269 = vmatpush1.msra.mxu0 %v445
        %2270 = vmatprep.subr.mxu0 0.0
        %2271 = vmatpush1.msra.mxu0 %v446
        %2272 = vmatprep.subr.mxu0 0.0
        %2273 = vmatpush1.msra.mxu0 %v447
        %2274 = vmatprep.subr.mxu0 0.0
        %2275 = vmatpush1.msra.mxu0 %v448
        %2276 = vmatprep.mubr.f32.mxu0 %v2197
        %2277 = vmatmul.mubr.f32.gmra.mrb[0].mxu0 %v2196
        %v2278 = vpop.f32.mrb[0].mxu0
        %v2279 = vadd.f32 0.0, %v2278
        %v2280 = vpop.f32.mrb[0].mxu0
        %2281 = vmatprep.mubr.f32.mxu0 %v2199
        %2282 = vmatmul.mubr.f32.gmra.mrb[0].mxu0 %v2198
        %v2283 = vpop.f32.mrb[0].mxu0
        %v2284 = vadd.f32 0.0, %v2283
        %v2285 = vpop.f32.mrb[0].mxu0
        %2286 = vmatprep.mubr.f32.mxu0 %v2201
        %2287 = vmatmul.mubr.f32.gmra.mrb[0].mxu0 %v2200
        %v2288 = vpop.f32.mrb[0].mxu0
        %v2289 = vadd.f32 0.0, %v2288
        %v2290 = vpop.f32.mrb[0].mxu0
        %2291 = vmatprep.mubr.f32.mxu0 %v2203
        %2292 = vmatmul.mubr.f32.gmra.mrb[0].mxu0 %v2202
        %v2293 = vpop.f32.mrb[0].mxu0
        %v2294 = vadd.f32 0.0, %v2293
        %v2295 = vpop.f32.mrb[0].mxu0
        %2296 = vmatprep.mubr.f32.mxu0 %v2205
        %2297 = vmatmul.mubr.f32.gmra.mrb[0].mxu0 %v2204
        %v2298 = vpop.f32.mrb[0].mxu0
        %v2299 = vadd.f32 0.0, %v2298
        %v2300 = vpop.f32.mrb[0].mxu0
        %2301 = vmatprep.mubr.f32.mxu0 %v2207
        %2302 = vmatmul.mubr.f32.gmra.mrb[0].mxu0 %v2206
        %v2303 = vpop.f32.mrb[0].mxu0
        %v2304 = vadd.f32 0.0, %v2303
        %v2305 = vpop.f32.mrb[0].mxu0
        %2306 = vmatprep.mubr.f32.mxu0 %v2209
        %2307 = vmatmul.mubr.f32.gmra.mrb[0].mxu0 %v2208
        %v2308 = vpop.f32.mrb[0].mxu0
        %v2309 = vadd.f32 0.0, %v2308
        %v2310 = vpop.f32.mrb[0].mxu0
        %2311 = vmatprep.mubr.f32.mxu0 %v2211
        %2312 = vmatmul.mubr.f32.gmra.mrb[0].mxu0 %v2210
        %v2313 = vpop.f32.mrb[0].mxu0
        %v2314 = vadd.f32 0.0, %v2313
        %v2315 = vpop.f32.mrb[0].mxu0
        %2316 = vdwg.mxu0
        %s2317 = scalar_lea.vmem [#allocation2], 896
        %v2318 = vld [vmem:[%s2317] sm:$0xff]
        %v2319 = vld [vmem:[%s2317 + $0x8] sm:$0xff]
        %v2320 = vld [vmem:[%s2317 + $0x10] sm:$0xff]
        %v2321 = vld [vmem:[%s2317 + $0x18] sm:$0xff]
        %v2322 = vld [vmem:[%s2317 + $0x20] sm:$0xff]
        %v2323 = vld [vmem:[%s2317 + $0x28] sm:$0xff]
        %v2324 = vld [vmem:[%s2317 + $0x30] sm:$0xff]
        %v2325 = vld [vmem:[%s2317 + $0x38] sm:$0xff]
        %v2326 = vld [vmem:[%s2317 + $0x40] sm:$0xff]
        %v2327 = vld [vmem:[%s2317 + $0x48] sm:$0xff]
        %v2328 = vld [vmem:[%s2317 + $0x50] sm:$0xff]
        %v2329 = vld [vmem:[%s2317 + $0x58] sm:$0xff]
        %v2330 = vld [vmem:[%s2317 + $0x60] sm:$0xff]
        %v2331 = vld [vmem:[%s2317 + $0x68] sm:$0xff]
        %v2332 = vld [vmem:[%s2317 + $0x70] sm:$0xff]
        %v2333 = vld [vmem:[%s2317 + $0x78] sm:$0xff]
        %2334 = vmatprep.subr.mxu0 0.0
        %2335 = vmatpush1.msra.mxu0 %v2318
        %2336 = vmatprep.subr.mxu0 0.0
        %2337 = vmatpush1.msra.mxu0 %v2319
        %2338 = vmatprep.subr.mxu0 0.0
        %2339 = vmatpush1.msra.mxu0 %v2320
        %2340 = vmatprep.subr.mxu0 0.0
        %2341 = vmatpush1.msra.mxu0 %v2321
        %2342 = vmatprep.subr.mxu0 0.0
        %2343 = vmatpush1.msra.mxu0 %v2322
        %2344 = vmatprep.subr.mxu0 0.0
        %2345 = vmatpush1.msra.mxu0 %v2323
        %2346 = vmatprep.subr.mxu0 0.0
        %2347 = vmatpush1.msra.mxu0 %v2324
        %2348 = vmatprep.subr.mxu0 0.0
        %2349 = vmatpush1.msra.mxu0 %v2325
        %2350 = vmatprep.subr.mxu0 0.0
        %2351 = vmatpush1.msra.mxu0 %v2326
        %2352 = vmatprep.subr.mxu0 0.0
        %2353 = vmatpush1.msra.mxu0 %v2327
        %2354 = vmatprep.subr.mxu0 0.0
        %2355 = vmatpush1.msra.mxu0 %v2328
        %2356 = vmatprep.subr.mxu0 0.0
        %2357 = vmatpush1.msra.mxu0 %v2329
        %2358 = vmatprep.subr.mxu0 0.0
        %2359 = vmatpush1.msra.mxu0 %v2330
        %2360 = vmatprep.subr.mxu0 0.0
        %2361 = vmatpush1.msra.mxu0 %v2331
        %2362 = vmatprep.subr.mxu0 0.0
        %2363 = vmatpush1.msra.mxu0 %v2332
        %2364 = vmatprep.subr.mxu0 0.0
        %2365 = vmatpush1.msra.mxu0 %v2333
        %2366 = vmatprep.subr.mxu0 0.0
        %2367 = vmatpush1.msra.mxu0 0.0
        %2368 = vmatprep.subr.mxu0 0.0
        %2369 = vmatpush1.msra.mxu0 0.0
        %2370 = vmatprep.subr.mxu0 0.0
        %2371 = vmatpush1.msra.mxu0 0.0
        %2372 = vmatprep.subr.mxu0 0.0
        %2373 = vmatpush1.msra.mxu0 0.0
        %2374 = vmatprep.subr.mxu0 0.0
        %2375 = vmatpush1.msra.mxu0 0.0
        %2376 = vmatprep.subr.mxu0 0.0
        %2377 = vmatpush1.msra.mxu0 0.0
        %2378 = vmatprep.subr.mxu0 0.0
        %2379 = vmatpush1.msra.mxu0 0.0
        %2380 = vmatprep.subr.mxu0 0.0
        %2381 = vmatpush1.msra.mxu0 0.0
        %2382 = vmatprep.subr.mxu0 0.0
        %2383 = vmatpush1.msra.mxu0 0.0
        %2384 = vmatprep.subr.mxu0 0.0
        %2385 = vmatpush1.msra.mxu0 0.0
        %2386 = vmatprep.subr.mxu0 0.0
        %2387 = vmatpush1.msra.mxu0 0.0
        %2388 = vmatprep.subr.mxu0 0.0
        %2389 = vmatpush1.msra.mxu0 0.0
        %2390 = vmatprep.subr.mxu0 0.0
        %2391 = vmatpush1.msra.mxu0 0.0
        %2392 = vmatprep.subr.mxu0 0.0
        %2393 = vmatpush1.msra.mxu0 0.0
        %2394 = vmatprep.subr.mxu0 0.0
        %2395 = vmatpush1.msra.mxu0 0.0
        %2396 = vmatprep.subr.mxu0 0.0
        %2397 = vmatpush1.msra.mxu0 0.0
        %2398 = vmatprep.mubr.f32.mxu0 0.0
        %2399 = vmatmul.mubr.f32.gmra.mrb[0].mxu0 %v2279
        %v2400 = vpop.f32.mrb[0].mxu0
        %v2401 = vadd.f32 0.0, %v2400
        %v2402 = vpop.f32.mrb[0].mxu0
        %2403 = vmatprep.mubr.f32.mxu0 0.0
        %2404 = vmatmul.mubr.f32.gmra.mrb[0].mxu0 %v2284
        %v2405 = vpop.f32.mrb[0].mxu0
        %v2406 = vadd.f32 0.0, %v2405
        %v2407 = vpop.f32.mrb[0].mxu0
        %2408 = vmatprep.mubr.f32.mxu0 0.0
        %2409 = vmatmul.mubr.f32.gmra.mrb[0].mxu0 %v2289
        %v2410 = vpop.f32.mrb[0].mxu0
        %v2411 = vadd.f32 0.0, %v2410
        %v2412 = vpop.f32.mrb[0].mxu0
        %2413 = vmatprep.mubr.f32.mxu0 0.0
        %2414 = vmatmul.mubr.f32.gmra.mrb[0].mxu0 %v2294
        %v2415 = vpop.f32.mrb[0].mxu0
        %v2416 = vadd.f32 0.0, %v2415
        %v2417 = vpop.f32.mrb[0].mxu0
        %2418 = vmatprep.mubr.f32.mxu0 0.0
        %2419 = vmatmul.mubr.f32.gmra.mrb[0].mxu0 %v2299
        %v2420 = vpop.f32.mrb[0].mxu0
        %v2421 = vadd.f32 0.0, %v2420
        %v2422 = vpop.f32.mrb[0].mxu0
        %2423 = vmatprep.mubr.f32.mxu0 0.0
        %2424 = vmatmul.mubr.f32.gmra.mrb[0].mxu0 %v2304
        %v2425 = vpop.f32.mrb[0].mxu0
        %v2426 = vadd.f32 0.0, %v2425
        %v2427 = vpop.f32.mrb[0].mxu0
        %2428 = vmatprep.mubr.f32.mxu0 0.0
        %2429 = vmatmul.mubr.f32.gmra.mrb[0].mxu0 %v2309
        %v2430 = vpop.f32.mrb[0].mxu0
        %v2431 = vadd.f32 0.0, %v2430
        %v2432 = vpop.f32.mrb[0].mxu0
        %2433 = vmatprep.mubr.f32.mxu0 0.0
        %2434 = vmatmul.mubr.f32.gmra.mrb[0].mxu0 %v2314
        %v2435 = vpop.f32.mrb[0].mxu0
        %v2436 = vadd.f32 0.0, %v2435
        %v2437 = vpop.f32.mrb[0].mxu0
        %2438 = vdwg.mxu0
        %v2439 = vadd.f32 %v2187, %v2401
        %v2440 = vadd.f32 %v2188, %v2406
        %v2441 = vadd.f32 %v2189, %v2411
        %v2442 = vadd.f32 %v2190, %v2416
        %v2443 = vadd.f32 %v2191, %v2421
        %v2444 = vadd.f32 %v2192, %v2426
        %v2445 = vadd.f32 %v2193, %v2431
        %v2446 = vadd.f32 %v2194, %v2436
        %s2447 = scalar_lea.vmem %s1, 1024
        %v2448 = vld [vmem:[%s2447] sm:$0xff]
        %v2449 = vld [vmem:[%s2447 + $0x8] sm:$0xff]
        %v2450 = vld [vmem:[%s2447 + $0x10] sm:$0xff]
        %v2451 = vld [vmem:[%s2447 + $0x18] sm:$0xff]
        %v2452 = vld [vmem:[%s2447 + $0x20] sm:$0xff]
        %v2453 = vld [vmem:[%s2447 + $0x28] sm:$0xff]
        %v2454 = vld [vmem:[%s2447 + $0x30] sm:$0xff]
        %v2455 = vld [vmem:[%s2447 + $0x38] sm:$0xff]
        %v2456 = vld [vmem:[%s2447 + $0x40] sm:$0xff]
        %v2457 = vld [vmem:[%s2447 + $0x48] sm:$0xff]
        %v2458 = vld [vmem:[%s2447 + $0x50] sm:$0xff]
        %v2459 = vld [vmem:[%s2447 + $0x58] sm:$0xff]
        %v2460 = vld [vmem:[%s2447 + $0x60] sm:$0xff]
        %v2461 = vld [vmem:[%s2447 + $0x68] sm:$0xff]
        %v2462 = vld [vmem:[%s2447 + $0x70] sm:$0xff]
        %v2463 = vld [vmem:[%s2447 + $0x78] sm:$0xff]
        %2464 = vmatprep.subr.mxu0 0.0
        %2465 = vmatpush1.msra.mxu0 %v417
        %2466 = vmatprep.subr.mxu0 0.0
        %2467 = vmatpush1.msra.mxu0 %v418
        %2468 = vmatprep.subr.mxu0 0.0
        %2469 = vmatpush1.msra.mxu0 %v419
        %2470 = vmatprep.subr.mxu0 0.0
        %2471 = vmatpush1.msra.mxu0 %v420
        %2472 = vmatprep.subr.mxu0 0.0
        %2473 = vmatpush1.msra.mxu0 %v421
        %2474 = vmatprep.subr.mxu0 0.0
        %2475 = vmatpush1.msra.mxu0 %v422
        %2476 = vmatprep.subr.mxu0 0.0
        %2477 = vmatpush1.msra.mxu0 %v423
        %2478 = vmatprep.subr.mxu0 0.0
        %2479 = vmatpush1.msra.mxu0 %v424
        %2480 = vmatprep.subr.mxu0 0.0
        %2481 = vmatpush1.msra.mxu0 %v425
        %2482 = vmatprep.subr.mxu0 0.0
        %2483 = vmatpush1.msra.mxu0 %v426
        %2484 = vmatprep.subr.mxu0 0.0
        %2485 = vmatpush1.msra.mxu0 %v427
        %2486 = vmatprep.subr.mxu0 0.0
        %2487 = vmatpush1.msra.mxu0 %v428
        %2488 = vmatprep.subr.mxu0 0.0
        %2489 = vmatpush1.msra.mxu0 %v429
        %2490 = vmatprep.subr.mxu0 0.0
        %2491 = vmatpush1.msra.mxu0 %v430
        %2492 = vmatprep.subr.mxu0 0.0
        %2493 = vmatpush1.msra.mxu0 %v431
        %2494 = vmatprep.subr.mxu0 0.0
        %2495 = vmatpush1.msra.mxu0 %v432
        %2496 = vmatprep.subr.mxu0 0.0
        %2497 = vmatpush1.msra.mxu0 %v433
        %2498 = vmatprep.subr.mxu0 0.0
        %2499 = vmatpush1.msra.mxu0 %v434
        %2500 = vmatprep.subr.mxu0 0.0
        %2501 = vmatpush1.msra.mxu0 %v435
        %2502 = vmatprep.subr.mxu0 0.0
        %2503 = vmatpush1.msra.mxu0 %v436
        %2504 = vmatprep.subr.mxu0 0.0
        %2505 = vmatpush1.msra.mxu0 %v437
        %2506 = vmatprep.subr.mxu0 0.0
        %2507 = vmatpush1.msra.mxu0 %v438
        %2508 = vmatprep.subr.mxu0 0.0
        %2509 = vmatpush1.msra.mxu0 %v439
        %2510 = vmatprep.subr.mxu0 0.0
        %2511 = vmatpush1.msra.mxu0 %v440
        %2512 = vmatprep.subr.mxu0 0.0
        %2513 = vmatpush1.msra.mxu0 %v441
        %2514 = vmatprep.subr.mxu0 0.0
        %2515 = vmatpush1.msra.mxu0 %v442
        %2516 = vmatprep.subr.mxu0 0.0
        %2517 = vmatpush1.msra.mxu0 %v443
        %2518 = vmatprep.subr.mxu0 0.0
        %2519 = vmatpush1.msra.mxu0 %v444
        %2520 = vmatprep.subr.mxu0 0.0
        %2521 = vmatpush1.msra.mxu0 %v445
        %2522 = vmatprep.subr.mxu0 0.0
        %2523 = vmatpush1.msra.mxu0 %v446
        %2524 = vmatprep.subr.mxu0 0.0
        %2525 = vmatpush1.msra.mxu0 %v447
        %2526 = vmatprep.subr.mxu0 0.0
        %2527 = vmatpush1.msra.mxu0 %v448
        %2528 = vmatprep.mubr.f32.mxu0 %v2449
        %2529 = vmatmul.mubr.f32.gmra.mrb[0].mxu0 %v2448
        %v2530 = vpop.f32.mrb[0].mxu0
        %v2531 = vadd.f32 0.0, %v2530
        %v2532 = vpop.f32.mrb[0].mxu0
        %2533 = vmatprep.mubr.f32.mxu0 %v2451
        %2534 = vmatmul.mubr.f32.gmra.mrb[0].mxu0 %v2450
        %v2535 = vpop.f32.mrb[0].mxu0
        %v2536 = vadd.f32 0.0, %v2535
        %v2537 = vpop.f32.mrb[0].mxu0
        %2538 = vmatprep.mubr.f32.mxu0 %v2453
        %2539 = vmatmul.mubr.f32.gmra.mrb[0].mxu0 %v2452
        %v2540 = vpop.f32.mrb[0].mxu0
        %v2541 = vadd.f32 0.0, %v2540
        %v2542 = vpop.f32.mrb[0].mxu0
        %2543 = vmatprep.mubr.f32.mxu0 %v2455
        %2544 = vmatmul.mubr.f32.gmra.mrb[0].mxu0 %v2454
        %v2545 = vpop.f32.mrb[0].mxu0
        %v2546 = vadd.f32 0.0, %v2545
        %v2547 = vpop.f32.mrb[0].mxu0
        %2548 = vmatprep.mubr.f32.mxu0 %v2457
        %2549 = vmatmul.mubr.f32.gmra.mrb[0].mxu0 %v2456
        %v2550 = vpop.f32.mrb[0].mxu0
        %v2551 = vadd.f32 0.0, %v2550
        %v2552 = vpop.f32.mrb[0].mxu0
        %2553 = vmatprep.mubr.f32.mxu0 %v2459
        %2554 = vmatmul.mubr.f32.gmra.mrb[0].mxu0 %v2458
        %v2555 = vpop.f32.mrb[0].mxu0
        %v2556 = vadd.f32 0.0, %v2555
        %v2557 = vpop.f32.mrb[0].mxu0
        %2558 = vmatprep.mubr.f32.mxu0 %v2461
        %2559 = vmatmul.mubr.f32.gmra.mrb[0].mxu0 %v2460
        %v2560 = vpop.f32.mrb[0].mxu0
        %v2561 = vadd.f32 0.0, %v2560
        %v2562 = vpop.f32.mrb[0].mxu0
        %2563 = vmatprep.mubr.f32.mxu0 %v2463
        %2564 = vmatmul.mubr.f32.gmra.mrb[0].mxu0 %v2462
        %v2565 = vpop.f32.mrb[0].mxu0
        %v2566 = vadd.f32 0.0, %v2565
        %v2567 = vpop.f32.mrb[0].mxu0
        %2568 = vdwg.mxu0
        %s2569 = scalar_lea.vmem [#allocation2], 1024
        %v2570 = vld [vmem:[%s2569] sm:$0xff]
        %v2571 = vld [vmem:[%s2569 + $0x8] sm:$0xff]
        %v2572 = vld [vmem:[%s2569 + $0x10] sm:$0xff]
        %v2573 = vld [vmem:[%s2569 + $0x18] sm:$0xff]
        %v2574 = vld [vmem:[%s2569 + $0x20] sm:$0xff]
        %v2575 = vld [vmem:[%s2569 + $0x28] sm:$0xff]
        %v2576 = vld [vmem:[%s2569 + $0x30] sm:$0xff]
        %v2577 = vld [vmem:[%s2569 + $0x38] sm:$0xff]
        %v2578 = vld [vmem:[%s2569 + $0x40] sm:$0xff]
        %v2579 = vld [vmem:[%s2569 + $0x48] sm:$0xff]
        %v2580 = vld [vmem:[%s2569 + $0x50] sm:$0xff]
        %v2581 = vld [vmem:[%s2569 + $0x58] sm:$0xff]
        %v2582 = vld [vmem:[%s2569 + $0x60] sm:$0xff]
        %v2583 = vld [vmem:[%s2569 + $0x68] sm:$0xff]
        %v2584 = vld [vmem:[%s2569 + $0x70] sm:$0xff]
        %v2585 = vld [vmem:[%s2569 + $0x78] sm:$0xff]
        %2586 = vmatprep.subr.mxu0 0.0
        %2587 = vmatpush1.msra.mxu0 %v2570
        %2588 = vmatprep.subr.mxu0 0.0
        %2589 = vmatpush1.msra.mxu0 %v2571
        %2590 = vmatprep.subr.mxu0 0.0
        %2591 = vmatpush1.msra.mxu0 %v2572
        %2592 = vmatprep.subr.mxu0 0.0
        %2593 = vmatpush1.msra.mxu0 %v2573
        %2594 = vmatprep.subr.mxu0 0.0
        %2595 = vmatpush1.msra.mxu0 %v2574
        %2596 = vmatprep.subr.mxu0 0.0
        %2597 = vmatpush1.msra.mxu0 %v2575
        %2598 = vmatprep.subr.mxu0 0.0
        %2599 = vmatpush1.msra.mxu0 %v2576
        %2600 = vmatprep.subr.mxu0 0.0
        %2601 = vmatpush1.msra.mxu0 %v2577
        %2602 = vmatprep.subr.mxu0 0.0
        %2603 = vmatpush1.msra.mxu0 %v2578
        %2604 = vmatprep.subr.mxu0 0.0
        %2605 = vmatpush1.msra.mxu0 %v2579
        %2606 = vmatprep.subr.mxu0 0.0
        %2607 = vmatpush1.msra.mxu0 %v2580
        %2608 = vmatprep.subr.mxu0 0.0
        %2609 = vmatpush1.msra.mxu0 %v2581
        %2610 = vmatprep.subr.mxu0 0.0
        %2611 = vmatpush1.msra.mxu0 %v2582
        %2612 = vmatprep.subr.mxu0 0.0
        %2613 = vmatpush1.msra.mxu0 %v2583
        %2614 = vmatprep.subr.mxu0 0.0
        %2615 = vmatpush1.msra.mxu0 %v2584
        %2616 = vmatprep.subr.mxu0 0.0
        %2617 = vmatpush1.msra.mxu0 %v2585
        %2618 = vmatprep.subr.mxu0 0.0
        %2619 = vmatpush1.msra.mxu0 0.0
        %2620 = vmatprep.subr.mxu0 0.0
        %2621 = vmatpush1.msra.mxu0 0.0
        %2622 = vmatprep.subr.mxu0 0.0
        %2623 = vmatpush1.msra.mxu0 0.0
        %2624 = vmatprep.subr.mxu0 0.0
        %2625 = vmatpush1.msra.mxu0 0.0
        %2626 = vmatprep.subr.mxu0 0.0
        %2627 = vmatpush1.msra.mxu0 0.0
        %2628 = vmatprep.subr.mxu0 0.0
        %2629 = vmatpush1.msra.mxu0 0.0
        %2630 = vmatprep.subr.mxu0 0.0
        %2631 = vmatpush1.msra.mxu0 0.0
        %2632 = vmatprep.subr.mxu0 0.0
        %2633 = vmatpush1.msra.mxu0 0.0
        %2634 = vmatprep.subr.mxu0 0.0
        %2635 = vmatpush1.msra.mxu0 0.0
        %2636 = vmatprep.subr.mxu0 0.0
        %2637 = vmatpush1.msra.mxu0 0.0
        %2638 = vmatprep.subr.mxu0 0.0
        %2639 = vmatpush1.msra.mxu0 0.0
        %2640 = vmatprep.subr.mxu0 0.0
        %2641 = vmatpush1.msra.mxu0 0.0
        %2642 = vmatprep.subr.mxu0 0.0
        %2643 = vmatpush1.msra.mxu0 0.0
        %2644 = vmatprep.subr.mxu0 0.0
        %2645 = vmatpush1.msra.mxu0 0.0
        %2646 = vmatprep.subr.mxu0 0.0
        %2647 = vmatpush1.msra.mxu0 0.0
        %2648 = vmatprep.subr.mxu0 0.0
        %2649 = vmatpush1.msra.mxu0 0.0
        %2650 = vmatprep.mubr.f32.mxu0 0.0
        %2651 = vmatmul.mubr.f32.gmra.mrb[0].mxu0 %v2531
        %v2652 = vpop.f32.mrb[0].mxu0
        %v2653 = vadd.f32 0.0, %v2652
        %v2654 = vpop.f32.mrb[0].mxu0
        %2655 = vmatprep.mubr.f32.mxu0 0.0
        %2656 = vmatmul.mubr.f32.gmra.mrb[0].mxu0 %v2536
        %v2657 = vpop.f32.mrb[0].mxu0
        %v2658 = vadd.f32 0.0, %v2657
        %v2659 = vpop.f32.mrb[0].mxu0
        %2660 = vmatprep.mubr.f32.mxu0 0.0
        %2661 = vmatmul.mubr.f32.gmra.mrb[0].mxu0 %v2541
        %v2662 = vpop.f32.mrb[0].mxu0
        %v2663 = vadd.f32 0.0, %v2662
        %v2664 = vpop.f32.mrb[0].mxu0
        %2665 = vmatprep.mubr.f32.mxu0 0.0
        %2666 = vmatmul.mubr.f32.gmra.mrb[0].mxu0 %v2546
        %v2667 = vpop.f32.mrb[0].mxu0
        %v2668 = vadd.f32 0.0, %v2667
        %v2669 = vpop.f32.mrb[0].mxu0
        %2670 = vmatprep.mubr.f32.mxu0 0.0
        %2671 = vmatmul.mubr.f32.gmra.mrb[0].mxu0 %v2551
        %v2672 = vpop.f32.mrb[0].mxu0
        %v2673 = vadd.f32 0.0, %v2672
        %v2674 = vpop.f32.mrb[0].mxu0
        %2675 = vmatprep.mubr.f32.mxu0 0.0
        %2676 = vmatmul.mubr.f32.gmra.mrb[0].mxu0 %v2556
        %v2677 = vpop.f32.mrb[0].mxu0
        %v2678 = vadd.f32 0.0, %v2677
        %v2679 = vpop.f32.mrb[0].mxu0
        %2680 = vmatprep.mubr.f32.mxu0 0.0
        %2681 = vmatmul.mubr.f32.gmra.mrb[0].mxu0 %v2561
        %v2682 = vpop.f32.mrb[0].mxu0
        %v2683 = vadd.f32 0.0, %v2682
        %v2684 = vpop.f32.mrb[0].mxu0
        %2685 = vmatprep.mubr.f32.mxu0 0.0
        %2686 = vmatmul.mubr.f32.gmra.mrb[0].mxu0 %v2566
        %v2687 = vpop.f32.mrb[0].mxu0
        %v2688 = vadd.f32 0.0, %v2687
        %v2689 = vpop.f32.mrb[0].mxu0
        %2690 = vdwg.mxu0
        %v2691 = vadd.f32 %v2439, %v2653
        %v2692 = vadd.f32 %v2440, %v2658
        %v2693 = vadd.f32 %v2441, %v2663
        %v2694 = vadd.f32 %v2442, %v2668
        %v2695 = vadd.f32 %v2443, %v2673
        %v2696 = vadd.f32 %v2444, %v2678
        %v2697 = vadd.f32 %v2445, %v2683
        %v2698 = vadd.f32 %v2446, %v2688
        %v2699 = vld [vmem:[%s9] sm:$0x1]
        %v2701 = vlaneseq
        %v2702 = vshrl.u32 %v2701, 7
        %v2703 = vsub.s32 0, %v2702
        %v2704 = vrot.slane %v2699, %v2703
        %v2706 = vadd.f32 %v2691, %v2704
        %v2707 = vadd.f32 %v2692, %v2704
        %v2708 = vadd.f32 %v2693, %v2704
        %v2709 = vadd.f32 %v2694, %v2704
        %v2710 = vadd.f32 %v2695, %v2704
        %v2711 = vadd.f32 %v2696, %v2704
        %v2712 = vadd.f32 %v2697, %v2704
        %v2713 = vadd.f32 %v2698, %v2704
        %v2714 = vand.u32 2147483647, %v2706
        %v2715 = vand.u32 2147483647, %v2707
        %v2716 = vand.u32 2147483647, %v2708
        %v2717 = vand.u32 2147483647, %v2709
        %v2718 = vand.u32 2147483647, %v2710
        %v2719 = vand.u32 2147483647, %v2711
        %v2720 = vand.u32 2147483647, %v2712
        %v2721 = vand.u32 2147483647, %v2713
        %v2722 = vsub.f32 0.0, %v2714
        %v2723 = vsub.f32 0.0, %v2715
        %v2724 = vsub.f32 0.0, %v2716
        %v2725 = vsub.f32 0.0, %v2717
        %v2726 = vsub.f32 0.0, %v2718
        %v2727 = vsub.f32 0.0, %v2719
        %v2728 = vsub.f32 0.0, %v2720
        %v2729 = vsub.f32 0.0, %v2721
        %v2730 = vmul.f32 %v2722, 1.442695
        %v2731 = vpow.pop %v2730
        %v2732 = vmul.f32 %v2723, 1.442695
        %v2733 = vpow.pop %v2732
        %v2734 = vmul.f32 %v2724, 1.442695
        %v2735 = vpow.pop %v2734
        %v2736 = vmul.f32 %v2725, 1.442695
        %v2737 = vpow.pop %v2736
        %v2738 = vmul.f32 %v2726, 1.442695
        %v2739 = vpow.pop %v2738
        %v2740 = vmul.f32 %v2727, 1.442695
        %v2741 = vpow.pop %v2740
        %v2742 = vmul.f32 %v2728, 1.442695
        %v2743 = vpow.pop %v2742
        %v2744 = vmul.f32 %v2729, 1.442695
        %v2745 = vpow.pop %v2744
        %v2746 = vadd.f32 %v2731, 1.0
        %v2747 = vadd.f32 %v2733, 1.0
        %v2748 = vadd.f32 %v2735, 1.0
        %v2749 = vadd.f32 %v2737, 1.0
        %v2750 = vadd.f32 %v2739, 1.0
        %v2751 = vadd.f32 %v2741, 1.0
        %v2752 = vadd.f32 %v2743, 1.0
        %v2753 = vadd.f32 %v2745, 1.0
        %v2754 = vrcp.pop %v2746
        %v2755 = vrcp.pop %v2747
        %v2756 = vrcp.pop %v2748
        %v2757 = vrcp.pop %v2749
        %v2758 = vrcp.pop %v2750
        %v2759 = vrcp.pop %v2751
        %v2760 = vrcp.pop %v2752
        %v2761 = vrcp.pop %v2753
        %v2762 = vmul.f32 %v2706, %v2754
        %v2763 = vmul.f32 %v2707, %v2755
        %v2764 = vmul.f32 %v2708, %v2756
        %v2765 = vmul.f32 %v2709, %v2757
        %v2766 = vmul.f32 %v2710, %v2758
        %v2767 = vmul.f32 %v2711, %v2759
        %v2768 = vmul.f32 %v2712, %v2760
        %v2769 = vmul.f32 %v2713, %v2761
        %vm2770 = vcmp.ge.f32.partialorder %v2706, 0.0
        %vm2771 = vcmp.ge.f32.partialorder %v2707, 0.0
        %vm2772 = vcmp.ge.f32.partialorder %v2708, 0.0
        %vm2773 = vcmp.ge.f32.partialorder %v2709, 0.0
        %vm2774 = vcmp.ge.f32.partialorder %v2710, 0.0
        %vm2775 = vcmp.ge.f32.partialorder %v2711, 0.0
        %vm2776 = vcmp.ge.f32.partialorder %v2712, 0.0
        %vm2777 = vcmp.ge.f32.partialorder %v2713, 0.0
        %v2778 = vsel %vm2770, 1.0, %v2731
        %v2779 = vsel %vm2771, 1.0, %v2733
        %v2780 = vsel %vm2772, 1.0, %v2735
        %v2781 = vsel %vm2773, 1.0, %v2737
        %v2782 = vsel %vm2774, 1.0, %v2739
        %v2783 = vsel %vm2775, 1.0, %v2741
        %v2784 = vsel %vm2776, 1.0, %v2743
        %v2785 = vsel %vm2777, 1.0, %v2745
        %v2786 = vmul.f32 %v2762, %v2778
        %v2787 = vmul.f32 %v2763, %v2779
        %v2788 = vmul.f32 %v2764, %v2780
        %v2789 = vmul.f32 %v2765, %v2781
        %v2790 = vmul.f32 %v2766, %v2782
        %v2791 = vmul.f32 %v2767, %v2783
        %v2792 = vmul.f32 %v2768, %v2784
        %v2793 = vmul.f32 %v2769, %v2785
        %v2794 = vld [vmem:[%s3] sm:$0xff]
        %v2795 = vld [vmem:[%s3 + $0x8] sm:$0xff]
        %vm2796 = vcmask 523264
        %v2798 = vsel %vm2796, %v2794, 0
        %v2801 = vsel %vm2796, %v2795, 0
        %2803 = vmatprep.subr.mxu0 0.0
        %2804 = vmatpush1.msra.mxu0 %v2786
        %2805 = vmatprep.subr.mxu0 0.0
        %2806 = vmatpush1.msra.mxu0 %v2787
        %2807 = vmatprep.subr.mxu0 0.0
        %2808 = vmatpush1.msra.mxu0 %v2788
        %2809 = vmatprep.subr.mxu0 0.0
        %2810 = vmatpush1.msra.mxu0 %v2789
        %2811 = vmatprep.subr.mxu0 0.0
        %2812 = vmatpush1.msra.mxu0 %v2790
        %2813 = vmatprep.subr.mxu0 0.0
        %2814 = vmatpush1.msra.mxu0 %v2791
        %2815 = vmatprep.subr.mxu0 0.0
        %2816 = vmatpush1.msra.mxu0 %v2792
        %2817 = vmatprep.subr.mxu0 0.0
        %2818 = vmatpush1.msra.mxu0 %v2793
        %2819 = vmatprep.subr.mxu0 0.0
        %2820 = vmatpush1.msra.mxu0 0.0
        %2821 = vmatprep.subr.mxu0 0.0
        %2822 = vmatpush1.msra.mxu0 0.0
        %2823 = vmatprep.subr.mxu0 0.0
        %2824 = vmatpush1.msra.mxu0 0.0
        %2825 = vmatprep.subr.mxu0 0.0
        %2826 = vmatpush1.msra.mxu0 0.0
        %2827 = vmatprep.subr.mxu0 0.0
        %2828 = vmatpush1.msra.mxu0 0.0
        %2829 = vmatprep.subr.mxu0 0.0
        %2830 = vmatpush1.msra.mxu0 0.0
        %2831 = vmatprep.subr.mxu0 0.0
        %2832 = vmatpush1.msra.mxu0 0.0
        %2833 = vmatprep.subr.mxu0 0.0
        %2834 = vmatpush1.msra.mxu0 0.0
        %2835 = vmatprep.subr.mxu0 0.0
        %2836 = vmatpush1.msra.mxu0 0.0
        %2837 = vmatprep.subr.mxu0 0.0
        %2838 = vmatpush1.msra.mxu0 0.0
        %2839 = vmatprep.subr.mxu0 0.0
        %2840 = vmatpush1.msra.mxu0 0.0
        %2841 = vmatprep.subr.mxu0 0.0
        %2842 = vmatpush1.msra.mxu0 0.0
        %2843 = vmatprep.subr.mxu0 0.0
        %2844 = vmatpush1.msra.mxu0 0.0
        %2845 = vmatprep.subr.mxu0 0.0
        %2846 = vmatpush1.msra.mxu0 0.0
        %2847 = vmatprep.subr.mxu0 0.0
        %2848 = vmatpush1.msra.mxu0 0.0
        %2849 = vmatprep.subr.mxu0 0.0
        %2850 = vmatpush1.msra.mxu0 0.0
        %2851 = vmatprep.subr.mxu0 0.0
        %2852 = vmatpush1.msra.mxu0 0.0
        %2853 = vmatprep.subr.mxu0 0.0
        %2854 = vmatpush1.msra.mxu0 0.0
        %2855 = vmatprep.subr.mxu0 0.0
        %2856 = vmatpush1.msra.mxu0 0.0
        %2857 = vmatprep.subr.mxu0 0.0
        %2858 = vmatpush1.msra.mxu0 0.0
        %2859 = vmatprep.subr.mxu0 0.0
        %2860 = vmatpush1.msra.mxu0 0.0
        %2861 = vmatprep.subr.mxu0 0.0
        %2862 = vmatpush1.msra.mxu0 0.0
        %2863 = vmatprep.subr.mxu0 0.0
        %2864 = vmatpush1.msra.mxu0 0.0
        %2865 = vmatprep.subr.mxu0 0.0
        %2866 = vmatpush1.msra.mxu0 0.0
        %2867 = vmatprep.mubr.f32.mxu0 0.0
        %2868 = vmatmul.mubr.f32.gmra.mrb[0].mxu0 %v2798
        %v2869 = vpop.f32.mrb[0].mxu0
        %v2870 = vadd.f32 0.0, %v2869
        %v2871 = vpop.f32.mrb[0].mxu0
        %2872 = vmatprep.mubr.f32.mxu0 0.0
        %2873 = vmatmul.mubr.f32.gmra.mrb[0].mxu0 %v2801
        %v2874 = vpop.f32.mrb[0].mxu0
        %v2875 = vadd.f32 0.0, %v2874
        %v2876 = vpop.f32.mrb[0].mxu0
        %2877 = vdwg.mxu0
        %v2878 = vld [vmem:[#allocation5] sm:$0xff]
        %v2879 = vld [vmem:[#allocation5 + $0x8] sm:$0xff]
        %v2880 = vld [vmem:[#allocation5 + $0x10] sm:$0xff]
        %v2881 = vld [vmem:[#allocation5 + $0x18] sm:$0xff]
        %v2882 = vld [vmem:[#allocation5 + $0x20] sm:$0xff]
        %v2883 = vld [vmem:[#allocation5 + $0x28] sm:$0xff]
        %v2884 = vld [vmem:[#allocation5 + $0x30] sm:$0xff]
        %v2885 = vld [vmem:[#allocation5 + $0x38] sm:$0xff]
        %v2886 = vld [vmem:[#allocation5 + $0x40] sm:$0xff]
        %v2887 = vld [vmem:[#allocation5 + $0x48] sm:$0xff]
        %v2888 = vld [vmem:[#allocation5 + $0x50] sm:$0xff]
        %v2889 = vld [vmem:[#allocation5 + $0x58] sm:$0xff]
        %v2890 = vld [vmem:[#allocation5 + $0x60] sm:$0xff]
        %v2891 = vld [vmem:[#allocation5 + $0x68] sm:$0xff]
        %v2892 = vld [vmem:[#allocation5 + $0x70] sm:$0xff]
        %v2893 = vld [vmem:[#allocation5 + $0x78] sm:$0xff]
        %s2894 = scalar_lea.vmem %s3, 16
        %v2895 = vld [vmem:[%s2894] sm:$0xff]
        %v2896 = vld [vmem:[%s2894 + $0x8] sm:$0xff]
        %v2898 = vsel %vm2796, %v2895, 0
        %v2901 = vsel %vm2796, %v2896, 0
        %2903 = vmatprep.subr.mxu0 0.0
        %2904 = vmatpush1.msra.mxu0 %v2786
        %2905 = vmatprep.subr.mxu0 0.0
        %2906 = vmatpush1.msra.mxu0 %v2787
        %2907 = vmatprep.subr.mxu0 0.0
        %2908 = vmatpush1.msra.mxu0 %v2788
        %2909 = vmatprep.subr.mxu0 0.0
        %2910 = vmatpush1.msra.mxu0 %v2789
        %2911 = vmatprep.subr.mxu0 0.0
        %2912 = vmatpush1.msra.mxu0 %v2790
        %2913 = vmatprep.subr.mxu0 0.0
        %2914 = vmatpush1.msra.mxu0 %v2791
        %2915 = vmatprep.subr.mxu0 0.0
        %2916 = vmatpush1.msra.mxu0 %v2792
        %2917 = vmatprep.subr.mxu0 0.0
        %2918 = vmatpush1.msra.mxu0 %v2793
        %2919 = vmatprep.subr.mxu0 0.0
        %2920 = vmatpush1.msra.mxu0 0.0
        %2921 = vmatprep.subr.mxu0 0.0
        %2922 = vmatpush1.msra.mxu0 0.0
        %2923 = vmatprep.subr.mxu0 0.0
        %2924 = vmatpush1.msra.mxu0 0.0
        %2925 = vmatprep.subr.mxu0 0.0
        %2926 = vmatpush1.msra.mxu0 0.0
        %2927 = vmatprep.subr.mxu0 0.0
        %2928 = vmatpush1.msra.mxu0 0.0
        %2929 = vmatprep.subr.mxu0 0.0
        %2930 = vmatpush1.msra.mxu0 0.0
        %2931 = vmatprep.subr.mxu0 0.0
        %2932 = vmatpush1.msra.mxu0 0.0
        %2933 = vmatprep.subr.mxu0 0.0
        %2934 = vmatpush1.msra.mxu0 0.0
        %2935 = vmatprep.subr.mxu0 0.0
        %2936 = vmatpush1.msra.mxu0 0.0
        %2937 = vmatprep.subr.mxu0 0.0
        %2938 = vmatpush1.msra.mxu0 0.0
        %2939 = vmatprep.subr.mxu0 0.0
        %2940 = vmatpush1.msra.mxu0 0.0
        %2941 = vmatprep.subr.mxu0 0.0
        %2942 = vmatpush1.msra.mxu0 0.0
        %2943 = vmatprep.subr.mxu0 0.0
        %2944 = vmatpush1.msra.mxu0 0.0
        %2945 = vmatprep.subr.mxu0 0.0
        %2946 = vmatpush1.msra.mxu0 0.0
        %2947 = vmatprep.subr.mxu0 0.0
        %2948 = vmatpush1.msra.mxu0 0.0
        %2949 = vmatprep.subr.mxu0 0.0
        %2950 = vmatpush1.msra.mxu0 0.0
        %2951 = vmatprep.subr.mxu0 0.0
        %2952 = vmatpush1.msra.mxu0 0.0
        %2953 = vmatprep.subr.mxu0 0.0
        %2954 = vmatpush1.msra.mxu0 0.0
        %2955 = vmatprep.subr.mxu0 0.0
        %2956 = vmatpush1.msra.mxu0 0.0
        %2957 = vmatprep.subr.mxu0 0.0
        %2958 = vmatpush1.msra.mxu0 0.0
        %2959 = vmatprep.subr.mxu0 0.0
        %2960 = vmatpush1.msra.mxu0 0.0
        %2961 = vmatprep.subr.mxu0 0.0
        %2962 = vmatpush1.msra.mxu0 0.0
        %2963 = vmatprep.subr.mxu0 0.0
        %2964 = vmatpush1.msra.mxu0 0.0
        %2965 = vmatprep.subr.mxu0 0.0
        %2966 = vmatpush1.msra.mxu0 0.0
        %2967 = vmatprep.mubr.f32.mxu0 0.0
        %2968 = vmatmul.mubr.f32.gmra.mrb[0].mxu0 %v2898
        %v2969 = vpop.f32.mrb[0].mxu0
        %v2970 = vadd.f32 0.0, %v2969
        %v2971 = vpop.f32.mrb[0].mxu0
        %2972 = vmatprep.mubr.f32.mxu0 0.0
        %2973 = vmatmul.mubr.f32.gmra.mrb[0].mxu0 %v2901
        %v2974 = vpop.f32.mrb[0].mxu0
        %v2975 = vadd.f32 0.0, %v2974
        %v2976 = vpop.f32.mrb[0].mxu0
        %2977 = vdwg.mxu0
        %s2978 = scalar_lea.vmem [#allocation5], 128
        %v2979 = vld [vmem:[%s2978] sm:$0xff]
        %v2980 = vld [vmem:[%s2978 + $0x8] sm:$0xff]
        %v2981 = vld [vmem:[%s2978 + $0x10] sm:$0xff]
        %v2982 = vld [vmem:[%s2978 + $0x18] sm:$0xff]
        %v2983 = vld [vmem:[%s2978 + $0x20] sm:$0xff]
        %v2984 = vld [vmem:[%s2978 + $0x28] sm:$0xff]
        %v2985 = vld [vmem:[%s2978 + $0x30] sm:$0xff]
        %v2986 = vld [vmem:[%s2978 + $0x38] sm:$0xff]
        %v2987 = vld [vmem:[%s2978 + $0x40] sm:$0xff]
        %v2988 = vld [vmem:[%s2978 + $0x48] sm:$0xff]
        %v2989 = vld [vmem:[%s2978 + $0x50] sm:$0xff]
        %v2990 = vld [vmem:[%s2978 + $0x58] sm:$0xff]
        %v2991 = vld [vmem:[%s2978 + $0x60] sm:$0xff]
        %v2992 = vld [vmem:[%s2978 + $0x68] sm:$0xff]
        %v2993 = vld [vmem:[%s2978 + $0x70] sm:$0xff]
        %v2994 = vld [vmem:[%s2978 + $0x78] sm:$0xff]
        %2995 = vmatprep.subr.mxu0 0.0
        %2996 = vmatpush1.msra.mxu0 %v2979
        %2997 = vmatprep.subr.mxu0 0.0
        %2998 = vmatpush1.msra.mxu0 %v2980
        %2999 = vmatprep.subr.mxu0 0.0
        %3000 = vmatpush1.msra.mxu0 %v2981
        %3001 = vmatprep.subr.mxu0 0.0
        %3002 = vmatpush1.msra.mxu0 %v2982
        %3003 = vmatprep.subr.mxu0 0.0
        %3004 = vmatpush1.msra.mxu0 %v2983
        %3005 = vmatprep.subr.mxu0 0.0
        %3006 = vmatpush1.msra.mxu0 %v2984
        %3007 = vmatprep.subr.mxu0 0.0
        %3008 = vmatpush1.msra.mxu0 %v2985
        %3009 = vmatprep.subr.mxu0 0.0
        %3010 = vmatpush1.msra.mxu0 %v2986
        %3011 = vmatprep.subr.mxu0 0.0
        %3012 = vmatpush1.msra.mxu0 %v2987
        %3013 = vmatprep.subr.mxu0 0.0
        %3014 = vmatpush1.msra.mxu0 %v2988
        %3015 = vmatprep.subr.mxu0 0.0
        %3016 = vmatpush1.msra.mxu0 %v2989
        %3017 = vmatprep.subr.mxu0 0.0
        %3018 = vmatpush1.msra.mxu0 %v2990
        %3019 = vmatprep.subr.mxu0 0.0
        %3020 = vmatpush1.msra.mxu0 %v2991
        %3021 = vmatprep.subr.mxu0 0.0
        %3022 = vmatpush1.msra.mxu0 %v2992
        %3023 = vmatprep.subr.mxu0 0.0
        %3024 = vmatpush1.msra.mxu0 %v2993
        %3025 = vmatprep.subr.mxu0 0.0
        %3026 = vmatpush1.msra.mxu0 %v2994
        %3027 = vmatprep.subr.mxu0 0.0
        %3028 = vmatpush1.msra.mxu0 0.0
        %3029 = vmatprep.subr.mxu0 0.0
        %3030 = vmatpush1.msra.mxu0 0.0
        %3031 = vmatprep.subr.mxu0 0.0
        %3032 = vmatpush1.msra.mxu0 0.0
        %3033 = vmatprep.subr.mxu0 0.0
        %3034 = vmatpush1.msra.mxu0 0.0
        %3035 = vmatprep.subr.mxu0 0.0
        %3036 = vmatpush1.msra.mxu0 0.0
        %3037 = vmatprep.subr.mxu0 0.0
        %3038 = vmatpush1.msra.mxu0 0.0
        %3039 = vmatprep.subr.mxu0 0.0
        %3040 = vmatpush1.msra.mxu0 0.0
        %3041 = vmatprep.subr.mxu0 0.0
        %3042 = vmatpush1.msra.mxu0 0.0
        %3043 = vmatprep.subr.mxu0 0.0
        %3044 = vmatpush1.msra.mxu0 0.0
        %3045 = vmatprep.subr.mxu0 0.0
        %3046 = vmatpush1.msra.mxu0 0.0
        %3047 = vmatprep.subr.mxu0 0.0
        %3048 = vmatpush1.msra.mxu0 0.0
        %3049 = vmatprep.subr.mxu0 0.0
        %3050 = vmatpush1.msra.mxu0 0.0
        %3051 = vmatprep.subr.mxu0 0.0
        %3052 = vmatpush1.msra.mxu0 0.0
        %3053 = vmatprep.subr.mxu0 0.0
        %3054 = vmatpush1.msra.mxu0 0.0
        %3055 = vmatprep.subr.mxu0 0.0
        %3056 = vmatpush1.msra.mxu0 0.0
        %3057 = vmatprep.subr.mxu0 0.0
        %3058 = vmatpush1.msra.mxu0 0.0
        %3059 = vmatprep.mubr.f32.mxu0 0.0
        %3060 = vmatmul.mubr.f32.gmra.mrb[0].mxu0 %v2970
        %v3061 = vpop.f32.mrb[0].mxu0
        %v3062 = vadd.f32 0.0, %v3061
        %v3063 = vpop.f32.mrb[0].mxu0
        %3064 = vmatprep.mubr.f32.mxu0 0.0
        %3065 = vmatmul.mubr.f32.gmra.mrb[0].mxu0 %v2975
        %v3066 = vpop.f32.mrb[0].mxu0
        %v3067 = vadd.f32 0.0, %v3066
        %v3068 = vpop.f32.mrb[0].mxu0
        %3069 = vdwg.mxu0
        %3070 = vmatprep.subr.mxu0 0.0
        %3071 = vmatpush1.msra.mxu0 %v2878
        %3072 = vmatprep.subr.mxu0 0.0
        %3073 = vmatpush1.msra.mxu0 %v2879
        %3074 = vmatprep.subr.mxu0 0.0
        %3075 = vmatpush1.msra.mxu0 %v2880
        %3076 = vmatprep.subr.mxu0 0.0
        %3077 = vmatpush1.msra.mxu0 %v2881
        %3078 = vmatprep.subr.mxu0 0.0
        %3079 = vmatpush1.msra.mxu0 %v2882
        %3080 = vmatprep.subr.mxu0 0.0
        %3081 = vmatpush1.msra.mxu0 %v2883
        %3082 = vmatprep.subr.mxu0 0.0
        %3083 = vmatpush1.msra.mxu0 %v2884
        %3084 = vmatprep.subr.mxu0 0.0
        %3085 = vmatpush1.msra.mxu0 %v2885
        %3086 = vmatprep.subr.mxu0 0.0
        %3087 = vmatpush1.msra.mxu0 %v2886
        %3088 = vmatprep.subr.mxu0 0.0
        %3089 = vmatpush1.msra.mxu0 %v2887
        %3090 = vmatprep.subr.mxu0 0.0
        %3091 = vmatpush1.msra.mxu0 %v2888
        %3092 = vmatprep.subr.mxu0 0.0
        %3093 = vmatpush1.msra.mxu0 %v2889
        %3094 = vmatprep.subr.mxu0 0.0
        %3095 = vmatpush1.msra.mxu0 %v2890
        %3096 = vmatprep.subr.mxu0 0.0
        %3097 = vmatpush1.msra.mxu0 %v2891
        %3098 = vmatprep.subr.mxu0 0.0
        %3099 = vmatpush1.msra.mxu0 %v2892
        %3100 = vmatprep.subr.mxu0 0.0
        %3101 = vmatpush1.msra.mxu0 %v2893
        %3102 = vmatprep.subr.mxu0 0.0
        %3103 = vmatpush1.msra.mxu0 0.0
        %3104 = vmatprep.subr.mxu0 0.0
        %3105 = vmatpush1.msra.mxu0 0.0
        %3106 = vmatprep.subr.mxu0 0.0
        %3107 = vmatpush1.msra.mxu0 0.0
        %3108 = vmatprep.subr.mxu0 0.0
        %3109 = vmatpush1.msra.mxu0 0.0
        %3110 = vmatprep.subr.mxu0 0.0
        %3111 = vmatpush1.msra.mxu0 0.0
        %3112 = vmatprep.subr.mxu0 0.0
        %3113 = vmatpush1.msra.mxu0 0.0
        %3114 = vmatprep.subr.mxu0 0.0
        %3115 = vmatpush1.msra.mxu0 0.0
        %3116 = vmatprep.subr.mxu0 0.0
        %3117 = vmatpush1.msra.mxu0 0.0
        %3118 = vmatprep.subr.mxu0 0.0
        %3119 = vmatpush1.msra.mxu0 0.0
        %3120 = vmatprep.subr.mxu0 0.0
        %3121 = vmatpush1.msra.mxu0 0.0
        %3122 = vmatprep.subr.mxu0 0.0
        %3123 = vmatpush1.msra.mxu0 0.0
        %3124 = vmatprep.subr.mxu0 0.0
        %3125 = vmatpush1.msra.mxu0 0.0
        %3126 = vmatprep.subr.mxu0 0.0
        %3127 = vmatpush1.msra.mxu0 0.0
        %3128 = vmatprep.subr.mxu0 0.0
        %3129 = vmatpush1.msra.mxu0 0.0
        %3130 = vmatprep.subr.mxu0 0.0
        %3131 = vmatpush1.msra.mxu0 0.0
        %3132 = vmatprep.subr.mxu0 0.0
        %3133 = vmatpush1.msra.mxu0 0.0
        %3134 = vmatprep.mubr.f32.mxu0 0.0
        %3135 = vmatmul.mubr.f32.gmra.mrb[0].mxu0 %v2870
        %v3136 = vpop.f32.mrb[0].mxu0
        %v3137 = vadd.f32 %v3062, %v3136
        %v3138 = vpop.f32.mrb[0].mxu0
        %3139 = vmatprep.mubr.f32.mxu0 0.0
        %3140 = vmatmul.mubr.f32.gmra.mrb[0].mxu0 %v2875
        %v3141 = vpop.f32.mrb[0].mxu0
        %v3142 = vadd.f32 %v3067, %v3141
        %v3143 = vpop.f32.mrb[0].mxu0
        %3144 = vdwg.mxu0
        %s3145 = scalar_lea.vmem %s3, 32
        %v3146 = vld [vmem:[%s3145] sm:$0xff]
        %v3147 = vld [vmem:[%s3145 + $0x8] sm:$0xff]
        %v3149 = vsel %vm2796, %v3146, 0
        %v3152 = vsel %vm2796, %v3147, 0
        %3154 = vmatprep.subr.mxu0 0.0
        %3155 = vmatpush1.msra.mxu0 %v2786
        %3156 = vmatprep.subr.mxu0 0.0
        %3157 = vmatpush1.msra.mxu0 %v2787
        %3158 = vmatprep.subr.mxu0 0.0
        %3159 = vmatpush1.msra.mxu0 %v2788
        %3160 = vmatprep.subr.mxu0 0.0
        %3161 = vmatpush1.msra.mxu0 %v2789
        %3162 = vmatprep.subr.mxu0 0.0
        %3163 = vmatpush1.msra.mxu0 %v2790
        %3164 = vmatprep.subr.mxu0 0.0
        %3165 = vmatpush1.msra.mxu0 %v2791
        %3166 = vmatprep.subr.mxu0 0.0
        %3167 = vmatpush1.msra.mxu0 %v2792
        %3168 = vmatprep.subr.mxu0 0.0
        %3169 = vmatpush1.msra.mxu0 %v2793
        %3170 = vmatprep.subr.mxu0 0.0
        %3171 = vmatpush1.msra.mxu0 0.0
        %3172 = vmatprep.subr.mxu0 0.0
        %3173 = vmatpush1.msra.mxu0 0.0
        %3174 = vmatprep.subr.mxu0 0.0
        %3175 = vmatpush1.msra.mxu0 0.0
        %3176 = vmatprep.subr.mxu0 0.0
        %3177 = vmatpush1.msra.mxu0 0.0
        %3178 = vmatprep.subr.mxu0 0.0
        %3179 = vmatpush1.msra.mxu0 0.0
        %3180 = vmatprep.subr.mxu0 0.0
        %3181 = vmatpush1.msra.mxu0 0.0
        %3182 = vmatprep.subr.mxu0 0.0
        %3183 = vmatpush1.msra.mxu0 0.0
        %3184 = vmatprep.subr.mxu0 0.0
        %3185 = vmatpush1.msra.mxu0 0.0
        %3186 = vmatprep.subr.mxu0 0.0
        %3187 = vmatpush1.msra.mxu0 0.0
        %3188 = vmatprep.subr.mxu0 0.0
        %3189 = vmatpush1.msra.mxu0 0.0
        %3190 = vmatprep.subr.mxu0 0.0
        %3191 = vmatpush1.msra.mxu0 0.0
        %3192 = vmatprep.subr.mxu0 0.0
        %3193 = vmatpush1.msra.mxu0 0.0
        %3194 = vmatprep.subr.mxu0 0.0
        %3195 = vmatpush1.msra.mxu0 0.0
        %3196 = vmatprep.subr.mxu0 0.0
        %3197 = vmatpush1.msra.mxu0 0.0
        %3198 = vmatprep.subr.mxu0 0.0
        %3199 = vmatpush1.msra.mxu0 0.0
        %3200 = vmatprep.subr.mxu0 0.0
        %3201 = vmatpush1.msra.mxu0 0.0
        %3202 = vmatprep.subr.mxu0 0.0
        %3203 = vmatpush1.msra.mxu0 0.0
        %3204 = vmatprep.subr.mxu0 0.0
        %3205 = vmatpush1.msra.mxu0 0.0
        %3206 = vmatprep.subr.mxu0 0.0
        %3207 = vmatpush1.msra.mxu0 0.0
        %3208 = vmatprep.subr.mxu0 0.0
        %3209 = vmatpush1.msra.mxu0 0.0
        %3210 = vmatprep.subr.mxu0 0.0
        %3211 = vmatpush1.msra.mxu0 0.0
        %3212 = vmatprep.subr.mxu0 0.0
        %3213 = vmatpush1.msra.mxu0 0.0
        %3214 = vmatprep.subr.mxu0 0.0
        %3215 = vmatpush1.msra.mxu0 0.0
        %3216 = vmatprep.subr.mxu0 0.0
        %3217 = vmatpush1.msra.mxu0 0.0
        %3218 = vmatprep.mubr.f32.mxu0 0.0
        %3219 = vmatmul.mubr.f32.gmra.mrb[0].mxu0 %v3149
        %v3220 = vpop.f32.mrb[0].mxu0
        %v3221 = vadd.f32 0.0, %v3220
        %v3222 = vpop.f32.mrb[0].mxu0
        %3223 = vmatprep.mubr.f32.mxu0 0.0
        %3224 = vmatmul.mubr.f32.gmra.mrb[0].mxu0 %v3152
        %v3225 = vpop.f32.mrb[0].mxu0
        %v3226 = vadd.f32 0.0, %v3225
        %v3227 = vpop.f32.mrb[0].mxu0
        %3228 = vdwg.mxu0
        %s3229 = scalar_lea.vmem [#allocation5], 256
        %v3230 = vld [vmem:[%s3229] sm:$0xff]
        %v3231 = vld [vmem:[%s3229 + $0x8] sm:$0xff]
        %v3232 = vld [vmem:[%s3229 + $0x10] sm:$0xff]
        %v3233 = vld [vmem:[%s3229 + $0x18] sm:$0xff]
        %v3234 = vld [vmem:[%s3229 + $0x20] sm:$0xff]
        %v3235 = vld [vmem:[%s3229 + $0x28] sm:$0xff]
        %v3236 = vld [vmem:[%s3229 + $0x30] sm:$0xff]
        %v3237 = vld [vmem:[%s3229 + $0x38] sm:$0xff]
        %v3238 = vld [vmem:[%s3229 + $0x40] sm:$0xff]
        %v3239 = vld [vmem:[%s3229 + $0x48] sm:$0xff]
        %v3240 = vld [vmem:[%s3229 + $0x50] sm:$0xff]
        %v3241 = vld [vmem:[%s3229 + $0x58] sm:$0xff]
        %v3242 = vld [vmem:[%s3229 + $0x60] sm:$0xff]
        %v3243 = vld [vmem:[%s3229 + $0x68] sm:$0xff]
        %v3244 = vld [vmem:[%s3229 + $0x70] sm:$0xff]
        %v3245 = vld [vmem:[%s3229 + $0x78] sm:$0xff]
        %3246 = vmatprep.subr.mxu0 0.0
        %3247 = vmatpush1.msra.mxu0 %v3230
        %3248 = vmatprep.subr.mxu0 0.0
        %3249 = vmatpush1.msra.mxu0 %v3231
        %3250 = vmatprep.subr.mxu0 0.0
        %3251 = vmatpush1.msra.mxu0 %v3232
        %3252 = vmatprep.subr.mxu0 0.0
        %3253 = vmatpush1.msra.mxu0 %v3233
        %3254 = vmatprep.subr.mxu0 0.0
        %3255 = vmatpush1.msra.mxu0 %v3234
        %3256 = vmatprep.subr.mxu0 0.0
        %3257 = vmatpush1.msra.mxu0 %v3235
        %3258 = vmatprep.subr.mxu0 0.0
        %3259 = vmatpush1.msra.mxu0 %v3236
        %3260 = vmatprep.subr.mxu0 0.0
        %3261 = vmatpush1.msra.mxu0 %v3237
        %3262 = vmatprep.subr.mxu0 0.0
        %3263 = vmatpush1.msra.mxu0 %v3238
        %3264 = vmatprep.subr.mxu0 0.0
        %3265 = vmatpush1.msra.mxu0 %v3239
        %3266 = vmatprep.subr.mxu0 0.0
        %3267 = vmatpush1.msra.mxu0 %v3240
        %3268 = vmatprep.subr.mxu0 0.0
        %3269 = vmatpush1.msra.mxu0 %v3241
        %3270 = vmatprep.subr.mxu0 0.0
        %3271 = vmatpush1.msra.mxu0 %v3242
        %3272 = vmatprep.subr.mxu0 0.0
        %3273 = vmatpush1.msra.mxu0 %v3243
        %3274 = vmatprep.subr.mxu0 0.0
        %3275 = vmatpush1.msra.mxu0 %v3244
        %3276 = vmatprep.subr.mxu0 0.0
        %3277 = vmatpush1.msra.mxu0 %v3245
        %3278 = vmatprep.subr.mxu0 0.0
        %3279 = vmatpush1.msra.mxu0 0.0
        %3280 = vmatprep.subr.mxu0 0.0
        %3281 = vmatpush1.msra.mxu0 0.0
        %3282 = vmatprep.subr.mxu0 0.0
        %3283 = vmatpush1.msra.mxu0 0.0
        %3284 = vmatprep.subr.mxu0 0.0
        %3285 = vmatpush1.msra.mxu0 0.0
        %3286 = vmatprep.subr.mxu0 0.0
        %3287 = vmatpush1.msra.mxu0 0.0
        %3288 = vmatprep.subr.mxu0 0.0
        %3289 = vmatpush1.msra.mxu0 0.0
        %3290 = vmatprep.subr.mxu0 0.0
        %3291 = vmatpush1.msra.mxu0 0.0
        %3292 = vmatprep.subr.mxu0 0.0
        %3293 = vmatpush1.msra.mxu0 0.0
        %3294 = vmatprep.subr.mxu0 0.0
        %3295 = vmatpush1.msra.mxu0 0.0
        %3296 = vmatprep.subr.mxu0 0.0
        %3297 = vmatpush1.msra.mxu0 0.0
        %3298 = vmatprep.subr.mxu0 0.0
        %3299 = vmatpush1.msra.mxu0 0.0
        %3300 = vmatprep.subr.mxu0 0.0
        %3301 = vmatpush1.msra.mxu0 0.0
        %3302 = vmatprep.subr.mxu0 0.0
        %3303 = vmatpush1.msra.mxu0 0.0
        %3304 = vmatprep.subr.mxu0 0.0
        %3305 = vmatpush1.msra.mxu0 0.0
        %3306 = vmatprep.subr.mxu0 0.0
        %3307 = vmatpush1.msra.mxu0 0.0
        %3308 = vmatprep.subr.mxu0 0.0
        %3309 = vmatpush1.msra.mxu0 0.0
        %3310 = vmatprep.mubr.f32.mxu0 0.0
        %3311 = vmatmul.mubr.f32.gmra.mrb[0].mxu0 %v3221
        %v3312 = vpop.f32.mrb[0].mxu0
        %v3313 = vadd.f32 0.0, %v3312
        %v3314 = vpop.f32.mrb[0].mxu0
        %3315 = vmatprep.mubr.f32.mxu0 0.0
        %3316 = vmatmul.mubr.f32.gmra.mrb[0].mxu0 %v3226
        %v3317 = vpop.f32.mrb[0].mxu0
        %v3318 = vadd.f32 0.0, %v3317
        %v3319 = vpop.f32.mrb[0].mxu0
        %3320 = vdwg.mxu0
        %v3321 = vadd.f32 %v3137, %v3313
        %v3322 = vadd.f32 %v3142, %v3318
        %s3323 = scalar_lea.vmem %s3, 48
        %v3324 = vld [vmem:[%s3323] sm:$0xff]
        %v3325 = vld [vmem:[%s3323 + $0x8] sm:$0xff]
        %v3327 = vsel %vm2796, %v3324, 0
        %v3330 = vsel %vm2796, %v3325, 0
        %3332 = vmatprep.subr.mxu0 0.0
        %3333 = vmatpush1.msra.mxu0 %v2786
        %3334 = vmatprep.subr.mxu0 0.0
        %3335 = vmatpush1.msra.mxu0 %v2787
        %3336 = vmatprep.subr.mxu0 0.0
        %3337 = vmatpush1.msra.mxu0 %v2788
        %3338 = vmatprep.subr.mxu0 0.0
        %3339 = vmatpush1.msra.mxu0 %v2789
        %3340 = vmatprep.subr.mxu0 0.0
        %3341 = vmatpush1.msra.mxu0 %v2790
        %3342 = vmatprep.subr.mxu0 0.0
        %3343 = vmatpush1.msra.mxu0 %v2791
        %3344 = vmatprep.subr.mxu0 0.0
        %3345 = vmatpush1.msra.mxu0 %v2792
        %3346 = vmatprep.subr.mxu0 0.0
        %3347 = vmatpush1.msra.mxu0 %v2793
        %3348 = vmatprep.subr.mxu0 0.0
        %3349 = vmatpush1.msra.mxu0 0.0
        %3350 = vmatprep.subr.mxu0 0.0
        %3351 = vmatpush1.msra.mxu0 0.0
        %3352 = vmatprep.subr.mxu0 0.0
        %3353 = vmatpush1.msra.mxu0 0.0
        %3354 = vmatprep.subr.mxu0 0.0
        %3355 = vmatpush1.msra.mxu0 0.0
        %3356 = vmatprep.subr.mxu0 0.0
        %3357 = vmatpush1.msra.mxu0 0.0
        %3358 = vmatprep.subr.mxu0 0.0
        %3359 = vmatpush1.msra.mxu0 0.0
        %3360 = vmatprep.subr.mxu0 0.0
        %3361 = vmatpush1.msra.mxu0 0.0
        %3362 = vmatprep.subr.mxu0 0.0
        %3363 = vmatpush1.msra.mxu0 0.0
        %3364 = vmatprep.subr.mxu0 0.0
        %3365 = vmatpush1.msra.mxu0 0.0
        %3366 = vmatprep.subr.mxu0 0.0
        %3367 = vmatpush1.msra.mxu0 0.0
        %3368 = vmatprep.subr.mxu0 0.0
        %3369 = vmatpush1.msra.mxu0 0.0
        %3370 = vmatprep.subr.mxu0 0.0
        %3371 = vmatpush1.msra.mxu0 0.0
        %3372 = vmatprep.subr.mxu0 0.0
        %3373 = vmatpush1.msra.mxu0 0.0
        %3374 = vmatprep.subr.mxu0 0.0
        %3375 = vmatpush1.msra.mxu0 0.0
        %3376 = vmatprep.subr.mxu0 0.0
        %3377 = vmatpush1.msra.mxu0 0.0
        %3378 = vmatprep.subr.mxu0 0.0
        %3379 = vmatpush1.msra.mxu0 0.0
        %3380 = vmatprep.subr.mxu0 0.0
        %3381 = vmatpush1.msra.mxu0 0.0
        %3382 = vmatprep.subr.mxu0 0.0
        %3383 = vmatpush1.msra.mxu0 0.0
        %3384 = vmatprep.subr.mxu0 0.0
        %3385 = vmatpush1.msra.mxu0 0.0
        %3386 = vmatprep.subr.mxu0 0.0
        %3387 = vmatpush1.msra.mxu0 0.0
        %3388 = vmatprep.subr.mxu0 0.0
        %3389 = vmatpush1.msra.mxu0 0.0
        %3390 = vmatprep.subr.mxu0 0.0
        %3391 = vmatpush1.msra.mxu0 0.0
        %3392 = vmatprep.subr.mxu0 0.0
        %3393 = vmatpush1.msra.mxu0 0.0
        %3394 = vmatprep.subr.mxu0 0.0
        %3395 = vmatpush1.msra.mxu0 0.0
        %3396 = vmatprep.mubr.f32.mxu0 0.0
        %3397 = vmatmul.mubr.f32.gmra.mrb[0].mxu0 %v3327
        %v3398 = vpop.f32.mrb[0].mxu0
        %v3399 = vadd.f32 0.0, %v3398
        %v3400 = vpop.f32.mrb[0].mxu0
        %3401 = vmatprep.mubr.f32.mxu0 0.0
        %3402 = vmatmul.mubr.f32.gmra.mrb[0].mxu0 %v3330
        %v3403 = vpop.f32.mrb[0].mxu0
        %v3404 = vadd.f32 0.0, %v3403
        %v3405 = vpop.f32.mrb[0].mxu0
        %3406 = vdwg.mxu0
        %s3407 = scalar_lea.vmem [#allocation5], 384
        %v3408 = vld [vmem:[%s3407] sm:$0xff]
        %v3409 = vld [vmem:[%s3407 + $0x8] sm:$0xff]
        %v3410 = vld [vmem:[%s3407 + $0x10] sm:$0xff]
        %v3411 = vld [vmem:[%s3407 + $0x18] sm:$0xff]
        %v3412 = vld [vmem:[%s3407 + $0x20] sm:$0xff]
        %v3413 = vld [vmem:[%s3407 + $0x28] sm:$0xff]
        %v3414 = vld [vmem:[%s3407 + $0x30] sm:$0xff]
        %v3415 = vld [vmem:[%s3407 + $0x38] sm:$0xff]
        %v3416 = vld [vmem:[%s3407 + $0x40] sm:$0xff]
        %v3417 = vld [vmem:[%s3407 + $0x48] sm:$0xff]
        %v3418 = vld [vmem:[%s3407 + $0x50] sm:$0xff]
        %v3419 = vld [vmem:[%s3407 + $0x58] sm:$0xff]
        %v3420 = vld [vmem:[%s3407 + $0x60] sm:$0xff]
        %v3421 = vld [vmem:[%s3407 + $0x68] sm:$0xff]
        %v3422 = vld [vmem:[%s3407 + $0x70] sm:$0xff]
        %v3423 = vld [vmem:[%s3407 + $0x78] sm:$0xff]
        %3424 = vmatprep.subr.mxu0 0.0
        %3425 = vmatpush1.msra.mxu0 %v3408
        %3426 = vmatprep.subr.mxu0 0.0
        %3427 = vmatpush1.msra.mxu0 %v3409
        %3428 = vmatprep.subr.mxu0 0.0
        %3429 = vmatpush1.msra.mxu0 %v3410
        %3430 = vmatprep.subr.mxu0 0.0
        %3431 = vmatpush1.msra.mxu0 %v3411
        %3432 = vmatprep.subr.mxu0 0.0
        %3433 = vmatpush1.msra.mxu0 %v3412
        %3434 = vmatprep.subr.mxu0 0.0
        %3435 = vmatpush1.msra.mxu0 %v3413
        %3436 = vmatprep.subr.mxu0 0.0
        %3437 = vmatpush1.msra.mxu0 %v3414
        %3438 = vmatprep.subr.mxu0 0.0
        %3439 = vmatpush1.msra.mxu0 %v3415
        %3440 = vmatprep.subr.mxu0 0.0
        %3441 = vmatpush1.msra.mxu0 %v3416
        %3442 = vmatprep.subr.mxu0 0.0
        %3443 = vmatpush1.msra.mxu0 %v3417
        %3444 = vmatprep.subr.mxu0 0.0
        %3445 = vmatpush1.msra.mxu0 %v3418
        %3446 = vmatprep.subr.mxu0 0.0
        %3447 = vmatpush1.msra.mxu0 %v3419
        %3448 = vmatprep.subr.mxu0 0.0
        %3449 = vmatpush1.msra.mxu0 %v3420
        %3450 = vmatprep.subr.mxu0 0.0
        %3451 = vmatpush1.msra.mxu0 %v3421
        %3452 = vmatprep.subr.mxu0 0.0
        %3453 = vmatpush1.msra.mxu0 %v3422
        %3454 = vmatprep.subr.mxu0 0.0
        %3455 = vmatpush1.msra.mxu0 %v3423
        %3456 = vmatprep.subr.mxu0 0.0
        %3457 = vmatpush1.msra.mxu0 0.0
        %3458 = vmatprep.subr.mxu0 0.0
        %3459 = vmatpush1.msra.mxu0 0.0
        %3460 = vmatprep.subr.mxu0 0.0
        %3461 = vmatpush1.msra.mxu0 0.0
        %3462 = vmatprep.subr.mxu0 0.0
        %3463 = vmatpush1.msra.mxu0 0.0
        %3464 = vmatprep.subr.mxu0 0.0
        %3465 = vmatpush1.msra.mxu0 0.0
        %3466 = vmatprep.subr.mxu0 0.0
        %3467 = vmatpush1.msra.mxu0 0.0
        %3468 = vmatprep.subr.mxu0 0.0
        %3469 = vmatpush1.msra.mxu0 0.0
        %3470 = vmatprep.subr.mxu0 0.0
        %3471 = vmatpush1.msra.mxu0 0.0
        %3472 = vmatprep.subr.mxu0 0.0
        %3473 = vmatpush1.msra.mxu0 0.0
        %3474 = vmatprep.subr.mxu0 0.0
        %3475 = vmatpush1.msra.mxu0 0.0
        %3476 = vmatprep.subr.mxu0 0.0
        %3477 = vmatpush1.msra.mxu0 0.0
        %3478 = vmatprep.subr.mxu0 0.0
        %3479 = vmatpush1.msra.mxu0 0.0
        %3480 = vmatprep.subr.mxu0 0.0
        %3481 = vmatpush1.msra.mxu0 0.0
        %3482 = vmatprep.subr.mxu0 0.0
        %3483 = vmatpush1.msra.mxu0 0.0
        %3484 = vmatprep.subr.mxu0 0.0
        %3485 = vmatpush1.msra.mxu0 0.0
        %3486 = vmatprep.subr.mxu0 0.0
        %3487 = vmatpush1.msra.mxu0 0.0
        %3488 = vmatprep.mubr.f32.mxu0 0.0
        %3489 = vmatmul.mubr.f32.gmra.mrb[0].mxu0 %v3399
        %v3490 = vpop.f32.mrb[0].mxu0
        %v3491 = vadd.f32 0.0, %v3490
        %v3492 = vpop.f32.mrb[0].mxu0
        %3493 = vmatprep.mubr.f32.mxu0 0.0
        %3494 = vmatmul.mubr.f32.gmra.mrb[0].mxu0 %v3404
        %v3495 = vpop.f32.mrb[0].mxu0
        %v3496 = vadd.f32 0.0, %v3495
        %v3497 = vpop.f32.mrb[0].mxu0
        %3498 = vdwg.mxu0
        %v3499 = vadd.f32 %v3321, %v3491
        %v3500 = vadd.f32 %v3322, %v3496
        %s3501 = scalar_lea.vmem %s3, 64
        %v3502 = vld [vmem:[%s3501] sm:$0xff]
        %v3503 = vld [vmem:[%s3501 + $0x8] sm:$0xff]
        %v3505 = vsel %vm2796, %v3502, 0
        %v3508 = vsel %vm2796, %v3503, 0
        %3510 = vmatprep.subr.mxu0 0.0
        %3511 = vmatpush1.msra.mxu0 %v2786
        %3512 = vmatprep.subr.mxu0 0.0
        %3513 = vmatpush1.msra.mxu0 %v2787
        %3514 = vmatprep.subr.mxu0 0.0
        %3515 = vmatpush1.msra.mxu0 %v2788
        %3516 = vmatprep.subr.mxu0 0.0
        %3517 = vmatpush1.msra.mxu0 %v2789
        %3518 = vmatprep.subr.mxu0 0.0
        %3519 = vmatpush1.msra.mxu0 %v2790
        %3520 = vmatprep.subr.mxu0 0.0
        %3521 = vmatpush1.msra.mxu0 %v2791
        %3522 = vmatprep.subr.mxu0 0.0
        %3523 = vmatpush1.msra.mxu0 %v2792
        %3524 = vmatprep.subr.mxu0 0.0
        %3525 = vmatpush1.msra.mxu0 %v2793
        %3526 = vmatprep.subr.mxu0 0.0
        %3527 = vmatpush1.msra.mxu0 0.0
        %3528 = vmatprep.subr.mxu0 0.0
        %3529 = vmatpush1.msra.mxu0 0.0
        %3530 = vmatprep.subr.mxu0 0.0
        %3531 = vmatpush1.msra.mxu0 0.0
        %3532 = vmatprep.subr.mxu0 0.0
        %3533 = vmatpush1.msra.mxu0 0.0
        %3534 = vmatprep.subr.mxu0 0.0
        %3535 = vmatpush1.msra.mxu0 0.0
        %3536 = vmatprep.subr.mxu0 0.0
        %3537 = vmatpush1.msra.mxu0 0.0
        %3538 = vmatprep.subr.mxu0 0.0
        %3539 = vmatpush1.msra.mxu0 0.0
        %3540 = vmatprep.subr.mxu0 0.0
        %3541 = vmatpush1.msra.mxu0 0.0
        %3542 = vmatprep.subr.mxu0 0.0
        %3543 = vmatpush1.msra.mxu0 0.0
        %3544 = vmatprep.subr.mxu0 0.0
        %3545 = vmatpush1.msra.mxu0 0.0
        %3546 = vmatprep.subr.mxu0 0.0
        %3547 = vmatpush1.msra.mxu0 0.0
        %3548 = vmatprep.subr.mxu0 0.0
        %3549 = vmatpush1.msra.mxu0 0.0
        %3550 = vmatprep.subr.mxu0 0.0
        %3551 = vmatpush1.msra.mxu0 0.0
        %3552 = vmatprep.subr.mxu0 0.0
        %3553 = vmatpush1.msra.mxu0 0.0
        %3554 = vmatprep.subr.mxu0 0.0
        %3555 = vmatpush1.msra.mxu0 0.0
        %3556 = vmatprep.subr.mxu0 0.0
        %3557 = vmatpush1.msra.mxu0 0.0
        %3558 = vmatprep.subr.mxu0 0.0
        %3559 = vmatpush1.msra.mxu0 0.0
        %3560 = vmatprep.subr.mxu0 0.0
        %3561 = vmatpush1.msra.mxu0 0.0
        %3562 = vmatprep.subr.mxu0 0.0
        %3563 = vmatpush1.msra.mxu0 0.0
        %3564 = vmatprep.subr.mxu0 0.0
        %3565 = vmatpush1.msra.mxu0 0.0
        %3566 = vmatprep.subr.mxu0 0.0
        %3567 = vmatpush1.msra.mxu0 0.0
        %3568 = vmatprep.subr.mxu0 0.0
        %3569 = vmatpush1.msra.mxu0 0.0
        %3570 = vmatprep.subr.mxu0 0.0
        %3571 = vmatpush1.msra.mxu0 0.0
        %3572 = vmatprep.subr.mxu0 0.0
        %3573 = vmatpush1.msra.mxu0 0.0
        %3574 = vmatprep.mubr.f32.mxu0 0.0
        %3575 = vmatmul.mubr.f32.gmra.mrb[0].mxu0 %v3505
        %v3576 = vpop.f32.mrb[0].mxu0
        %v3577 = vadd.f32 0.0, %v3576
        %v3578 = vpop.f32.mrb[0].mxu0
        %3579 = vmatprep.mubr.f32.mxu0 0.0
        %3580 = vmatmul.mubr.f32.gmra.mrb[0].mxu0 %v3508
        %v3581 = vpop.f32.mrb[0].mxu0
        %v3582 = vadd.f32 0.0, %v3581
        %v3583 = vpop.f32.mrb[0].mxu0
        %3584 = vdwg.mxu0
        %s3585 = scalar_lea.vmem [#allocation5], 512
        %v3586 = vld [vmem:[%s3585] sm:$0xff]
        %v3587 = vld [vmem:[%s3585 + $0x8] sm:$0xff]
        %v3588 = vld [vmem:[%s3585 + $0x10] sm:$0xff]
        %v3589 = vld [vmem:[%s3585 + $0x18] sm:$0xff]
        %v3590 = vld [vmem:[%s3585 + $0x20] sm:$0xff]
        %v3591 = vld [vmem:[%s3585 + $0x28] sm:$0xff]
        %v3592 = vld [vmem:[%s3585 + $0x30] sm:$0xff]
        %v3593 = vld [vmem:[%s3585 + $0x38] sm:$0xff]
        %v3594 = vld [vmem:[%s3585 + $0x40] sm:$0xff]
        %v3595 = vld [vmem:[%s3585 + $0x48] sm:$0xff]
        %v3596 = vld [vmem:[%s3585 + $0x50] sm:$0xff]
        %v3597 = vld [vmem:[%s3585 + $0x58] sm:$0xff]
        %v3598 = vld [vmem:[%s3585 + $0x60] sm:$0xff]
        %v3599 = vld [vmem:[%s3585 + $0x68] sm:$0xff]
        %v3600 = vld [vmem:[%s3585 + $0x70] sm:$0xff]
        %v3601 = vld [vmem:[%s3585 + $0x78] sm:$0xff]
        %3602 = vmatprep.subr.mxu0 0.0
        %3603 = vmatpush1.msra.mxu0 %v3586
        %3604 = vmatprep.subr.mxu0 0.0
        %3605 = vmatpush1.msra.mxu0 %v3587
        %3606 = vmatprep.subr.mxu0 0.0
        %3607 = vmatpush1.msra.mxu0 %v3588
        %3608 = vmatprep.subr.mxu0 0.0
        %3609 = vmatpush1.msra.mxu0 %v3589
        %3610 = vmatprep.subr.mxu0 0.0
        %3611 = vmatpush1.msra.mxu0 %v3590
        %3612 = vmatprep.subr.mxu0 0.0
        %3613 = vmatpush1.msra.mxu0 %v3591
        %3614 = vmatprep.subr.mxu0 0.0
        %3615 = vmatpush1.msra.mxu0 %v3592
        %3616 = vmatprep.subr.mxu0 0.0
        %3617 = vmatpush1.msra.mxu0 %v3593
        %3618 = vmatprep.subr.mxu0 0.0
        %3619 = vmatpush1.msra.mxu0 %v3594
        %3620 = vmatprep.subr.mxu0 0.0
        %3621 = vmatpush1.msra.mxu0 %v3595
        %3622 = vmatprep.subr.mxu0 0.0
        %3623 = vmatpush1.msra.mxu0 %v3596
        %3624 = vmatprep.subr.mxu0 0.0
        %3625 = vmatpush1.msra.mxu0 %v3597
        %3626 = vmatprep.subr.mxu0 0.0
        %3627 = vmatpush1.msra.mxu0 %v3598
        %3628 = vmatprep.subr.mxu0 0.0
        %3629 = vmatpush1.msra.mxu0 %v3599
        %3630 = vmatprep.subr.mxu0 0.0
        %3631 = vmatpush1.msra.mxu0 %v3600
        %3632 = vmatprep.subr.mxu0 0.0
        %3633 = vmatpush1.msra.mxu0 %v3601
        %3634 = vmatprep.subr.mxu0 0.0
        %3635 = vmatpush1.msra.mxu0 0.0
        %3636 = vmatprep.subr.mxu0 0.0
        %3637 = vmatpush1.msra.mxu0 0.0
        %3638 = vmatprep.subr.mxu0 0.0
        %3639 = vmatpush1.msra.mxu0 0.0
        %3640 = vmatprep.subr.mxu0 0.0
        %3641 = vmatpush1.msra.mxu0 0.0
        %3642 = vmatprep.subr.mxu0 0.0
        %3643 = vmatpush1.msra.mxu0 0.0
        %3644 = vmatprep.subr.mxu0 0.0
        %3645 = vmatpush1.msra.mxu0 0.0
        %3646 = vmatprep.subr.mxu0 0.0
        %3647 = vmatpush1.msra.mxu0 0.0
        %3648 = vmatprep.subr.mxu0 0.0
        %3649 = vmatpush1.msra.mxu0 0.0
        %3650 = vmatprep.subr.mxu0 0.0
        %3651 = vmatpush1.msra.mxu0 0.0
        %3652 = vmatprep.subr.mxu0 0.0
        %3653 = vmatpush1.msra.mxu0 0.0
        %3654 = vmatprep.subr.mxu0 0.0
        %3655 = vmatpush1.msra.mxu0 0.0
        %3656 = vmatprep.subr.mxu0 0.0
        %3657 = vmatpush1.msra.mxu0 0.0
        %3658 = vmatprep.subr.mxu0 0.0
        %3659 = vmatpush1.msra.mxu0 0.0
        %3660 = vmatprep.subr.mxu0 0.0
        %3661 = vmatpush1.msra.mxu0 0.0
        %3662 = vmatprep.subr.mxu0 0.0
        %3663 = vmatpush1.msra.mxu0 0.0
        %3664 = vmatprep.subr.mxu0 0.0
        %3665 = vmatpush1.msra.mxu0 0.0
        %3666 = vmatprep.mubr.f32.mxu0 0.0
        %3667 = vmatmul.mubr.f32.gmra.mrb[0].mxu0 %v3577
        %v3668 = vpop.f32.mrb[0].mxu0
        %v3669 = vadd.f32 0.0, %v3668
        %v3670 = vpop.f32.mrb[0].mxu0
        %3671 = vmatprep.mubr.f32.mxu0 0.0
        %3672 = vmatmul.mubr.f32.gmra.mrb[0].mxu0 %v3582
        %v3673 = vpop.f32.mrb[0].mxu0
        %v3674 = vadd.f32 0.0, %v3673
        %v3675 = vpop.f32.mrb[0].mxu0
        %3676 = vdwg.mxu0
        %v3677 = vadd.f32 %v3499, %v3669
        %v3678 = vadd.f32 %v3500, %v3674
        %s3679 = scalar_lea.vmem %s3, 80
        %v3680 = vld [vmem:[%s3679] sm:$0xff]
        %v3681 = vld [vmem:[%s3679 + $0x8] sm:$0xff]
        %v3683 = vsel %vm2796, %v3680, 0
        %v3686 = vsel %vm2796, %v3681, 0
        %3688 = vmatprep.subr.mxu0 0.0
        %3689 = vmatpush1.msra.mxu0 %v2786
        %3690 = vmatprep.subr.mxu0 0.0
        %3691 = vmatpush1.msra.mxu0 %v2787
        %3692 = vmatprep.subr.mxu0 0.0
        %3693 = vmatpush1.msra.mxu0 %v2788
        %3694 = vmatprep.subr.mxu0 0.0
        %3695 = vmatpush1.msra.mxu0 %v2789
        %3696 = vmatprep.subr.mxu0 0.0
        %3697 = vmatpush1.msra.mxu0 %v2790
        %3698 = vmatprep.subr.mxu0 0.0
        %3699 = vmatpush1.msra.mxu0 %v2791
        %3700 = vmatprep.subr.mxu0 0.0
        %3701 = vmatpush1.msra.mxu0 %v2792
        %3702 = vmatprep.subr.mxu0 0.0
        %3703 = vmatpush1.msra.mxu0 %v2793
        %3704 = vmatprep.subr.mxu0 0.0
        %3705 = vmatpush1.msra.mxu0 0.0
        %3706 = vmatprep.subr.mxu0 0.0
        %3707 = vmatpush1.msra.mxu0 0.0
        %3708 = vmatprep.subr.mxu0 0.0
        %3709 = vmatpush1.msra.mxu0 0.0
        %3710 = vmatprep.subr.mxu0 0.0
        %3711 = vmatpush1.msra.mxu0 0.0
        %3712 = vmatprep.subr.mxu0 0.0
        %3713 = vmatpush1.msra.mxu0 0.0
        %3714 = vmatprep.subr.mxu0 0.0
        %3715 = vmatpush1.msra.mxu0 0.0
        %3716 = vmatprep.subr.mxu0 0.0
        %3717 = vmatpush1.msra.mxu0 0.0
        %3718 = vmatprep.subr.mxu0 0.0
        %3719 = vmatpush1.msra.mxu0 0.0
        %3720 = vmatprep.subr.mxu0 0.0
        %3721 = vmatpush1.msra.mxu0 0.0
        %3722 = vmatprep.subr.mxu0 0.0
        %3723 = vmatpush1.msra.mxu0 0.0
        %3724 = vmatprep.subr.mxu0 0.0
        %3725 = vmatpush1.msra.mxu0 0.0
        %3726 = vmatprep.subr.mxu0 0.0
        %3727 = vmatpush1.msra.mxu0 0.0
        %3728 = vmatprep.subr.mxu0 0.0
        %3729 = vmatpush1.msra.mxu0 0.0
        %3730 = vmatprep.subr.mxu0 0.0
        %3731 = vmatpush1.msra.mxu0 0.0
        %3732 = vmatprep.subr.mxu0 0.0
        %3733 = vmatpush1.msra.mxu0 0.0
        %3734 = vmatprep.subr.mxu0 0.0
        %3735 = vmatpush1.msra.mxu0 0.0
        %3736 = vmatprep.subr.mxu0 0.0
        %3737 = vmatpush1.msra.mxu0 0.0
        %3738 = vmatprep.subr.mxu0 0.0
        %3739 = vmatpush1.msra.mxu0 0.0
        %3740 = vmatprep.subr.mxu0 0.0
        %3741 = vmatpush1.msra.mxu0 0.0
        %3742 = vmatprep.subr.mxu0 0.0
        %3743 = vmatpush1.msra.mxu0 0.0
        %3744 = vmatprep.subr.mxu0 0.0
        %3745 = vmatpush1.msra.mxu0 0.0
        %3746 = vmatprep.subr.mxu0 0.0
        %3747 = vmatpush1.msra.mxu0 0.0
        %3748 = vmatprep.subr.mxu0 0.0
        %3749 = vmatpush1.msra.mxu0 0.0
        %3750 = vmatprep.subr.mxu0 0.0
        %3751 = vmatpush1.msra.mxu0 0.0
        %3752 = vmatprep.mubr.f32.mxu0 0.0
        %3753 = vmatmul.mubr.f32.gmra.mrb[0].mxu0 %v3683
        %v3754 = vpop.f32.mrb[0].mxu0
        %v3755 = vadd.f32 0.0, %v3754
        %v3756 = vpop.f32.mrb[0].mxu0
        %3757 = vmatprep.mubr.f32.mxu0 0.0
        %3758 = vmatmul.mubr.f32.gmra.mrb[0].mxu0 %v3686
        %v3759 = vpop.f32.mrb[0].mxu0
        %v3760 = vadd.f32 0.0, %v3759
        %v3761 = vpop.f32.mrb[0].mxu0
        %3762 = vdwg.mxu0
        %s3763 = scalar_lea.vmem [#allocation5], 640
        %v3764 = vld [vmem:[%s3763] sm:$0xff]
        %v3765 = vld [vmem:[%s3763 + $0x8] sm:$0xff]
        %v3766 = vld [vmem:[%s3763 + $0x10] sm:$0xff]
        %v3767 = vld [vmem:[%s3763 + $0x18] sm:$0xff]
        %v3768 = vld [vmem:[%s3763 + $0x20] sm:$0xff]
        %v3769 = vld [vmem:[%s3763 + $0x28] sm:$0xff]
        %v3770 = vld [vmem:[%s3763 + $0x30] sm:$0xff]
        %v3771 = vld [vmem:[%s3763 + $0x38] sm:$0xff]
        %v3772 = vld [vmem:[%s3763 + $0x40] sm:$0xff]
        %v3773 = vld [vmem:[%s3763 + $0x48] sm:$0xff]
        %v3774 = vld [vmem:[%s3763 + $0x50] sm:$0xff]
        %v3775 = vld [vmem:[%s3763 + $0x58] sm:$0xff]
        %v3776 = vld [vmem:[%s3763 + $0x60] sm:$0xff]
        %v3777 = vld [vmem:[%s3763 + $0x68] sm:$0xff]
        %v3778 = vld [vmem:[%s3763 + $0x70] sm:$0xff]
        %v3779 = vld [vmem:[%s3763 + $0x78] sm:$0xff]
        %3780 = vmatprep.subr.mxu0 0.0
        %3781 = vmatpush1.msra.mxu0 %v3764
        %3782 = vmatprep.subr.mxu0 0.0
        %3783 = vmatpush1.msra.mxu0 %v3765
        %3784 = vmatprep.subr.mxu0 0.0
        %3785 = vmatpush1.msra.mxu0 %v3766
        %3786 = vmatprep.subr.mxu0 0.0
        %3787 = vmatpush1.msra.mxu0 %v3767
        %3788 = vmatprep.subr.mxu0 0.0
        %3789 = vmatpush1.msra.mxu0 %v3768
        %3790 = vmatprep.subr.mxu0 0.0
        %3791 = vmatpush1.msra.mxu0 %v3769
        %3792 = vmatprep.subr.mxu0 0.0
        %3793 = vmatpush1.msra.mxu0 %v3770
        %3794 = vmatprep.subr.mxu0 0.0
        %3795 = vmatpush1.msra.mxu0 %v3771
        %3796 = vmatprep.subr.mxu0 0.0
        %3797 = vmatpush1.msra.mxu0 %v3772
        %3798 = vmatprep.subr.mxu0 0.0
        %3799 = vmatpush1.msra.mxu0 %v3773
        %3800 = vmatprep.subr.mxu0 0.0
        %3801 = vmatpush1.msra.mxu0 %v3774
        %3802 = vmatprep.subr.mxu0 0.0
        %3803 = vmatpush1.msra.mxu0 %v3775
        %3804 = vmatprep.subr.mxu0 0.0
        %3805 = vmatpush1.msra.mxu0 %v3776
        %3806 = vmatprep.subr.mxu0 0.0
        %3807 = vmatpush1.msra.mxu0 %v3777
        %3808 = vmatprep.subr.mxu0 0.0
        %3809 = vmatpush1.msra.mxu0 %v3778
        %3810 = vmatprep.subr.mxu0 0.0
        %3811 = vmatpush1.msra.mxu0 %v3779
        %3812 = vmatprep.subr.mxu0 0.0
        %3813 = vmatpush1.msra.mxu0 0.0
        %3814 = vmatprep.subr.mxu0 0.0
        %3815 = vmatpush1.msra.mxu0 0.0
        %3816 = vmatprep.subr.mxu0 0.0
        %3817 = vmatpush1.msra.mxu0 0.0
        %3818 = vmatprep.subr.mxu0 0.0
        %3819 = vmatpush1.msra.mxu0 0.0
        %3820 = vmatprep.subr.mxu0 0.0
        %3821 = vmatpush1.msra.mxu0 0.0
        %3822 = vmatprep.subr.mxu0 0.0
        %3823 = vmatpush1.msra.mxu0 0.0
        %3824 = vmatprep.subr.mxu0 0.0
        %3825 = vmatpush1.msra.mxu0 0.0
        %3826 = vmatprep.subr.mxu0 0.0
        %3827 = vmatpush1.msra.mxu0 0.0
        %3828 = vmatprep.subr.mxu0 0.0
        %3829 = vmatpush1.msra.mxu0 0.0
        %3830 = vmatprep.subr.mxu0 0.0
        %3831 = vmatpush1.msra.mxu0 0.0
        %3832 = vmatprep.subr.mxu0 0.0
        %3833 = vmatpush1.msra.mxu0 0.0
        %3834 = vmatprep.subr.mxu0 0.0
        %3835 = vmatpush1.msra.mxu0 0.0
        %3836 = vmatprep.subr.mxu0 0.0
        %3837 = vmatpush1.msra.mxu0 0.0
        %3838 = vmatprep.subr.mxu0 0.0
        %3839 = vmatpush1.msra.mxu0 0.0
        %3840 = vmatprep.subr.mxu0 0.0
        %3841 = vmatpush1.msra.mxu0 0.0
        %3842 = vmatprep.subr.mxu0 0.0
        %3843 = vmatpush1.msra.mxu0 0.0
        %3844 = vmatprep.mubr.f32.mxu0 0.0
        %3845 = vmatmul.mubr.f32.gmra.mrb[0].mxu0 %v3755
        %v3846 = vpop.f32.mrb[0].mxu0
        %v3847 = vadd.f32 0.0, %v3846
        %v3848 = vpop.f32.mrb[0].mxu0
        %3849 = vmatprep.mubr.f32.mxu0 0.0
        %3850 = vmatmul.mubr.f32.gmra.mrb[0].mxu0 %v3760
        %v3851 = vpop.f32.mrb[0].mxu0
        %v3852 = vadd.f32 0.0, %v3851
        %v3853 = vpop.f32.mrb[0].mxu0
        %3854 = vdwg.mxu0
        %v3855 = vadd.f32 %v3677, %v3847
        %v3856 = vadd.f32 %v3678, %v3852
        %s3857 = scalar_lea.vmem %s3, 96
        %v3858 = vld [vmem:[%s3857] sm:$0xff]
        %v3859 = vld [vmem:[%s3857 + $0x8] sm:$0xff]
        %v3861 = vsel %vm2796, %v3858, 0
        %v3864 = vsel %vm2796, %v3859, 0
        %3866 = vmatprep.subr.mxu0 0.0
        %3867 = vmatpush1.msra.mxu0 %v2786
        %3868 = vmatprep.subr.mxu0 0.0
        %3869 = vmatpush1.msra.mxu0 %v2787
        %3870 = vmatprep.subr.mxu0 0.0
        %3871 = vmatpush1.msra.mxu0 %v2788
        %3872 = vmatprep.subr.mxu0 0.0
        %3873 = vmatpush1.msra.mxu0 %v2789
        %3874 = vmatprep.subr.mxu0 0.0
        %3875 = vmatpush1.msra.mxu0 %v2790
        %3876 = vmatprep.subr.mxu0 0.0
        %3877 = vmatpush1.msra.mxu0 %v2791
        %3878 = vmatprep.subr.mxu0 0.0
        %3879 = vmatpush1.msra.mxu0 %v2792
        %3880 = vmatprep.subr.mxu0 0.0
        %3881 = vmatpush1.msra.mxu0 %v2793
        %3882 = vmatprep.subr.mxu0 0.0
        %3883 = vmatpush1.msra.mxu0 0.0
        %3884 = vmatprep.subr.mxu0 0.0
        %3885 = vmatpush1.msra.mxu0 0.0
        %3886 = vmatprep.subr.mxu0 0.0
        %3887 = vmatpush1.msra.mxu0 0.0
        %3888 = vmatprep.subr.mxu0 0.0
        %3889 = vmatpush1.msra.mxu0 0.0
        %3890 = vmatprep.subr.mxu0 0.0
        %3891 = vmatpush1.msra.mxu0 0.0
        %3892 = vmatprep.subr.mxu0 0.0
        %3893 = vmatpush1.msra.mxu0 0.0
        %3894 = vmatprep.subr.mxu0 0.0
        %3895 = vmatpush1.msra.mxu0 0.0
        %3896 = vmatprep.subr.mxu0 0.0
        %3897 = vmatpush1.msra.mxu0 0.0
        %3898 = vmatprep.subr.mxu0 0.0
        %3899 = vmatpush1.msra.mxu0 0.0
        %3900 = vmatprep.subr.mxu0 0.0
        %3901 = vmatpush1.msra.mxu0 0.0
        %3902 = vmatprep.subr.mxu0 0.0
        %3903 = vmatpush1.msra.mxu0 0.0
        %3904 = vmatprep.subr.mxu0 0.0
        %3905 = vmatpush1.msra.mxu0 0.0
        %3906 = vmatprep.subr.mxu0 0.0
        %3907 = vmatpush1.msra.mxu0 0.0
        %3908 = vmatprep.subr.mxu0 0.0
        %3909 = vmatpush1.msra.mxu0 0.0
        %3910 = vmatprep.subr.mxu0 0.0
        %3911 = vmatpush1.msra.mxu0 0.0
        %3912 = vmatprep.subr.mxu0 0.0
        %3913 = vmatpush1.msra.mxu0 0.0
        %3914 = vmatprep.subr.mxu0 0.0
        %3915 = vmatpush1.msra.mxu0 0.0
        %3916 = vmatprep.subr.mxu0 0.0
        %3917 = vmatpush1.msra.mxu0 0.0
        %3918 = vmatprep.subr.mxu0 0.0
        %3919 = vmatpush1.msra.mxu0 0.0
        %3920 = vmatprep.subr.mxu0 0.0
        %3921 = vmatpush1.msra.mxu0 0.0
        %3922 = vmatprep.subr.mxu0 0.0
        %3923 = vmatpush1.msra.mxu0 0.0
        %3924 = vmatprep.subr.mxu0 0.0
        %3925 = vmatpush1.msra.mxu0 0.0
        %3926 = vmatprep.subr.mxu0 0.0
        %3927 = vmatpush1.msra.mxu0 0.0
        %3928 = vmatprep.subr.mxu0 0.0
        %3929 = vmatpush1.msra.mxu0 0.0
        %3930 = vmatprep.mubr.f32.mxu0 0.0
        %3931 = vmatmul.mubr.f32.gmra.mrb[0].mxu0 %v3861
        %v3932 = vpop.f32.mrb[0].mxu0
        %v3933 = vadd.f32 0.0, %v3932
        %v3934 = vpop.f32.mrb[0].mxu0
        %3935 = vmatprep.mubr.f32.mxu0 0.0
        %3936 = vmatmul.mubr.f32.gmra.mrb[0].mxu0 %v3864
        %v3937 = vpop.f32.mrb[0].mxu0
        %v3938 = vadd.f32 0.0, %v3937
        %v3939 = vpop.f32.mrb[0].mxu0
        %3940 = vdwg.mxu0
        %s3941 = scalar_lea.vmem [#allocation5], 768
        %v3942 = vld [vmem:[%s3941] sm:$0xff]
        %v3943 = vld [vmem:[%s3941 + $0x8] sm:$0xff]
        %v3944 = vld [vmem:[%s3941 + $0x10] sm:$0xff]
        %v3945 = vld [vmem:[%s3941 + $0x18] sm:$0xff]
        %v3946 = vld [vmem:[%s3941 + $0x20] sm:$0xff]
        %v3947 = vld [vmem:[%s3941 + $0x28] sm:$0xff]
        %v3948 = vld [vmem:[%s3941 + $0x30] sm:$0xff]
        %v3949 = vld [vmem:[%s3941 + $0x38] sm:$0xff]
        %v3950 = vld [vmem:[%s3941 + $0x40] sm:$0xff]
        %v3951 = vld [vmem:[%s3941 + $0x48] sm:$0xff]
        %v3952 = vld [vmem:[%s3941 + $0x50] sm:$0xff]
        %v3953 = vld [vmem:[%s3941 + $0x58] sm:$0xff]
        %v3954 = vld [vmem:[%s3941 + $0x60] sm:$0xff]
        %v3955 = vld [vmem:[%s3941 + $0x68] sm:$0xff]
        %v3956 = vld [vmem:[%s3941 + $0x70] sm:$0xff]
        %v3957 = vld [vmem:[%s3941 + $0x78] sm:$0xff]
        %3958 = vmatprep.subr.mxu0 0.0
        %3959 = vmatpush1.msra.mxu0 %v3942
        %3960 = vmatprep.subr.mxu0 0.0
        %3961 = vmatpush1.msra.mxu0 %v3943
        %3962 = vmatprep.subr.mxu0 0.0
        %3963 = vmatpush1.msra.mxu0 %v3944
        %3964 = vmatprep.subr.mxu0 0.0
        %3965 = vmatpush1.msra.mxu0 %v3945
        %3966 = vmatprep.subr.mxu0 0.0
        %3967 = vmatpush1.msra.mxu0 %v3946
        %3968 = vmatprep.subr.mxu0 0.0
        %3969 = vmatpush1.msra.mxu0 %v3947
        %3970 = vmatprep.subr.mxu0 0.0
        %3971 = vmatpush1.msra.mxu0 %v3948
        %3972 = vmatprep.subr.mxu0 0.0
        %3973 = vmatpush1.msra.mxu0 %v3949
        %3974 = vmatprep.subr.mxu0 0.0
        %3975 = vmatpush1.msra.mxu0 %v3950
        %3976 = vmatprep.subr.mxu0 0.0
        %3977 = vmatpush1.msra.mxu0 %v3951
        %3978 = vmatprep.subr.mxu0 0.0
        %3979 = vmatpush1.msra.mxu0 %v3952
        %3980 = vmatprep.subr.mxu0 0.0
        %3981 = vmatpush1.msra.mxu0 %v3953
        %3982 = vmatprep.subr.mxu0 0.0
        %3983 = vmatpush1.msra.mxu0 %v3954
        %3984 = vmatprep.subr.mxu0 0.0
        %3985 = vmatpush1.msra.mxu0 %v3955
        %3986 = vmatprep.subr.mxu0 0.0
        %3987 = vmatpush1.msra.mxu0 %v3956
        %3988 = vmatprep.subr.mxu0 0.0
        %3989 = vmatpush1.msra.mxu0 %v3957
        %3990 = vmatprep.subr.mxu0 0.0
        %3991 = vmatpush1.msra.mxu0 0.0
        %3992 = vmatprep.subr.mxu0 0.0
        %3993 = vmatpush1.msra.mxu0 0.0
        %3994 = vmatprep.subr.mxu0 0.0
        %3995 = vmatpush1.msra.mxu0 0.0
        %3996 = vmatprep.subr.mxu0 0.0
        %3997 = vmatpush1.msra.mxu0 0.0
        %3998 = vmatprep.subr.mxu0 0.0
        %3999 = vmatpush1.msra.mxu0 0.0
        %4000 = vmatprep.subr.mxu0 0.0
        %4001 = vmatpush1.msra.mxu0 0.0
        %4002 = vmatprep.subr.mxu0 0.0
        %4003 = vmatpush1.msra.mxu0 0.0
        %4004 = vmatprep.subr.mxu0 0.0
        %4005 = vmatpush1.msra.mxu0 0.0
        %4006 = vmatprep.subr.mxu0 0.0
        %4007 = vmatpush1.msra.mxu0 0.0
        %4008 = vmatprep.subr.mxu0 0.0
        %4009 = vmatpush1.msra.mxu0 0.0
        %4010 = vmatprep.subr.mxu0 0.0
        %4011 = vmatpush1.msra.mxu0 0.0
        %4012 = vmatprep.subr.mxu0 0.0
        %4013 = vmatpush1.msra.mxu0 0.0
        %4014 = vmatprep.subr.mxu0 0.0
        %4015 = vmatpush1.msra.mxu0 0.0
        %4016 = vmatprep.subr.mxu0 0.0
        %4017 = vmatpush1.msra.mxu0 0.0
        %4018 = vmatprep.subr.mxu0 0.0
        %4019 = vmatpush1.msra.mxu0 0.0
        %4020 = vmatprep.subr.mxu0 0.0
        %4021 = vmatpush1.msra.mxu0 0.0
        %4022 = vmatprep.mubr.f32.mxu0 0.0
        %4023 = vmatmul.mubr.f32.gmra.mrb[0].mxu0 %v3933
        %v4024 = vpop.f32.mrb[0].mxu0
        %v4025 = vadd.f32 0.0, %v4024
        %v4026 = vpop.f32.mrb[0].mxu0
        %4027 = vmatprep.mubr.f32.mxu0 0.0
        %4028 = vmatmul.mubr.f32.gmra.mrb[0].mxu0 %v3938
        %v4029 = vpop.f32.mrb[0].mxu0
        %v4030 = vadd.f32 0.0, %v4029
        %v4031 = vpop.f32.mrb[0].mxu0
        %4032 = vdwg.mxu0
        %v4033 = vadd.f32 %v3855, %v4025
        %v4034 = vadd.f32 %v3856, %v4030
        %s4035 = scalar_lea.vmem %s3, 112
        %v4036 = vld [vmem:[%s4035] sm:$0xff]
        %v4037 = vld [vmem:[%s4035 + $0x8] sm:$0xff]
        %v4039 = vsel %vm2796, %v4036, 0
        %v4042 = vsel %vm2796, %v4037, 0
        %4044 = vmatprep.subr.mxu0 0.0
        %4045 = vmatpush1.msra.mxu0 %v2786
        %4046 = vmatprep.subr.mxu0 0.0
        %4047 = vmatpush1.msra.mxu0 %v2787
        %4048 = vmatprep.subr.mxu0 0.0
        %4049 = vmatpush1.msra.mxu0 %v2788
        %4050 = vmatprep.subr.mxu0 0.0
        %4051 = vmatpush1.msra.mxu0 %v2789
        %4052 = vmatprep.subr.mxu0 0.0
        %4053 = vmatpush1.msra.mxu0 %v2790
        %4054 = vmatprep.subr.mxu0 0.0
        %4055 = vmatpush1.msra.mxu0 %v2791
        %4056 = vmatprep.subr.mxu0 0.0
        %4057 = vmatpush1.msra.mxu0 %v2792
        %4058 = vmatprep.subr.mxu0 0.0
        %4059 = vmatpush1.msra.mxu0 %v2793
        %4060 = vmatprep.subr.mxu0 0.0
        %4061 = vmatpush1.msra.mxu0 0.0
        %4062 = vmatprep.subr.mxu0 0.0
        %4063 = vmatpush1.msra.mxu0 0.0
        %4064 = vmatprep.subr.mxu0 0.0
        %4065 = vmatpush1.msra.mxu0 0.0
        %4066 = vmatprep.subr.mxu0 0.0
        %4067 = vmatpush1.msra.mxu0 0.0
        %4068 = vmatprep.subr.mxu0 0.0
        %4069 = vmatpush1.msra.mxu0 0.0
        %4070 = vmatprep.subr.mxu0 0.0
        %4071 = vmatpush1.msra.mxu0 0.0
        %4072 = vmatprep.subr.mxu0 0.0
        %4073 = vmatpush1.msra.mxu0 0.0
        %4074 = vmatprep.subr.mxu0 0.0
        %4075 = vmatpush1.msra.mxu0 0.0
        %4076 = vmatprep.subr.mxu0 0.0
        %4077 = vmatpush1.msra.mxu0 0.0
        %4078 = vmatprep.subr.mxu0 0.0
        %4079 = vmatpush1.msra.mxu0 0.0
        %4080 = vmatprep.subr.mxu0 0.0
        %4081 = vmatpush1.msra.mxu0 0.0
        %4082 = vmatprep.subr.mxu0 0.0
        %4083 = vmatpush1.msra.mxu0 0.0
        %4084 = vmatprep.subr.mxu0 0.0
        %4085 = vmatpush1.msra.mxu0 0.0
        %4086 = vmatprep.subr.mxu0 0.0
        %4087 = vmatpush1.msra.mxu0 0.0
        %4088 = vmatprep.subr.mxu0 0.0
        %4089 = vmatpush1.msra.mxu0 0.0
        %4090 = vmatprep.subr.mxu0 0.0
        %4091 = vmatpush1.msra.mxu0 0.0
        %4092 = vmatprep.subr.mxu0 0.0
        %4093 = vmatpush1.msra.mxu0 0.0
        %4094 = vmatprep.subr.mxu0 0.0
        %4095 = vmatpush1.msra.mxu0 0.0
        %4096 = vmatprep.subr.mxu0 0.0
        %4097 = vmatpush1.msra.mxu0 0.0
        %4098 = vmatprep.subr.mxu0 0.0
        %4099 = vmatpush1.msra.mxu0 0.0
        %4100 = vmatprep.subr.mxu0 0.0
        %4101 = vmatpush1.msra.mxu0 0.0
        %4102 = vmatprep.subr.mxu0 0.0
        %4103 = vmatpush1.msra.mxu0 0.0
        %4104 = vmatprep.subr.mxu0 0.0
        %4105 = vmatpush1.msra.mxu0 0.0
        %4106 = vmatprep.subr.mxu0 0.0
        %4107 = vmatpush1.msra.mxu0 0.0
        %4108 = vmatprep.mubr.f32.mxu0 0.0
        %4109 = vmatmul.mubr.f32.gmra.mrb[0].mxu0 %v4039
        %v4110 = vpop.f32.mrb[0].mxu0
        %v4111 = vadd.f32 0.0, %v4110
        %v4112 = vpop.f32.mrb[0].mxu0
        %4113 = vmatprep.mubr.f32.mxu0 0.0
        %4114 = vmatmul.mubr.f32.gmra.mrb[0].mxu0 %v4042
        %v4115 = vpop.f32.mrb[0].mxu0
        %v4116 = vadd.f32 0.0, %v4115
        %v4117 = vpop.f32.mrb[0].mxu0
        %4118 = vdwg.mxu0
        %s4119 = scalar_lea.vmem [#allocation5], 896
        %v4120 = vld [vmem:[%s4119] sm:$0xff]
        %v4121 = vld [vmem:[%s4119 + $0x8] sm:$0xff]
        %v4122 = vld [vmem:[%s4119 + $0x10] sm:$0xff]
        %v4123 = vld [vmem:[%s4119 + $0x18] sm:$0xff]
        %v4124 = vld [vmem:[%s4119 + $0x20] sm:$0xff]
        %v4125 = vld [vmem:[%s4119 + $0x28] sm:$0xff]
        %v4126 = vld [vmem:[%s4119 + $0x30] sm:$0xff]
        %v4127 = vld [vmem:[%s4119 + $0x38] sm:$0xff]
        %v4128 = vld [vmem:[%s4119 + $0x40] sm:$0xff]
        %v4129 = vld [vmem:[%s4119 + $0x48] sm:$0xff]
        %v4130 = vld [vmem:[%s4119 + $0x50] sm:$0xff]
        %v4131 = vld [vmem:[%s4119 + $0x58] sm:$0xff]
        %v4132 = vld [vmem:[%s4119 + $0x60] sm:$0xff]
        %v4133 = vld [vmem:[%s4119 + $0x68] sm:$0xff]
        %v4134 = vld [vmem:[%s4119 + $0x70] sm:$0xff]
        %v4135 = vld [vmem:[%s4119 + $0x78] sm:$0xff]
        %4136 = vmatprep.subr.mxu0 0.0
        %4137 = vmatpush1.msra.mxu0 %v4120
        %4138 = vmatprep.subr.mxu0 0.0
        %4139 = vmatpush1.msra.mxu0 %v4121
        %4140 = vmatprep.subr.mxu0 0.0
        %4141 = vmatpush1.msra.mxu0 %v4122
        %4142 = vmatprep.subr.mxu0 0.0
        %4143 = vmatpush1.msra.mxu0 %v4123
        %4144 = vmatprep.subr.mxu0 0.0
        %4145 = vmatpush1.msra.mxu0 %v4124
        %4146 = vmatprep.subr.mxu0 0.0
        %4147 = vmatpush1.msra.mxu0 %v4125
        %4148 = vmatprep.subr.mxu0 0.0
        %4149 = vmatpush1.msra.mxu0 %v4126
        %4150 = vmatprep.subr.mxu0 0.0
        %4151 = vmatpush1.msra.mxu0 %v4127
        %4152 = vmatprep.subr.mxu0 0.0
        %4153 = vmatpush1.msra.mxu0 %v4128
        %4154 = vmatprep.subr.mxu0 0.0
        %4155 = vmatpush1.msra.mxu0 %v4129
        %4156 = vmatprep.subr.mxu0 0.0
        %4157 = vmatpush1.msra.mxu0 %v4130
        %4158 = vmatprep.subr.mxu0 0.0
        %4159 = vmatpush1.msra.mxu0 %v4131
        %4160 = vmatprep.subr.mxu0 0.0
        %4161 = vmatpush1.msra.mxu0 %v4132
        %4162 = vmatprep.subr.mxu0 0.0
        %4163 = vmatpush1.msra.mxu0 %v4133
        %4164 = vmatprep.subr.mxu0 0.0
        %4165 = vmatpush1.msra.mxu0 %v4134
        %4166 = vmatprep.subr.mxu0 0.0
        %4167 = vmatpush1.msra.mxu0 %v4135
        %4168 = vmatprep.subr.mxu0 0.0
        %4169 = vmatpush1.msra.mxu0 0.0
        %4170 = vmatprep.subr.mxu0 0.0
        %4171 = vmatpush1.msra.mxu0 0.0
        %4172 = vmatprep.subr.mxu0 0.0
        %4173 = vmatpush1.msra.mxu0 0.0
        %4174 = vmatprep.subr.mxu0 0.0
        %4175 = vmatpush1.msra.mxu0 0.0
        %4176 = vmatprep.subr.mxu0 0.0
        %4177 = vmatpush1.msra.mxu0 0.0
        %4178 = vmatprep.subr.mxu0 0.0
        %4179 = vmatpush1.msra.mxu0 0.0
        %4180 = vmatprep.subr.mxu0 0.0
        %4181 = vmatpush1.msra.mxu0 0.0
        %4182 = vmatprep.subr.mxu0 0.0
        %4183 = vmatpush1.msra.mxu0 0.0
        %4184 = vmatprep.subr.mxu0 0.0
        %4185 = vmatpush1.msra.mxu0 0.0
        %4186 = vmatprep.subr.mxu0 0.0
        %4187 = vmatpush1.msra.mxu0 0.0
        %4188 = vmatprep.subr.mxu0 0.0
        %4189 = vmatpush1.msra.mxu0 0.0
        %4190 = vmatprep.subr.mxu0 0.0
        %4191 = vmatpush1.msra.mxu0 0.0
        %4192 = vmatprep.subr.mxu0 0.0
        %4193 = vmatpush1.msra.mxu0 0.0
        %4194 = vmatprep.subr.mxu0 0.0
        %4195 = vmatpush1.msra.mxu0 0.0
        %4196 = vmatprep.subr.mxu0 0.0
        %4197 = vmatpush1.msra.mxu0 0.0
        %4198 = vmatprep.subr.mxu0 0.0
        %4199 = vmatpush1.msra.mxu0 0.0
        %4200 = vmatprep.mubr.f32.mxu0 0.0
        %4201 = vmatmul.mubr.f32.gmra.mrb[0].mxu0 %v4111
        %v4202 = vpop.f32.mrb[0].mxu0
        %v4203 = vadd.f32 0.0, %v4202
        %v4204 = vpop.f32.mrb[0].mxu0
        %4205 = vmatprep.mubr.f32.mxu0 0.0
        %4206 = vmatmul.mubr.f32.gmra.mrb[0].mxu0 %v4116
        %v4207 = vpop.f32.mrb[0].mxu0
        %v4208 = vadd.f32 0.0, %v4207
        %v4209 = vpop.f32.mrb[0].mxu0
        %4210 = vdwg.mxu0
        %v4211 = vadd.f32 %v4033, %v4203
        %v4212 = vadd.f32 %v4034, %v4208
        %s4213 = scalar_lea.vmem %s3, 128
        %v4214 = vld [vmem:[%s4213] sm:$0xff]
        %v4215 = vld [vmem:[%s4213 + $0x8] sm:$0xff]
        %v4217 = vsel %vm2796, %v4214, 0
        %v4220 = vsel %vm2796, %v4215, 0
        %4222 = vmatprep.subr.mxu0 0.0
        %4223 = vmatpush1.msra.mxu0 %v2786
        %4224 = vmatprep.subr.mxu0 0.0
        %4225 = vmatpush1.msra.mxu0 %v2787
        %4226 = vmatprep.subr.mxu0 0.0
        %4227 = vmatpush1.msra.mxu0 %v2788
        %4228 = vmatprep.subr.mxu0 0.0
        %4229 = vmatpush1.msra.mxu0 %v2789
        %4230 = vmatprep.subr.mxu0 0.0
        %4231 = vmatpush1.msra.mxu0 %v2790
        %4232 = vmatprep.subr.mxu0 0.0
        %4233 = vmatpush1.msra.mxu0 %v2791
        %4234 = vmatprep.subr.mxu0 0.0
        %4235 = vmatpush1.msra.mxu0 %v2792
        %4236 = vmatprep.subr.mxu0 0.0
        %4237 = vmatpush1.msra.mxu0 %v2793
        %4238 = vmatprep.subr.mxu0 0.0
        %4239 = vmatpush1.msra.mxu0 0.0
        %4240 = vmatprep.subr.mxu0 0.0
        %4241 = vmatpush1.msra.mxu0 0.0
        %4242 = vmatprep.subr.mxu0 0.0
        %4243 = vmatpush1.msra.mxu0 0.0
        %4244 = vmatprep.subr.mxu0 0.0
        %4245 = vmatpush1.msra.mxu0 0.0
        %4246 = vmatprep.subr.mxu0 0.0
        %4247 = vmatpush1.msra.mxu0 0.0
        %4248 = vmatprep.subr.mxu0 0.0
        %4249 = vmatpush1.msra.mxu0 0.0
        %4250 = vmatprep.subr.mxu0 0.0
        %4251 = vmatpush1.msra.mxu0 0.0
        %4252 = vmatprep.subr.mxu0 0.0
        %4253 = vmatpush1.msra.mxu0 0.0
        %4254 = vmatprep.subr.mxu0 0.0
        %4255 = vmatpush1.msra.mxu0 0.0
        %4256 = vmatprep.subr.mxu0 0.0
        %4257 = vmatpush1.msra.mxu0 0.0
        %4258 = vmatprep.subr.mxu0 0.0
        %4259 = vmatpush1.msra.mxu0 0.0
        %4260 = vmatprep.subr.mxu0 0.0
        %4261 = vmatpush1.msra.mxu0 0.0
        %4262 = vmatprep.subr.mxu0 0.0
        %4263 = vmatpush1.msra.mxu0 0.0
        %4264 = vmatprep.subr.mxu0 0.0
        %4265 = vmatpush1.msra.mxu0 0.0
        %4266 = vmatprep.subr.mxu0 0.0
        %4267 = vmatpush1.msra.mxu0 0.0
        %4268 = vmatprep.subr.mxu0 0.0
        %4269 = vmatpush1.msra.mxu0 0.0
        %4270 = vmatprep.subr.mxu0 0.0
        %4271 = vmatpush1.msra.mxu0 0.0
        %4272 = vmatprep.subr.mxu0 0.0
        %4273 = vmatpush1.msra.mxu0 0.0
        %4274 = vmatprep.subr.mxu0 0.0
        %4275 = vmatpush1.msra.mxu0 0.0
        %4276 = vmatprep.subr.mxu0 0.0
        %4277 = vmatpush1.msra.mxu0 0.0
        %4278 = vmatprep.subr.mxu0 0.0
        %4279 = vmatpush1.msra.mxu0 0.0
        %4280 = vmatprep.subr.mxu0 0.0
        %4281 = vmatpush1.msra.mxu0 0.0
        %4282 = vmatprep.subr.mxu0 0.0
        %4283 = vmatpush1.msra.mxu0 0.0
        %4284 = vmatprep.subr.mxu0 0.0
        %4285 = vmatpush1.msra.mxu0 0.0
        %4286 = vmatprep.mubr.f32.mxu0 0.0
        %4287 = vmatmul.mubr.f32.gmra.mrb[0].mxu0 %v4217
        %v4288 = vpop.f32.mrb[0].mxu0
        %v4289 = vadd.f32 0.0, %v4288
        %v4290 = vpop.f32.mrb[0].mxu0
        %4291 = vmatprep.mubr.f32.mxu0 0.0
        %4292 = vmatmul.mubr.f32.gmra.mrb[0].mxu0 %v4220
        %v4293 = vpop.f32.mrb[0].mxu0
        %v4294 = vadd.f32 0.0, %v4293
        %v4295 = vpop.f32.mrb[0].mxu0
        %4296 = vdwg.mxu0
        %s4297 = scalar_lea.vmem [#allocation5], 1024
        %v4298 = vld [vmem:[%s4297] sm:$0xff]
        %v4299 = vld [vmem:[%s4297 + $0x8] sm:$0xff]
        %v4300 = vld [vmem:[%s4297 + $0x10] sm:$0xff]
        %v4301 = vld [vmem:[%s4297 + $0x18] sm:$0xff]
        %v4302 = vld [vmem:[%s4297 + $0x20] sm:$0xff]
        %v4303 = vld [vmem:[%s4297 + $0x28] sm:$0xff]
        %v4304 = vld [vmem:[%s4297 + $0x30] sm:$0xff]
        %v4305 = vld [vmem:[%s4297 + $0x38] sm:$0xff]
        %v4306 = vld [vmem:[%s4297 + $0x40] sm:$0xff]
        %v4307 = vld [vmem:[%s4297 + $0x48] sm:$0xff]
        %v4308 = vld [vmem:[%s4297 + $0x50] sm:$0xff]
        %v4309 = vld [vmem:[%s4297 + $0x58] sm:$0xff]
        %v4310 = vld [vmem:[%s4297 + $0x60] sm:$0xff]
        %v4311 = vld [vmem:[%s4297 + $0x68] sm:$0xff]
        %v4312 = vld [vmem:[%s4297 + $0x70] sm:$0xff]
        %v4313 = vld [vmem:[%s4297 + $0x78] sm:$0xff]
        %4314 = vmatprep.subr.mxu0 0.0
        %4315 = vmatpush1.msra.mxu0 %v4298
        %4316 = vmatprep.subr.mxu0 0.0
        %4317 = vmatpush1.msra.mxu0 %v4299
        %4318 = vmatprep.subr.mxu0 0.0
        %4319 = vmatpush1.msra.mxu0 %v4300
        %4320 = vmatprep.subr.mxu0 0.0
        %4321 = vmatpush1.msra.mxu0 %v4301
        %4322 = vmatprep.subr.mxu0 0.0
        %4323 = vmatpush1.msra.mxu0 %v4302
        %4324 = vmatprep.subr.mxu0 0.0
        %4325 = vmatpush1.msra.mxu0 %v4303
        %4326 = vmatprep.subr.mxu0 0.0
        %4327 = vmatpush1.msra.mxu0 %v4304
        %4328 = vmatprep.subr.mxu0 0.0
        %4329 = vmatpush1.msra.mxu0 %v4305
        %4330 = vmatprep.subr.mxu0 0.0
        %4331 = vmatpush1.msra.mxu0 %v4306
        %4332 = vmatprep.subr.mxu0 0.0
        %4333 = vmatpush1.msra.mxu0 %v4307
        %4334 = vmatprep.subr.mxu0 0.0
        %4335 = vmatpush1.msra.mxu0 %v4308
        %4336 = vmatprep.subr.mxu0 0.0
        %4337 = vmatpush1.msra.mxu0 %v4309
        %4338 = vmatprep.subr.mxu0 0.0
        %4339 = vmatpush1.msra.mxu0 %v4310
        %4340 = vmatprep.subr.mxu0 0.0
        %4341 = vmatpush1.msra.mxu0 %v4311
        %4342 = vmatprep.subr.mxu0 0.0
        %4343 = vmatpush1.msra.mxu0 %v4312
        %4344 = vmatprep.subr.mxu0 0.0
        %4345 = vmatpush1.msra.mxu0 %v4313
        %4346 = vmatprep.subr.mxu0 0.0
        %4347 = vmatpush1.msra.mxu0 0.0
        %4348 = vmatprep.subr.mxu0 0.0
        %4349 = vmatpush1.msra.mxu0 0.0
        %4350 = vmatprep.subr.mxu0 0.0
        %4351 = vmatpush1.msra.mxu0 0.0
        %4352 = vmatprep.subr.mxu0 0.0
        %4353 = vmatpush1.msra.mxu0 0.0
        %4354 = vmatprep.subr.mxu0 0.0
        %4355 = vmatpush1.msra.mxu0 0.0
        %4356 = vmatprep.subr.mxu0 0.0
        %4357 = vmatpush1.msra.mxu0 0.0
        %4358 = vmatprep.subr.mxu0 0.0
        %4359 = vmatpush1.msra.mxu0 0.0
        %4360 = vmatprep.subr.mxu0 0.0
        %4361 = vmatpush1.msra.mxu0 0.0
        %4362 = vmatprep.subr.mxu0 0.0
        %4363 = vmatpush1.msra.mxu0 0.0
        %4364 = vmatprep.subr.mxu0 0.0
        %4365 = vmatpush1.msra.mxu0 0.0
        %4366 = vmatprep.subr.mxu0 0.0
        %4367 = vmatpush1.msra.mxu0 0.0
        %4368 = vmatprep.subr.mxu0 0.0
        %4369 = vmatpush1.msra.mxu0 0.0
        %4370 = vmatprep.subr.mxu0 0.0
        %4371 = vmatpush1.msra.mxu0 0.0
        %4372 = vmatprep.subr.mxu0 0.0
        %4373 = vmatpush1.msra.mxu0 0.0
        %4374 = vmatprep.subr.mxu0 0.0
        %4375 = vmatpush1.msra.mxu0 0.0
        %4376 = vmatprep.subr.mxu0 0.0
        %4377 = vmatpush1.msra.mxu0 0.0
        %4378 = vmatprep.mubr.f32.mxu0 0.0
        %4379 = vmatmul.mubr.f32.gmra.mrb[0].mxu0 %v4289
        %v4380 = vpop.f32.mrb[0].mxu0
        %v4381 = vadd.f32 0.0, %v4380
        %v4382 = vpop.f32.mrb[0].mxu0
        %4383 = vmatprep.mubr.f32.mxu0 0.0
        %4384 = vmatmul.mubr.f32.gmra.mrb[0].mxu0 %v4294
        %v4385 = vpop.f32.mrb[0].mxu0
        %v4386 = vadd.f32 0.0, %v4385
        %v4387 = vpop.f32.mrb[0].mxu0
        %4388 = vdwg.mxu0
        %v4389 = vadd.f32 %v4211, %v4381
        %v4390 = vadd.f32 %v4212, %v4386
        %s4391 = scalar_lea.vmem %s9, 1
        %v4392 = vld [vmem:[%s4391] sm:$0x1]
        %v4394 = vlaneseq
        %v4395 = vshrl.u32 %v4394, 7
        %v4396 = vsub.s32 0, %v4395
        %v4397 = vrot.slane %v4392, %v4396
        %v4399 = vadd.f32 %v4389, %v4397
        %v4400 = vadd.f32 %v4390, %v4397
        %v4401 = vand.u32 2147483647, %v4399
        %v4402 = vand.u32 2147483647, %v4400
        %v4403 = vsub.f32 0.0, %v4401
        %v4404 = vsub.f32 0.0, %v4402
        %v4405 = vmul.f32 %v4403, 1.442695
        %v4406 = vpow.pop %v4405
        %v4407 = vmul.f32 %v4404, 1.442695
        %v4408 = vpow.pop %v4407
        %v4409 = vadd.f32 %v4406, 1.0
        %v4410 = vadd.f32 %v4408, 1.0
        %v4411 = vrcp.pop %v4409
        %v4412 = vrcp.pop %v4410
        %v4413 = vmul.f32 %v4399, %v4411
        %v4414 = vmul.f32 %v4400, %v4412
        %vm4415 = vcmp.ge.f32.partialorder %v4399, 0.0
        %vm4416 = vcmp.ge.f32.partialorder %v4400, 0.0
        %v4417 = vsel %vm4415, 1.0, %v4406
        %v4418 = vsel %vm4416, 1.0, %v4408
        %v4419 = vmul.f32 %v4413, %v4417
        %v4420 = vmul.f32 %v4414, %v4418
        %v4421 = vld [vmem:[#allocation8] sm:$0xff]
        %v4422 = vld [vmem:[#allocation8 + $0x8] sm:$0xff]
        %v4423 = vld [vmem:[#allocation8 + $0x10] sm:$0xff]
        %v4424 = vld [vmem:[#allocation8 + $0x18] sm:$0xff]
        %v4425 = vld [vmem:[#allocation8 + $0x20] sm:$0xff]
        %v4426 = vld [vmem:[#allocation8 + $0x28] sm:$0xff]
        %v4427 = vld [vmem:[#allocation8 + $0x30] sm:$0xff]
        %v4428 = vld [vmem:[#allocation8 + $0x38] sm:$0xff]
        %v4429 = vld [vmem:[#allocation8 + $0x40] sm:$0xff]
        %v4430 = vld [vmem:[#allocation8 + $0x48] sm:$0xff]
        %v4431 = vld [vmem:[#allocation8 + $0x50] sm:$0xff]
        %v4432 = vld [vmem:[#allocation8 + $0x58] sm:$0xff]
        %v4433 = vld [vmem:[#allocation8 + $0x60] sm:$0xff]
        %v4434 = vld [vmem:[#allocation8 + $0x68] sm:$0xff]
        %v4435 = vld [vmem:[#allocation8 + $0x70] sm:$0xff]
        %v4436 = vld [vmem:[#allocation8 + $0x78] sm:$0xff]
        %s4437 = scalar_lea.vmem %s9, 2
        %v4438 = vld [vmem:[%s4437] sm:$0x1]
        %v4440 = vlaneseq
        %v4441 = vshrl.u32 %v4440, 7
        %v4442 = vsub.s32 0, %v4441
        %v4443 = vrot.slane %v4438, %v4442
        %4445 = vmatprep.subr.mxu0 0.0
        %4446 = vmatpush1.msra.mxu0 %v4421
        %4447 = vmatprep.subr.mxu0 0.0
        %4448 = vmatpush1.msra.mxu0 %v4422
        %4449 = vmatprep.subr.mxu0 0.0
        %4450 = vmatpush1.msra.mxu0 %v4423
        %4451 = vmatprep.subr.mxu0 0.0
        %4452 = vmatpush1.msra.mxu0 %v4424
        %4453 = vmatprep.subr.mxu0 0.0
        %4454 = vmatpush1.msra.mxu0 %v4425
        %4455 = vmatprep.subr.mxu0 0.0
        %4456 = vmatpush1.msra.mxu0 %v4426
        %4457 = vmatprep.subr.mxu0 0.0
        %4458 = vmatpush1.msra.mxu0 %v4427
        %4459 = vmatprep.subr.mxu0 0.0
        %4460 = vmatpush1.msra.mxu0 %v4428
        %4461 = vmatprep.subr.mxu0 0.0
        %4462 = vmatpush1.msra.mxu0 %v4429
        %4463 = vmatprep.subr.mxu0 0.0
        %4464 = vmatpush1.msra.mxu0 %v4430
        %4465 = vmatprep.subr.mxu0 0.0
        %4466 = vmatpush1.msra.mxu0 %v4431
        %4467 = vmatprep.subr.mxu0 0.0
        %4468 = vmatpush1.msra.mxu0 %v4432
        %4469 = vmatprep.subr.mxu0 0.0
        %4470 = vmatpush1.msra.mxu0 %v4433
        %4471 = vmatprep.subr.mxu0 0.0
        %4472 = vmatpush1.msra.mxu0 %v4434
        %4473 = vmatprep.subr.mxu0 0.0
        %4474 = vmatpush1.msra.mxu0 %v4435
        %4475 = vmatprep.subr.mxu0 0.0
        %4476 = vmatpush1.msra.mxu0 %v4436
        %4477 = vmatprep.subr.mxu0 0.0
        %4478 = vmatpush1.msra.mxu0 0.0
        %4479 = vmatprep.subr.mxu0 0.0
        %4480 = vmatpush1.msra.mxu0 0.0
        %4481 = vmatprep.subr.mxu0 0.0
        %4482 = vmatpush1.msra.mxu0 0.0
        %4483 = vmatprep.subr.mxu0 0.0
        %4484 = vmatpush1.msra.mxu0 0.0
        %4485 = vmatprep.subr.mxu0 0.0
        %4486 = vmatpush1.msra.mxu0 0.0
        %4487 = vmatprep.subr.mxu0 0.0
        %4488 = vmatpush1.msra.mxu0 0.0
        %4489 = vmatprep.subr.mxu0 0.0
        %4490 = vmatpush1.msra.mxu0 0.0
        %4491 = vmatprep.subr.mxu0 0.0
        %4492 = vmatpush1.msra.mxu0 0.0
        %4493 = vmatprep.subr.mxu0 0.0
        %4494 = vmatpush1.msra.mxu0 0.0
        %4495 = vmatprep.subr.mxu0 0.0
        %4496 = vmatpush1.msra.mxu0 0.0
        %4497 = vmatprep.subr.mxu0 0.0
        %4498 = vmatpush1.msra.mxu0 0.0
        %4499 = vmatprep.subr.mxu0 0.0
        %4500 = vmatpush1.msra.mxu0 0.0
        %4501 = vmatprep.subr.mxu0 0.0
        %4502 = vmatpush1.msra.mxu0 0.0
        %4503 = vmatprep.subr.mxu0 0.0
        %4504 = vmatpush1.msra.mxu0 0.0
        %4505 = vmatprep.subr.mxu0 0.0
        %4506 = vmatpush1.msra.mxu0 0.0
        %4507 = vmatprep.subr.mxu0 0.0
        %4508 = vmatpush1.msra.mxu0 0.0
        %4509 = vmatprep.mubr.f32.mxu0 0.0
        %4510 = vmatmul.mubr.f32.gmra.mrb[0].mxu0 %v4419
        %v4511 = vpop.f32.mrb[0].mxu0
        %v4512 = vadd.f32 %v4443, %v4511
        %v4513 = vpop.f32.mrb[0].mxu0
        %4514 = vmatprep.mubr.f32.mxu0 0.0
        %4515 = vmatmul.mubr.f32.gmra.mrb[0].mxu0 %v4420
        %v4516 = vpop.f32.mrb[0].mxu0
        %v4517 = vadd.f32 %v4443, %v4516
        %v4518 = vpop.f32.mrb[0].mxu0
        %4519 = vdwg.mxu0
        %v4520 = vand.u32 2147483647, %v4512
        %v4521 = vand.u32 2147483647, %v4517
        %v4522 = vsub.f32 0.0, %v4520
        %v4523 = vsub.f32 0.0, %v4521
        %v4524 = vmul.f32 %v4522, 1.442695
        %v4525 = vpow.pop %v4524
        %v4526 = vmul.f32 %v4523, 1.442695
        %v4527 = vpow.pop %v4526
        %v4528 = vadd.f32 %v4525, 1.0
        %v4529 = vadd.f32 %v4527, 1.0
        %v4530 = vrcp.pop %v4528
        %v4531 = vrcp.pop %v4529
        %v4532 = vmul.f32 %v4512, %v4530
        %v4533 = vmul.f32 %v4517, %v4531
        %vm4534 = vcmp.ge.f32.partialorder %v4512, 0.0
        %vm4535 = vcmp.ge.f32.partialorder %v4517, 0.0
        %v4536 = vsel %vm4534, 1.0, %v4525
        %v4537 = vsel %vm4535, 1.0, %v4527
        %v4538 = vmul.f32 %v4532, %v4536
        %v4539 = vmul.f32 %v4533, %v4537
        %s4540 = scalar_lea.vmem [#allocation8], 128
        %v4541 = vld [vmem:[%s4540] sm:$0xff]
        %v4542 = vld [vmem:[%s4540 + $0x8] sm:$0xff]
        %v4543 = vld [vmem:[%s4540 + $0x10] sm:$0xff]
        %v4544 = vld [vmem:[%s4540 + $0x18] sm:$0xff]
        %v4545 = vld [vmem:[%s4540 + $0x20] sm:$0xff]
        %v4546 = vld [vmem:[%s4540 + $0x28] sm:$0xff]
        %v4547 = vld [vmem:[%s4540 + $0x30] sm:$0xff]
        %v4548 = vld [vmem:[%s4540 + $0x38] sm:$0xff]
        %v4549 = vld [vmem:[%s4540 + $0x40] sm:$0xff]
        %v4550 = vld [vmem:[%s4540 + $0x48] sm:$0xff]
        %v4551 = vld [vmem:[%s4540 + $0x50] sm:$0xff]
        %v4552 = vld [vmem:[%s4540 + $0x58] sm:$0xff]
        %v4553 = vld [vmem:[%s4540 + $0x60] sm:$0xff]
        %v4554 = vld [vmem:[%s4540 + $0x68] sm:$0xff]
        %v4555 = vld [vmem:[%s4540 + $0x70] sm:$0xff]
        %v4556 = vld [vmem:[%s4540 + $0x78] sm:$0xff]
        %s4557 = scalar_lea.vmem %s9, 3
        %v4558 = vld [vmem:[%s4557] sm:$0x1]
        %v4560 = vlaneseq
        %v4561 = vshrl.u32 %v4560, 7
        %v4562 = vsub.s32 0, %v4561
        %v4563 = vrot.slane %v4558, %v4562
        %4565 = vmatprep.subr.mxu0 0.0
        %4566 = vmatpush1.msra.mxu0 %v4541
        %4567 = vmatprep.subr.mxu0 0.0
        %4568 = vmatpush1.msra.mxu0 %v4542
        %4569 = vmatprep.subr.mxu0 0.0
        %4570 = vmatpush1.msra.mxu0 %v4543
        %4571 = vmatprep.subr.mxu0 0.0
        %4572 = vmatpush1.msra.mxu0 %v4544
        %4573 = vmatprep.subr.mxu0 0.0
        %4574 = vmatpush1.msra.mxu0 %v4545
        %4575 = vmatprep.subr.mxu0 0.0
        %4576 = vmatpush1.msra.mxu0 %v4546
        %4577 = vmatprep.subr.mxu0 0.0
        %4578 = vmatpush1.msra.mxu0 %v4547
        %4579 = vmatprep.subr.mxu0 0.0
        %4580 = vmatpush1.msra.mxu0 %v4548
        %4581 = vmatprep.subr.mxu0 0.0
        %4582 = vmatpush1.msra.mxu0 %v4549
        %4583 = vmatprep.subr.mxu0 0.0
        %4584 = vmatpush1.msra.mxu0 %v4550
        %4585 = vmatprep.subr.mxu0 0.0
        %4586 = vmatpush1.msra.mxu0 %v4551
        %4587 = vmatprep.subr.mxu0 0.0
        %4588 = vmatpush1.msra.mxu0 %v4552
        %4589 = vmatprep.subr.mxu0 0.0
        %4590 = vmatpush1.msra.mxu0 %v4553
        %4591 = vmatprep.subr.mxu0 0.0
        %4592 = vmatpush1.msra.mxu0 %v4554
        %4593 = vmatprep.subr.mxu0 0.0
        %4594 = vmatpush1.msra.mxu0 %v4555
        %4595 = vmatprep.subr.mxu0 0.0
        %4596 = vmatpush1.msra.mxu0 %v4556
        %4597 = vmatprep.subr.mxu0 0.0
        %4598 = vmatpush1.msra.mxu0 0.0
        %4599 = vmatprep.subr.mxu0 0.0
        %4600 = vmatpush1.msra.mxu0 0.0
        %4601 = vmatprep.subr.mxu0 0.0
        %4602 = vmatpush1.msra.mxu0 0.0
        %4603 = vmatprep.subr.mxu0 0.0
        %4604 = vmatpush1.msra.mxu0 0.0
        %4605 = vmatprep.subr.mxu0 0.0
        %4606 = vmatpush1.msra.mxu0 0.0
        %4607 = vmatprep.subr.mxu0 0.0
        %4608 = vmatpush1.msra.mxu0 0.0
        %4609 = vmatprep.subr.mxu0 0.0
        %4610 = vmatpush1.msra.mxu0 0.0
        %4611 = vmatprep.subr.mxu0 0.0
        %4612 = vmatpush1.msra.mxu0 0.0
        %4613 = vmatprep.subr.mxu0 0.0
        %4614 = vmatpush1.msra.mxu0 0.0
        %4615 = vmatprep.subr.mxu0 0.0
        %4616 = vmatpush1.msra.mxu0 0.0
        %4617 = vmatprep.subr.mxu0 0.0
        %4618 = vmatpush1.msra.mxu0 0.0
        %4619 = vmatprep.subr.mxu0 0.0
        %4620 = vmatpush1.msra.mxu0 0.0
        %4621 = vmatprep.subr.mxu0 0.0
        %4622 = vmatpush1.msra.mxu0 0.0
        %4623 = vmatprep.subr.mxu0 0.0
        %4624 = vmatpush1.msra.mxu0 0.0
        %4625 = vmatprep.subr.mxu0 0.0
        %4626 = vmatpush1.msra.mxu0 0.0
        %4627 = vmatprep.subr.mxu0 0.0
        %4628 = vmatpush1.msra.mxu0 0.0
        %4629 = vmatprep.mubr.f32.mxu0 0.0
        %4630 = vmatmul.mubr.f32.gmra.mrb[0].mxu0 %v4538
        %v4631 = vpop.f32.mrb[0].mxu0
        %v4632 = vadd.f32 %v4563, %v4631
        %v4633 = vpop.f32.mrb[0].mxu0
        %4634 = vmatprep.mubr.f32.mxu0 0.0
        %4635 = vmatmul.mubr.f32.gmra.mrb[0].mxu0 %v4539
        %v4636 = vpop.f32.mrb[0].mxu0
        %v4637 = vadd.f32 %v4563, %v4636
        %v4638 = vpop.f32.mrb[0].mxu0
        %4639 = vdwg.mxu0
        %v4640 = vand.u32 2147483647, %v4632
        %v4641 = vand.u32 2147483647, %v4637
        %v4642 = vsub.f32 0.0, %v4640
        %v4643 = vsub.f32 0.0, %v4641
        %v4644 = vmul.f32 %v4642, 1.442695
        %v4645 = vpow.pop %v4644
        %v4646 = vmul.f32 %v4643, 1.442695
        %v4647 = vpow.pop %v4646
        %v4648 = vadd.f32 %v4645, 1.0
        %v4649 = vadd.f32 %v4647, 1.0
        %v4650 = vrcp.pop %v4648
        %v4651 = vrcp.pop %v4649
        %v4652 = vmul.f32 %v4632, %v4650
        %v4653 = vmul.f32 %v4637, %v4651
        %vm4654 = vcmp.ge.f32.partialorder %v4632, 0.0
        %vm4655 = vcmp.ge.f32.partialorder %v4637, 0.0
        %v4656 = vsel %vm4654, 1.0, %v4645
        %v4657 = vsel %vm4655, 1.0, %v4647
        %v4658 = vmul.f32 %v4652, %v4656
        %v4659 = vmul.f32 %v4653, %v4657
        %v4660 = vld [vmem:[%s5] sm:$0xff]
        %v4661 = vld [vmem:[%s5 + $0x8] sm:$0xff]
        %vm4662 = vcmask 130048
        %v4664 = vsel %vm4662, %v4660, 0
        %v4667 = vsel %vm4662, %v4661, 0
        %4669 = vmatprep.subr.mxu0 0.0
        %4670 = vmatpush1.msra.mxu0 %v4658
        %4671 = vmatprep.subr.mxu0 0.0
        %4672 = vmatpush1.msra.mxu0 %v4659
        %4673 = vmatprep.subr.mxu0 0.0
        %4674 = vmatpush1.msra.mxu0 0.0
        %4675 = vmatprep.subr.mxu0 0.0
        %4676 = vmatpush1.msra.mxu0 0.0
        %4677 = vmatprep.subr.mxu0 0.0
        %4678 = vmatpush1.msra.mxu0 0.0
        %4679 = vmatprep.subr.mxu0 0.0
        %4680 = vmatpush1.msra.mxu0 0.0
        %4681 = vmatprep.subr.mxu0 0.0
        %4682 = vmatpush1.msra.mxu0 0.0
        %4683 = vmatprep.subr.mxu0 0.0
        %4684 = vmatpush1.msra.mxu0 0.0
        %4685 = vmatprep.subr.mxu0 0.0
        %4686 = vmatpush1.msra.mxu0 0.0
        %4687 = vmatprep.subr.mxu0 0.0
        %4688 = vmatpush1.msra.mxu0 0.0
        %4689 = vmatprep.subr.mxu0 0.0
        %4690 = vmatpush1.msra.mxu0 0.0
        %4691 = vmatprep.subr.mxu0 0.0
        %4692 = vmatpush1.msra.mxu0 0.0
        %4693 = vmatprep.subr.mxu0 0.0
        %4694 = vmatpush1.msra.mxu0 0.0
        %4695 = vmatprep.subr.mxu0 0.0
        %4696 = vmatpush1.msra.mxu0 0.0
        %4697 = vmatprep.subr.mxu0 0.0
        %4698 = vmatpush1.msra.mxu0 0.0
        %4699 = vmatprep.subr.mxu0 0.0
        %4700 = vmatpush1.msra.mxu0 0.0
        %4701 = vmatprep.subr.mxu0 0.0
        %4702 = vmatpush1.msra.mxu0 0.0
        %4703 = vmatprep.subr.mxu0 0.0
        %4704 = vmatpush1.msra.mxu0 0.0
        %4705 = vmatprep.subr.mxu0 0.0
        %4706 = vmatpush1.msra.mxu0 0.0
        %4707 = vmatprep.subr.mxu0 0.0
        %4708 = vmatpush1.msra.mxu0 0.0
        %4709 = vmatprep.subr.mxu0 0.0
        %4710 = vmatpush1.msra.mxu0 0.0
        %4711 = vmatprep.subr.mxu0 0.0
        %4712 = vmatpush1.msra.mxu0 0.0
        %4713 = vmatprep.subr.mxu0 0.0
        %4714 = vmatpush1.msra.mxu0 0.0
        %4715 = vmatprep.subr.mxu0 0.0
        %4716 = vmatpush1.msra.mxu0 0.0
        %4717 = vmatprep.subr.mxu0 0.0
        %4718 = vmatpush1.msra.mxu0 0.0
        %4719 = vmatprep.subr.mxu0 0.0
        %4720 = vmatpush1.msra.mxu0 0.0
        %4721 = vmatprep.subr.mxu0 0.0
        %4722 = vmatpush1.msra.mxu0 0.0
        %4723 = vmatprep.subr.mxu0 0.0
        %4724 = vmatpush1.msra.mxu0 0.0
        %4725 = vmatprep.subr.mxu0 0.0
        %4726 = vmatpush1.msra.mxu0 0.0
        %4727 = vmatprep.subr.mxu0 0.0
        %4728 = vmatpush1.msra.mxu0 0.0
        %4729 = vmatprep.subr.mxu0 0.0
        %4730 = vmatpush1.msra.mxu0 0.0
        %4731 = vmatprep.subr.mxu0 0.0
        %4732 = vmatpush1.msra.mxu0 0.0
        %4733 = vmatprep.mubr.f32.mxu0 0.0
        %4734 = vmatmul.mubr.f32.gmra.mrb[0].mxu0 %v4664
        %v4735 = vpop.f32.mrb[0].mxu0
        %v4736 = vadd.f32 0.0, %v4735
        %v4737 = vpop.f32.mrb[0].mxu0
        %4738 = vmatprep.mubr.f32.mxu0 0.0
        %4739 = vmatmul.mubr.f32.gmra.mrb[0].mxu0 %v4667
        %v4740 = vpop.f32.mrb[0].mxu0
        %v4741 = vadd.f32 0.0, %v4740
        %v4742 = vpop.f32.mrb[0].mxu0
        %4743 = vdwg.mxu0
        %v4744 = vld [vmem:[#allocation7] sm:$0xff]
        %v4745 = vld [vmem:[#allocation7 + $0x8] sm:$0xff]
        %v4746 = vld [vmem:[#allocation7 + $0x10] sm:$0xff]
        %v4747 = vld [vmem:[#allocation7 + $0x18] sm:$0xff]
        %v4748 = vld [vmem:[#allocation7 + $0x20] sm:$0xff]
        %v4749 = vld [vmem:[#allocation7 + $0x28] sm:$0xff]
        %v4750 = vld [vmem:[#allocation7 + $0x30] sm:$0xff]
        %v4751 = vld [vmem:[#allocation7 + $0x38] sm:$0xff]
        %v4752 = vld [vmem:[#allocation7 + $0x40] sm:$0xff]
        %v4753 = vld [vmem:[#allocation7 + $0x48] sm:$0xff]
        %v4754 = vld [vmem:[#allocation7 + $0x50] sm:$0xff]
        %v4755 = vld [vmem:[#allocation7 + $0x58] sm:$0xff]
        %v4756 = vld [vmem:[#allocation7 + $0x60] sm:$0xff]
        %v4757 = vld [vmem:[#allocation7 + $0x68] sm:$0xff]
        %v4758 = vld [vmem:[#allocation7 + $0x70] sm:$0xff]
        %v4759 = vld [vmem:[#allocation7 + $0x78] sm:$0xff]
        %s4760 = scalar_lea.vmem %s5, 16
        %v4761 = vld [vmem:[%s4760] sm:$0xff]
        %v4762 = vld [vmem:[%s4760 + $0x8] sm:$0xff]
        %v4764 = vsel %vm4662, %v4761, 0
        %v4767 = vsel %vm4662, %v4762, 0
        %4769 = vmatprep.subr.mxu0 0.0
        %4770 = vmatpush1.msra.mxu0 %v4658
        %4771 = vmatprep.subr.mxu0 0.0
        %4772 = vmatpush1.msra.mxu0 %v4659
        %4773 = vmatprep.subr.mxu0 0.0
        %4774 = vmatpush1.msra.mxu0 0.0
        %4775 = vmatprep.subr.mxu0 0.0
        %4776 = vmatpush1.msra.mxu0 0.0
        %4777 = vmatprep.subr.mxu0 0.0
        %4778 = vmatpush1.msra.mxu0 0.0
        %4779 = vmatprep.subr.mxu0 0.0
        %4780 = vmatpush1.msra.mxu0 0.0
        %4781 = vmatprep.subr.mxu0 0.0
        %4782 = vmatpush1.msra.mxu0 0.0
        %4783 = vmatprep.subr.mxu0 0.0
        %4784 = vmatpush1.msra.mxu0 0.0
        %4785 = vmatprep.subr.mxu0 0.0
        %4786 = vmatpush1.msra.mxu0 0.0
        %4787 = vmatprep.subr.mxu0 0.0
        %4788 = vmatpush1.msra.mxu0 0.0
        %4789 = vmatprep.subr.mxu0 0.0
        %4790 = vmatpush1.msra.mxu0 0.0
        %4791 = vmatprep.subr.mxu0 0.0
        %4792 = vmatpush1.msra.mxu0 0.0
        %4793 = vmatprep.subr.mxu0 0.0
        %4794 = vmatpush1.msra.mxu0 0.0
        %4795 = vmatprep.subr.mxu0 0.0
        %4796 = vmatpush1.msra.mxu0 0.0
        %4797 = vmatprep.subr.mxu0 0.0
        %4798 = vmatpush1.msra.mxu0 0.0
        %4799 = vmatprep.subr.mxu0 0.0
        %4800 = vmatpush1.msra.mxu0 0.0
        %4801 = vmatprep.subr.mxu0 0.0
        %4802 = vmatpush1.msra.mxu0 0.0
        %4803 = vmatprep.subr.mxu0 0.0
        %4804 = vmatpush1.msra.mxu0 0.0
        %4805 = vmatprep.subr.mxu0 0.0
        %4806 = vmatpush1.msra.mxu0 0.0
        %4807 = vmatprep.subr.mxu0 0.0
        %4808 = vmatpush1.msra.mxu0 0.0
        %4809 = vmatprep.subr.mxu0 0.0
        %4810 = vmatpush1.msra.mxu0 0.0
        %4811 = vmatprep.subr.mxu0 0.0
        %4812 = vmatpush1.msra.mxu0 0.0
        %4813 = vmatprep.subr.mxu0 0.0
        %4814 = vmatpush1.msra.mxu0 0.0
        %4815 = vmatprep.subr.mxu0 0.0
        %4816 = vmatpush1.msra.mxu0 0.0
        %4817 = vmatprep.subr.mxu0 0.0
        %4818 = vmatpush1.msra.mxu0 0.0
        %4819 = vmatprep.subr.mxu0 0.0
        %4820 = vmatpush1.msra.mxu0 0.0
        %4821 = vmatprep.subr.mxu0 0.0
        %4822 = vmatpush1.msra.mxu0 0.0
        %4823 = vmatprep.subr.mxu0 0.0
        %4824 = vmatpush1.msra.mxu0 0.0
        %4825 = vmatprep.subr.mxu0 0.0
        %4826 = vmatpush1.msra.mxu0 0.0
        %4827 = vmatprep.subr.mxu0 0.0
        %4828 = vmatpush1.msra.mxu0 0.0
        %4829 = vmatprep.subr.mxu0 0.0
        %4830 = vmatpush1.msra.mxu0 0.0
        %4831 = vmatprep.subr.mxu0 0.0
        %4832 = vmatpush1.msra.mxu0 0.0
        %4833 = vmatprep.mubr.f32.mxu0 0.0
        %4834 = vmatmul.mubr.f32.gmra.mrb[0].mxu0 %v4764
        %v4835 = vpop.f32.mrb[0].mxu0
        %v4836 = vadd.f32 0.0, %v4835
        %v4837 = vpop.f32.mrb[0].mxu0
        %4838 = vmatprep.mubr.f32.mxu0 0.0
        %4839 = vmatmul.mubr.f32.gmra.mrb[0].mxu0 %v4767
        %v4840 = vpop.f32.mrb[0].mxu0
        %v4841 = vadd.f32 0.0, %v4840
        %v4842 = vpop.f32.mrb[0].mxu0
        %4843 = vdwg.mxu0
        %s4844 = scalar_lea.vmem [#allocation7], 128
        %v4845 = vld [vmem:[%s4844] sm:$0xff]
        %v4846 = vld [vmem:[%s4844 + $0x8] sm:$0xff]
        %v4847 = vld [vmem:[%s4844 + $0x10] sm:$0xff]
        %v4848 = vld [vmem:[%s4844 + $0x18] sm:$0xff]
        %v4849 = vld [vmem:[%s4844 + $0x20] sm:$0xff]
        %v4850 = vld [vmem:[%s4844 + $0x28] sm:$0xff]
        %v4851 = vld [vmem:[%s4844 + $0x30] sm:$0xff]
        %v4852 = vld [vmem:[%s4844 + $0x38] sm:$0xff]
        %v4853 = vld [vmem:[%s4844 + $0x40] sm:$0xff]
        %v4854 = vld [vmem:[%s4844 + $0x48] sm:$0xff]
        %v4855 = vld [vmem:[%s4844 + $0x50] sm:$0xff]
        %v4856 = vld [vmem:[%s4844 + $0x58] sm:$0xff]
        %v4857 = vld [vmem:[%s4844 + $0x60] sm:$0xff]
        %v4858 = vld [vmem:[%s4844 + $0x68] sm:$0xff]
        %v4859 = vld [vmem:[%s4844 + $0x70] sm:$0xff]
        %v4860 = vld [vmem:[%s4844 + $0x78] sm:$0xff]
        %4861 = vmatprep.subr.mxu0 0.0
        %4862 = vmatpush1.msra.mxu0 %v4845
        %4863 = vmatprep.subr.mxu0 0.0
        %4864 = vmatpush1.msra.mxu0 %v4846
        %4865 = vmatprep.subr.mxu0 0.0
        %4866 = vmatpush1.msra.mxu0 %v4847
        %4867 = vmatprep.subr.mxu0 0.0
        %4868 = vmatpush1.msra.mxu0 %v4848
        %4869 = vmatprep.subr.mxu0 0.0
        %4870 = vmatpush1.msra.mxu0 %v4849
        %4871 = vmatprep.subr.mxu0 0.0
        %4872 = vmatpush1.msra.mxu0 %v4850
        %4873 = vmatprep.subr.mxu0 0.0
        %4874 = vmatpush1.msra.mxu0 %v4851
        %4875 = vmatprep.subr.mxu0 0.0
        %4876 = vmatpush1.msra.mxu0 %v4852
        %4877 = vmatprep.subr.mxu0 0.0
        %4878 = vmatpush1.msra.mxu0 %v4853
        %4879 = vmatprep.subr.mxu0 0.0
        %4880 = vmatpush1.msra.mxu0 %v4854
        %4881 = vmatprep.subr.mxu0 0.0
        %4882 = vmatpush1.msra.mxu0 %v4855
        %4883 = vmatprep.subr.mxu0 0.0
        %4884 = vmatpush1.msra.mxu0 %v4856
        %4885 = vmatprep.subr.mxu0 0.0
        %4886 = vmatpush1.msra.mxu0 %v4857
        %4887 = vmatprep.subr.mxu0 0.0
        %4888 = vmatpush1.msra.mxu0 %v4858
        %4889 = vmatprep.subr.mxu0 0.0
        %4890 = vmatpush1.msra.mxu0 %v4859
        %4891 = vmatprep.subr.mxu0 0.0
        %4892 = vmatpush1.msra.mxu0 %v4860
        %4893 = vmatprep.subr.mxu0 0.0
        %4894 = vmatpush1.msra.mxu0 0.0
        %4895 = vmatprep.subr.mxu0 0.0
        %4896 = vmatpush1.msra.mxu0 0.0
        %4897 = vmatprep.subr.mxu0 0.0
        %4898 = vmatpush1.msra.mxu0 0.0
        %4899 = vmatprep.subr.mxu0 0.0
        %4900 = vmatpush1.msra.mxu0 0.0
        %4901 = vmatprep.subr.mxu0 0.0
        %4902 = vmatpush1.msra.mxu0 0.0
        %4903 = vmatprep.subr.mxu0 0.0
        %4904 = vmatpush1.msra.mxu0 0.0
        %4905 = vmatprep.subr.mxu0 0.0
        %4906 = vmatpush1.msra.mxu0 0.0
        %4907 = vmatprep.subr.mxu0 0.0
        %4908 = vmatpush1.msra.mxu0 0.0
        %4909 = vmatprep.subr.mxu0 0.0
        %4910 = vmatpush1.msra.mxu0 0.0
        %4911 = vmatprep.subr.mxu0 0.0
        %4912 = vmatpush1.msra.mxu0 0.0
        %4913 = vmatprep.subr.mxu0 0.0
        %4914 = vmatpush1.msra.mxu0 0.0
        %4915 = vmatprep.subr.mxu0 0.0
        %4916 = vmatpush1.msra.mxu0 0.0
        %4917 = vmatprep.subr.mxu0 0.0
        %4918 = vmatpush1.msra.mxu0 0.0
        %4919 = vmatprep.subr.mxu0 0.0
        %4920 = vmatpush1.msra.mxu0 0.0
        %4921 = vmatprep.subr.mxu0 0.0
        %4922 = vmatpush1.msra.mxu0 0.0
        %4923 = vmatprep.subr.mxu0 0.0
        %4924 = vmatpush1.msra.mxu0 0.0
        %4925 = vmatprep.mubr.f32.mxu0 0.0
        %4926 = vmatmul.mubr.f32.gmra.mrb[0].mxu0 %v4836
        %v4927 = vpop.f32.mrb[0].mxu0
        %v4928 = vadd.f32 0.0, %v4927
        %v4929 = vpop.f32.mrb[0].mxu0
        %4930 = vmatprep.mubr.f32.mxu0 0.0
        %4931 = vmatmul.mubr.f32.gmra.mrb[0].mxu0 %v4841
        %v4932 = vpop.f32.mrb[0].mxu0
        %v4933 = vadd.f32 0.0, %v4932
        %v4934 = vpop.f32.mrb[0].mxu0
        %4935 = vdwg.mxu0
        %4936 = vmatprep.subr.mxu0 0.0
        %4937 = vmatpush1.msra.mxu0 %v4744
        %4938 = vmatprep.subr.mxu0 0.0
        %4939 = vmatpush1.msra.mxu0 %v4745
        %4940 = vmatprep.subr.mxu0 0.0
        %4941 = vmatpush1.msra.mxu0 %v4746
        %4942 = vmatprep.subr.mxu0 0.0
        %4943 = vmatpush1.msra.mxu0 %v4747
        %4944 = vmatprep.subr.mxu0 0.0
        %4945 = vmatpush1.msra.mxu0 %v4748
        %4946 = vmatprep.subr.mxu0 0.0
        %4947 = vmatpush1.msra.mxu0 %v4749
        %4948 = vmatprep.subr.mxu0 0.0
        %4949 = vmatpush1.msra.mxu0 %v4750
        %4950 = vmatprep.subr.mxu0 0.0
        %4951 = vmatpush1.msra.mxu0 %v4751
        %4952 = vmatprep.subr.mxu0 0.0
        %4953 = vmatpush1.msra.mxu0 %v4752
        %4954 = vmatprep.subr.mxu0 0.0
        %4955 = vmatpush1.msra.mxu0 %v4753
        %4956 = vmatprep.subr.mxu0 0.0
        %4957 = vmatpush1.msra.mxu0 %v4754
        %4958 = vmatprep.subr.mxu0 0.0
        %4959 = vmatpush1.msra.mxu0 %v4755
        %4960 = vmatprep.subr.mxu0 0.0
        %4961 = vmatpush1.msra.mxu0 %v4756
        %4962 = vmatprep.subr.mxu0 0.0
        %4963 = vmatpush1.msra.mxu0 %v4757
        %4964 = vmatprep.subr.mxu0 0.0
        %4965 = vmatpush1.msra.mxu0 %v4758
        %4966 = vmatprep.subr.mxu0 0.0
        %4967 = vmatpush1.msra.mxu0 %v4759
        %4968 = vmatprep.subr.mxu0 0.0
        %4969 = vmatpush1.msra.mxu0 0.0
        %4970 = vmatprep.subr.mxu0 0.0
        %4971 = vmatpush1.msra.mxu0 0.0
        %4972 = vmatprep.subr.mxu0 0.0
        %4973 = vmatpush1.msra.mxu0 0.0
        %4974 = vmatprep.subr.mxu0 0.0
        %4975 = vmatpush1.msra.mxu0 0.0
        %4976 = vmatprep.subr.mxu0 0.0
        %4977 = vmatpush1.msra.mxu0 0.0
        %4978 = vmatprep.subr.mxu0 0.0
        %4979 = vmatpush1.msra.mxu0 0.0
        %4980 = vmatprep.subr.mxu0 0.0
        %4981 = vmatpush1.msra.mxu0 0.0
        %4982 = vmatprep.subr.mxu0 0.0
        %4983 = vmatpush1.msra.mxu0 0.0
        %4984 = vmatprep.subr.mxu0 0.0
        %4985 = vmatpush1.msra.mxu0 0.0
        %4986 = vmatprep.subr.mxu0 0.0
        %4987 = vmatpush1.msra.mxu0 0.0
        %4988 = vmatprep.subr.mxu0 0.0
        %4989 = vmatpush1.msra.mxu0 0.0
        %4990 = vmatprep.subr.mxu0 0.0
        %4991 = vmatpush1.msra.mxu0 0.0
        %4992 = vmatprep.subr.mxu0 0.0
        %4993 = vmatpush1.msra.mxu0 0.0
        %4994 = vmatprep.subr.mxu0 0.0
        %4995 = vmatpush1.msra.mxu0 0.0
        %4996 = vmatprep.subr.mxu0 0.0
        %4997 = vmatpush1.msra.mxu0 0.0
        %4998 = vmatprep.subr.mxu0 0.0
        %4999 = vmatpush1.msra.mxu0 0.0
        %5000 = vmatprep.mubr.f32.mxu0 0.0
        %5001 = vmatmul.mubr.f32.gmra.mrb[0].mxu0 %v4736
        %v5002 = vpop.f32.mrb[0].mxu0
        %v5003 = vadd.f32 %v4928, %v5002
        %v5004 = vpop.f32.mrb[0].mxu0
        %5005 = vmatprep.mubr.f32.mxu0 0.0
        %5006 = vmatmul.mubr.f32.gmra.mrb[0].mxu0 %v4741
        %v5007 = vpop.f32.mrb[0].mxu0
        %v5008 = vadd.f32 %v4933, %v5007
        %v5009 = vpop.f32.mrb[0].mxu0
        %5010 = vdwg.mxu0
        %s5011 = scalar_lea.vmem %s5, 32
        %v5012 = vld [vmem:[%s5011] sm:$0xff]
        %v5013 = vld [vmem:[%s5011 + $0x8] sm:$0xff]
        %v5015 = vsel %vm4662, %v5012, 0
        %v5018 = vsel %vm4662, %v5013, 0
        %5020 = vmatprep.subr.mxu0 0.0
        %5021 = vmatpush1.msra.mxu0 %v4658
        %5022 = vmatprep.subr.mxu0 0.0
        %5023 = vmatpush1.msra.mxu0 %v4659
        %5024 = vmatprep.subr.mxu0 0.0
        %5025 = vmatpush1.msra.mxu0 0.0
        %5026 = vmatprep.subr.mxu0 0.0
        %5027 = vmatpush1.msra.mxu0 0.0
        %5028 = vmatprep.subr.mxu0 0.0
        %5029 = vmatpush1.msra.mxu0 0.0
        %5030 = vmatprep.subr.mxu0 0.0
        %5031 = vmatpush1.msra.mxu0 0.0
        %5032 = vmatprep.subr.mxu0 0.0
        %5033 = vmatpush1.msra.mxu0 0.0
        %5034 = vmatprep.subr.mxu0 0.0
        %5035 = vmatpush1.msra.mxu0 0.0
        %5036 = vmatprep.subr.mxu0 0.0
        %5037 = vmatpush1.msra.mxu0 0.0
        %5038 = vmatprep.subr.mxu0 0.0
        %5039 = vmatpush1.msra.mxu0 0.0
        %5040 = vmatprep.subr.mxu0 0.0
        %5041 = vmatpush1.msra.mxu0 0.0
        %5042 = vmatprep.subr.mxu0 0.0
        %5043 = vmatpush1.msra.mxu0 0.0
        %5044 = vmatprep.subr.mxu0 0.0
        %5045 = vmatpush1.msra.mxu0 0.0
        %5046 = vmatprep.subr.mxu0 0.0
        %5047 = vmatpush1.msra.mxu0 0.0
        %5048 = vmatprep.subr.mxu0 0.0
        %5049 = vmatpush1.msra.mxu0 0.0
        %5050 = vmatprep.subr.mxu0 0.0
        %5051 = vmatpush1.msra.mxu0 0.0
        %5052 = vmatprep.subr.mxu0 0.0
        %5053 = vmatpush1.msra.mxu0 0.0
        %5054 = vmatprep.subr.mxu0 0.0
        %5055 = vmatpush1.msra.mxu0 0.0
        %5056 = vmatprep.subr.mxu0 0.0
        %5057 = vmatpush1.msra.mxu0 0.0
        %5058 = vmatprep.subr.mxu0 0.0
        %5059 = vmatpush1.msra.mxu0 0.0
        %5060 = vmatprep.subr.mxu0 0.0
        %5061 = vmatpush1.msra.mxu0 0.0
        %5062 = vmatprep.subr.mxu0 0.0
        %5063 = vmatpush1.msra.mxu0 0.0
        %5064 = vmatprep.subr.mxu0 0.0
        %5065 = vmatpush1.msra.mxu0 0.0
        %5066 = vmatprep.subr.mxu0 0.0
        %5067 = vmatpush1.msra.mxu0 0.0
        %5068 = vmatprep.subr.mxu0 0.0
        %5069 = vmatpush1.msra.mxu0 0.0
        %5070 = vmatprep.subr.mxu0 0.0
        %5071 = vmatpush1.msra.mxu0 0.0
        %5072 = vmatprep.subr.mxu0 0.0
        %5073 = vmatpush1.msra.mxu0 0.0
        %5074 = vmatprep.subr.mxu0 0.0
        %5075 = vmatpush1.msra.mxu0 0.0
        %5076 = vmatprep.subr.mxu0 0.0
        %5077 = vmatpush1.msra.mxu0 0.0
        %5078 = vmatprep.subr.mxu0 0.0
        %5079 = vmatpush1.msra.mxu0 0.0
        %5080 = vmatprep.subr.mxu0 0.0
        %5081 = vmatpush1.msra.mxu0 0.0
        %5082 = vmatprep.subr.mxu0 0.0
        %5083 = vmatpush1.msra.mxu0 0.0
        %5084 = vmatprep.mubr.f32.mxu0 0.0
        %5085 = vmatmul.mubr.f32.gmra.mrb[0].mxu0 %v5015
        %v5086 = vpop.f32.mrb[0].mxu0
        %v5087 = vadd.f32 0.0, %v5086
        %v5088 = vpop.f32.mrb[0].mxu0
        %5089 = vmatprep.mubr.f32.mxu0 0.0
        %5090 = vmatmul.mubr.f32.gmra.mrb[0].mxu0 %v5018
        %v5091 = vpop.f32.mrb[0].mxu0
        %v5092 = vadd.f32 0.0, %v5091
        %v5093 = vpop.f32.mrb[0].mxu0
        %5094 = vdwg.mxu0
        %s5095 = scalar_lea.vmem [#allocation7], 256
        %v5096 = vld [vmem:[%s5095] sm:$0xff]
        %v5097 = vld [vmem:[%s5095 + $0x8] sm:$0xff]
        %v5098 = vld [vmem:[%s5095 + $0x10] sm:$0xff]
        %v5099 = vld [vmem:[%s5095 + $0x18] sm:$0xff]
        %v5100 = vld [vmem:[%s5095 + $0x20] sm:$0xff]
        %v5101 = vld [vmem:[%s5095 + $0x28] sm:$0xff]
        %v5102 = vld [vmem:[%s5095 + $0x30] sm:$0xff]
        %v5103 = vld [vmem:[%s5095 + $0x38] sm:$0xff]
        %v5104 = vld [vmem:[%s5095 + $0x40] sm:$0xff]
        %v5105 = vld [vmem:[%s5095 + $0x48] sm:$0xff]
        %v5106 = vld [vmem:[%s5095 + $0x50] sm:$0xff]
        %v5107 = vld [vmem:[%s5095 + $0x58] sm:$0xff]
        %v5108 = vld [vmem:[%s5095 + $0x60] sm:$0xff]
        %v5109 = vld [vmem:[%s5095 + $0x68] sm:$0xff]
        %v5110 = vld [vmem:[%s5095 + $0x70] sm:$0xff]
        %v5111 = vld [vmem:[%s5095 + $0x78] sm:$0xff]
        %5112 = vmatprep.subr.mxu0 0.0
        %5113 = vmatpush1.msra.mxu0 %v5096
        %5114 = vmatprep.subr.mxu0 0.0
        %5115 = vmatpush1.msra.mxu0 %v5097
        %5116 = vmatprep.subr.mxu0 0.0
        %5117 = vmatpush1.msra.mxu0 %v5098
        %5118 = vmatprep.subr.mxu0 0.0
        %5119 = vmatpush1.msra.mxu0 %v5099
        %5120 = vmatprep.subr.mxu0 0.0
        %5121 = vmatpush1.msra.mxu0 %v5100
        %5122 = vmatprep.subr.mxu0 0.0
        %5123 = vmatpush1.msra.mxu0 %v5101
        %5124 = vmatprep.subr.mxu0 0.0
        %5125 = vmatpush1.msra.mxu0 %v5102
        %5126 = vmatprep.subr.mxu0 0.0
        %5127 = vmatpush1.msra.mxu0 %v5103
        %5128 = vmatprep.subr.mxu0 0.0
        %5129 = vmatpush1.msra.mxu0 %v5104
        %5130 = vmatprep.subr.mxu0 0.0
        %5131 = vmatpush1.msra.mxu0 %v5105
        %5132 = vmatprep.subr.mxu0 0.0
        %5133 = vmatpush1.msra.mxu0 %v5106
        %5134 = vmatprep.subr.mxu0 0.0
        %5135 = vmatpush1.msra.mxu0 %v5107
        %5136 = vmatprep.subr.mxu0 0.0
        %5137 = vmatpush1.msra.mxu0 %v5108
        %5138 = vmatprep.subr.mxu0 0.0
        %5139 = vmatpush1.msra.mxu0 %v5109
        %5140 = vmatprep.subr.mxu0 0.0
        %5141 = vmatpush1.msra.mxu0 %v5110
        %5142 = vmatprep.subr.mxu0 0.0
        %5143 = vmatpush1.msra.mxu0 %v5111
        %5144 = vmatprep.subr.mxu0 0.0
        %5145 = vmatpush1.msra.mxu0 0.0
        %5146 = vmatprep.subr.mxu0 0.0
        %5147 = vmatpush1.msra.mxu0 0.0
        %5148 = vmatprep.subr.mxu0 0.0
        %5149 = vmatpush1.msra.mxu0 0.0
        %5150 = vmatprep.subr.mxu0 0.0
        %5151 = vmatpush1.msra.mxu0 0.0
        %5152 = vmatprep.subr.mxu0 0.0
        %5153 = vmatpush1.msra.mxu0 0.0
        %5154 = vmatprep.subr.mxu0 0.0
        %5155 = vmatpush1.msra.mxu0 0.0
        %5156 = vmatprep.subr.mxu0 0.0
        %5157 = vmatpush1.msra.mxu0 0.0
        %5158 = vmatprep.subr.mxu0 0.0
        %5159 = vmatpush1.msra.mxu0 0.0
        %5160 = vmatprep.subr.mxu0 0.0
        %5161 = vmatpush1.msra.mxu0 0.0
        %5162 = vmatprep.subr.mxu0 0.0
        %5163 = vmatpush1.msra.mxu0 0.0
        %5164 = vmatprep.subr.mxu0 0.0
        %5165 = vmatpush1.msra.mxu0 0.0
        %5166 = vmatprep.subr.mxu0 0.0
        %5167 = vmatpush1.msra.mxu0 0.0
        %5168 = vmatprep.subr.mxu0 0.0
        %5169 = vmatpush1.msra.mxu0 0.0
        %5170 = vmatprep.subr.mxu0 0.0
        %5171 = vmatpush1.msra.mxu0 0.0
        %5172 = vmatprep.subr.mxu0 0.0
        %5173 = vmatpush1.msra.mxu0 0.0
        %5174 = vmatprep.subr.mxu0 0.0
        %5175 = vmatpush1.msra.mxu0 0.0
        %5176 = vmatprep.mubr.f32.mxu0 0.0
        %5177 = vmatmul.mubr.f32.gmra.mrb[0].mxu0 %v5087
        %v5178 = vpop.f32.mrb[0].mxu0
        %v5179 = vadd.f32 0.0, %v5178
        %v5180 = vpop.f32.mrb[0].mxu0
        %5181 = vmatprep.mubr.f32.mxu0 0.0
        %5182 = vmatmul.mubr.f32.gmra.mrb[0].mxu0 %v5092
        %v5183 = vpop.f32.mrb[0].mxu0
        %v5184 = vadd.f32 0.0, %v5183
        %v5185 = vpop.f32.mrb[0].mxu0
        %5186 = vdwg.mxu0
        %v5187 = vadd.f32 %v5003, %v5179
        %v5188 = vadd.f32 %v5008, %v5184
        %s5189 = scalar_lea.vmem %s5, 48
        %v5190 = vld [vmem:[%s5189] sm:$0xff]
        %v5191 = vld [vmem:[%s5189 + $0x8] sm:$0xff]
        %v5193 = vsel %vm4662, %v5190, 0
        %v5196 = vsel %vm4662, %v5191, 0
        %5198 = vmatprep.subr.mxu0 0.0
        %5199 = vmatpush1.msra.mxu0 %v4658
        %5200 = vmatprep.subr.mxu0 0.0
        %5201 = vmatpush1.msra.mxu0 %v4659
        %5202 = vmatprep.subr.mxu0 0.0
        %5203 = vmatpush1.msra.mxu0 0.0
        %5204 = vmatprep.subr.mxu0 0.0
        %5205 = vmatpush1.msra.mxu0 0.0
        %5206 = vmatprep.subr.mxu0 0.0
        %5207 = vmatpush1.msra.mxu0 0.0
        %5208 = vmatprep.subr.mxu0 0.0
        %5209 = vmatpush1.msra.mxu0 0.0
        %5210 = vmatprep.subr.mxu0 0.0
        %5211 = vmatpush1.msra.mxu0 0.0
        %5212 = vmatprep.subr.mxu0 0.0
        %5213 = vmatpush1.msra.mxu0 0.0
        %5214 = vmatprep.subr.mxu0 0.0
        %5215 = vmatpush1.msra.mxu0 0.0
        %5216 = vmatprep.subr.mxu0 0.0
        %5217 = vmatpush1.msra.mxu0 0.0
        %5218 = vmatprep.subr.mxu0 0.0
        %5219 = vmatpush1.msra.mxu0 0.0
        %5220 = vmatprep.subr.mxu0 0.0
        %5221 = vmatpush1.msra.mxu0 0.0
        %5222 = vmatprep.subr.mxu0 0.0
        %5223 = vmatpush1.msra.mxu0 0.0
        %5224 = vmatprep.subr.mxu0 0.0
        %5225 = vmatpush1.msra.mxu0 0.0
        %5226 = vmatprep.subr.mxu0 0.0
        %5227 = vmatpush1.msra.mxu0 0.0
        %5228 = vmatprep.subr.mxu0 0.0
        %5229 = vmatpush1.msra.mxu0 0.0
        %5230 = vmatprep.subr.mxu0 0.0
        %5231 = vmatpush1.msra.mxu0 0.0
        %5232 = vmatprep.subr.mxu0 0.0
        %5233 = vmatpush1.msra.mxu0 0.0
        %5234 = vmatprep.subr.mxu0 0.0
        %5235 = vmatpush1.msra.mxu0 0.0
        %5236 = vmatprep.subr.mxu0 0.0
        %5237 = vmatpush1.msra.mxu0 0.0
        %5238 = vmatprep.subr.mxu0 0.0
        %5239 = vmatpush1.msra.mxu0 0.0
        %5240 = vmatprep.subr.mxu0 0.0
        %5241 = vmatpush1.msra.mxu0 0.0
        %5242 = vmatprep.subr.mxu0 0.0
        %5243 = vmatpush1.msra.mxu0 0.0
        %5244 = vmatprep.subr.mxu0 0.0
        %5245 = vmatpush1.msra.mxu0 0.0
        %5246 = vmatprep.subr.mxu0 0.0
        %5247 = vmatpush1.msra.mxu0 0.0
        %5248 = vmatprep.subr.mxu0 0.0
        %5249 = vmatpush1.msra.mxu0 0.0
        %5250 = vmatprep.subr.mxu0 0.0
        %5251 = vmatpush1.msra.mxu0 0.0
        %5252 = vmatprep.subr.mxu0 0.0
        %5253 = vmatpush1.msra.mxu0 0.0
        %5254 = vmatprep.subr.mxu0 0.0
        %5255 = vmatpush1.msra.mxu0 0.0
        %5256 = vmatprep.subr.mxu0 0.0
        %5257 = vmatpush1.msra.mxu0 0.0
        %5258 = vmatprep.subr.mxu0 0.0
        %5259 = vmatpush1.msra.mxu0 0.0
        %5260 = vmatprep.subr.mxu0 0.0
        %5261 = vmatpush1.msra.mxu0 0.0
        %5262 = vmatprep.mubr.f32.mxu0 0.0
        %5263 = vmatmul.mubr.f32.gmra.mrb[0].mxu0 %v5193
        %v5264 = vpop.f32.mrb[0].mxu0
        %v5265 = vadd.f32 0.0, %v5264
        %v5266 = vpop.f32.mrb[0].mxu0
        %5267 = vmatprep.mubr.f32.mxu0 0.0
        %5268 = vmatmul.mubr.f32.gmra.mrb[0].mxu0 %v5196
        %v5269 = vpop.f32.mrb[0].mxu0
        %v5270 = vadd.f32 0.0, %v5269
        %v5271 = vpop.f32.mrb[0].mxu0
        %5272 = vdwg.mxu0
        %s5273 = scalar_lea.vmem [#allocation7], 384
        %v5274 = vld [vmem:[%s5273] sm:$0xff]
        %v5275 = vld [vmem:[%s5273 + $0x8] sm:$0xff]
        %v5276 = vld [vmem:[%s5273 + $0x10] sm:$0xff]
        %v5277 = vld [vmem:[%s5273 + $0x18] sm:$0xff]
        %v5278 = vld [vmem:[%s5273 + $0x20] sm:$0xff]
        %v5279 = vld [vmem:[%s5273 + $0x28] sm:$0xff]
        %v5280 = vld [vmem:[%s5273 + $0x30] sm:$0xff]
        %v5281 = vld [vmem:[%s5273 + $0x38] sm:$0xff]
        %v5282 = vld [vmem:[%s5273 + $0x40] sm:$0xff]
        %v5283 = vld [vmem:[%s5273 + $0x48] sm:$0xff]
        %v5284 = vld [vmem:[%s5273 + $0x50] sm:$0xff]
        %v5285 = vld [vmem:[%s5273 + $0x58] sm:$0xff]
        %v5286 = vld [vmem:[%s5273 + $0x60] sm:$0xff]
        %v5287 = vld [vmem:[%s5273 + $0x68] sm:$0xff]
        %v5288 = vld [vmem:[%s5273 + $0x70] sm:$0xff]
        %v5289 = vld [vmem:[%s5273 + $0x78] sm:$0xff]
        %5290 = vmatprep.subr.mxu0 0.0
        %5291 = vmatpush1.msra.mxu0 %v5274
        %5292 = vmatprep.subr.mxu0 0.0
        %5293 = vmatpush1.msra.mxu0 %v5275
        %5294 = vmatprep.subr.mxu0 0.0
        %5295 = vmatpush1.msra.mxu0 %v5276
        %5296 = vmatprep.subr.mxu0 0.0
        %5297 = vmatpush1.msra.mxu0 %v5277
        %5298 = vmatprep.subr.mxu0 0.0
        %5299 = vmatpush1.msra.mxu0 %v5278
        %5300 = vmatprep.subr.mxu0 0.0
        %5301 = vmatpush1.msra.mxu0 %v5279
        %5302 = vmatprep.subr.mxu0 0.0
        %5303 = vmatpush1.msra.mxu0 %v5280
        %5304 = vmatprep.subr.mxu0 0.0
        %5305 = vmatpush1.msra.mxu0 %v5281
        %5306 = vmatprep.subr.mxu0 0.0
        %5307 = vmatpush1.msra.mxu0 %v5282
        %5308 = vmatprep.subr.mxu0 0.0
        %5309 = vmatpush1.msra.mxu0 %v5283
        %5310 = vmatprep.subr.mxu0 0.0
        %5311 = vmatpush1.msra.mxu0 %v5284
        %5312 = vmatprep.subr.mxu0 0.0
        %5313 = vmatpush1.msra.mxu0 %v5285
        %5314 = vmatprep.subr.mxu0 0.0
        %5315 = vmatpush1.msra.mxu0 %v5286
        %5316 = vmatprep.subr.mxu0 0.0
        %5317 = vmatpush1.msra.mxu0 %v5287
        %5318 = vmatprep.subr.mxu0 0.0
        %5319 = vmatpush1.msra.mxu0 %v5288
        %5320 = vmatprep.subr.mxu0 0.0
        %5321 = vmatpush1.msra.mxu0 %v5289
        %5322 = vmatprep.subr.mxu0 0.0
        %5323 = vmatpush1.msra.mxu0 0.0
        %5324 = vmatprep.subr.mxu0 0.0
        %5325 = vmatpush1.msra.mxu0 0.0
        %5326 = vmatprep.subr.mxu0 0.0
        %5327 = vmatpush1.msra.mxu0 0.0
        %5328 = vmatprep.subr.mxu0 0.0
        %5329 = vmatpush1.msra.mxu0 0.0
        %5330 = vmatprep.subr.mxu0 0.0
        %5331 = vmatpush1.msra.mxu0 0.0
        %5332 = vmatprep.subr.mxu0 0.0
        %5333 = vmatpush1.msra.mxu0 0.0
        %5334 = vmatprep.subr.mxu0 0.0
        %5335 = vmatpush1.msra.mxu0 0.0
        %5336 = vmatprep.subr.mxu0 0.0
        %5337 = vmatpush1.msra.mxu0 0.0
        %5338 = vmatprep.subr.mxu0 0.0
        %5339 = vmatpush1.msra.mxu0 0.0
        %5340 = vmatprep.subr.mxu0 0.0
        %5341 = vmatpush1.msra.mxu0 0.0
        %5342 = vmatprep.subr.mxu0 0.0
        %5343 = vmatpush1.msra.mxu0 0.0
        %5344 = vmatprep.subr.mxu0 0.0
        %5345 = vmatpush1.msra.mxu0 0.0
        %5346 = vmatprep.subr.mxu0 0.0
        %5347 = vmatpush1.msra.mxu0 0.0
        %5348 = vmatprep.subr.mxu0 0.0
        %5349 = vmatpush1.msra.mxu0 0.0
        %5350 = vmatprep.subr.mxu0 0.0
        %5351 = vmatpush1.msra.mxu0 0.0
        %5352 = vmatprep.subr.mxu0 0.0
        %5353 = vmatpush1.msra.mxu0 0.0
        %5354 = vmatprep.mubr.f32.mxu0 0.0
        %5355 = vmatmul.mubr.f32.gmra.mrb[0].mxu0 %v5265
        %v5356 = vpop.f32.mrb[0].mxu0
        %v5357 = vadd.f32 0.0, %v5356
        %v5358 = vpop.f32.mrb[0].mxu0
        %5359 = vmatprep.mubr.f32.mxu0 0.0
        %5360 = vmatmul.mubr.f32.gmra.mrb[0].mxu0 %v5270
        %v5361 = vpop.f32.mrb[0].mxu0
        %v5362 = vadd.f32 0.0, %v5361
        %v5363 = vpop.f32.mrb[0].mxu0
        %5364 = vdwg.mxu0
        %v5365 = vadd.f32 %v5187, %v5357
        %v5366 = vadd.f32 %v5188, %v5362
        %s5367 = scalar_lea.vmem %s5, 64
        %v5368 = vld [vmem:[%s5367] sm:$0xff]
        %v5369 = vld [vmem:[%s5367 + $0x8] sm:$0xff]
        %v5371 = vsel %vm4662, %v5368, 0
        %v5374 = vsel %vm4662, %v5369, 0
        %5376 = vmatprep.subr.mxu0 0.0
        %5377 = vmatpush1.msra.mxu0 %v4658
        %5378 = vmatprep.subr.mxu0 0.0
        %5379 = vmatpush1.msra.mxu0 %v4659
        %5380 = vmatprep.subr.mxu0 0.0
        %5381 = vmatpush1.msra.mxu0 0.0
        %5382 = vmatprep.subr.mxu0 0.0
        %5383 = vmatpush1.msra.mxu0 0.0
        %5384 = vmatprep.subr.mxu0 0.0
        %5385 = vmatpush1.msra.mxu0 0.0
        %5386 = vmatprep.subr.mxu0 0.0
        %5387 = vmatpush1.msra.mxu0 0.0
        %5388 = vmatprep.subr.mxu0 0.0
        %5389 = vmatpush1.msra.mxu0 0.0
        %5390 = vmatprep.subr.mxu0 0.0
        %5391 = vmatpush1.msra.mxu0 0.0
        %5392 = vmatprep.subr.mxu0 0.0
        %5393 = vmatpush1.msra.mxu0 0.0
        %5394 = vmatprep.subr.mxu0 0.0
        %5395 = vmatpush1.msra.mxu0 0.0
        %5396 = vmatprep.subr.mxu0 0.0
        %5397 = vmatpush1.msra.mxu0 0.0
        %5398 = vmatprep.subr.mxu0 0.0
        %5399 = vmatpush1.msra.mxu0 0.0
        %5400 = vmatprep.subr.mxu0 0.0
        %5401 = vmatpush1.msra.mxu0 0.0
        %5402 = vmatprep.subr.mxu0 0.0
        %5403 = vmatpush1.msra.mxu0 0.0
        %5404 = vmatprep.subr.mxu0 0.0
        %5405 = vmatpush1.msra.mxu0 0.0
        %5406 = vmatprep.subr.mxu0 0.0
        %5407 = vmatpush1.msra.mxu0 0.0
        %5408 = vmatprep.subr.mxu0 0.0
        %5409 = vmatpush1.msra.mxu0 0.0
        %5410 = vmatprep.subr.mxu0 0.0
        %5411 = vmatpush1.msra.mxu0 0.0
        %5412 = vmatprep.subr.mxu0 0.0
        %5413 = vmatpush1.msra.mxu0 0.0
        %5414 = vmatprep.subr.mxu0 0.0
        %5415 = vmatpush1.msra.mxu0 0.0
        %5416 = vmatprep.subr.mxu0 0.0
        %5417 = vmatpush1.msra.mxu0 0.0
        %5418 = vmatprep.subr.mxu0 0.0
        %5419 = vmatpush1.msra.mxu0 0.0
        %5420 = vmatprep.subr.mxu0 0.0
        %5421 = vmatpush1.msra.mxu0 0.0
        %5422 = vmatprep.subr.mxu0 0.0
        %5423 = vmatpush1.msra.mxu0 0.0
        %5424 = vmatprep.subr.mxu0 0.0
        %5425 = vmatpush1.msra.mxu0 0.0
        %5426 = vmatprep.subr.mxu0 0.0
        %5427 = vmatpush1.msra.mxu0 0.0
        %5428 = vmatprep.subr.mxu0 0.0
        %5429 = vmatpush1.msra.mxu0 0.0
        %5430 = vmatprep.subr.mxu0 0.0
        %5431 = vmatpush1.msra.mxu0 0.0
        %5432 = vmatprep.subr.mxu0 0.0
        %5433 = vmatpush1.msra.mxu0 0.0
        %5434 = vmatprep.subr.mxu0 0.0
        %5435 = vmatpush1.msra.mxu0 0.0
        %5436 = vmatprep.subr.mxu0 0.0
        %5437 = vmatpush1.msra.mxu0 0.0
        %5438 = vmatprep.subr.mxu0 0.0
        %5439 = vmatpush1.msra.mxu0 0.0
        %5440 = vmatprep.mubr.f32.mxu0 0.0
        %5441 = vmatmul.mubr.f32.gmra.mrb[0].mxu0 %v5371
        %v5442 = vpop.f32.mrb[0].mxu0
        %v5443 = vadd.f32 0.0, %v5442
        %v5444 = vpop.f32.mrb[0].mxu0
        %5445 = vmatprep.mubr.f32.mxu0 0.0
        %5446 = vmatmul.mubr.f32.gmra.mrb[0].mxu0 %v5374
        %v5447 = vpop.f32.mrb[0].mxu0
        %v5448 = vadd.f32 0.0, %v5447
        %v5449 = vpop.f32.mrb[0].mxu0
        %5450 = vdwg.mxu0
        %s5451 = scalar_lea.vmem [#allocation7], 512
        %v5452 = vld [vmem:[%s5451] sm:$0xff]
        %v5453 = vld [vmem:[%s5451 + $0x8] sm:$0xff]
        %v5454 = vld [vmem:[%s5451 + $0x10] sm:$0xff]
        %v5455 = vld [vmem:[%s5451 + $0x18] sm:$0xff]
        %v5456 = vld [vmem:[%s5451 + $0x20] sm:$0xff]
        %v5457 = vld [vmem:[%s5451 + $0x28] sm:$0xff]
        %v5458 = vld [vmem:[%s5451 + $0x30] sm:$0xff]
        %v5459 = vld [vmem:[%s5451 + $0x38] sm:$0xff]
        %v5460 = vld [vmem:[%s5451 + $0x40] sm:$0xff]
        %v5461 = vld [vmem:[%s5451 + $0x48] sm:$0xff]
        %v5462 = vld [vmem:[%s5451 + $0x50] sm:$0xff]
        %v5463 = vld [vmem:[%s5451 + $0x58] sm:$0xff]
        %v5464 = vld [vmem:[%s5451 + $0x60] sm:$0xff]
        %v5465 = vld [vmem:[%s5451 + $0x68] sm:$0xff]
        %v5466 = vld [vmem:[%s5451 + $0x70] sm:$0xff]
        %v5467 = vld [vmem:[%s5451 + $0x78] sm:$0xff]
        %5468 = vmatprep.subr.mxu0 0.0
        %5469 = vmatpush1.msra.mxu0 %v5452
        %5470 = vmatprep.subr.mxu0 0.0
        %5471 = vmatpush1.msra.mxu0 %v5453
        %5472 = vmatprep.subr.mxu0 0.0
        %5473 = vmatpush1.msra.mxu0 %v5454
        %5474 = vmatprep.subr.mxu0 0.0
        %5475 = vmatpush1.msra.mxu0 %v5455
        %5476 = vmatprep.subr.mxu0 0.0
        %5477 = vmatpush1.msra.mxu0 %v5456
        %5478 = vmatprep.subr.mxu0 0.0
        %5479 = vmatpush1.msra.mxu0 %v5457
        %5480 = vmatprep.subr.mxu0 0.0
        %5481 = vmatpush1.msra.mxu0 %v5458
        %5482 = vmatprep.subr.mxu0 0.0
        %5483 = vmatpush1.msra.mxu0 %v5459
        %5484 = vmatprep.subr.mxu0 0.0
        %5485 = vmatpush1.msra.mxu0 %v5460
        %5486 = vmatprep.subr.mxu0 0.0
        %5487 = vmatpush1.msra.mxu0 %v5461
        %5488 = vmatprep.subr.mxu0 0.0
        %5489 = vmatpush1.msra.mxu0 %v5462
        %5490 = vmatprep.subr.mxu0 0.0
        %5491 = vmatpush1.msra.mxu0 %v5463
        %5492 = vmatprep.subr.mxu0 0.0
        %5493 = vmatpush1.msra.mxu0 %v5464
        %5494 = vmatprep.subr.mxu0 0.0
        %5495 = vmatpush1.msra.mxu0 %v5465
        %5496 = vmatprep.subr.mxu0 0.0
        %5497 = vmatpush1.msra.mxu0 %v5466
        %5498 = vmatprep.subr.mxu0 0.0
        %5499 = vmatpush1.msra.mxu0 %v5467
        %5500 = vmatprep.subr.mxu0 0.0
        %5501 = vmatpush1.msra.mxu0 0.0
        %5502 = vmatprep.subr.mxu0 0.0
        %5503 = vmatpush1.msra.mxu0 0.0
        %5504 = vmatprep.subr.mxu0 0.0
        %5505 = vmatpush1.msra.mxu0 0.0
        %5506 = vmatprep.subr.mxu0 0.0
        %5507 = vmatpush1.msra.mxu0 0.0
        %5508 = vmatprep.subr.mxu0 0.0
        %5509 = vmatpush1.msra.mxu0 0.0
        %5510 = vmatprep.subr.mxu0 0.0
        %5511 = vmatpush1.msra.mxu0 0.0
        %5512 = vmatprep.subr.mxu0 0.0
        %5513 = vmatpush1.msra.mxu0 0.0
        %5514 = vmatprep.subr.mxu0 0.0
        %5515 = vmatpush1.msra.mxu0 0.0
        %5516 = vmatprep.subr.mxu0 0.0
        %5517 = vmatpush1.msra.mxu0 0.0
        %5518 = vmatprep.subr.mxu0 0.0
        %5519 = vmatpush1.msra.mxu0 0.0
        %5520 = vmatprep.subr.mxu0 0.0
        %5521 = vmatpush1.msra.mxu0 0.0
        %5522 = vmatprep.subr.mxu0 0.0
        %5523 = vmatpush1.msra.mxu0 0.0
        %5524 = vmatprep.subr.mxu0 0.0
        %5525 = vmatpush1.msra.mxu0 0.0
        %5526 = vmatprep.subr.mxu0 0.0
        %5527 = vmatpush1.msra.mxu0 0.0
        %5528 = vmatprep.subr.mxu0 0.0
        %5529 = vmatpush1.msra.mxu0 0.0
        %5530 = vmatprep.subr.mxu0 0.0
        %5531 = vmatpush1.msra.mxu0 0.0
        %5532 = vmatprep.mubr.f32.mxu0 0.0
        %5533 = vmatmul.mubr.f32.gmra.mrb[0].mxu0 %v5443
        %v5534 = vpop.f32.mrb[0].mxu0
        %v5535 = vadd.f32 0.0, %v5534
        %v5536 = vpop.f32.mrb[0].mxu0
        %5537 = vmatprep.mubr.f32.mxu0 0.0
        %5538 = vmatmul.mubr.f32.gmra.mrb[0].mxu0 %v5448
        %v5539 = vpop.f32.mrb[0].mxu0
        %v5540 = vadd.f32 0.0, %v5539
        %v5541 = vpop.f32.mrb[0].mxu0
        %5542 = vdwg.mxu0
        %v5543 = vadd.f32 %v5365, %v5535
        %v5544 = vadd.f32 %v5366, %v5540
        %s5545 = scalar_lea.vmem %s5, 80
        %v5546 = vld [vmem:[%s5545] sm:$0xff]
        %v5547 = vld [vmem:[%s5545 + $0x8] sm:$0xff]
        %v5549 = vsel %vm4662, %v5546, 0
        %v5552 = vsel %vm4662, %v5547, 0
        %5554 = vmatprep.subr.mxu0 0.0
        %5555 = vmatpush1.msra.mxu0 %v4658
        %5556 = vmatprep.subr.mxu0 0.0
        %5557 = vmatpush1.msra.mxu0 %v4659
        %5558 = vmatprep.subr.mxu0 0.0
        %5559 = vmatpush1.msra.mxu0 0.0
        %5560 = vmatprep.subr.mxu0 0.0
        %5561 = vmatpush1.msra.mxu0 0.0
        %5562 = vmatprep.subr.mxu0 0.0
        %5563 = vmatpush1.msra.mxu0 0.0
        %5564 = vmatprep.subr.mxu0 0.0
        %5565 = vmatpush1.msra.mxu0 0.0
        %5566 = vmatprep.subr.mxu0 0.0
        %5567 = vmatpush1.msra.mxu0 0.0
        %5568 = vmatprep.subr.mxu0 0.0
        %5569 = vmatpush1.msra.mxu0 0.0
        %5570 = vmatprep.subr.mxu0 0.0
        %5571 = vmatpush1.msra.mxu0 0.0
        %5572 = vmatprep.subr.mxu0 0.0
        %5573 = vmatpush1.msra.mxu0 0.0
        %5574 = vmatprep.subr.mxu0 0.0
        %5575 = vmatpush1.msra.mxu0 0.0
        %5576 = vmatprep.subr.mxu0 0.0
        %5577 = vmatpush1.msra.mxu0 0.0
        %5578 = vmatprep.subr.mxu0 0.0
        %5579 = vmatpush1.msra.mxu0 0.0
        %5580 = vmatprep.subr.mxu0 0.0
        %5581 = vmatpush1.msra.mxu0 0.0
        %5582 = vmatprep.subr.mxu0 0.0
        %5583 = vmatpush1.msra.mxu0 0.0
        %5584 = vmatprep.subr.mxu0 0.0
        %5585 = vmatpush1.msra.mxu0 0.0
        %5586 = vmatprep.subr.mxu0 0.0
        %5587 = vmatpush1.msra.mxu0 0.0
        %5588 = vmatprep.subr.mxu0 0.0
        %5589 = vmatpush1.msra.mxu0 0.0
        %5590 = vmatprep.subr.mxu0 0.0
        %5591 = vmatpush1.msra.mxu0 0.0
        %5592 = vmatprep.subr.mxu0 0.0
        %5593 = vmatpush1.msra.mxu0 0.0
        %5594 = vmatprep.subr.mxu0 0.0
        %5595 = vmatpush1.msra.mxu0 0.0
        %5596 = vmatprep.subr.mxu0 0.0
        %5597 = vmatpush1.msra.mxu0 0.0
        %5598 = vmatprep.subr.mxu0 0.0
        %5599 = vmatpush1.msra.mxu0 0.0
        %5600 = vmatprep.subr.mxu0 0.0
        %5601 = vmatpush1.msra.mxu0 0.0
        %5602 = vmatprep.subr.mxu0 0.0
        %5603 = vmatpush1.msra.mxu0 0.0
        %5604 = vmatprep.subr.mxu0 0.0
        %5605 = vmatpush1.msra.mxu0 0.0
        %5606 = vmatprep.subr.mxu0 0.0
        %5607 = vmatpush1.msra.mxu0 0.0
        %5608 = vmatprep.subr.mxu0 0.0
        %5609 = vmatpush1.msra.mxu0 0.0
        %5610 = vmatprep.subr.mxu0 0.0
        %5611 = vmatpush1.msra.mxu0 0.0
        %5612 = vmatprep.subr.mxu0 0.0
        %5613 = vmatpush1.msra.mxu0 0.0
        %5614 = vmatprep.subr.mxu0 0.0
        %5615 = vmatpush1.msra.mxu0 0.0
        %5616 = vmatprep.subr.mxu0 0.0
        %5617 = vmatpush1.msra.mxu0 0.0
        %5618 = vmatprep.mubr.f32.mxu0 0.0
        %5619 = vmatmul.mubr.f32.gmra.mrb[0].mxu0 %v5549
        %v5620 = vpop.f32.mrb[0].mxu0
        %v5621 = vadd.f32 0.0, %v5620
        %v5622 = vpop.f32.mrb[0].mxu0
        %5623 = vmatprep.mubr.f32.mxu0 0.0
        %5624 = vmatmul.mubr.f32.gmra.mrb[0].mxu0 %v5552
        %v5625 = vpop.f32.mrb[0].mxu0
        %v5626 = vadd.f32 0.0, %v5625
        %v5627 = vpop.f32.mrb[0].mxu0
        %5628 = vdwg.mxu0
        %s5629 = scalar_lea.vmem [#allocation7], 640
        %v5630 = vld [vmem:[%s5629] sm:$0xff]
        %v5631 = vld [vmem:[%s5629 + $0x8] sm:$0xff]
        %v5632 = vld [vmem:[%s5629 + $0x10] sm:$0xff]
        %v5633 = vld [vmem:[%s5629 + $0x18] sm:$0xff]
        %v5634 = vld [vmem:[%s5629 + $0x20] sm:$0xff]
        %v5635 = vld [vmem:[%s5629 + $0x28] sm:$0xff]
        %v5636 = vld [vmem:[%s5629 + $0x30] sm:$0xff]
        %v5637 = vld [vmem:[%s5629 + $0x38] sm:$0xff]
        %v5638 = vld [vmem:[%s5629 + $0x40] sm:$0xff]
        %v5639 = vld [vmem:[%s5629 + $0x48] sm:$0xff]
        %v5640 = vld [vmem:[%s5629 + $0x50] sm:$0xff]
        %v5641 = vld [vmem:[%s5629 + $0x58] sm:$0xff]
        %v5642 = vld [vmem:[%s5629 + $0x60] sm:$0xff]
        %v5643 = vld [vmem:[%s5629 + $0x68] sm:$0xff]
        %v5644 = vld [vmem:[%s5629 + $0x70] sm:$0xff]
        %v5645 = vld [vmem:[%s5629 + $0x78] sm:$0xff]
        %5646 = vmatprep.subr.mxu0 0.0
        %5647 = vmatpush1.msra.mxu0 %v5630
        %5648 = vmatprep.subr.mxu0 0.0
        %5649 = vmatpush1.msra.mxu0 %v5631
        %5650 = vmatprep.subr.mxu0 0.0
        %5651 = vmatpush1.msra.mxu0 %v5632
        %5652 = vmatprep.subr.mxu0 0.0
        %5653 = vmatpush1.msra.mxu0 %v5633
        %5654 = vmatprep.subr.mxu0 0.0
        %5655 = vmatpush1.msra.mxu0 %v5634
        %5656 = vmatprep.subr.mxu0 0.0
        %5657 = vmatpush1.msra.mxu0 %v5635
        %5658 = vmatprep.subr.mxu0 0.0
        %5659 = vmatpush1.msra.mxu0 %v5636
        %5660 = vmatprep.subr.mxu0 0.0
        %5661 = vmatpush1.msra.mxu0 %v5637
        %5662 = vmatprep.subr.mxu0 0.0
        %5663 = vmatpush1.msra.mxu0 %v5638
        %5664 = vmatprep.subr.mxu0 0.0
        %5665 = vmatpush1.msra.mxu0 %v5639
        %5666 = vmatprep.subr.mxu0 0.0
        %5667 = vmatpush1.msra.mxu0 %v5640
        %5668 = vmatprep.subr.mxu0 0.0
        %5669 = vmatpush1.msra.mxu0 %v5641
        %5670 = vmatprep.subr.mxu0 0.0
        %5671 = vmatpush1.msra.mxu0 %v5642
        %5672 = vmatprep.subr.mxu0 0.0
        %5673 = vmatpush1.msra.mxu0 %v5643
        %5674 = vmatprep.subr.mxu0 0.0
        %5675 = vmatpush1.msra.mxu0 %v5644
        %5676 = vmatprep.subr.mxu0 0.0
        %5677 = vmatpush1.msra.mxu0 %v5645
        %5678 = vmatprep.subr.mxu0 0.0
        %5679 = vmatpush1.msra.mxu0 0.0
        %5680 = vmatprep.subr.mxu0 0.0
        %5681 = vmatpush1.msra.mxu0 0.0
        %5682 = vmatprep.subr.mxu0 0.0
        %5683 = vmatpush1.msra.mxu0 0.0
        %5684 = vmatprep.subr.mxu0 0.0
        %5685 = vmatpush1.msra.mxu0 0.0
        %5686 = vmatprep.subr.mxu0 0.0
        %5687 = vmatpush1.msra.mxu0 0.0
        %5688 = vmatprep.subr.mxu0 0.0
        %5689 = vmatpush1.msra.mxu0 0.0
        %5690 = vmatprep.subr.mxu0 0.0
        %5691 = vmatpush1.msra.mxu0 0.0
        %5692 = vmatprep.subr.mxu0 0.0
        %5693 = vmatpush1.msra.mxu0 0.0
        %5694 = vmatprep.subr.mxu0 0.0
        %5695 = vmatpush1.msra.mxu0 0.0
        %5696 = vmatprep.subr.mxu0 0.0
        %5697 = vmatpush1.msra.mxu0 0.0
        %5698 = vmatprep.subr.mxu0 0.0
        %5699 = vmatpush1.msra.mxu0 0.0
        %5700 = vmatprep.subr.mxu0 0.0
        %5701 = vmatpush1.msra.mxu0 0.0
        %5702 = vmatprep.subr.mxu0 0.0
        %5703 = vmatpush1.msra.mxu0 0.0
        %5704 = vmatprep.subr.mxu0 0.0
        %5705 = vmatpush1.msra.mxu0 0.0
        %5706 = vmatprep.subr.mxu0 0.0
        %5707 = vmatpush1.msra.mxu0 0.0
        %5708 = vmatprep.subr.mxu0 0.0
        %5709 = vmatpush1.msra.mxu0 0.0
        %5710 = vmatprep.mubr.f32.mxu0 0.0
        %5711 = vmatmul.mubr.f32.gmra.mrb[0].mxu0 %v5621
        %v5712 = vpop.f32.mrb[0].mxu0
        %v5713 = vadd.f32 0.0, %v5712
        %v5714 = vpop.f32.mrb[0].mxu0
        %5715 = vmatprep.mubr.f32.mxu0 0.0
        %5716 = vmatmul.mubr.f32.gmra.mrb[0].mxu0 %v5626
        %v5717 = vpop.f32.mrb[0].mxu0
        %v5718 = vadd.f32 0.0, %v5717
        %v5719 = vpop.f32.mrb[0].mxu0
        %5720 = vdwg.mxu0
        %v5721 = vadd.f32 %v5543, %v5713
        %v5722 = vadd.f32 %v5544, %v5718
        %s5723 = scalar_lea.vmem %s5, 96
        %v5724 = vld [vmem:[%s5723] sm:$0xff]
        %v5725 = vld [vmem:[%s5723 + $0x8] sm:$0xff]
        %v5727 = vsel %vm4662, %v5724, 0
        %v5730 = vsel %vm4662, %v5725, 0
        %5732 = vmatprep.subr.mxu0 0.0
        %5733 = vmatpush1.msra.mxu0 %v4658
        %5734 = vmatprep.subr.mxu0 0.0
        %5735 = vmatpush1.msra.mxu0 %v4659
        %5736 = vmatprep.subr.mxu0 0.0
        %5737 = vmatpush1.msra.mxu0 0.0
        %5738 = vmatprep.subr.mxu0 0.0
        %5739 = vmatpush1.msra.mxu0 0.0
        %5740 = vmatprep.subr.mxu0 0.0
        %5741 = vmatpush1.msra.mxu0 0.0
        %5742 = vmatprep.subr.mxu0 0.0
        %5743 = vmatpush1.msra.mxu0 0.0
        %5744 = vmatprep.subr.mxu0 0.0
        %5745 = vmatpush1.msra.mxu0 0.0
        %5746 = vmatprep.subr.mxu0 0.0
        %5747 = vmatpush1.msra.mxu0 0.0
        %5748 = vmatprep.subr.mxu0 0.0
        %5749 = vmatpush1.msra.mxu0 0.0
        %5750 = vmatprep.subr.mxu0 0.0
        %5751 = vmatpush1.msra.mxu0 0.0
        %5752 = vmatprep.subr.mxu0 0.0
        %5753 = vmatpush1.msra.mxu0 0.0
        %5754 = vmatprep.subr.mxu0 0.0
        %5755 = vmatpush1.msra.mxu0 0.0
        %5756 = vmatprep.subr.mxu0 0.0
        %5757 = vmatpush1.msra.mxu0 0.0
        %5758 = vmatprep.subr.mxu0 0.0
        %5759 = vmatpush1.msra.mxu0 0.0
        %5760 = vmatprep.subr.mxu0 0.0
        %5761 = vmatpush1.msra.mxu0 0.0
        %5762 = vmatprep.subr.mxu0 0.0
        %5763 = vmatpush1.msra.mxu0 0.0
        %5764 = vmatprep.subr.mxu0 0.0
        %5765 = vmatpush1.msra.mxu0 0.0
        %5766 = vmatprep.subr.mxu0 0.0
        %5767 = vmatpush1.msra.mxu0 0.0
        %5768 = vmatprep.subr.mxu0 0.0
        %5769 = vmatpush1.msra.mxu0 0.0
        %5770 = vmatprep.subr.mxu0 0.0
        %5771 = vmatpush1.msra.mxu0 0.0
        %5772 = vmatprep.subr.mxu0 0.0
        %5773 = vmatpush1.msra.mxu0 0.0
        %5774 = vmatprep.subr.mxu0 0.0
        %5775 = vmatpush1.msra.mxu0 0.0
        %5776 = vmatprep.subr.mxu0 0.0
        %5777 = vmatpush1.msra.mxu0 0.0
        %5778 = vmatprep.subr.mxu0 0.0
        %5779 = vmatpush1.msra.mxu0 0.0
        %5780 = vmatprep.subr.mxu0 0.0
        %5781 = vmatpush1.msra.mxu0 0.0
        %5782 = vmatprep.subr.mxu0 0.0
        %5783 = vmatpush1.msra.mxu0 0.0
        %5784 = vmatprep.subr.mxu0 0.0
        %5785 = vmatpush1.msra.mxu0 0.0
        %5786 = vmatprep.subr.mxu0 0.0
        %5787 = vmatpush1.msra.mxu0 0.0
        %5788 = vmatprep.subr.mxu0 0.0
        %5789 = vmatpush1.msra.mxu0 0.0
        %5790 = vmatprep.subr.mxu0 0.0
        %5791 = vmatpush1.msra.mxu0 0.0
        %5792 = vmatprep.subr.mxu0 0.0
        %5793 = vmatpush1.msra.mxu0 0.0
        %5794 = vmatprep.subr.mxu0 0.0
        %5795 = vmatpush1.msra.mxu0 0.0
        %5796 = vmatprep.mubr.f32.mxu0 0.0
        %5797 = vmatmul.mubr.f32.gmra.mrb[0].mxu0 %v5727
        %v5798 = vpop.f32.mrb[0].mxu0
        %v5799 = vadd.f32 0.0, %v5798
        %v5800 = vpop.f32.mrb[0].mxu0
        %5801 = vmatprep.mubr.f32.mxu0 0.0
        %5802 = vmatmul.mubr.f32.gmra.mrb[0].mxu0 %v5730
        %v5803 = vpop.f32.mrb[0].mxu0
        %v5804 = vadd.f32 0.0, %v5803
        %v5805 = vpop.f32.mrb[0].mxu0
        %5806 = vdwg.mxu0
        %s5807 = scalar_lea.vmem [#allocation7], 768
        %v5808 = vld [vmem:[%s5807] sm:$0xff]
        %v5809 = vld [vmem:[%s5807 + $0x8] sm:$0xff]
        %v5810 = vld [vmem:[%s5807 + $0x10] sm:$0xff]
        %v5811 = vld [vmem:[%s5807 + $0x18] sm:$0xff]
        %v5812 = vld [vmem:[%s5807 + $0x20] sm:$0xff]
        %v5813 = vld [vmem:[%s5807 + $0x28] sm:$0xff]
        %v5814 = vld [vmem:[%s5807 + $0x30] sm:$0xff]
        %v5815 = vld [vmem:[%s5807 + $0x38] sm:$0xff]
        %v5816 = vld [vmem:[%s5807 + $0x40] sm:$0xff]
        %v5817 = vld [vmem:[%s5807 + $0x48] sm:$0xff]
        %v5818 = vld [vmem:[%s5807 + $0x50] sm:$0xff]
        %v5819 = vld [vmem:[%s5807 + $0x58] sm:$0xff]
        %v5820 = vld [vmem:[%s5807 + $0x60] sm:$0xff]
        %v5821 = vld [vmem:[%s5807 + $0x68] sm:$0xff]
        %v5822 = vld [vmem:[%s5807 + $0x70] sm:$0xff]
        %v5823 = vld [vmem:[%s5807 + $0x78] sm:$0xff]
        %5824 = vmatprep.subr.mxu0 0.0
        %5825 = vmatpush1.msra.mxu0 %v5808
        %5826 = vmatprep.subr.mxu0 0.0
        %5827 = vmatpush1.msra.mxu0 %v5809
        %5828 = vmatprep.subr.mxu0 0.0
        %5829 = vmatpush1.msra.mxu0 %v5810
        %5830 = vmatprep.subr.mxu0 0.0
        %5831 = vmatpush1.msra.mxu0 %v5811
        %5832 = vmatprep.subr.mxu0 0.0
        %5833 = vmatpush1.msra.mxu0 %v5812
        %5834 = vmatprep.subr.mxu0 0.0
        %5835 = vmatpush1.msra.mxu0 %v5813
        %5836 = vmatprep.subr.mxu0 0.0
        %5837 = vmatpush1.msra.mxu0 %v5814
        %5838 = vmatprep.subr.mxu0 0.0
        %5839 = vmatpush1.msra.mxu0 %v5815
        %5840 = vmatprep.subr.mxu0 0.0
        %5841 = vmatpush1.msra.mxu0 %v5816
        %5842 = vmatprep.subr.mxu0 0.0
        %5843 = vmatpush1.msra.mxu0 %v5817
        %5844 = vmatprep.subr.mxu0 0.0
        %5845 = vmatpush1.msra.mxu0 %v5818
        %5846 = vmatprep.subr.mxu0 0.0
        %5847 = vmatpush1.msra.mxu0 %v5819
        %5848 = vmatprep.subr.mxu0 0.0
        %5849 = vmatpush1.msra.mxu0 %v5820
        %5850 = vmatprep.subr.mxu0 0.0
        %5851 = vmatpush1.msra.mxu0 %v5821
        %5852 = vmatprep.subr.mxu0 0.0
        %5853 = vmatpush1.msra.mxu0 %v5822
        %5854 = vmatprep.subr.mxu0 0.0
        %5855 = vmatpush1.msra.mxu0 %v5823
        %5856 = vmatprep.subr.mxu0 0.0
        %5857 = vmatpush1.msra.mxu0 0.0
        %5858 = vmatprep.subr.mxu0 0.0
        %5859 = vmatpush1.msra.mxu0 0.0
        %5860 = vmatprep.subr.mxu0 0.0
        %5861 = vmatpush1.msra.mxu0 0.0
        %5862 = vmatprep.subr.mxu0 0.0
        %5863 = vmatpush1.msra.mxu0 0.0
        %5864 = vmatprep.subr.mxu0 0.0
        %5865 = vmatpush1.msra.mxu0 0.0
        %5866 = vmatprep.subr.mxu0 0.0
        %5867 = vmatpush1.msra.mxu0 0.0
        %5868 = vmatprep.subr.mxu0 0.0
        %5869 = vmatpush1.msra.mxu0 0.0
        %5870 = vmatprep.subr.mxu0 0.0
        %5871 = vmatpush1.msra.mxu0 0.0
        %5872 = vmatprep.subr.mxu0 0.0
        %5873 = vmatpush1.msra.mxu0 0.0
        %5874 = vmatprep.subr.mxu0 0.0
        %5875 = vmatpush1.msra.mxu0 0.0
        %5876 = vmatprep.subr.mxu0 0.0
        %5877 = vmatpush1.msra.mxu0 0.0
        %5878 = vmatprep.subr.mxu0 0.0
        %5879 = vmatpush1.msra.mxu0 0.0
        %5880 = vmatprep.subr.mxu0 0.0
        %5881 = vmatpush1.msra.mxu0 0.0
        %5882 = vmatprep.subr.mxu0 0.0
        %5883 = vmatpush1.msra.mxu0 0.0
        %5884 = vmatprep.subr.mxu0 0.0
        %5885 = vmatpush1.msra.mxu0 0.0
        %5886 = vmatprep.subr.mxu0 0.0
        %5887 = vmatpush1.msra.mxu0 0.0
        %5888 = vmatprep.mubr.f32.mxu0 0.0
        %5889 = vmatmul.mubr.f32.gmra.mrb[0].mxu0 %v5799
        %v5890 = vpop.f32.mrb[0].mxu0
        %v5891 = vadd.f32 0.0, %v5890
        %v5892 = vpop.f32.mrb[0].mxu0
        %5893 = vmatprep.mubr.f32.mxu0 0.0
        %5894 = vmatmul.mubr.f32.gmra.mrb[0].mxu0 %v5804
        %v5895 = vpop.f32.mrb[0].mxu0
        %v5896 = vadd.f32 0.0, %v5895
        %v5897 = vpop.f32.mrb[0].mxu0
        %5898 = vdwg.mxu0
        %v5899 = vadd.f32 %v5721, %v5891
        %v5900 = vadd.f32 %v5722, %v5896
        %s5901 = scalar_lea.vmem %s5, 112
        %v5902 = vld [vmem:[%s5901] sm:$0xff]
        %v5903 = vld [vmem:[%s5901 + $0x8] sm:$0xff]
        %v5905 = vsel %vm4662, %v5902, 0
        %v5908 = vsel %vm4662, %v5903, 0
        %5910 = vmatprep.subr.mxu0 0.0
        %5911 = vmatpush1.msra.mxu0 %v4658
        %5912 = vmatprep.subr.mxu0 0.0
        %5913 = vmatpush1.msra.mxu0 %v4659
        %5914 = vmatprep.subr.mxu0 0.0
        %5915 = vmatpush1.msra.mxu0 0.0
        %5916 = vmatprep.subr.mxu0 0.0
        %5917 = vmatpush1.msra.mxu0 0.0
        %5918 = vmatprep.subr.mxu0 0.0
        %5919 = vmatpush1.msra.mxu0 0.0
        %5920 = vmatprep.subr.mxu0 0.0
        %5921 = vmatpush1.msra.mxu0 0.0
        %5922 = vmatprep.subr.mxu0 0.0
        %5923 = vmatpush1.msra.mxu0 0.0
        %5924 = vmatprep.subr.mxu0 0.0
        %5925 = vmatpush1.msra.mxu0 0.0
        %5926 = vmatprep.subr.mxu0 0.0
        %5927 = vmatpush1.msra.mxu0 0.0
        %5928 = vmatprep.subr.mxu0 0.0
        %5929 = vmatpush1.msra.mxu0 0.0
        %5930 = vmatprep.subr.mxu0 0.0
        %5931 = vmatpush1.msra.mxu0 0.0
        %5932 = vmatprep.subr.mxu0 0.0
        %5933 = vmatpush1.msra.mxu0 0.0
        %5934 = vmatprep.subr.mxu0 0.0
        %5935 = vmatpush1.msra.mxu0 0.0
        %5936 = vmatprep.subr.mxu0 0.0
        %5937 = vmatpush1.msra.mxu0 0.0
        %5938 = vmatprep.subr.mxu0 0.0
        %5939 = vmatpush1.msra.mxu0 0.0
        %5940 = vmatprep.subr.mxu0 0.0
        %5941 = vmatpush1.msra.mxu0 0.0
        %5942 = vmatprep.subr.mxu0 0.0
        %5943 = vmatpush1.msra.mxu0 0.0
        %5944 = vmatprep.subr.mxu0 0.0
        %5945 = vmatpush1.msra.mxu0 0.0
        %5946 = vmatprep.subr.mxu0 0.0
        %5947 = vmatpush1.msra.mxu0 0.0
        %5948 = vmatprep.subr.mxu0 0.0
        %5949 = vmatpush1.msra.mxu0 0.0
        %5950 = vmatprep.subr.mxu0 0.0
        %5951 = vmatpush1.msra.mxu0 0.0
        %5952 = vmatprep.subr.mxu0 0.0
        %5953 = vmatpush1.msra.mxu0 0.0
        %5954 = vmatprep.subr.mxu0 0.0
        %5955 = vmatpush1.msra.mxu0 0.0
        %5956 = vmatprep.subr.mxu0 0.0
        %5957 = vmatpush1.msra.mxu0 0.0
        %5958 = vmatprep.subr.mxu0 0.0
        %5959 = vmatpush1.msra.mxu0 0.0
        %5960 = vmatprep.subr.mxu0 0.0
        %5961 = vmatpush1.msra.mxu0 0.0
        %5962 = vmatprep.subr.mxu0 0.0
        %5963 = vmatpush1.msra.mxu0 0.0
        %5964 = vmatprep.subr.mxu0 0.0
        %5965 = vmatpush1.msra.mxu0 0.0
        %5966 = vmatprep.subr.mxu0 0.0
        %5967 = vmatpush1.msra.mxu0 0.0
        %5968 = vmatprep.subr.mxu0 0.0
        %5969 = vmatpush1.msra.mxu0 0.0
        %5970 = vmatprep.subr.mxu0 0.0
        %5971 = vmatpush1.msra.mxu0 0.0
        %5972 = vmatprep.subr.mxu0 0.0
        %5973 = vmatpush1.msra.mxu0 0.0
        %5974 = vmatprep.mubr.f32.mxu0 0.0
        %5975 = vmatmul.mubr.f32.gmra.mrb[0].mxu0 %v5905
        %v5976 = vpop.f32.mrb[0].mxu0
        %v5977 = vadd.f32 0.0, %v5976
        %v5978 = vpop.f32.mrb[0].mxu0
        %5979 = vmatprep.mubr.f32.mxu0 0.0
        %5980 = vmatmul.mubr.f32.gmra.mrb[0].mxu0 %v5908
        %v5981 = vpop.f32.mrb[0].mxu0
        %v5982 = vadd.f32 0.0, %v5981
        %v5983 = vpop.f32.mrb[0].mxu0
        %5984 = vdwg.mxu0
        %s5985 = scalar_lea.vmem [#allocation7], 896
        %v5986 = vld [vmem:[%s5985] sm:$0xff]
        %v5987 = vld [vmem:[%s5985 + $0x8] sm:$0xff]
        %v5988 = vld [vmem:[%s5985 + $0x10] sm:$0xff]
        %v5989 = vld [vmem:[%s5985 + $0x18] sm:$0xff]
        %v5990 = vld [vmem:[%s5985 + $0x20] sm:$0xff]
        %v5991 = vld [vmem:[%s5985 + $0x28] sm:$0xff]
        %v5992 = vld [vmem:[%s5985 + $0x30] sm:$0xff]
        %v5993 = vld [vmem:[%s5985 + $0x38] sm:$0xff]
        %v5994 = vld [vmem:[%s5985 + $0x40] sm:$0xff]
        %v5995 = vld [vmem:[%s5985 + $0x48] sm:$0xff]
        %v5996 = vld [vmem:[%s5985 + $0x50] sm:$0xff]
        %v5997 = vld [vmem:[%s5985 + $0x58] sm:$0xff]
        %v5998 = vld [vmem:[%s5985 + $0x60] sm:$0xff]
        %v5999 = vld [vmem:[%s5985 + $0x68] sm:$0xff]
        %v6000 = vld [vmem:[%s5985 + $0x70] sm:$0xff]
        %v6001 = vld [vmem:[%s5985 + $0x78] sm:$0xff]
        %6002 = vmatprep.subr.mxu0 0.0
        %6003 = vmatpush1.msra.mxu0 %v5986
        %6004 = vmatprep.subr.mxu0 0.0
        %6005 = vmatpush1.msra.mxu0 %v5987
        %6006 = vmatprep.subr.mxu0 0.0
        %6007 = vmatpush1.msra.mxu0 %v5988
        %6008 = vmatprep.subr.mxu0 0.0
        %6009 = vmatpush1.msra.mxu0 %v5989
        %6010 = vmatprep.subr.mxu0 0.0
        %6011 = vmatpush1.msra.mxu0 %v5990
        %6012 = vmatprep.subr.mxu0 0.0
        %6013 = vmatpush1.msra.mxu0 %v5991
        %6014 = vmatprep.subr.mxu0 0.0
        %6015 = vmatpush1.msra.mxu0 %v5992
        %6016 = vmatprep.subr.mxu0 0.0
        %6017 = vmatpush1.msra.mxu0 %v5993
        %6018 = vmatprep.subr.mxu0 0.0
        %6019 = vmatpush1.msra.mxu0 %v5994
        %6020 = vmatprep.subr.mxu0 0.0
        %6021 = vmatpush1.msra.mxu0 %v5995
        %6022 = vmatprep.subr.mxu0 0.0
        %6023 = vmatpush1.msra.mxu0 %v5996
        %6024 = vmatprep.subr.mxu0 0.0
        %6025 = vmatpush1.msra.mxu0 %v5997
        %6026 = vmatprep.subr.mxu0 0.0
        %6027 = vmatpush1.msra.mxu0 %v5998
        %6028 = vmatprep.subr.mxu0 0.0
        %6029 = vmatpush1.msra.mxu0 %v5999
        %6030 = vmatprep.subr.mxu0 0.0
        %6031 = vmatpush1.msra.mxu0 %v6000
        %6032 = vmatprep.subr.mxu0 0.0
        %6033 = vmatpush1.msra.mxu0 %v6001
        %6034 = vmatprep.subr.mxu0 0.0
        %6035 = vmatpush1.msra.mxu0 0.0
        %6036 = vmatprep.subr.mxu0 0.0
        %6037 = vmatpush1.msra.mxu0 0.0
        %6038 = vmatprep.subr.mxu0 0.0
        %6039 = vmatpush1.msra.mxu0 0.0
        %6040 = vmatprep.subr.mxu0 0.0
        %6041 = vmatpush1.msra.mxu0 0.0
        %6042 = vmatprep.subr.mxu0 0.0
        %6043 = vmatpush1.msra.mxu0 0.0
        %6044 = vmatprep.subr.mxu0 0.0
        %6045 = vmatpush1.msra.mxu0 0.0
        %6046 = vmatprep.subr.mxu0 0.0
        %6047 = vmatpush1.msra.mxu0 0.0
        %6048 = vmatprep.subr.mxu0 0.0
        %6049 = vmatpush1.msra.mxu0 0.0
        %6050 = vmatprep.subr.mxu0 0.0
        %6051 = vmatpush1.msra.mxu0 0.0
        %6052 = vmatprep.subr.mxu0 0.0
        %6053 = vmatpush1.msra.mxu0 0.0
        %6054 = vmatprep.subr.mxu0 0.0
        %6055 = vmatpush1.msra.mxu0 0.0
        %6056 = vmatprep.subr.mxu0 0.0
        %6057 = vmatpush1.msra.mxu0 0.0
        %6058 = vmatprep.subr.mxu0 0.0
        %6059 = vmatpush1.msra.mxu0 0.0
        %6060 = vmatprep.subr.mxu0 0.0
        %6061 = vmatpush1.msra.mxu0 0.0
        %6062 = vmatprep.subr.mxu0 0.0
        %6063 = vmatpush1.msra.mxu0 0.0
        %6064 = vmatprep.subr.mxu0 0.0
        %6065 = vmatpush1.msra.mxu0 0.0
        %6066 = vmatprep.mubr.f32.mxu0 0.0
        %6067 = vmatmul.mubr.f32.gmra.mrb[0].mxu0 %v5977
        %v6068 = vpop.f32.mrb[0].mxu0
        %v6069 = vadd.f32 0.0, %v6068
        %v6070 = vpop.f32.mrb[0].mxu0
        %6071 = vmatprep.mubr.f32.mxu0 0.0
        %6072 = vmatmul.mubr.f32.gmra.mrb[0].mxu0 %v5982
        %v6073 = vpop.f32.mrb[0].mxu0
        %v6074 = vadd.f32 0.0, %v6073
        %v6075 = vpop.f32.mrb[0].mxu0
        %6076 = vdwg.mxu0
        %v6077 = vadd.f32 %v5899, %v6069
        %v6078 = vadd.f32 %v5900, %v6074
        %s6079 = scalar_lea.vmem %s5, 128
        %v6080 = vld [vmem:[%s6079] sm:$0xff]
        %v6081 = vld [vmem:[%s6079 + $0x8] sm:$0xff]
        %v6083 = vsel %vm4662, %v6080, 0
        %v6086 = vsel %vm4662, %v6081, 0
        %6088 = vmatprep.subr.mxu0 0.0
        %6089 = vmatpush1.msra.mxu0 %v4658
        %6090 = vmatprep.subr.mxu0 0.0
        %6091 = vmatpush1.msra.mxu0 %v4659
        %6092 = vmatprep.subr.mxu0 0.0
        %6093 = vmatpush1.msra.mxu0 0.0
        %6094 = vmatprep.subr.mxu0 0.0
        %6095 = vmatpush1.msra.mxu0 0.0
        %6096 = vmatprep.subr.mxu0 0.0
        %6097 = vmatpush1.msra.mxu0 0.0
        %6098 = vmatprep.subr.mxu0 0.0
        %6099 = vmatpush1.msra.mxu0 0.0
        %6100 = vmatprep.subr.mxu0 0.0
        %6101 = vmatpush1.msra.mxu0 0.0
        %6102 = vmatprep.subr.mxu0 0.0
        %6103 = vmatpush1.msra.mxu0 0.0
        %6104 = vmatprep.subr.mxu0 0.0
        %6105 = vmatpush1.msra.mxu0 0.0
        %6106 = vmatprep.subr.mxu0 0.0
        %6107 = vmatpush1.msra.mxu0 0.0
        %6108 = vmatprep.subr.mxu0 0.0
        %6109 = vmatpush1.msra.mxu0 0.0
        %6110 = vmatprep.subr.mxu0 0.0
        %6111 = vmatpush1.msra.mxu0 0.0
        %6112 = vmatprep.subr.mxu0 0.0
        %6113 = vmatpush1.msra.mxu0 0.0
        %6114 = vmatprep.subr.mxu0 0.0
        %6115 = vmatpush1.msra.mxu0 0.0
        %6116 = vmatprep.subr.mxu0 0.0
        %6117 = vmatpush1.msra.mxu0 0.0
        %6118 = vmatprep.subr.mxu0 0.0
        %6119 = vmatpush1.msra.mxu0 0.0
        %6120 = vmatprep.subr.mxu0 0.0
        %6121 = vmatpush1.msra.mxu0 0.0
        %6122 = vmatprep.subr.mxu0 0.0
        %6123 = vmatpush1.msra.mxu0 0.0
        %6124 = vmatprep.subr.mxu0 0.0
        %6125 = vmatpush1.msra.mxu0 0.0
        %6126 = vmatprep.subr.mxu0 0.0
        %6127 = vmatpush1.msra.mxu0 0.0
        %6128 = vmatprep.subr.mxu0 0.0
        %6129 = vmatpush1.msra.mxu0 0.0
        %6130 = vmatprep.subr.mxu0 0.0
        %6131 = vmatpush1.msra.mxu0 0.0
        %6132 = vmatprep.subr.mxu0 0.0
        %6133 = vmatpush1.msra.mxu0 0.0
        %6134 = vmatprep.subr.mxu0 0.0
        %6135 = vmatpush1.msra.mxu0 0.0
        %6136 = vmatprep.subr.mxu0 0.0
        %6137 = vmatpush1.msra.mxu0 0.0
        %6138 = vmatprep.subr.mxu0 0.0
        %6139 = vmatpush1.msra.mxu0 0.0
        %6140 = vmatprep.subr.mxu0 0.0
        %6141 = vmatpush1.msra.mxu0 0.0
        %6142 = vmatprep.subr.mxu0 0.0
        %6143 = vmatpush1.msra.mxu0 0.0
        %6144 = vmatprep.subr.mxu0 0.0
        %6145 = vmatpush1.msra.mxu0 0.0
        %6146 = vmatprep.subr.mxu0 0.0
        %6147 = vmatpush1.msra.mxu0 0.0
        %6148 = vmatprep.subr.mxu0 0.0
        %6149 = vmatpush1.msra.mxu0 0.0
        %6150 = vmatprep.subr.mxu0 0.0
        %6151 = vmatpush1.msra.mxu0 0.0
        %6152 = vmatprep.mubr.f32.mxu0 0.0
        %6153 = vmatmul.mubr.f32.gmra.mrb[0].mxu0 %v6083
        %v6154 = vpop.f32.mrb[0].mxu0
        %v6155 = vadd.f32 0.0, %v6154
        %v6156 = vpop.f32.mrb[0].mxu0
        %6157 = vmatprep.mubr.f32.mxu0 0.0
        %6158 = vmatmul.mubr.f32.gmra.mrb[0].mxu0 %v6086
        %v6159 = vpop.f32.mrb[0].mxu0
        %v6160 = vadd.f32 0.0, %v6159
        %v6161 = vpop.f32.mrb[0].mxu0
        %6162 = vdwg.mxu0
        %s6163 = scalar_lea.vmem [#allocation7], 1024
        %v6164 = vld [vmem:[%s6163] sm:$0xff]
        %v6165 = vld [vmem:[%s6163 + $0x8] sm:$0xff]
        %v6166 = vld [vmem:[%s6163 + $0x10] sm:$0xff]
        %v6167 = vld [vmem:[%s6163 + $0x18] sm:$0xff]
        %v6168 = vld [vmem:[%s6163 + $0x20] sm:$0xff]
        %v6169 = vld [vmem:[%s6163 + $0x28] sm:$0xff]
        %v6170 = vld [vmem:[%s6163 + $0x30] sm:$0xff]
        %v6171 = vld [vmem:[%s6163 + $0x38] sm:$0xff]
        %v6172 = vld [vmem:[%s6163 + $0x40] sm:$0xff]
        %v6173 = vld [vmem:[%s6163 + $0x48] sm:$0xff]
        %v6174 = vld [vmem:[%s6163 + $0x50] sm:$0xff]
        %v6175 = vld [vmem:[%s6163 + $0x58] sm:$0xff]
        %v6176 = vld [vmem:[%s6163 + $0x60] sm:$0xff]
        %v6177 = vld [vmem:[%s6163 + $0x68] sm:$0xff]
        %v6178 = vld [vmem:[%s6163 + $0x70] sm:$0xff]
        %v6179 = vld [vmem:[%s6163 + $0x78] sm:$0xff]
        %6180 = vmatprep.subr.mxu0 0.0
        %6181 = vmatpush1.msra.mxu0 %v6164
        %6182 = vmatprep.subr.mxu0 0.0
        %6183 = vmatpush1.msra.mxu0 %v6165
        %6184 = vmatprep.subr.mxu0 0.0
        %6185 = vmatpush1.msra.mxu0 %v6166
        %6186 = vmatprep.subr.mxu0 0.0
        %6187 = vmatpush1.msra.mxu0 %v6167
        %6188 = vmatprep.subr.mxu0 0.0
        %6189 = vmatpush1.msra.mxu0 %v6168
        %6190 = vmatprep.subr.mxu0 0.0
        %6191 = vmatpush1.msra.mxu0 %v6169
        %6192 = vmatprep.subr.mxu0 0.0
        %6193 = vmatpush1.msra.mxu0 %v6170
        %6194 = vmatprep.subr.mxu0 0.0
        %6195 = vmatpush1.msra.mxu0 %v6171
        %6196 = vmatprep.subr.mxu0 0.0
        %6197 = vmatpush1.msra.mxu0 %v6172
        %6198 = vmatprep.subr.mxu0 0.0
        %6199 = vmatpush1.msra.mxu0 %v6173
        %6200 = vmatprep.subr.mxu0 0.0
        %6201 = vmatpush1.msra.mxu0 %v6174
        %6202 = vmatprep.subr.mxu0 0.0
        %6203 = vmatpush1.msra.mxu0 %v6175
        %6204 = vmatprep.subr.mxu0 0.0
        %6205 = vmatpush1.msra.mxu0 %v6176
        %6206 = vmatprep.subr.mxu0 0.0
        %6207 = vmatpush1.msra.mxu0 %v6177
        %6208 = vmatprep.subr.mxu0 0.0
        %6209 = vmatpush1.msra.mxu0 %v6178
        %6210 = vmatprep.subr.mxu0 0.0
        %6211 = vmatpush1.msra.mxu0 %v6179
        %6212 = vmatprep.subr.mxu0 0.0
        %6213 = vmatpush1.msra.mxu0 0.0
        %6214 = vmatprep.subr.mxu0 0.0
        %6215 = vmatpush1.msra.mxu0 0.0
        %6216 = vmatprep.subr.mxu0 0.0
        %6217 = vmatpush1.msra.mxu0 0.0
        %6218 = vmatprep.subr.mxu0 0.0
        %6219 = vmatpush1.msra.mxu0 0.0
        %6220 = vmatprep.subr.mxu0 0.0
        %6221 = vmatpush1.msra.mxu0 0.0
        %6222 = vmatprep.subr.mxu0 0.0
        %6223 = vmatpush1.msra.mxu0 0.0
        %6224 = vmatprep.subr.mxu0 0.0
        %6225 = vmatpush1.msra.mxu0 0.0
        %6226 = vmatprep.subr.mxu0 0.0
        %6227 = vmatpush1.msra.mxu0 0.0
        %6228 = vmatprep.subr.mxu0 0.0
        %6229 = vmatpush1.msra.mxu0 0.0
        %6230 = vmatprep.subr.mxu0 0.0
        %6231 = vmatpush1.msra.mxu0 0.0
        %6232 = vmatprep.subr.mxu0 0.0
        %6233 = vmatpush1.msra.mxu0 0.0
        %6234 = vmatprep.subr.mxu0 0.0
        %6235 = vmatpush1.msra.mxu0 0.0
        %6236 = vmatprep.subr.mxu0 0.0
        %6237 = vmatpush1.msra.mxu0 0.0
        %6238 = vmatprep.subr.mxu0 0.0
        %6239 = vmatpush1.msra.mxu0 0.0
        %6240 = vmatprep.subr.mxu0 0.0
        %6241 = vmatpush1.msra.mxu0 0.0
        %6242 = vmatprep.subr.mxu0 0.0
        %6243 = vmatpush1.msra.mxu0 0.0
        %6244 = vmatprep.mubr.f32.mxu0 0.0
        %6245 = vmatmul.mubr.f32.gmra.mrb[0].mxu0 %v6155
        %v6246 = vpop.f32.mrb[0].mxu0
        %v6247 = vadd.f32 0.0, %v6246
        %v6248 = vpop.f32.mrb[0].mxu0
        %6249 = vmatprep.mubr.f32.mxu0 0.0
        %6250 = vmatmul.mubr.f32.gmra.mrb[0].mxu0 %v6160
        %v6251 = vpop.f32.mrb[0].mxu0
        %v6252 = vadd.f32 0.0, %v6251
        %v6253 = vpop.f32.mrb[0].mxu0
        %6254 = vdwg.mxu0
        %v6255 = vadd.f32 %v6077, %v6247
        %v6256 = vadd.f32 %v6078, %v6252
        %s6257 = scalar_lea.vmem %s9, 4
        %v6258 = vld [vmem:[%s6257] sm:$0x1]
        %v6260 = vlaneseq
        %v6261 = vshrl.u32 %v6260, 7
        %v6262 = vsub.s32 0, %v6261
        %v6263 = vrot.slane %v6258, %v6262
        %v6265 = vadd.f32 %v6255, %v6263
        %v6266 = vadd.f32 %v6256, %v6263
        %v6267 = vand.u32 2147483647, %v6265
        %v6268 = vand.u32 2147483647, %v6266
        %v6269 = vsub.f32 0.0, %v6267
        %v6270 = vsub.f32 0.0, %v6268
        %v6271 = vmul.f32 %v6269, 1.442695
        %v6272 = vpow.pop %v6271
        %v6273 = vmul.f32 %v6270, 1.442695
        %v6274 = vpow.pop %v6273
        %v6275 = vadd.f32 %v6272, 1.0
        %v6276 = vadd.f32 %v6274, 1.0
        %v6277 = vrcp.pop %v6275
        %v6278 = vrcp.pop %v6276
        %v6279 = vmul.f32 %v6265, %v6277
        %v6280 = vmul.f32 %v6266, %v6278
        %vm6281 = vcmp.ge.f32.partialorder %v6265, 0.0
        %vm6282 = vcmp.ge.f32.partialorder %v6266, 0.0
        %v6283 = vsel %vm6281, 1.0, %v6272
        %v6284 = vsel %vm6282, 1.0, %v6274
        %v6285 = vmul.f32 %v6279, %v6283
        %v6286 = vmul.f32 %v6280, %v6284
        %v6287 = vadd.f32 %v4538, %v6285
        %v6288 = vadd.f32 %v4539, %v6286
        %s6289 = scalar_lea.vmem [#allocation8], 256
        %v6290 = vld [vmem:[%s6289] sm:$0xff]
        %v6291 = vld [vmem:[%s6289 + $0x8] sm:$0xff]
        %v6292 = vld [vmem:[%s6289 + $0x10] sm:$0xff]
        %v6293 = vld [vmem:[%s6289 + $0x18] sm:$0xff]
        %v6294 = vld [vmem:[%s6289 + $0x20] sm:$0xff]
        %v6295 = vld [vmem:[%s6289 + $0x28] sm:$0xff]
        %v6296 = vld [vmem:[%s6289 + $0x30] sm:$0xff]
        %v6297 = vld [vmem:[%s6289 + $0x38] sm:$0xff]
        %v6298 = vld [vmem:[%s6289 + $0x40] sm:$0xff]
        %v6299 = vld [vmem:[%s6289 + $0x48] sm:$0xff]
        %v6300 = vld [vmem:[%s6289 + $0x50] sm:$0xff]
        %v6301 = vld [vmem:[%s6289 + $0x58] sm:$0xff]
        %v6302 = vld [vmem:[%s6289 + $0x60] sm:$0xff]
        %v6303 = vld [vmem:[%s6289 + $0x68] sm:$0xff]
        %v6304 = vld [vmem:[%s6289 + $0x70] sm:$0xff]
        %v6305 = vld [vmem:[%s6289 + $0x78] sm:$0xff]
        %s6306 = scalar_lea.vmem %s9, 5
        %v6307 = vld [vmem:[%s6306] sm:$0x1]
        %v6309 = vlaneseq
        %v6310 = vshrl.u32 %v6309, 7
        %v6311 = vsub.s32 0, %v6310
        %v6312 = vrot.slane %v6307, %v6311
        %6314 = vmatprep.subr.mxu0 0.0
        %6315 = vmatpush1.msra.mxu0 %v6290
        %6316 = vmatprep.subr.mxu0 0.0
        %6317 = vmatpush1.msra.mxu0 %v6291
        %6318 = vmatprep.subr.mxu0 0.0
        %6319 = vmatpush1.msra.mxu0 %v6292
        %6320 = vmatprep.subr.mxu0 0.0
        %6321 = vmatpush1.msra.mxu0 %v6293
        %6322 = vmatprep.subr.mxu0 0.0
        %6323 = vmatpush1.msra.mxu0 %v6294
        %6324 = vmatprep.subr.mxu0 0.0
        %6325 = vmatpush1.msra.mxu0 %v6295
        %6326 = vmatprep.subr.mxu0 0.0
        %6327 = vmatpush1.msra.mxu0 %v6296
        %6328 = vmatprep.subr.mxu0 0.0
        %6329 = vmatpush1.msra.mxu0 %v6297
        %6330 = vmatprep.subr.mxu0 0.0
        %6331 = vmatpush1.msra.mxu0 %v6298
        %6332 = vmatprep.subr.mxu0 0.0
        %6333 = vmatpush1.msra.mxu0 %v6299
        %6334 = vmatprep.subr.mxu0 0.0
        %6335 = vmatpush1.msra.mxu0 %v6300
        %6336 = vmatprep.subr.mxu0 0.0
        %6337 = vmatpush1.msra.mxu0 %v6301
        %6338 = vmatprep.subr.mxu0 0.0
        %6339 = vmatpush1.msra.mxu0 %v6302
        %6340 = vmatprep.subr.mxu0 0.0
        %6341 = vmatpush1.msra.mxu0 %v6303
        %6342 = vmatprep.subr.mxu0 0.0
        %6343 = vmatpush1.msra.mxu0 %v6304
        %6344 = vmatprep.subr.mxu0 0.0
        %6345 = vmatpush1.msra.mxu0 %v6305
        %6346 = vmatprep.subr.mxu0 0.0
        %6347 = vmatpush1.msra.mxu0 0.0
        %6348 = vmatprep.subr.mxu0 0.0
        %6349 = vmatpush1.msra.mxu0 0.0
        %6350 = vmatprep.subr.mxu0 0.0
        %6351 = vmatpush1.msra.mxu0 0.0
        %6352 = vmatprep.subr.mxu0 0.0
        %6353 = vmatpush1.msra.mxu0 0.0
        %6354 = vmatprep.subr.mxu0 0.0
        %6355 = vmatpush1.msra.mxu0 0.0
        %6356 = vmatprep.subr.mxu0 0.0
        %6357 = vmatpush1.msra.mxu0 0.0
        %6358 = vmatprep.subr.mxu0 0.0
        %6359 = vmatpush1.msra.mxu0 0.0
        %6360 = vmatprep.subr.mxu0 0.0
        %6361 = vmatpush1.msra.mxu0 0.0
        %6362 = vmatprep.subr.mxu0 0.0
        %6363 = vmatpush1.msra.mxu0 0.0
        %6364 = vmatprep.subr.mxu0 0.0
        %6365 = vmatpush1.msra.mxu0 0.0
        %6366 = vmatprep.subr.mxu0 0.0
        %6367 = vmatpush1.msra.mxu0 0.0
        %6368 = vmatprep.subr.mxu0 0.0
        %6369 = vmatpush1.msra.mxu0 0.0
        %6370 = vmatprep.subr.mxu0 0.0
        %6371 = vmatpush1.msra.mxu0 0.0
        %6372 = vmatprep.subr.mxu0 0.0
        %6373 = vmatpush1.msra.mxu0 0.0
        %6374 = vmatprep.subr.mxu0 0.0
        %6375 = vmatpush1.msra.mxu0 0.0
        %6376 = vmatprep.subr.mxu0 0.0
        %6377 = vmatpush1.msra.mxu0 0.0
        %6378 = vmatprep.mubr.f32.mxu0 0.0
        %6379 = vmatmul.mubr.f32.gmra.mrb[0].mxu0 %v6287
        %v6380 = vpop.f32.mrb[0].mxu0
        %v6381 = vadd.f32 %v6312, %v6380
        %v6382 = vpop.f32.mrb[0].mxu0
        %6383 = vmatprep.mubr.f32.mxu0 0.0
        %6384 = vmatmul.mubr.f32.gmra.mrb[0].mxu0 %v6288
        %v6385 = vpop.f32.mrb[0].mxu0
        %v6386 = vadd.f32 %v6312, %v6385
        %v6387 = vpop.f32.mrb[0].mxu0
        %6388 = vdwg.mxu0
        %v6389 = vand.u32 2147483647, %v6381
        %v6390 = vand.u32 2147483647, %v6386
        %v6391 = vsub.f32 0.0, %v6389
        %v6392 = vsub.f32 0.0, %v6390
        %v6393 = vmul.f32 %v6391, 1.442695
        %v6394 = vpow.pop %v6393
        %v6395 = vmul.f32 %v6392, 1.442695
        %v6396 = vpow.pop %v6395
        %v6397 = vadd.f32 %v6394, 1.0
        %v6398 = vadd.f32 %v6396, 1.0
        %v6399 = vrcp.pop %v6397
        %v6400 = vrcp.pop %v6398
        %v6401 = vmul.f32 %v6381, %v6399
        %v6402 = vmul.f32 %v6386, %v6400
        %vm6403 = vcmp.ge.f32.partialorder %v6381, 0.0
        %vm6404 = vcmp.ge.f32.partialorder %v6386, 0.0
        %v6405 = vsel %vm6403, 1.0, %v6394
        %v6406 = vsel %vm6404, 1.0, %v6396
        %v6407 = vmul.f32 %v6401, %v6405
        %v6408 = vmul.f32 %v6402, %v6406
        %s6409 = scalar_lea.vmem [#allocation8], 384
        %v6410 = vld [vmem:[%s6409] sm:$0xff]
        %v6411 = vld [vmem:[%s6409 + $0x8] sm:$0xff]
        %v6412 = vld [vmem:[%s6409 + $0x10] sm:$0xff]
        %v6413 = vld [vmem:[%s6409 + $0x18] sm:$0xff]
        %v6414 = vld [vmem:[%s6409 + $0x20] sm:$0xff]
        %v6415 = vld [vmem:[%s6409 + $0x28] sm:$0xff]
        %v6416 = vld [vmem:[%s6409 + $0x30] sm:$0xff]
        %v6417 = vld [vmem:[%s6409 + $0x38] sm:$0xff]
        %v6418 = vld [vmem:[%s6409 + $0x40] sm:$0xff]
        %v6419 = vld [vmem:[%s6409 + $0x48] sm:$0xff]
        %v6420 = vld [vmem:[%s6409 + $0x50] sm:$0xff]
        %v6421 = vld [vmem:[%s6409 + $0x58] sm:$0xff]
        %v6422 = vld [vmem:[%s6409 + $0x60] sm:$0xff]
        %v6423 = vld [vmem:[%s6409 + $0x68] sm:$0xff]
        %v6424 = vld [vmem:[%s6409 + $0x70] sm:$0xff]
        %v6425 = vld [vmem:[%s6409 + $0x78] sm:$0xff]
        %s6426 = scalar_lea.vmem %s9, 6
        %v6427 = vld [vmem:[%s6426] sm:$0x1]
        %v6429 = vlaneseq
        %v6430 = vshrl.u32 %v6429, 7
        %v6431 = vsub.s32 0, %v6430
        %v6432 = vrot.slane %v6427, %v6431
        %6434 = vmatprep.subr.mxu0 0.0
        %6435 = vmatpush1.msra.mxu0 %v6410
        %6436 = vmatprep.subr.mxu0 0.0
        %6437 = vmatpush1.msra.mxu0 %v6411
        %6438 = vmatprep.subr.mxu0 0.0
        %6439 = vmatpush1.msra.mxu0 %v6412
        %6440 = vmatprep.subr.mxu0 0.0
        %6441 = vmatpush1.msra.mxu0 %v6413
        %6442 = vmatprep.subr.mxu0 0.0
        %6443 = vmatpush1.msra.mxu0 %v6414
        %6444 = vmatprep.subr.mxu0 0.0
        %6445 = vmatpush1.msra.mxu0 %v6415
        %6446 = vmatprep.subr.mxu0 0.0
        %6447 = vmatpush1.msra.mxu0 %v6416
        %6448 = vmatprep.subr.mxu0 0.0
        %6449 = vmatpush1.msra.mxu0 %v6417
        %6450 = vmatprep.subr.mxu0 0.0
        %6451 = vmatpush1.msra.mxu0 %v6418
        %6452 = vmatprep.subr.mxu0 0.0
        %6453 = vmatpush1.msra.mxu0 %v6419
        %6454 = vmatprep.subr.mxu0 0.0
        %6455 = vmatpush1.msra.mxu0 %v6420
        %6456 = vmatprep.subr.mxu0 0.0
        %6457 = vmatpush1.msra.mxu0 %v6421
        %6458 = vmatprep.subr.mxu0 0.0
        %6459 = vmatpush1.msra.mxu0 %v6422
        %6460 = vmatprep.subr.mxu0 0.0
        %6461 = vmatpush1.msra.mxu0 %v6423
        %6462 = vmatprep.subr.mxu0 0.0
        %6463 = vmatpush1.msra.mxu0 %v6424
        %6464 = vmatprep.subr.mxu0 0.0
        %6465 = vmatpush1.msra.mxu0 %v6425
        %6466 = vmatprep.subr.mxu0 0.0
        %6467 = vmatpush1.msra.mxu0 0.0
        %6468 = vmatprep.subr.mxu0 0.0
        %6469 = vmatpush1.msra.mxu0 0.0
        %6470 = vmatprep.subr.mxu0 0.0
        %6471 = vmatpush1.msra.mxu0 0.0
        %6472 = vmatprep.subr.mxu0 0.0
        %6473 = vmatpush1.msra.mxu0 0.0
        %6474 = vmatprep.subr.mxu0 0.0
        %6475 = vmatpush1.msra.mxu0 0.0
        %6476 = vmatprep.subr.mxu0 0.0
        %6477 = vmatpush1.msra.mxu0 0.0
        %6478 = vmatprep.subr.mxu0 0.0
        %6479 = vmatpush1.msra.mxu0 0.0
        %6480 = vmatprep.subr.mxu0 0.0
        %6481 = vmatpush1.msra.mxu0 0.0
        %6482 = vmatprep.subr.mxu0 0.0
        %6483 = vmatpush1.msra.mxu0 0.0
        %6484 = vmatprep.subr.mxu0 0.0
        %6485 = vmatpush1.msra.mxu0 0.0
        %6486 = vmatprep.subr.mxu0 0.0
        %6487 = vmatpush1.msra.mxu0 0.0
        %6488 = vmatprep.subr.mxu0 0.0
        %6489 = vmatpush1.msra.mxu0 0.0
        %6490 = vmatprep.subr.mxu0 0.0
        %6491 = vmatpush1.msra.mxu0 0.0
        %6492 = vmatprep.subr.mxu0 0.0
        %6493 = vmatpush1.msra.mxu0 0.0
        %6494 = vmatprep.subr.mxu0 0.0
        %6495 = vmatpush1.msra.mxu0 0.0
        %6496 = vmatprep.subr.mxu0 0.0
        %6497 = vmatpush1.msra.mxu0 0.0
        %6498 = vmatprep.mubr.f32.mxu0 0.0
        %6499 = vmatmul.mubr.f32.gmra.mrb[0].mxu0 %v6407
        %v6500 = vpop.f32.mrb[0].mxu0
        %v6501 = vadd.f32 %v6432, %v6500
        %v6502 = vpop.f32.mrb[0].mxu0
        %6503 = vmatprep.mubr.f32.mxu0 0.0
        %6504 = vmatmul.mubr.f32.gmra.mrb[0].mxu0 %v6408
        %v6505 = vpop.f32.mrb[0].mxu0
        %v6506 = vadd.f32 %v6432, %v6505
        %v6507 = vpop.f32.mrb[0].mxu0
        %6508 = vdwg.mxu0
        %v6509 = vand.u32 2147483647, %v6501
        %v6510 = vand.u32 2147483647, %v6506
        %v6511 = vsub.f32 0.0, %v6509
        %v6512 = vsub.f32 0.0, %v6510
        %v6513 = vmul.f32 %v6511, 1.442695
        %v6514 = vpow.pop %v6513
        %v6515 = vmul.f32 %v6512, 1.442695
        %v6516 = vpow.pop %v6515
        %v6517 = vadd.f32 %v6514, 1.0
        %v6518 = vadd.f32 %v6516, 1.0
        %v6519 = vrcp.pop %v6517
        %v6520 = vrcp.pop %v6518
        %v6521 = vmul.f32 %v6501, %v6519
        %v6522 = vmul.f32 %v6506, %v6520
        %vm6523 = vcmp.ge.f32.partialorder %v6501, 0.0
        %vm6524 = vcmp.ge.f32.partialorder %v6506, 0.0
        %v6525 = vsel %vm6523, 1.0, %v6514
        %v6526 = vsel %vm6524, 1.0, %v6516
        %v6527 = vmul.f32 %v6521, %v6525
        %v6528 = vmul.f32 %v6522, %v6526
        %v6529 = vadd.f32 %v6527, 1.0
        %v6530 = vadd.f32 %v6528, 1.0
        %v6531 = vld [vmem:[%s7] sm:$0xff]
        %v6532 = vld [vmem:[%s7 + $0x8] sm:$0xff]
        %v6534 = vsel %vm4662, %v6531, 0
        %v6537 = vsel %vm4662, %v6532, 0
        %6539 = vmatprep.subr.mxu0 0.0
        %6540 = vmatpush1.msra.mxu0 %v6529
        %6541 = vmatprep.subr.mxu0 0.0
        %6542 = vmatpush1.msra.mxu0 %v6530
        %6543 = vmatprep.subr.mxu0 0.0
        %6544 = vmatpush1.msra.mxu0 0.0
        %6545 = vmatprep.subr.mxu0 0.0
        %6546 = vmatpush1.msra.mxu0 0.0
        %6547 = vmatprep.subr.mxu0 0.0
        %6548 = vmatpush1.msra.mxu0 0.0
        %6549 = vmatprep.subr.mxu0 0.0
        %6550 = vmatpush1.msra.mxu0 0.0
        %6551 = vmatprep.subr.mxu0 0.0
        %6552 = vmatpush1.msra.mxu0 0.0
        %6553 = vmatprep.subr.mxu0 0.0
        %6554 = vmatpush1.msra.mxu0 0.0
        %6555 = vmatprep.subr.mxu0 0.0
        %6556 = vmatpush1.msra.mxu0 0.0
        %6557 = vmatprep.subr.mxu0 0.0
        %6558 = vmatpush1.msra.mxu0 0.0
        %6559 = vmatprep.subr.mxu0 0.0
        %6560 = vmatpush1.msra.mxu0 0.0
        %6561 = vmatprep.subr.mxu0 0.0
        %6562 = vmatpush1.msra.mxu0 0.0
        %6563 = vmatprep.subr.mxu0 0.0
        %6564 = vmatpush1.msra.mxu0 0.0
        %6565 = vmatprep.subr.mxu0 0.0
        %6566 = vmatpush1.msra.mxu0 0.0
        %6567 = vmatprep.subr.mxu0 0.0
        %6568 = vmatpush1.msra.mxu0 0.0
        %6569 = vmatprep.subr.mxu0 0.0
        %6570 = vmatpush1.msra.mxu0 0.0
        %6571 = vmatprep.subr.mxu0 0.0
        %6572 = vmatpush1.msra.mxu0 0.0
        %6573 = vmatprep.subr.mxu0 0.0
        %6574 = vmatpush1.msra.mxu0 0.0
        %6575 = vmatprep.subr.mxu0 0.0
        %6576 = vmatpush1.msra.mxu0 0.0
        %6577 = vmatprep.subr.mxu0 0.0
        %6578 = vmatpush1.msra.mxu0 0.0
        %6579 = vmatprep.subr.mxu0 0.0
        %6580 = vmatpush1.msra.mxu0 0.0
        %6581 = vmatprep.subr.mxu0 0.0
        %6582 = vmatpush1.msra.mxu0 0.0
        %6583 = vmatprep.subr.mxu0 0.0
        %6584 = vmatpush1.msra.mxu0 0.0
        %6585 = vmatprep.subr.mxu0 0.0
        %6586 = vmatpush1.msra.mxu0 0.0
        %6587 = vmatprep.subr.mxu0 0.0
        %6588 = vmatpush1.msra.mxu0 0.0
        %6589 = vmatprep.subr.mxu0 0.0
        %6590 = vmatpush1.msra.mxu0 0.0
        %6591 = vmatprep.subr.mxu0 0.0
        %6592 = vmatpush1.msra.mxu0 0.0
        %6593 = vmatprep.subr.mxu0 0.0
        %6594 = vmatpush1.msra.mxu0 0.0
        %6595 = vmatprep.subr.mxu0 0.0
        %6596 = vmatpush1.msra.mxu0 0.0
        %6597 = vmatprep.subr.mxu0 0.0
        %6598 = vmatpush1.msra.mxu0 0.0
        %6599 = vmatprep.subr.mxu0 0.0
        %6600 = vmatpush1.msra.mxu0 0.0
        %6601 = vmatprep.subr.mxu0 0.0
        %6602 = vmatpush1.msra.mxu0 0.0
        %6603 = vmatprep.mubr.f32.mxu0 0.0
        %6604 = vmatmul.mubr.f32.gmra.mrb[0].mxu0 %v6534
        %v6605 = vpop.f32.mrb[0].mxu0
        %v6606 = vadd.f32 0.0, %v6605
        %v6607 = vpop.f32.mrb[0].mxu0
        %6608 = vmatprep.mubr.f32.mxu0 0.0
        %6609 = vmatmul.mubr.f32.gmra.mrb[0].mxu0 %v6537
        %v6610 = vpop.f32.mrb[0].mxu0
        %v6611 = vadd.f32 0.0, %v6610
        %v6612 = vpop.f32.mrb[0].mxu0
        %6613 = vdwg.mxu0
        %v6614 = vmax.f32 %v6529, %v6606
        %v6615 = vmax.f32 %v6530, %v6611
        %s6616 = scalar_lea.vmem %s7, 16
        %v6617 = vld [vmem:[%s6616] sm:$0xff]
        %v6618 = vld [vmem:[%s6616 + $0x8] sm:$0xff]
        %v6620 = vsel %vm4662, %v6617, 0
        %v6623 = vsel %vm4662, %v6618, 0
        %6625 = vmatprep.subr.mxu0 0.0
        %6626 = vmatpush1.msra.mxu0 %v6529
        %6627 = vmatprep.subr.mxu0 0.0
        %6628 = vmatpush1.msra.mxu0 %v6530
        %6629 = vmatprep.subr.mxu0 0.0
        %6630 = vmatpush1.msra.mxu0 0.0
        %6631 = vmatprep.subr.mxu0 0.0
        %6632 = vmatpush1.msra.mxu0 0.0
        %6633 = vmatprep.subr.mxu0 0.0
        %6634 = vmatpush1.msra.mxu0 0.0
        %6635 = vmatprep.subr.mxu0 0.0
        %6636 = vmatpush1.msra.mxu0 0.0
        %6637 = vmatprep.subr.mxu0 0.0
        %6638 = vmatpush1.msra.mxu0 0.0
        %6639 = vmatprep.subr.mxu0 0.0
        %6640 = vmatpush1.msra.mxu0 0.0
        %6641 = vmatprep.subr.mxu0 0.0
        %6642 = vmatpush1.msra.mxu0 0.0
        %6643 = vmatprep.subr.mxu0 0.0
        %6644 = vmatpush1.msra.mxu0 0.0
        %6645 = vmatprep.subr.mxu0 0.0
        %6646 = vmatpush1.msra.mxu0 0.0
        %6647 = vmatprep.subr.mxu0 0.0
        %6648 = vmatpush1.msra.mxu0 0.0
        %6649 = vmatprep.subr.mxu0 0.0
        %6650 = vmatpush1.msra.mxu0 0.0
        %6651 = vmatprep.subr.mxu0 0.0
        %6652 = vmatpush1.msra.mxu0 0.0
        %6653 = vmatprep.subr.mxu0 0.0
        %6654 = vmatpush1.msra.mxu0 0.0
        %6655 = vmatprep.subr.mxu0 0.0
        %6656 = vmatpush1.msra.mxu0 0.0
        %6657 = vmatprep.subr.mxu0 0.0
        %6658 = vmatpush1.msra.mxu0 0.0
        %6659 = vmatprep.subr.mxu0 0.0
        %6660 = vmatpush1.msra.mxu0 0.0
        %6661 = vmatprep.subr.mxu0 0.0
        %6662 = vmatpush1.msra.mxu0 0.0
        %6663 = vmatprep.subr.mxu0 0.0
        %6664 = vmatpush1.msra.mxu0 0.0
        %6665 = vmatprep.subr.mxu0 0.0
        %6666 = vmatpush1.msra.mxu0 0.0
        %6667 = vmatprep.subr.mxu0 0.0
        %6668 = vmatpush1.msra.mxu0 0.0
        %6669 = vmatprep.subr.mxu0 0.0
        %6670 = vmatpush1.msra.mxu0 0.0
        %6671 = vmatprep.subr.mxu0 0.0
        %6672 = vmatpush1.msra.mxu0 0.0
        %6673 = vmatprep.subr.mxu0 0.0
        %6674 = vmatpush1.msra.mxu0 0.0
        %6675 = vmatprep.subr.mxu0 0.0
        %6676 = vmatpush1.msra.mxu0 0.0
        %6677 = vmatprep.subr.mxu0 0.0
        %6678 = vmatpush1.msra.mxu0 0.0
        %6679 = vmatprep.subr.mxu0 0.0
        %6680 = vmatpush1.msra.mxu0 0.0
        %6681 = vmatprep.subr.mxu0 0.0
        %6682 = vmatpush1.msra.mxu0 0.0
        %6683 = vmatprep.subr.mxu0 0.0
        %6684 = vmatpush1.msra.mxu0 0.0
        %6685 = vmatprep.subr.mxu0 0.0
        %6686 = vmatpush1.msra.mxu0 0.0
        %6687 = vmatprep.subr.mxu0 0.0
        %6688 = vmatpush1.msra.mxu0 0.0
        %6689 = vmatprep.mubr.f32.mxu0 0.0
        %6690 = vmatmul.mubr.f32.gmra.mrb[0].mxu0 %v6620
        %v6691 = vpop.f32.mrb[0].mxu0
        %v6692 = vadd.f32 0.0, %v6691
        %v6693 = vpop.f32.mrb[0].mxu0
        %6694 = vmatprep.mubr.f32.mxu0 0.0
        %6695 = vmatmul.mubr.f32.gmra.mrb[0].mxu0 %v6623
        %v6696 = vpop.f32.mrb[0].mxu0
        %v6697 = vadd.f32 0.0, %v6696
        %v6698 = vpop.f32.mrb[0].mxu0
        %6699 = vdwg.mxu0
        %v6700 = vmax.f32 %v6614, %v6692
        %v6701 = vmax.f32 %v6615, %v6697
        %s6702 = scalar_lea.vmem %s7, 32
        %v6703 = vld [vmem:[%s6702] sm:$0xff]
        %v6704 = vld [vmem:[%s6702 + $0x8] sm:$0xff]
        %v6706 = vsel %vm4662, %v6703, 0
        %v6709 = vsel %vm4662, %v6704, 0
        %6711 = vmatprep.subr.mxu0 0.0
        %6712 = vmatpush1.msra.mxu0 %v6529
        %6713 = vmatprep.subr.mxu0 0.0
        %6714 = vmatpush1.msra.mxu0 %v6530
        %6715 = vmatprep.subr.mxu0 0.0
        %6716 = vmatpush1.msra.mxu0 0.0
        %6717 = vmatprep.subr.mxu0 0.0
        %6718 = vmatpush1.msra.mxu0 0.0
        %6719 = vmatprep.subr.mxu0 0.0
        %6720 = vmatpush1.msra.mxu0 0.0
        %6721 = vmatprep.subr.mxu0 0.0
        %6722 = vmatpush1.msra.mxu0 0.0
        %6723 = vmatprep.subr.mxu0 0.0
        %6724 = vmatpush1.msra.mxu0 0.0
        %6725 = vmatprep.subr.mxu0 0.0
        %6726 = vmatpush1.msra.mxu0 0.0
        %6727 = vmatprep.subr.mxu0 0.0
        %6728 = vmatpush1.msra.mxu0 0.0
        %6729 = vmatprep.subr.mxu0 0.0
        %6730 = vmatpush1.msra.mxu0 0.0
        %6731 = vmatprep.subr.mxu0 0.0
        %6732 = vmatpush1.msra.mxu0 0.0
        %6733 = vmatprep.subr.mxu0 0.0
        %6734 = vmatpush1.msra.mxu0 0.0
        %6735 = vmatprep.subr.mxu0 0.0
        %6736 = vmatpush1.msra.mxu0 0.0
        %6737 = vmatprep.subr.mxu0 0.0
        %6738 = vmatpush1.msra.mxu0 0.0
        %6739 = vmatprep.subr.mxu0 0.0
        %6740 = vmatpush1.msra.mxu0 0.0
        %6741 = vmatprep.subr.mxu0 0.0
        %6742 = vmatpush1.msra.mxu0 0.0
        %6743 = vmatprep.subr.mxu0 0.0
        %6744 = vmatpush1.msra.mxu0 0.0
        %6745 = vmatprep.subr.mxu0 0.0
        %6746 = vmatpush1.msra.mxu0 0.0
        %6747 = vmatprep.subr.mxu0 0.0
        %6748 = vmatpush1.msra.mxu0 0.0
        %6749 = vmatprep.subr.mxu0 0.0
        %6750 = vmatpush1.msra.mxu0 0.0
        %6751 = vmatprep.subr.mxu0 0.0
        %6752 = vmatpush1.msra.mxu0 0.0
        %6753 = vmatprep.subr.mxu0 0.0
        %6754 = vmatpush1.msra.mxu0 0.0
        %6755 = vmatprep.subr.mxu0 0.0
        %6756 = vmatpush1.msra.mxu0 0.0
        %6757 = vmatprep.subr.mxu0 0.0
        %6758 = vmatpush1.msra.mxu0 0.0
        %6759 = vmatprep.subr.mxu0 0.0
        %6760 = vmatpush1.msra.mxu0 0.0
        %6761 = vmatprep.subr.mxu0 0.0
        %6762 = vmatpush1.msra.mxu0 0.0
        %6763 = vmatprep.subr.mxu0 0.0
        %6764 = vmatpush1.msra.mxu0 0.0
        %6765 = vmatprep.subr.mxu0 0.0
        %6766 = vmatpush1.msra.mxu0 0.0
        %6767 = vmatprep.subr.mxu0 0.0
        %6768 = vmatpush1.msra.mxu0 0.0
        %6769 = vmatprep.subr.mxu0 0.0
        %6770 = vmatpush1.msra.mxu0 0.0
        %6771 = vmatprep.subr.mxu0 0.0
        %6772 = vmatpush1.msra.mxu0 0.0
        %6773 = vmatprep.subr.mxu0 0.0
        %6774 = vmatpush1.msra.mxu0 0.0
        %6775 = vmatprep.mubr.f32.mxu0 0.0
        %6776 = vmatmul.mubr.f32.gmra.mrb[0].mxu0 %v6706
        %v6777 = vpop.f32.mrb[0].mxu0
        %v6778 = vadd.f32 0.0, %v6777
        %v6779 = vpop.f32.mrb[0].mxu0
        %6780 = vmatprep.mubr.f32.mxu0 0.0
        %6781 = vmatmul.mubr.f32.gmra.mrb[0].mxu0 %v6709
        %v6782 = vpop.f32.mrb[0].mxu0
        %v6783 = vadd.f32 0.0, %v6782
        %v6784 = vpop.f32.mrb[0].mxu0
        %6785 = vdwg.mxu0
        %v6786 = vmax.f32 %v6700, %v6778
        %v6787 = vmax.f32 %v6701, %v6783
        %s6788 = scalar_lea.vmem %s7, 48
        %v6789 = vld [vmem:[%s6788] sm:$0xff]
        %v6790 = vld [vmem:[%s6788 + $0x8] sm:$0xff]
        %v6792 = vsel %vm4662, %v6789, 0
        %v6795 = vsel %vm4662, %v6790, 0
        %6797 = vmatprep.subr.mxu0 0.0
        %6798 = vmatpush1.msra.mxu0 %v6529
        %6799 = vmatprep.subr.mxu0 0.0
        %6800 = vmatpush1.msra.mxu0 %v6530
        %6801 = vmatprep.subr.mxu0 0.0
        %6802 = vmatpush1.msra.mxu0 0.0
        %6803 = vmatprep.subr.mxu0 0.0
        %6804 = vmatpush1.msra.mxu0 0.0
        %6805 = vmatprep.subr.mxu0 0.0
        %6806 = vmatpush1.msra.mxu0 0.0
        %6807 = vmatprep.subr.mxu0 0.0
        %6808 = vmatpush1.msra.mxu0 0.0
        %6809 = vmatprep.subr.mxu0 0.0
        %6810 = vmatpush1.msra.mxu0 0.0
        %6811 = vmatprep.subr.mxu0 0.0
        %6812 = vmatpush1.msra.mxu0 0.0
        %6813 = vmatprep.subr.mxu0 0.0
        %6814 = vmatpush1.msra.mxu0 0.0
        %6815 = vmatprep.subr.mxu0 0.0
        %6816 = vmatpush1.msra.mxu0 0.0
        %6817 = vmatprep.subr.mxu0 0.0
        %6818 = vmatpush1.msra.mxu0 0.0
        %6819 = vmatprep.subr.mxu0 0.0
        %6820 = vmatpush1.msra.mxu0 0.0
        %6821 = vmatprep.subr.mxu0 0.0
        %6822 = vmatpush1.msra.mxu0 0.0
        %6823 = vmatprep.subr.mxu0 0.0
        %6824 = vmatpush1.msra.mxu0 0.0
        %6825 = vmatprep.subr.mxu0 0.0
        %6826 = vmatpush1.msra.mxu0 0.0
        %6827 = vmatprep.subr.mxu0 0.0
        %6828 = vmatpush1.msra.mxu0 0.0
        %6829 = vmatprep.subr.mxu0 0.0
        %6830 = vmatpush1.msra.mxu0 0.0
        %6831 = vmatprep.subr.mxu0 0.0
        %6832 = vmatpush1.msra.mxu0 0.0
        %6833 = vmatprep.subr.mxu0 0.0
        %6834 = vmatpush1.msra.mxu0 0.0
        %6835 = vmatprep.subr.mxu0 0.0
        %6836 = vmatpush1.msra.mxu0 0.0
        %6837 = vmatprep.subr.mxu0 0.0
        %6838 = vmatpush1.msra.mxu0 0.0
        %6839 = vmatprep.subr.mxu0 0.0
        %6840 = vmatpush1.msra.mxu0 0.0
        %6841 = vmatprep.subr.mxu0 0.0
        %6842 = vmatpush1.msra.mxu0 0.0
        %6843 = vmatprep.subr.mxu0 0.0
        %6844 = vmatpush1.msra.mxu0 0.0
        %6845 = vmatprep.subr.mxu0 0.0
        %6846 = vmatpush1.msra.mxu0 0.0
        %6847 = vmatprep.subr.mxu0 0.0
        %6848 = vmatpush1.msra.mxu0 0.0
        %6849 = vmatprep.subr.mxu0 0.0
        %6850 = vmatpush1.msra.mxu0 0.0
        %6851 = vmatprep.subr.mxu0 0.0
        %6852 = vmatpush1.msra.mxu0 0.0
        %6853 = vmatprep.subr.mxu0 0.0
        %6854 = vmatpush1.msra.mxu0 0.0
        %6855 = vmatprep.subr.mxu0 0.0
        %6856 = vmatpush1.msra.mxu0 0.0
        %6857 = vmatprep.subr.mxu0 0.0
        %6858 = vmatpush1.msra.mxu0 0.0
        %6859 = vmatprep.subr.mxu0 0.0
        %6860 = vmatpush1.msra.mxu0 0.0
        %6861 = vmatprep.mubr.f32.mxu0 0.0
        %6862 = vmatmul.mubr.f32.gmra.mrb[0].mxu0 %v6792
        %v6863 = vpop.f32.mrb[0].mxu0
        %v6864 = vadd.f32 0.0, %v6863
        %v6865 = vpop.f32.mrb[0].mxu0
        %6866 = vmatprep.mubr.f32.mxu0 0.0
        %6867 = vmatmul.mubr.f32.gmra.mrb[0].mxu0 %v6795
        %v6868 = vpop.f32.mrb[0].mxu0
        %v6869 = vadd.f32 0.0, %v6868
        %v6870 = vpop.f32.mrb[0].mxu0
        %6871 = vdwg.mxu0
        %v6872 = vmax.f32 %v6786, %v6864
        %v6873 = vmax.f32 %v6787, %v6869
        %s6874 = scalar_lea.vmem %s7, 64
        %v6875 = vld [vmem:[%s6874] sm:$0xff]
        %v6876 = vld [vmem:[%s6874 + $0x8] sm:$0xff]
        %v6878 = vsel %vm4662, %v6875, 0
        %v6881 = vsel %vm4662, %v6876, 0
        %6883 = vmatprep.subr.mxu0 0.0
        %6884 = vmatpush1.msra.mxu0 %v6872
        %6885 = vmatprep.subr.mxu0 0.0
        %6886 = vmatpush1.msra.mxu0 %v6873
        %6887 = vmatprep.subr.mxu0 0.0
        %6888 = vmatpush1.msra.mxu0 0.0
        %6889 = vmatprep.subr.mxu0 0.0
        %6890 = vmatpush1.msra.mxu0 0.0
        %6891 = vmatprep.subr.mxu0 0.0
        %6892 = vmatpush1.msra.mxu0 0.0
        %6893 = vmatprep.subr.mxu0 0.0
        %6894 = vmatpush1.msra.mxu0 0.0
        %6895 = vmatprep.subr.mxu0 0.0
        %6896 = vmatpush1.msra.mxu0 0.0
        %6897 = vmatprep.subr.mxu0 0.0
        %6898 = vmatpush1.msra.mxu0 0.0
        %6899 = vmatprep.subr.mxu0 0.0
        %6900 = vmatpush1.msra.mxu0 0.0
        %6901 = vmatprep.subr.mxu0 0.0
        %6902 = vmatpush1.msra.mxu0 0.0
        %6903 = vmatprep.subr.mxu0 0.0
        %6904 = vmatpush1.msra.mxu0 0.0
        %6905 = vmatprep.subr.mxu0 0.0
        %6906 = vmatpush1.msra.mxu0 0.0
        %6907 = vmatprep.subr.mxu0 0.0
        %6908 = vmatpush1.msra.mxu0 0.0
        %6909 = vmatprep.subr.mxu0 0.0
        %6910 = vmatpush1.msra.mxu0 0.0
        %6911 = vmatprep.subr.mxu0 0.0
        %6912 = vmatpush1.msra.mxu0 0.0
        %6913 = vmatprep.subr.mxu0 0.0
        %6914 = vmatpush1.msra.mxu0 0.0
        %6915 = vmatprep.subr.mxu0 0.0
        %6916 = vmatpush1.msra.mxu0 0.0
        %6917 = vmatprep.subr.mxu0 0.0
        %6918 = vmatpush1.msra.mxu0 0.0
        %6919 = vmatprep.subr.mxu0 0.0
        %6920 = vmatpush1.msra.mxu0 0.0
        %6921 = vmatprep.subr.mxu0 0.0
        %6922 = vmatpush1.msra.mxu0 0.0
        %6923 = vmatprep.subr.mxu0 0.0
        %6924 = vmatpush1.msra.mxu0 0.0
        %6925 = vmatprep.subr.mxu0 0.0
        %6926 = vmatpush1.msra.mxu0 0.0
        %6927 = vmatprep.subr.mxu0 0.0
        %6928 = vmatpush1.msra.mxu0 0.0
        %6929 = vmatprep.subr.mxu0 0.0
        %6930 = vmatpush1.msra.mxu0 0.0
        %6931 = vmatprep.subr.mxu0 0.0
        %6932 = vmatpush1.msra.mxu0 0.0
        %6933 = vmatprep.subr.mxu0 0.0
        %6934 = vmatpush1.msra.mxu0 0.0
        %6935 = vmatprep.subr.mxu0 0.0
        %6936 = vmatpush1.msra.mxu0 0.0
        %6937 = vmatprep.subr.mxu0 0.0
        %6938 = vmatpush1.msra.mxu0 0.0
        %6939 = vmatprep.subr.mxu0 0.0
        %6940 = vmatpush1.msra.mxu0 0.0
        %6941 = vmatprep.subr.mxu0 0.0
        %6942 = vmatpush1.msra.mxu0 0.0
        %6943 = vmatprep.subr.mxu0 0.0
        %6944 = vmatpush1.msra.mxu0 0.0
        %6945 = vmatprep.subr.mxu0 0.0
        %6946 = vmatpush1.msra.mxu0 0.0
        %6947 = vmatprep.mubr.f32.mxu0 0.0
        %6948 = vmatmul.mubr.f32.gmra.mrb[0].mxu0 %v6878
        %v6949 = vpop.f32.mrb[0].mxu0
        %v6950 = vadd.f32 0.0, %v6949
        %v6951 = vpop.f32.mrb[0].mxu0
        %6952 = vmatprep.mubr.f32.mxu0 0.0
        %6953 = vmatmul.mubr.f32.gmra.mrb[0].mxu0 %v6881
        %v6954 = vpop.f32.mrb[0].mxu0
        %v6955 = vadd.f32 0.0, %v6954
        %v6956 = vpop.f32.mrb[0].mxu0
        %6957 = vdwg.mxu0
        %v6958 = vmax.f32 %v6872, %v6950
        %v6959 = vmax.f32 %v6873, %v6955
        %s6960 = scalar_lea.vmem %s7, 80
        %v6961 = vld [vmem:[%s6960] sm:$0xff]
        %v6962 = vld [vmem:[%s6960 + $0x8] sm:$0xff]
        %v6964 = vsel %vm4662, %v6961, 0
        %v6967 = vsel %vm4662, %v6962, 0
        %6969 = vmatprep.subr.mxu0 0.0
        %6970 = vmatpush1.msra.mxu0 %v6872
        %6971 = vmatprep.subr.mxu0 0.0
        %6972 = vmatpush1.msra.mxu0 %v6873
        %6973 = vmatprep.subr.mxu0 0.0
        %6974 = vmatpush1.msra.mxu0 0.0
        %6975 = vmatprep.subr.mxu0 0.0
        %6976 = vmatpush1.msra.mxu0 0.0
        %6977 = vmatprep.subr.mxu0 0.0
        %6978 = vmatpush1.msra.mxu0 0.0
        %6979 = vmatprep.subr.mxu0 0.0
        %6980 = vmatpush1.msra.mxu0 0.0
        %6981 = vmatprep.subr.mxu0 0.0
        %6982 = vmatpush1.msra.mxu0 0.0
        %6983 = vmatprep.subr.mxu0 0.0
        %6984 = vmatpush1.msra.mxu0 0.0
        %6985 = vmatprep.subr.mxu0 0.0
        %6986 = vmatpush1.msra.mxu0 0.0
        %6987 = vmatprep.subr.mxu0 0.0
        %6988 = vmatpush1.msra.mxu0 0.0
        %6989 = vmatprep.subr.mxu0 0.0
        %6990 = vmatpush1.msra.mxu0 0.0
        %6991 = vmatprep.subr.mxu0 0.0
        %6992 = vmatpush1.msra.mxu0 0.0
        %6993 = vmatprep.subr.mxu0 0.0
        %6994 = vmatpush1.msra.mxu0 0.0
        %6995 = vmatprep.subr.mxu0 0.0
        %6996 = vmatpush1.msra.mxu0 0.0
        %6997 = vmatprep.subr.mxu0 0.0
        %6998 = vmatpush1.msra.mxu0 0.0
        %6999 = vmatprep.subr.mxu0 0.0
        %7000 = vmatpush1.msra.mxu0 0.0
        %7001 = vmatprep.subr.mxu0 0.0
        %7002 = vmatpush1.msra.mxu0 0.0
        %7003 = vmatprep.subr.mxu0 0.0
        %7004 = vmatpush1.msra.mxu0 0.0
        %7005 = vmatprep.subr.mxu0 0.0
        %7006 = vmatpush1.msra.mxu0 0.0
        %7007 = vmatprep.subr.mxu0 0.0
        %7008 = vmatpush1.msra.mxu0 0.0
        %7009 = vmatprep.subr.mxu0 0.0
        %7010 = vmatpush1.msra.mxu0 0.0
        %7011 = vmatprep.subr.mxu0 0.0
        %7012 = vmatpush1.msra.mxu0 0.0
        %7013 = vmatprep.subr.mxu0 0.0
        %7014 = vmatpush1.msra.mxu0 0.0
        %7015 = vmatprep.subr.mxu0 0.0
        %7016 = vmatpush1.msra.mxu0 0.0
        %7017 = vmatprep.subr.mxu0 0.0
        %7018 = vmatpush1.msra.mxu0 0.0
        %7019 = vmatprep.subr.mxu0 0.0
        %7020 = vmatpush1.msra.mxu0 0.0
        %7021 = vmatprep.subr.mxu0 0.0
        %7022 = vmatpush1.msra.mxu0 0.0
        %7023 = vmatprep.subr.mxu0 0.0
        %7024 = vmatpush1.msra.mxu0 0.0
        %7025 = vmatprep.subr.mxu0 0.0
        %7026 = vmatpush1.msra.mxu0 0.0
        %7027 = vmatprep.subr.mxu0 0.0
        %7028 = vmatpush1.msra.mxu0 0.0
        %7029 = vmatprep.subr.mxu0 0.0
        %7030 = vmatpush1.msra.mxu0 0.0
        %7031 = vmatprep.subr.mxu0 0.0
        %7032 = vmatpush1.msra.mxu0 0.0
        %7033 = vmatprep.mubr.f32.mxu0 0.0
        %7034 = vmatmul.mubr.f32.gmra.mrb[0].mxu0 %v6964
        %v7035 = vpop.f32.mrb[0].mxu0
        %v7036 = vadd.f32 0.0, %v7035
        %v7037 = vpop.f32.mrb[0].mxu0
        %7038 = vmatprep.mubr.f32.mxu0 0.0
        %7039 = vmatmul.mubr.f32.gmra.mrb[0].mxu0 %v6967
        %v7040 = vpop.f32.mrb[0].mxu0
        %v7041 = vadd.f32 0.0, %v7040
        %v7042 = vpop.f32.mrb[0].mxu0
        %7043 = vdwg.mxu0
        %v7044 = vmax.f32 %v6958, %v7036
        %v7045 = vmax.f32 %v6959, %v7041
        %s7046 = scalar_lea.vmem %s7, 96
        %v7047 = vld [vmem:[%s7046] sm:$0xff]
        %v7048 = vld [vmem:[%s7046 + $0x8] sm:$0xff]
        %v7050 = vsel %vm4662, %v7047, 0
        %v7053 = vsel %vm4662, %v7048, 0
        %7055 = vmatprep.subr.mxu0 0.0
        %7056 = vmatpush1.msra.mxu0 %v6872
        %7057 = vmatprep.subr.mxu0 0.0
        %7058 = vmatpush1.msra.mxu0 %v6873
        %7059 = vmatprep.subr.mxu0 0.0
        %7060 = vmatpush1.msra.mxu0 0.0
        %7061 = vmatprep.subr.mxu0 0.0
        %7062 = vmatpush1.msra.mxu0 0.0
        %7063 = vmatprep.subr.mxu0 0.0
        %7064 = vmatpush1.msra.mxu0 0.0
        %7065 = vmatprep.subr.mxu0 0.0
        %7066 = vmatpush1.msra.mxu0 0.0
        %7067 = vmatprep.subr.mxu0 0.0
        %7068 = vmatpush1.msra.mxu0 0.0
        %7069 = vmatprep.subr.mxu0 0.0
        %7070 = vmatpush1.msra.mxu0 0.0
        %7071 = vmatprep.subr.mxu0 0.0
        %7072 = vmatpush1.msra.mxu0 0.0
        %7073 = vmatprep.subr.mxu0 0.0
        %7074 = vmatpush1.msra.mxu0 0.0
        %7075 = vmatprep.subr.mxu0 0.0
        %7076 = vmatpush1.msra.mxu0 0.0
        %7077 = vmatprep.subr.mxu0 0.0
        %7078 = vmatpush1.msra.mxu0 0.0
        %7079 = vmatprep.subr.mxu0 0.0
        %7080 = vmatpush1.msra.mxu0 0.0
        %7081 = vmatprep.subr.mxu0 0.0
        %7082 = vmatpush1.msra.mxu0 0.0
        %7083 = vmatprep.subr.mxu0 0.0
        %7084 = vmatpush1.msra.mxu0 0.0
        %7085 = vmatprep.subr.mxu0 0.0
        %7086 = vmatpush1.msra.mxu0 0.0
        %7087 = vmatprep.subr.mxu0 0.0
        %7088 = vmatpush1.msra.mxu0 0.0
        %7089 = vmatprep.subr.mxu0 0.0
        %7090 = vmatpush1.msra.mxu0 0.0
        %7091 = vmatprep.subr.mxu0 0.0
        %7092 = vmatpush1.msra.mxu0 0.0
        %7093 = vmatprep.subr.mxu0 0.0
        %7094 = vmatpush1.msra.mxu0 0.0
        %7095 = vmatprep.subr.mxu0 0.0
        %7096 = vmatpush1.msra.mxu0 0.0
        %7097 = vmatprep.subr.mxu0 0.0
        %7098 = vmatpush1.msra.mxu0 0.0
        %7099 = vmatprep.subr.mxu0 0.0
        %7100 = vmatpush1.msra.mxu0 0.0
        %7101 = vmatprep.subr.mxu0 0.0
        %7102 = vmatpush1.msra.mxu0 0.0
        %7103 = vmatprep.subr.mxu0 0.0
        %7104 = vmatpush1.msra.mxu0 0.0
        %7105 = vmatprep.subr.mxu0 0.0
        %7106 = vmatpush1.msra.mxu0 0.0
        %7107 = vmatprep.subr.mxu0 0.0
        %7108 = vmatpush1.msra.mxu0 0.0
        %7109 = vmatprep.subr.mxu0 0.0
        %7110 = vmatpush1.msra.mxu0 0.0
        %7111 = vmatprep.subr.mxu0 0.0
        %7112 = vmatpush1.msra.mxu0 0.0
        %7113 = vmatprep.subr.mxu0 0.0
        %7114 = vmatpush1.msra.mxu0 0.0
        %7115 = vmatprep.subr.mxu0 0.0
        %7116 = vmatpush1.msra.mxu0 0.0
        %7117 = vmatprep.subr.mxu0 0.0
        %7118 = vmatpush1.msra.mxu0 0.0
        %7119 = vmatprep.mubr.f32.mxu0 0.0
        %7120 = vmatmul.mubr.f32.gmra.mrb[0].mxu0 %v7050
        %v7121 = vpop.f32.mrb[0].mxu0
        %v7122 = vadd.f32 0.0, %v7121
        %v7123 = vpop.f32.mrb[0].mxu0
        %7124 = vmatprep.mubr.f32.mxu0 0.0
        %7125 = vmatmul.mubr.f32.gmra.mrb[0].mxu0 %v7053
        %v7126 = vpop.f32.mrb[0].mxu0
        %v7127 = vadd.f32 0.0, %v7126
        %v7128 = vpop.f32.mrb[0].mxu0
        %7129 = vdwg.mxu0
        %v7130 = vmax.f32 %v7044, %v7122
        %v7131 = vmax.f32 %v7045, %v7127
        %s7132 = scalar_lea.vmem %s7, 112
        %v7133 = vld [vmem:[%s7132] sm:$0xff]
        %v7134 = vld [vmem:[%s7132 + $0x8] sm:$0xff]
        %v7136 = vsel %vm4662, %v7133, 0
        %v7139 = vsel %vm4662, %v7134, 0
        %7141 = vmatprep.subr.mxu0 0.0
        %7142 = vmatpush1.msra.mxu0 %v6872
        %7143 = vmatprep.subr.mxu0 0.0
        %7144 = vmatpush1.msra.mxu0 %v6873
        %7145 = vmatprep.subr.mxu0 0.0
        %7146 = vmatpush1.msra.mxu0 0.0
        %7147 = vmatprep.subr.mxu0 0.0
        %7148 = vmatpush1.msra.mxu0 0.0
        %7149 = vmatprep.subr.mxu0 0.0
        %7150 = vmatpush1.msra.mxu0 0.0
        %7151 = vmatprep.subr.mxu0 0.0
        %7152 = vmatpush1.msra.mxu0 0.0
        %7153 = vmatprep.subr.mxu0 0.0
        %7154 = vmatpush1.msra.mxu0 0.0
        %7155 = vmatprep.subr.mxu0 0.0
        %7156 = vmatpush1.msra.mxu0 0.0
        %7157 = vmatprep.subr.mxu0 0.0
        %7158 = vmatpush1.msra.mxu0 0.0
        %7159 = vmatprep.subr.mxu0 0.0
        %7160 = vmatpush1.msra.mxu0 0.0
        %7161 = vmatprep.subr.mxu0 0.0
        %7162 = vmatpush1.msra.mxu0 0.0
        %7163 = vmatprep.subr.mxu0 0.0
        %7164 = vmatpush1.msra.mxu0 0.0
        %7165 = vmatprep.subr.mxu0 0.0
        %7166 = vmatpush1.msra.mxu0 0.0
        %7167 = vmatprep.subr.mxu0 0.0
        %7168 = vmatpush1.msra.mxu0 0.0
        %7169 = vmatprep.subr.mxu0 0.0
        %7170 = vmatpush1.msra.mxu0 0.0
        %7171 = vmatprep.subr.mxu0 0.0
        %7172 = vmatpush1.msra.mxu0 0.0
        %7173 = vmatprep.subr.mxu0 0.0
        %7174 = vmatpush1.msra.mxu0 0.0
        %7175 = vmatprep.subr.mxu0 0.0
        %7176 = vmatpush1.msra.mxu0 0.0
        %7177 = vmatprep.subr.mxu0 0.0
        %7178 = vmatpush1.msra.mxu0 0.0
        %7179 = vmatprep.subr.mxu0 0.0
        %7180 = vmatpush1.msra.mxu0 0.0
        %7181 = vmatprep.subr.mxu0 0.0
        %7182 = vmatpush1.msra.mxu0 0.0
        %7183 = vmatprep.subr.mxu0 0.0
        %7184 = vmatpush1.msra.mxu0 0.0
        %7185 = vmatprep.subr.mxu0 0.0
        %7186 = vmatpush1.msra.mxu0 0.0
        %7187 = vmatprep.subr.mxu0 0.0
        %7188 = vmatpush1.msra.mxu0 0.0
        %7189 = vmatprep.subr.mxu0 0.0
        %7190 = vmatpush1.msra.mxu0 0.0
        %7191 = vmatprep.subr.mxu0 0.0
        %7192 = vmatpush1.msra.mxu0 0.0
        %7193 = vmatprep.subr.mxu0 0.0
        %7194 = vmatpush1.msra.mxu0 0.0
        %7195 = vmatprep.subr.mxu0 0.0
        %7196 = vmatpush1.msra.mxu0 0.0
        %7197 = vmatprep.subr.mxu0 0.0
        %7198 = vmatpush1.msra.mxu0 0.0
        %7199 = vmatprep.subr.mxu0 0.0
        %7200 = vmatpush1.msra.mxu0 0.0
        %7201 = vmatprep.subr.mxu0 0.0
        %7202 = vmatpush1.msra.mxu0 0.0
        %7203 = vmatprep.subr.mxu0 0.0
        %7204 = vmatpush1.msra.mxu0 0.0
        %7205 = vmatprep.mubr.f32.mxu0 0.0
        %7206 = vmatmul.mubr.f32.gmra.mrb[0].mxu0 %v7136
        %v7207 = vpop.f32.mrb[0].mxu0
        %v7208 = vadd.f32 0.0, %v7207
        %v7209 = vpop.f32.mrb[0].mxu0
        %7210 = vmatprep.mubr.f32.mxu0 0.0
        %7211 = vmatmul.mubr.f32.gmra.mrb[0].mxu0 %v7139
        %v7212 = vpop.f32.mrb[0].mxu0
        %v7213 = vadd.f32 0.0, %v7212
        %v7214 = vpop.f32.mrb[0].mxu0
        %7215 = vdwg.mxu0
        %v7216 = vmax.f32 %v7130, %v7208
        %v7217 = vmax.f32 %v7131, %v7213
        %v7218 = vsub.f32 %v7216, 1.0
        %v7219 = vsub.f32 %v7217, 1.0
        %v7220 = vadd.f32 %v7218, 1.0
        %v7221 = vadd.f32 %v7219, 1.0
        %7222 = vmatprep.subr.mxu0 0.0
        %7223 = vmatpush1.msra.mxu0 %v7220
        %7224 = vmatprep.subr.mxu0 0.0
        %7225 = vmatpush1.msra.mxu0 %v7221
        %7226 = vmatprep.subr.mxu0 0.0
        %7227 = vmatpush1.msra.mxu0 0.0
        %7228 = vmatprep.subr.mxu0 0.0
        %7229 = vmatpush1.msra.mxu0 0.0
        %7230 = vmatprep.subr.mxu0 0.0
        %7231 = vmatpush1.msra.mxu0 0.0
        %7232 = vmatprep.subr.mxu0 0.0
        %7233 = vmatpush1.msra.mxu0 0.0
        %7234 = vmatprep.subr.mxu0 0.0
        %7235 = vmatpush1.msra.mxu0 0.0
        %7236 = vmatprep.subr.mxu0 0.0
        %7237 = vmatpush1.msra.mxu0 0.0
        %7238 = vmatprep.subr.mxu0 0.0
        %7239 = vmatpush1.msra.mxu0 0.0
        %7240 = vmatprep.subr.mxu0 0.0
        %7241 = vmatpush1.msra.mxu0 0.0
        %7242 = vmatprep.subr.mxu0 0.0
        %7243 = vmatpush1.msra.mxu0 0.0
        %7244 = vmatprep.subr.mxu0 0.0
        %7245 = vmatpush1.msra.mxu0 0.0
        %7246 = vmatprep.subr.mxu0 0.0
        %7247 = vmatpush1.msra.mxu0 0.0
        %7248 = vmatprep.subr.mxu0 0.0
        %7249 = vmatpush1.msra.mxu0 0.0
        %7250 = vmatprep.subr.mxu0 0.0
        %7251 = vmatpush1.msra.mxu0 0.0
        %7252 = vmatprep.subr.mxu0 0.0
        %7253 = vmatpush1.msra.mxu0 0.0
        %7254 = vmatprep.subr.mxu0 0.0
        %7255 = vmatpush1.msra.mxu0 0.0
        %7256 = vmatprep.subr.mxu0 0.0
        %7257 = vmatpush1.msra.mxu0 0.0
        %7258 = vmatprep.subr.mxu0 0.0
        %7259 = vmatpush1.msra.mxu0 0.0
        %7260 = vmatprep.subr.mxu0 0.0
        %7261 = vmatpush1.msra.mxu0 0.0
        %7262 = vmatprep.subr.mxu0 0.0
        %7263 = vmatpush1.msra.mxu0 0.0
        %7264 = vmatprep.subr.mxu0 0.0
        %7265 = vmatpush1.msra.mxu0 0.0
        %7266 = vmatprep.subr.mxu0 0.0
        %7267 = vmatpush1.msra.mxu0 0.0
        %7268 = vmatprep.subr.mxu0 0.0
        %7269 = vmatpush1.msra.mxu0 0.0
        %7270 = vmatprep.subr.mxu0 0.0
        %7271 = vmatpush1.msra.mxu0 0.0
        %7272 = vmatprep.subr.mxu0 0.0
        %7273 = vmatpush1.msra.mxu0 0.0
        %7274 = vmatprep.subr.mxu0 0.0
        %7275 = vmatpush1.msra.mxu0 0.0
        %7276 = vmatprep.subr.mxu0 0.0
        %7277 = vmatpush1.msra.mxu0 0.0
        %7278 = vmatprep.subr.mxu0 0.0
        %7279 = vmatpush1.msra.mxu0 0.0
        %7280 = vmatprep.subr.mxu0 0.0
        %7281 = vmatpush1.msra.mxu0 0.0
        %7282 = vmatprep.subr.mxu0 0.0
        %7283 = vmatpush1.msra.mxu0 0.0
        %7284 = vmatprep.subr.mxu0 0.0
        %7285 = vmatpush1.msra.mxu0 0.0
        %7286 = vmatprep.mubr.f32.mxu0 0.0
        %7287 = vmatmul.mubr.f32.gmra.mrb[0].mxu0 %v6534
        %v7288 = vpop.f32.mrb[0].mxu0
        %v7289 = vadd.f32 0.0, %v7288
        %v7290 = vpop.f32.mrb[0].mxu0
        %7291 = vmatprep.mubr.f32.mxu0 0.0
        %7292 = vmatmul.mubr.f32.gmra.mrb[0].mxu0 %v6537
        %v7293 = vpop.f32.mrb[0].mxu0
        %v7294 = vadd.f32 0.0, %v7293
        %v7295 = vpop.f32.mrb[0].mxu0
        %7296 = vdwg.mxu0
        %v7297 = vmax.f32 %v7220, %v7289
        %v7298 = vmax.f32 %v7221, %v7294
        %7299 = vmatprep.subr.mxu0 0.0
        %7300 = vmatpush1.msra.mxu0 %v7220
        %7301 = vmatprep.subr.mxu0 0.0
        %7302 = vmatpush1.msra.mxu0 %v7221
        %7303 = vmatprep.subr.mxu0 0.0
        %7304 = vmatpush1.msra.mxu0 0.0
        %7305 = vmatprep.subr.mxu0 0.0
        %7306 = vmatpush1.msra.mxu0 0.0
        %7307 = vmatprep.subr.mxu0 0.0
        %7308 = vmatpush1.msra.mxu0 0.0
        %7309 = vmatprep.subr.mxu0 0.0
        %7310 = vmatpush1.msra.mxu0 0.0
        %7311 = vmatprep.subr.mxu0 0.0
        %7312 = vmatpush1.msra.mxu0 0.0
        %7313 = vmatprep.subr.mxu0 0.0
        %7314 = vmatpush1.msra.mxu0 0.0
        %7315 = vmatprep.subr.mxu0 0.0
        %7316 = vmatpush1.msra.mxu0 0.0
        %7317 = vmatprep.subr.mxu0 0.0
        %7318 = vmatpush1.msra.mxu0 0.0
        %7319 = vmatprep.subr.mxu0 0.0
        %7320 = vmatpush1.msra.mxu0 0.0
        %7321 = vmatprep.subr.mxu0 0.0
        %7322 = vmatpush1.msra.mxu0 0.0
        %7323 = vmatprep.subr.mxu0 0.0
        %7324 = vmatpush1.msra.mxu0 0.0
        %7325 = vmatprep.subr.mxu0 0.0
        %7326 = vmatpush1.msra.mxu0 0.0
        %7327 = vmatprep.subr.mxu0 0.0
        %7328 = vmatpush1.msra.mxu0 0.0
        %7329 = vmatprep.subr.mxu0 0.0
        %7330 = vmatpush1.msra.mxu0 0.0
        %7331 = vmatprep.subr.mxu0 0.0
        %7332 = vmatpush1.msra.mxu0 0.0
        %7333 = vmatprep.subr.mxu0 0.0
        %7334 = vmatpush1.msra.mxu0 0.0
        %7335 = vmatprep.subr.mxu0 0.0
        %7336 = vmatpush1.msra.mxu0 0.0
        %7337 = vmatprep.subr.mxu0 0.0
        %7338 = vmatpush1.msra.mxu0 0.0
        %7339 = vmatprep.subr.mxu0 0.0
        %7340 = vmatpush1.msra.mxu0 0.0
        %7341 = vmatprep.subr.mxu0 0.0
        %7342 = vmatpush1.msra.mxu0 0.0
        %7343 = vmatprep.subr.mxu0 0.0
        %7344 = vmatpush1.msra.mxu0 0.0
        %7345 = vmatprep.subr.mxu0 0.0
        %7346 = vmatpush1.msra.mxu0 0.0
        %7347 = vmatprep.subr.mxu0 0.0
        %7348 = vmatpush1.msra.mxu0 0.0
        %7349 = vmatprep.subr.mxu0 0.0
        %7350 = vmatpush1.msra.mxu0 0.0
        %7351 = vmatprep.subr.mxu0 0.0
        %7352 = vmatpush1.msra.mxu0 0.0
        %7353 = vmatprep.subr.mxu0 0.0
        %7354 = vmatpush1.msra.mxu0 0.0
        %7355 = vmatprep.subr.mxu0 0.0
        %7356 = vmatpush1.msra.mxu0 0.0
        %7357 = vmatprep.subr.mxu0 0.0
        %7358 = vmatpush1.msra.mxu0 0.0
        %7359 = vmatprep.subr.mxu0 0.0
        %7360 = vmatpush1.msra.mxu0 0.0
        %7361 = vmatprep.subr.mxu0 0.0
        %7362 = vmatpush1.msra.mxu0 0.0
        %7363 = vmatprep.mubr.f32.mxu0 0.0
        %7364 = vmatmul.mubr.f32.gmra.mrb[0].mxu0 %v6620
        %v7365 = vpop.f32.mrb[0].mxu0
        %v7366 = vadd.f32 0.0, %v7365
        %v7367 = vpop.f32.mrb[0].mxu0
        %7368 = vmatprep.mubr.f32.mxu0 0.0
        %7369 = vmatmul.mubr.f32.gmra.mrb[0].mxu0 %v6623
        %v7370 = vpop.f32.mrb[0].mxu0
        %v7371 = vadd.f32 0.0, %v7370
        %v7372 = vpop.f32.mrb[0].mxu0
        %7373 = vdwg.mxu0
        %v7374 = vmax.f32 %v7297, %v7366
        %v7375 = vmax.f32 %v7298, %v7371
        %7376 = vmatprep.subr.mxu0 0.0
        %7377 = vmatpush1.msra.mxu0 %v7220
        %7378 = vmatprep.subr.mxu0 0.0
        %7379 = vmatpush1.msra.mxu0 %v7221
        %7380 = vmatprep.subr.mxu0 0.0
        %7381 = vmatpush1.msra.mxu0 0.0
        %7382 = vmatprep.subr.mxu0 0.0
        %7383 = vmatpush1.msra.mxu0 0.0
        %7384 = vmatprep.subr.mxu0 0.0
        %7385 = vmatpush1.msra.mxu0 0.0
        %7386 = vmatprep.subr.mxu0 0.0
        %7387 = vmatpush1.msra.mxu0 0.0
        %7388 = vmatprep.subr.mxu0 0.0
        %7389 = vmatpush1.msra.mxu0 0.0
        %7390 = vmatprep.subr.mxu0 0.0
        %7391 = vmatpush1.msra.mxu0 0.0
        %7392 = vmatprep.subr.mxu0 0.0
        %7393 = vmatpush1.msra.mxu0 0.0
        %7394 = vmatprep.subr.mxu0 0.0
        %7395 = vmatpush1.msra.mxu0 0.0
        %7396 = vmatprep.subr.mxu0 0.0
        %7397 = vmatpush1.msra.mxu0 0.0
        %7398 = vmatprep.subr.mxu0 0.0
        %7399 = vmatpush1.msra.mxu0 0.0
        %7400 = vmatprep.subr.mxu0 0.0
        %7401 = vmatpush1.msra.mxu0 0.0
        %7402 = vmatprep.subr.mxu0 0.0
        %7403 = vmatpush1.msra.mxu0 0.0
        %7404 = vmatprep.subr.mxu0 0.0
        %7405 = vmatpush1.msra.mxu0 0.0
        %7406 = vmatprep.subr.mxu0 0.0
        %7407 = vmatpush1.msra.mxu0 0.0
        %7408 = vmatprep.subr.mxu0 0.0
        %7409 = vmatpush1.msra.mxu0 0.0
        %7410 = vmatprep.subr.mxu0 0.0
        %7411 = vmatpush1.msra.mxu0 0.0
        %7412 = vmatprep.subr.mxu0 0.0
        %7413 = vmatpush1.msra.mxu0 0.0
        %7414 = vmatprep.subr.mxu0 0.0
        %7415 = vmatpush1.msra.mxu0 0.0
        %7416 = vmatprep.subr.mxu0 0.0
        %7417 = vmatpush1.msra.mxu0 0.0
        %7418 = vmatprep.subr.mxu0 0.0
        %7419 = vmatpush1.msra.mxu0 0.0
        %7420 = vmatprep.subr.mxu0 0.0
        %7421 = vmatpush1.msra.mxu0 0.0
        %7422 = vmatprep.subr.mxu0 0.0
        %7423 = vmatpush1.msra.mxu0 0.0
        %7424 = vmatprep.subr.mxu0 0.0
        %7425 = vmatpush1.msra.mxu0 0.0
        %7426 = vmatprep.subr.mxu0 0.0
        %7427 = vmatpush1.msra.mxu0 0.0
        %7428 = vmatprep.subr.mxu0 0.0
        %7429 = vmatpush1.msra.mxu0 0.0
        %7430 = vmatprep.subr.mxu0 0.0
        %7431 = vmatpush1.msra.mxu0 0.0
        %7432 = vmatprep.subr.mxu0 0.0
        %7433 = vmatpush1.msra.mxu0 0.0
        %7434 = vmatprep.subr.mxu0 0.0
        %7435 = vmatpush1.msra.mxu0 0.0
        %7436 = vmatprep.subr.mxu0 0.0
        %7437 = vmatpush1.msra.mxu0 0.0
        %7438 = vmatprep.subr.mxu0 0.0
        %7439 = vmatpush1.msra.mxu0 0.0
        %7440 = vmatprep.mubr.f32.mxu0 0.0
        %7441 = vmatmul.mubr.f32.gmra.mrb[0].mxu0 %v6706
        %v7442 = vpop.f32.mrb[0].mxu0
        %v7443 = vadd.f32 0.0, %v7442
        %v7444 = vpop.f32.mrb[0].mxu0
        %7445 = vmatprep.mubr.f32.mxu0 0.0
        %7446 = vmatmul.mubr.f32.gmra.mrb[0].mxu0 %v6709
        %v7447 = vpop.f32.mrb[0].mxu0
        %v7448 = vadd.f32 0.0, %v7447
        %v7449 = vpop.f32.mrb[0].mxu0
        %7450 = vdwg.mxu0
        %v7451 = vmax.f32 %v7374, %v7443
        %v7452 = vmax.f32 %v7375, %v7448
        %7453 = vmatprep.subr.mxu0 0.0
        %7454 = vmatpush1.msra.mxu0 %v7220
        %7455 = vmatprep.subr.mxu0 0.0
        %7456 = vmatpush1.msra.mxu0 %v7221
        %7457 = vmatprep.subr.mxu0 0.0
        %7458 = vmatpush1.msra.mxu0 0.0
        %7459 = vmatprep.subr.mxu0 0.0
        %7460 = vmatpush1.msra.mxu0 0.0
        %7461 = vmatprep.subr.mxu0 0.0
        %7462 = vmatpush1.msra.mxu0 0.0
        %7463 = vmatprep.subr.mxu0 0.0
        %7464 = vmatpush1.msra.mxu0 0.0
        %7465 = vmatprep.subr.mxu0 0.0
        %7466 = vmatpush1.msra.mxu0 0.0
        %7467 = vmatprep.subr.mxu0 0.0
        %7468 = vmatpush1.msra.mxu0 0.0
        %7469 = vmatprep.subr.mxu0 0.0
        %7470 = vmatpush1.msra.mxu0 0.0
        %7471 = vmatprep.subr.mxu0 0.0
        %7472 = vmatpush1.msra.mxu0 0.0
        %7473 = vmatprep.subr.mxu0 0.0
        %7474 = vmatpush1.msra.mxu0 0.0
        %7475 = vmatprep.subr.mxu0 0.0
        %7476 = vmatpush1.msra.mxu0 0.0
        %7477 = vmatprep.subr.mxu0 0.0
        %7478 = vmatpush1.msra.mxu0 0.0
        %7479 = vmatprep.subr.mxu0 0.0
        %7480 = vmatpush1.msra.mxu0 0.0
        %7481 = vmatprep.subr.mxu0 0.0
        %7482 = vmatpush1.msra.mxu0 0.0
        %7483 = vmatprep.subr.mxu0 0.0
        %7484 = vmatpush1.msra.mxu0 0.0
        %7485 = vmatprep.subr.mxu0 0.0
        %7486 = vmatpush1.msra.mxu0 0.0
        %7487 = vmatprep.subr.mxu0 0.0
        %7488 = vmatpush1.msra.mxu0 0.0
        %7489 = vmatprep.subr.mxu0 0.0
        %7490 = vmatpush1.msra.mxu0 0.0
        %7491 = vmatprep.subr.mxu0 0.0
        %7492 = vmatpush1.msra.mxu0 0.0
        %7493 = vmatprep.subr.mxu0 0.0
        %7494 = vmatpush1.msra.mxu0 0.0
        %7495 = vmatprep.subr.mxu0 0.0
        %7496 = vmatpush1.msra.mxu0 0.0
        %7497 = vmatprep.subr.mxu0 0.0
        %7498 = vmatpush1.msra.mxu0 0.0
        %7499 = vmatprep.subr.mxu0 0.0
        %7500 = vmatpush1.msra.mxu0 0.0
        %7501 = vmatprep.subr.mxu0 0.0
        %7502 = vmatpush1.msra.mxu0 0.0
        %7503 = vmatprep.subr.mxu0 0.0
        %7504 = vmatpush1.msra.mxu0 0.0
        %7505 = vmatprep.subr.mxu0 0.0
        %7506 = vmatpush1.msra.mxu0 0.0
        %7507 = vmatprep.subr.mxu0 0.0
        %7508 = vmatpush1.msra.mxu0 0.0
        %7509 = vmatprep.subr.mxu0 0.0
        %7510 = vmatpush1.msra.mxu0 0.0
        %7511 = vmatprep.subr.mxu0 0.0
        %7512 = vmatpush1.msra.mxu0 0.0
        %7513 = vmatprep.subr.mxu0 0.0
        %7514 = vmatpush1.msra.mxu0 0.0
        %7515 = vmatprep.subr.mxu0 0.0
        %7516 = vmatpush1.msra.mxu0 0.0
        %7517 = vmatprep.mubr.f32.mxu0 0.0
        %7518 = vmatmul.mubr.f32.gmra.mrb[0].mxu0 %v6792
        %v7519 = vpop.f32.mrb[0].mxu0
        %v7520 = vadd.f32 0.0, %v7519
        %v7521 = vpop.f32.mrb[0].mxu0
        %7522 = vmatprep.mubr.f32.mxu0 0.0
        %7523 = vmatmul.mubr.f32.gmra.mrb[0].mxu0 %v6795
        %v7524 = vpop.f32.mrb[0].mxu0
        %v7525 = vadd.f32 0.0, %v7524
        %v7526 = vpop.f32.mrb[0].mxu0
        %7527 = vdwg.mxu0
        %v7528 = vmax.f32 %v7451, %v7520
        %v7529 = vmax.f32 %v7452, %v7525
        %7530 = vmatprep.subr.mxu0 0.0
        %7531 = vmatpush1.msra.mxu0 %v7528
        %7532 = vmatprep.subr.mxu0 0.0
        %7533 = vmatpush1.msra.mxu0 %v7529
        %7534 = vmatprep.subr.mxu0 0.0
        %7535 = vmatpush1.msra.mxu0 0.0
        %7536 = vmatprep.subr.mxu0 0.0
        %7537 = vmatpush1.msra.mxu0 0.0
        %7538 = vmatprep.subr.mxu0 0.0
        %7539 = vmatpush1.msra.mxu0 0.0
        %7540 = vmatprep.subr.mxu0 0.0
        %7541 = vmatpush1.msra.mxu0 0.0
        %7542 = vmatprep.subr.mxu0 0.0
        %7543 = vmatpush1.msra.mxu0 0.0
        %7544 = vmatprep.subr.mxu0 0.0
        %7545 = vmatpush1.msra.mxu0 0.0
        %7546 = vmatprep.subr.mxu0 0.0
        %7547 = vmatpush1.msra.mxu0 0.0
        %7548 = vmatprep.subr.mxu0 0.0
        %7549 = vmatpush1.msra.mxu0 0.0
        %7550 = vmatprep.subr.mxu0 0.0
        %7551 = vmatpush1.msra.mxu0 0.0
        %7552 = vmatprep.subr.mxu0 0.0
        %7553 = vmatpush1.msra.mxu0 0.0
        %7554 = vmatprep.subr.mxu0 0.0
        %7555 = vmatpush1.msra.mxu0 0.0
        %7556 = vmatprep.subr.mxu0 0.0
        %7557 = vmatpush1.msra.mxu0 0.0
        %7558 = vmatprep.subr.mxu0 0.0
        %7559 = vmatpush1.msra.mxu0 0.0
        %7560 = vmatprep.subr.mxu0 0.0
        %7561 = vmatpush1.msra.mxu0 0.0
        %7562 = vmatprep.subr.mxu0 0.0
        %7563 = vmatpush1.msra.mxu0 0.0
        %7564 = vmatprep.subr.mxu0 0.0
        %7565 = vmatpush1.msra.mxu0 0.0
        %7566 = vmatprep.subr.mxu0 0.0
        %7567 = vmatpush1.msra.mxu0 0.0
        %7568 = vmatprep.subr.mxu0 0.0
        %7569 = vmatpush1.msra.mxu0 0.0
        %7570 = vmatprep.subr.mxu0 0.0
        %7571 = vmatpush1.msra.mxu0 0.0
        %7572 = vmatprep.subr.mxu0 0.0
        %7573 = vmatpush1.msra.mxu0 0.0
        %7574 = vmatprep.subr.mxu0 0.0
        %7575 = vmatpush1.msra.mxu0 0.0
        %7576 = vmatprep.subr.mxu0 0.0
        %7577 = vmatpush1.msra.mxu0 0.0
        %7578 = vmatprep.subr.mxu0 0.0
        %7579 = vmatpush1.msra.mxu0 0.0
        %7580 = vmatprep.subr.mxu0 0.0
        %7581 = vmatpush1.msra.mxu0 0.0
        %7582 = vmatprep.subr.mxu0 0.0
        %7583 = vmatpush1.msra.mxu0 0.0
        %7584 = vmatprep.subr.mxu0 0.0
        %7585 = vmatpush1.msra.mxu0 0.0
        %7586 = vmatprep.subr.mxu0 0.0
        %7587 = vmatpush1.msra.mxu0 0.0
        %7588 = vmatprep.subr.mxu0 0.0
        %7589 = vmatpush1.msra.mxu0 0.0
        %7590 = vmatprep.subr.mxu0 0.0
        %7591 = vmatpush1.msra.mxu0 0.0
        %7592 = vmatprep.subr.mxu0 0.0
        %7593 = vmatpush1.msra.mxu0 0.0
        %7594 = vmatprep.mubr.f32.mxu0 0.0
        %7595 = vmatmul.mubr.f32.gmra.mrb[0].mxu0 %v6878
        %v7596 = vpop.f32.mrb[0].mxu0
        %v7597 = vadd.f32 0.0, %v7596
        %v7598 = vpop.f32.mrb[0].mxu0
        %7599 = vmatprep.mubr.f32.mxu0 0.0
        %7600 = vmatmul.mubr.f32.gmra.mrb[0].mxu0 %v6881
        %v7601 = vpop.f32.mrb[0].mxu0
        %v7602 = vadd.f32 0.0, %v7601
        %v7603 = vpop.f32.mrb[0].mxu0
        %7604 = vdwg.mxu0
        %v7605 = vmax.f32 %v7528, %v7597
        %v7606 = vmax.f32 %v7529, %v7602
        %7607 = vmatprep.subr.mxu0 0.0
        %7608 = vmatpush1.msra.mxu0 %v7528
        %7609 = vmatprep.subr.mxu0 0.0
        %7610 = vmatpush1.msra.mxu0 %v7529
        %7611 = vmatprep.subr.mxu0 0.0
        %7612 = vmatpush1.msra.mxu0 0.0
        %7613 = vmatprep.subr.mxu0 0.0
        %7614 = vmatpush1.msra.mxu0 0.0
        %7615 = vmatprep.subr.mxu0 0.0
        %7616 = vmatpush1.msra.mxu0 0.0
        %7617 = vmatprep.subr.mxu0 0.0
        %7618 = vmatpush1.msra.mxu0 0.0
        %7619 = vmatprep.subr.mxu0 0.0
        %7620 = vmatpush1.msra.mxu0 0.0
        %7621 = vmatprep.subr.mxu0 0.0
        %7622 = vmatpush1.msra.mxu0 0.0
        %7623 = vmatprep.subr.mxu0 0.0
        %7624 = vmatpush1.msra.mxu0 0.0
        %7625 = vmatprep.subr.mxu0 0.0
        %7626 = vmatpush1.msra.mxu0 0.0
        %7627 = vmatprep.subr.mxu0 0.0
        %7628 = vmatpush1.msra.mxu0 0.0
        %7629 = vmatprep.subr.mxu0 0.0
        %7630 = vmatpush1.msra.mxu0 0.0
        %7631 = vmatprep.subr.mxu0 0.0
        %7632 = vmatpush1.msra.mxu0 0.0
        %7633 = vmatprep.subr.mxu0 0.0
        %7634 = vmatpush1.msra.mxu0 0.0
        %7635 = vmatprep.subr.mxu0 0.0
        %7636 = vmatpush1.msra.mxu0 0.0
        %7637 = vmatprep.subr.mxu0 0.0
        %7638 = vmatpush1.msra.mxu0 0.0
        %7639 = vmatprep.subr.mxu0 0.0
        %7640 = vmatpush1.msra.mxu0 0.0
        %7641 = vmatprep.subr.mxu0 0.0
        %7642 = vmatpush1.msra.mxu0 0.0
        %7643 = vmatprep.subr.mxu0 0.0
        %7644 = vmatpush1.msra.mxu0 0.0
        %7645 = vmatprep.subr.mxu0 0.0
        %7646 = vmatpush1.msra.mxu0 0.0
        %7647 = vmatprep.subr.mxu0 0.0
        %7648 = vmatpush1.msra.mxu0 0.0
        %7649 = vmatprep.subr.mxu0 0.0
        %7650 = vmatpush1.msra.mxu0 0.0
        %7651 = vmatprep.subr.mxu0 0.0
        %7652 = vmatpush1.msra.mxu0 0.0
        %7653 = vmatprep.subr.mxu0 0.0
        %7654 = vmatpush1.msra.mxu0 0.0
        %7655 = vmatprep.subr.mxu0 0.0
        %7656 = vmatpush1.msra.mxu0 0.0
        %7657 = vmatprep.subr.mxu0 0.0
        %7658 = vmatpush1.msra.mxu0 0.0
        %7659 = vmatprep.subr.mxu0 0.0
        %7660 = vmatpush1.msra.mxu0 0.0
        %7661 = vmatprep.subr.mxu0 0.0
        %7662 = vmatpush1.msra.mxu0 0.0
        %7663 = vmatprep.subr.mxu0 0.0
        %7664 = vmatpush1.msra.mxu0 0.0
        %7665 = vmatprep.subr.mxu0 0.0
        %7666 = vmatpush1.msra.mxu0 0.0
        %7667 = vmatprep.subr.mxu0 0.0
        %7668 = vmatpush1.msra.mxu0 0.0
        %7669 = vmatprep.subr.mxu0 0.0
        %7670 = vmatpush1.msra.mxu0 0.0
        %7671 = vmatprep.mubr.f32.mxu0 0.0
        %7672 = vmatmul.mubr.f32.gmra.mrb[0].mxu0 %v6964
        %v7673 = vpop.f32.mrb[0].mxu0
        %v7674 = vadd.f32 0.0, %v7673
        %v7675 = vpop.f32.mrb[0].mxu0
        %7676 = vmatprep.mubr.f32.mxu0 0.0
        %7677 = vmatmul.mubr.f32.gmra.mrb[0].mxu0 %v6967
        %v7678 = vpop.f32.mrb[0].mxu0
        %v7679 = vadd.f32 0.0, %v7678
        %v7680 = vpop.f32.mrb[0].mxu0
        %7681 = vdwg.mxu0
        %v7682 = vmax.f32 %v7605, %v7674
        %v7683 = vmax.f32 %v7606, %v7679
        %7684 = vmatprep.subr.mxu0 0.0
        %7685 = vmatpush1.msra.mxu0 %v7528
        %7686 = vmatprep.subr.mxu0 0.0
        %7687 = vmatpush1.msra.mxu0 %v7529
        %7688 = vmatprep.subr.mxu0 0.0
        %7689 = vmatpush1.msra.mxu0 0.0
        %7690 = vmatprep.subr.mxu0 0.0
        %7691 = vmatpush1.msra.mxu0 0.0
        %7692 = vmatprep.subr.mxu0 0.0
        %7693 = vmatpush1.msra.mxu0 0.0
        %7694 = vmatprep.subr.mxu0 0.0
        %7695 = vmatpush1.msra.mxu0 0.0
        %7696 = vmatprep.subr.mxu0 0.0
        %7697 = vmatpush1.msra.mxu0 0.0
        %7698 = vmatprep.subr.mxu0 0.0
        %7699 = vmatpush1.msra.mxu0 0.0
        %7700 = vmatprep.subr.mxu0 0.0
        %7701 = vmatpush1.msra.mxu0 0.0
        %7702 = vmatprep.subr.mxu0 0.0
        %7703 = vmatpush1.msra.mxu0 0.0
        %7704 = vmatprep.subr.mxu0 0.0
        %7705 = vmatpush1.msra.mxu0 0.0
        %7706 = vmatprep.subr.mxu0 0.0
        %7707 = vmatpush1.msra.mxu0 0.0
        %7708 = vmatprep.subr.mxu0 0.0
        %7709 = vmatpush1.msra.mxu0 0.0
        %7710 = vmatprep.subr.mxu0 0.0
        %7711 = vmatpush1.msra.mxu0 0.0
        %7712 = vmatprep.subr.mxu0 0.0
        %7713 = vmatpush1.msra.mxu0 0.0
        %7714 = vmatprep.subr.mxu0 0.0
        %7715 = vmatpush1.msra.mxu0 0.0
        %7716 = vmatprep.subr.mxu0 0.0
        %7717 = vmatpush1.msra.mxu0 0.0
        %7718 = vmatprep.subr.mxu0 0.0
        %7719 = vmatpush1.msra.mxu0 0.0
        %7720 = vmatprep.subr.mxu0 0.0
        %7721 = vmatpush1.msra.mxu0 0.0
        %7722 = vmatprep.subr.mxu0 0.0
        %7723 = vmatpush1.msra.mxu0 0.0
        %7724 = vmatprep.subr.mxu0 0.0
        %7725 = vmatpush1.msra.mxu0 0.0
        %7726 = vmatprep.subr.mxu0 0.0
        %7727 = vmatpush1.msra.mxu0 0.0
        %7728 = vmatprep.subr.mxu0 0.0
        %7729 = vmatpush1.msra.mxu0 0.0
        %7730 = vmatprep.subr.mxu0 0.0
        %7731 = vmatpush1.msra.mxu0 0.0
        %7732 = vmatprep.subr.mxu0 0.0
        %7733 = vmatpush1.msra.mxu0 0.0
        %7734 = vmatprep.subr.mxu0 0.0
        %7735 = vmatpush1.msra.mxu0 0.0
        %7736 = vmatprep.subr.mxu0 0.0
        %7737 = vmatpush1.msra.mxu0 0.0
        %7738 = vmatprep.subr.mxu0 0.0
        %7739 = vmatpush1.msra.mxu0 0.0
        %7740 = vmatprep.subr.mxu0 0.0
        %7741 = vmatpush1.msra.mxu0 0.0
        %7742 = vmatprep.subr.mxu0 0.0
        %7743 = vmatpush1.msra.mxu0 0.0
        %7744 = vmatprep.subr.mxu0 0.0
        %7745 = vmatpush1.msra.mxu0 0.0
        %7746 = vmatprep.subr.mxu0 0.0
        %7747 = vmatpush1.msra.mxu0 0.0
        %7748 = vmatprep.mubr.f32.mxu0 0.0
        %7749 = vmatmul.mubr.f32.gmra.mrb[0].mxu0 %v7050
        %v7750 = vpop.f32.mrb[0].mxu0
        %v7751 = vadd.f32 0.0, %v7750
        %v7752 = vpop.f32.mrb[0].mxu0
        %7753 = vmatprep.mubr.f32.mxu0 0.0
        %7754 = vmatmul.mubr.f32.gmra.mrb[0].mxu0 %v7053
        %v7755 = vpop.f32.mrb[0].mxu0
        %v7756 = vadd.f32 0.0, %v7755
        %v7757 = vpop.f32.mrb[0].mxu0
        %7758 = vdwg.mxu0
        %v7759 = vmax.f32 %v7682, %v7751
        %v7760 = vmax.f32 %v7683, %v7756
        %7761 = vmatprep.subr.mxu0 0.0
        %7762 = vmatpush1.msra.mxu0 %v7528
        %7763 = vmatprep.subr.mxu0 0.0
        %7764 = vmatpush1.msra.mxu0 %v7529
        %7765 = vmatprep.subr.mxu0 0.0
        %7766 = vmatpush1.msra.mxu0 0.0
        %7767 = vmatprep.subr.mxu0 0.0
        %7768 = vmatpush1.msra.mxu0 0.0
        %7769 = vmatprep.subr.mxu0 0.0
        %7770 = vmatpush1.msra.mxu0 0.0
        %7771 = vmatprep.subr.mxu0 0.0
        %7772 = vmatpush1.msra.mxu0 0.0
        %7773 = vmatprep.subr.mxu0 0.0
        %7774 = vmatpush1.msra.mxu0 0.0
        %7775 = vmatprep.subr.mxu0 0.0
        %7776 = vmatpush1.msra.mxu0 0.0
        %7777 = vmatprep.subr.mxu0 0.0
        %7778 = vmatpush1.msra.mxu0 0.0
        %7779 = vmatprep.subr.mxu0 0.0
        %7780 = vmatpush1.msra.mxu0 0.0
        %7781 = vmatprep.subr.mxu0 0.0
        %7782 = vmatpush1.msra.mxu0 0.0
        %7783 = vmatprep.subr.mxu0 0.0
        %7784 = vmatpush1.msra.mxu0 0.0
        %7785 = vmatprep.subr.mxu0 0.0
        %7786 = vmatpush1.msra.mxu0 0.0
        %7787 = vmatprep.subr.mxu0 0.0
        %7788 = vmatpush1.msra.mxu0 0.0
        %7789 = vmatprep.subr.mxu0 0.0
        %7790 = vmatpush1.msra.mxu0 0.0
        %7791 = vmatprep.subr.mxu0 0.0
        %7792 = vmatpush1.msra.mxu0 0.0
        %7793 = vmatprep.subr.mxu0 0.0
        %7794 = vmatpush1.msra.mxu0 0.0
        %7795 = vmatprep.subr.mxu0 0.0
        %7796 = vmatpush1.msra.mxu0 0.0
        %7797 = vmatprep.subr.mxu0 0.0
        %7798 = vmatpush1.msra.mxu0 0.0
        %7799 = vmatprep.subr.mxu0 0.0
        %7800 = vmatpush1.msra.mxu0 0.0
        %7801 = vmatprep.subr.mxu0 0.0
        %7802 = vmatpush1.msra.mxu0 0.0
        %7803 = vmatprep.subr.mxu0 0.0
        %7804 = vmatpush1.msra.mxu0 0.0
        %7805 = vmatprep.subr.mxu0 0.0
        %7806 = vmatpush1.msra.mxu0 0.0
        %7807 = vmatprep.subr.mxu0 0.0
        %7808 = vmatpush1.msra.mxu0 0.0
        %7809 = vmatprep.subr.mxu0 0.0
        %7810 = vmatpush1.msra.mxu0 0.0
        %7811 = vmatprep.subr.mxu0 0.0
        %7812 = vmatpush1.msra.mxu0 0.0
        %7813 = vmatprep.subr.mxu0 0.0
        %7814 = vmatpush1.msra.mxu0 0.0
        %7815 = vmatprep.subr.mxu0 0.0
        %7816 = vmatpush1.msra.mxu0 0.0
        %7817 = vmatprep.subr.mxu0 0.0
        %7818 = vmatpush1.msra.mxu0 0.0
        %7819 = vmatprep.subr.mxu0 0.0
        %7820 = vmatpush1.msra.mxu0 0.0
        %7821 = vmatprep.subr.mxu0 0.0
        %7822 = vmatpush1.msra.mxu0 0.0
        %7823 = vmatprep.subr.mxu0 0.0
        %7824 = vmatpush1.msra.mxu0 0.0
        %7825 = vmatprep.mubr.f32.mxu0 0.0
        %7826 = vmatmul.mubr.f32.gmra.mrb[0].mxu0 %v7136
        %v7827 = vpop.f32.mrb[0].mxu0
        %v7828 = vadd.f32 0.0, %v7827
        %v7829 = vpop.f32.mrb[0].mxu0
        %7830 = vmatprep.mubr.f32.mxu0 0.0
        %7831 = vmatmul.mubr.f32.gmra.mrb[0].mxu0 %v7139
        %v7832 = vpop.f32.mrb[0].mxu0
        %v7833 = vadd.f32 0.0, %v7832
        %v7834 = vpop.f32.mrb[0].mxu0
        %7835 = vdwg.mxu0
        %v7836 = vmax.f32 %v7759, %v7828
        %v7837 = vmax.f32 %v7760, %v7833
        %v7838 = vsub.f32 %v7836, 1.0
        %v7839 = vsub.f32 %v7837, 1.0
        %v7840 = vadd.f32 %v7838, 1.0
        %v7841 = vadd.f32 %v7839, 1.0
        %7842 = vmatprep.subr.mxu0 0.0
        %7843 = vmatpush1.msra.mxu0 %v7840
        %7844 = vmatprep.subr.mxu0 0.0
        %7845 = vmatpush1.msra.mxu0 %v7841
        %7846 = vmatprep.subr.mxu0 0.0
        %7847 = vmatpush1.msra.mxu0 0.0
        %7848 = vmatprep.subr.mxu0 0.0
        %7849 = vmatpush1.msra.mxu0 0.0
        %7850 = vmatprep.subr.mxu0 0.0
        %7851 = vmatpush1.msra.mxu0 0.0
        %7852 = vmatprep.subr.mxu0 0.0
        %7853 = vmatpush1.msra.mxu0 0.0
        %7854 = vmatprep.subr.mxu0 0.0
        %7855 = vmatpush1.msra.mxu0 0.0
        %7856 = vmatprep.subr.mxu0 0.0
        %7857 = vmatpush1.msra.mxu0 0.0
        %7858 = vmatprep.subr.mxu0 0.0
        %7859 = vmatpush1.msra.mxu0 0.0
        %7860 = vmatprep.subr.mxu0 0.0
        %7861 = vmatpush1.msra.mxu0 0.0
        %7862 = vmatprep.subr.mxu0 0.0
        %7863 = vmatpush1.msra.mxu0 0.0
        %7864 = vmatprep.subr.mxu0 0.0
        %7865 = vmatpush1.msra.mxu0 0.0
        %7866 = vmatprep.subr.mxu0 0.0
        %7867 = vmatpush1.msra.mxu0 0.0
        %7868 = vmatprep.subr.mxu0 0.0
        %7869 = vmatpush1.msra.mxu0 0.0
        %7870 = vmatprep.subr.mxu0 0.0
        %7871 = vmatpush1.msra.mxu0 0.0
        %7872 = vmatprep.subr.mxu0 0.0
        %7873 = vmatpush1.msra.mxu0 0.0
        %7874 = vmatprep.subr.mxu0 0.0
        %7875 = vmatpush1.msra.mxu0 0.0
        %7876 = vmatprep.subr.mxu0 0.0
        %7877 = vmatpush1.msra.mxu0 0.0
        %7878 = vmatprep.subr.mxu0 0.0
        %7879 = vmatpush1.msra.mxu0 0.0
        %7880 = vmatprep.subr.mxu0 0.0
        %7881 = vmatpush1.msra.mxu0 0.0
        %7882 = vmatprep.subr.mxu0 0.0
        %7883 = vmatpush1.msra.mxu0 0.0
        %7884 = vmatprep.subr.mxu0 0.0
        %7885 = vmatpush1.msra.mxu0 0.0
        %7886 = vmatprep.subr.mxu0 0.0
        %7887 = vmatpush1.msra.mxu0 0.0
        %7888 = vmatprep.subr.mxu0 0.0
        %7889 = vmatpush1.msra.mxu0 0.0
        %7890 = vmatprep.subr.mxu0 0.0
        %7891 = vmatpush1.msra.mxu0 0.0
        %7892 = vmatprep.subr.mxu0 0.0
        %7893 = vmatpush1.msra.mxu0 0.0
        %7894 = vmatprep.subr.mxu0 0.0
        %7895 = vmatpush1.msra.mxu0 0.0
        %7896 = vmatprep.subr.mxu0 0.0
        %7897 = vmatpush1.msra.mxu0 0.0
        %7898 = vmatprep.subr.mxu0 0.0
        %7899 = vmatpush1.msra.mxu0 0.0
        %7900 = vmatprep.subr.mxu0 0.0
        %7901 = vmatpush1.msra.mxu0 0.0
        %7902 = vmatprep.subr.mxu0 0.0
        %7903 = vmatpush1.msra.mxu0 0.0
        %7904 = vmatprep.subr.mxu0 0.0
        %7905 = vmatpush1.msra.mxu0 0.0
        %7906 = vmatprep.mubr.f32.mxu0 0.0
        %7907 = vmatmul.mubr.f32.gmra.mrb[0].mxu0 %v6534
        %v7908 = vpop.f32.mrb[0].mxu0
        %v7909 = vadd.f32 0.0, %v7908
        %v7910 = vpop.f32.mrb[0].mxu0
        %7911 = vmatprep.mubr.f32.mxu0 0.0
        %7912 = vmatmul.mubr.f32.gmra.mrb[0].mxu0 %v6537
        %v7913 = vpop.f32.mrb[0].mxu0
        %v7914 = vadd.f32 0.0, %v7913
        %v7915 = vpop.f32.mrb[0].mxu0
        %7916 = vdwg.mxu0
        %v7917 = vmax.f32 %v7840, %v7909
        %v7918 = vmax.f32 %v7841, %v7914
        %7919 = vmatprep.subr.mxu0 0.0
        %7920 = vmatpush1.msra.mxu0 %v7840
        %7921 = vmatprep.subr.mxu0 0.0
        %7922 = vmatpush1.msra.mxu0 %v7841
        %7923 = vmatprep.subr.mxu0 0.0
        %7924 = vmatpush1.msra.mxu0 0.0
        %7925 = vmatprep.subr.mxu0 0.0
        %7926 = vmatpush1.msra.mxu0 0.0
        %7927 = vmatprep.subr.mxu0 0.0
        %7928 = vmatpush1.msra.mxu0 0.0
        %7929 = vmatprep.subr.mxu0 0.0
        %7930 = vmatpush1.msra.mxu0 0.0
        %7931 = vmatprep.subr.mxu0 0.0
        %7932 = vmatpush1.msra.mxu0 0.0
        %7933 = vmatprep.subr.mxu0 0.0
        %7934 = vmatpush1.msra.mxu0 0.0
        %7935 = vmatprep.subr.mxu0 0.0
        %7936 = vmatpush1.msra.mxu0 0.0
        %7937 = vmatprep.subr.mxu0 0.0
        %7938 = vmatpush1.msra.mxu0 0.0
        %7939 = vmatprep.subr.mxu0 0.0
        %7940 = vmatpush1.msra.mxu0 0.0
        %7941 = vmatprep.subr.mxu0 0.0
        %7942 = vmatpush1.msra.mxu0 0.0
        %7943 = vmatprep.subr.mxu0 0.0
        %7944 = vmatpush1.msra.mxu0 0.0
        %7945 = vmatprep.subr.mxu0 0.0
        %7946 = vmatpush1.msra.mxu0 0.0
        %7947 = vmatprep.subr.mxu0 0.0
        %7948 = vmatpush1.msra.mxu0 0.0
        %7949 = vmatprep.subr.mxu0 0.0
        %7950 = vmatpush1.msra.mxu0 0.0
        %7951 = vmatprep.subr.mxu0 0.0
        %7952 = vmatpush1.msra.mxu0 0.0
        %7953 = vmatprep.subr.mxu0 0.0
        %7954 = vmatpush1.msra.mxu0 0.0
        %7955 = vmatprep.subr.mxu0 0.0
        %7956 = vmatpush1.msra.mxu0 0.0
        %7957 = vmatprep.subr.mxu0 0.0
        %7958 = vmatpush1.msra.mxu0 0.0
        %7959 = vmatprep.subr.mxu0 0.0
        %7960 = vmatpush1.msra.mxu0 0.0
        %7961 = vmatprep.subr.mxu0 0.0
        %7962 = vmatpush1.msra.mxu0 0.0
        %7963 = vmatprep.subr.mxu0 0.0
        %7964 = vmatpush1.msra.mxu0 0.0
        %7965 = vmatprep.subr.mxu0 0.0
        %7966 = vmatpush1.msra.mxu0 0.0
        %7967 = vmatprep.subr.mxu0 0.0
        %7968 = vmatpush1.msra.mxu0 0.0
        %7969 = vmatprep.subr.mxu0 0.0
        %7970 = vmatpush1.msra.mxu0 0.0
        %7971 = vmatprep.subr.mxu0 0.0
        %7972 = vmatpush1.msra.mxu0 0.0
        %7973 = vmatprep.subr.mxu0 0.0
        %7974 = vmatpush1.msra.mxu0 0.0
        %7975 = vmatprep.subr.mxu0 0.0
        %7976 = vmatpush1.msra.mxu0 0.0
        %7977 = vmatprep.subr.mxu0 0.0
        %7978 = vmatpush1.msra.mxu0 0.0
        %7979 = vmatprep.subr.mxu0 0.0
        %7980 = vmatpush1.msra.mxu0 0.0
        %7981 = vmatprep.subr.mxu0 0.0
        %7982 = vmatpush1.msra.mxu0 0.0
        %7983 = vmatprep.mubr.f32.mxu0 0.0
        %7984 = vmatmul.mubr.f32.gmra.mrb[0].mxu0 %v6620
        %v7985 = vpop.f32.mrb[0].mxu0
        %v7986 = vadd.f32 0.0, %v7985
        %v7987 = vpop.f32.mrb[0].mxu0
        %7988 = vmatprep.mubr.f32.mxu0 0.0
        %7989 = vmatmul.mubr.f32.gmra.mrb[0].mxu0 %v6623
        %v7990 = vpop.f32.mrb[0].mxu0
        %v7991 = vadd.f32 0.0, %v7990
        %v7992 = vpop.f32.mrb[0].mxu0
        %7993 = vdwg.mxu0
        %v7994 = vmax.f32 %v7917, %v7986
        %v7995 = vmax.f32 %v7918, %v7991
        %7996 = vmatprep.subr.mxu0 0.0
        %7997 = vmatpush1.msra.mxu0 %v7840
        %7998 = vmatprep.subr.mxu0 0.0
        %7999 = vmatpush1.msra.mxu0 %v7841
        %8000 = vmatprep.subr.mxu0 0.0
        %8001 = vmatpush1.msra.mxu0 0.0
        %8002 = vmatprep.subr.mxu0 0.0
        %8003 = vmatpush1.msra.mxu0 0.0
        %8004 = vmatprep.subr.mxu0 0.0
        %8005 = vmatpush1.msra.mxu0 0.0
        %8006 = vmatprep.subr.mxu0 0.0
        %8007 = vmatpush1.msra.mxu0 0.0
        %8008 = vmatprep.subr.mxu0 0.0
        %8009 = vmatpush1.msra.mxu0 0.0
        %8010 = vmatprep.subr.mxu0 0.0
        %8011 = vmatpush1.msra.mxu0 0.0
        %8012 = vmatprep.subr.mxu0 0.0
        %8013 = vmatpush1.msra.mxu0 0.0
        %8014 = vmatprep.subr.mxu0 0.0
        %8015 = vmatpush1.msra.mxu0 0.0
        %8016 = vmatprep.subr.mxu0 0.0
        %8017 = vmatpush1.msra.mxu0 0.0
        %8018 = vmatprep.subr.mxu0 0.0
        %8019 = vmatpush1.msra.mxu0 0.0
        %8020 = vmatprep.subr.mxu0 0.0
        %8021 = vmatpush1.msra.mxu0 0.0
        %8022 = vmatprep.subr.mxu0 0.0
        %8023 = vmatpush1.msra.mxu0 0.0
        %8024 = vmatprep.subr.mxu0 0.0
        %8025 = vmatpush1.msra.mxu0 0.0
        %8026 = vmatprep.subr.mxu0 0.0
        %8027 = vmatpush1.msra.mxu0 0.0
        %8028 = vmatprep.subr.mxu0 0.0
        %8029 = vmatpush1.msra.mxu0 0.0
        %8030 = vmatprep.subr.mxu0 0.0
        %8031 = vmatpush1.msra.mxu0 0.0
        %8032 = vmatprep.subr.mxu0 0.0
        %8033 = vmatpush1.msra.mxu0 0.0
        %8034 = vmatprep.subr.mxu0 0.0
        %8035 = vmatpush1.msra.mxu0 0.0
        %8036 = vmatprep.subr.mxu0 0.0
        %8037 = vmatpush1.msra.mxu0 0.0
        %8038 = vmatprep.subr.mxu0 0.0
        %8039 = vmatpush1.msra.mxu0 0.0
        %8040 = vmatprep.subr.mxu0 0.0
        %8041 = vmatpush1.msra.mxu0 0.0
        %8042 = vmatprep.subr.mxu0 0.0
        %8043 = vmatpush1.msra.mxu0 0.0
        %8044 = vmatprep.subr.mxu0 0.0
        %8045 = vmatpush1.msra.mxu0 0.0
        %8046 = vmatprep.subr.mxu0 0.0
        %8047 = vmatpush1.msra.mxu0 0.0
        %8048 = vmatprep.subr.mxu0 0.0
        %8049 = vmatpush1.msra.mxu0 0.0
        %8050 = vmatprep.subr.mxu0 0.0
        %8051 = vmatpush1.msra.mxu0 0.0
        %8052 = vmatprep.subr.mxu0 0.0
        %8053 = vmatpush1.msra.mxu0 0.0
        %8054 = vmatprep.subr.mxu0 0.0
        %8055 = vmatpush1.msra.mxu0 0.0
        %8056 = vmatprep.subr.mxu0 0.0
        %8057 = vmatpush1.msra.mxu0 0.0
        %8058 = vmatprep.subr.mxu0 0.0
        %8059 = vmatpush1.msra.mxu0 0.0
        %8060 = vmatprep.mubr.f32.mxu0 0.0
        %8061 = vmatmul.mubr.f32.gmra.mrb[0].mxu0 %v6706
        %v8062 = vpop.f32.mrb[0].mxu0
        %v8063 = vadd.f32 0.0, %v8062
        %v8064 = vpop.f32.mrb[0].mxu0
        %8065 = vmatprep.mubr.f32.mxu0 0.0
        %8066 = vmatmul.mubr.f32.gmra.mrb[0].mxu0 %v6709
        %v8067 = vpop.f32.mrb[0].mxu0
        %v8068 = vadd.f32 0.0, %v8067
        %v8069 = vpop.f32.mrb[0].mxu0
        %8070 = vdwg.mxu0
        %v8071 = vmax.f32 %v7994, %v8063
        %v8072 = vmax.f32 %v7995, %v8068
        %8073 = vmatprep.subr.mxu0 0.0
        %8074 = vmatpush1.msra.mxu0 %v7840
        %8075 = vmatprep.subr.mxu0 0.0
        %8076 = vmatpush1.msra.mxu0 %v7841
        %8077 = vmatprep.subr.mxu0 0.0
        %8078 = vmatpush1.msra.mxu0 0.0
        %8079 = vmatprep.subr.mxu0 0.0
        %8080 = vmatpush1.msra.mxu0 0.0
        %8081 = vmatprep.subr.mxu0 0.0
        %8082 = vmatpush1.msra.mxu0 0.0
        %8083 = vmatprep.subr.mxu0 0.0
        %8084 = vmatpush1.msra.mxu0 0.0
        %8085 = vmatprep.subr.mxu0 0.0
        %8086 = vmatpush1.msra.mxu0 0.0
        %8087 = vmatprep.subr.mxu0 0.0
        %8088 = vmatpush1.msra.mxu0 0.0
        %8089 = vmatprep.subr.mxu0 0.0
        %8090 = vmatpush1.msra.mxu0 0.0
        %8091 = vmatprep.subr.mxu0 0.0
        %8092 = vmatpush1.msra.mxu0 0.0
        %8093 = vmatprep.subr.mxu0 0.0
        %8094 = vmatpush1.msra.mxu0 0.0
        %8095 = vmatprep.subr.mxu0 0.0
        %8096 = vmatpush1.msra.mxu0 0.0
        %8097 = vmatprep.subr.mxu0 0.0
        %8098 = vmatpush1.msra.mxu0 0.0
        %8099 = vmatprep.subr.mxu0 0.0
        %8100 = vmatpush1.msra.mxu0 0.0
        %8101 = vmatprep.subr.mxu0 0.0
        %8102 = vmatpush1.msra.mxu0 0.0
        %8103 = vmatprep.subr.mxu0 0.0
        %8104 = vmatpush1.msra.mxu0 0.0
        %8105 = vmatprep.subr.mxu0 0.0
        %8106 = vmatpush1.msra.mxu0 0.0
        %8107 = vmatprep.subr.mxu0 0.0
        %8108 = vmatpush1.msra.mxu0 0.0
        %8109 = vmatprep.subr.mxu0 0.0
        %8110 = vmatpush1.msra.mxu0 0.0
        %8111 = vmatprep.subr.mxu0 0.0
        %8112 = vmatpush1.msra.mxu0 0.0
        %8113 = vmatprep.subr.mxu0 0.0
        %8114 = vmatpush1.msra.mxu0 0.0
        %8115 = vmatprep.subr.mxu0 0.0
        %8116 = vmatpush1.msra.mxu0 0.0
        %8117 = vmatprep.subr.mxu0 0.0
        %8118 = vmatpush1.msra.mxu0 0.0
        %8119 = vmatprep.subr.mxu0 0.0
        %8120 = vmatpush1.msra.mxu0 0.0
        %8121 = vmatprep.subr.mxu0 0.0
        %8122 = vmatpush1.msra.mxu0 0.0
        %8123 = vmatprep.subr.mxu0 0.0
        %8124 = vmatpush1.msra.mxu0 0.0
        %8125 = vmatprep.subr.mxu0 0.0
        %8126 = vmatpush1.msra.mxu0 0.0
        %8127 = vmatprep.subr.mxu0 0.0
        %8128 = vmatpush1.msra.mxu0 0.0
        %8129 = vmatprep.subr.mxu0 0.0
        %8130 = vmatpush1.msra.mxu0 0.0
        %8131 = vmatprep.subr.mxu0 0.0
        %8132 = vmatpush1.msra.mxu0 0.0
        %8133 = vmatprep.subr.mxu0 0.0
        %8134 = vmatpush1.msra.mxu0 0.0
        %8135 = vmatprep.subr.mxu0 0.0
        %8136 = vmatpush1.msra.mxu0 0.0
        %8137 = vmatprep.mubr.f32.mxu0 0.0
        %8138 = vmatmul.mubr.f32.gmra.mrb[0].mxu0 %v6792
        %v8139 = vpop.f32.mrb[0].mxu0
        %v8140 = vadd.f32 0.0, %v8139
        %v8141 = vpop.f32.mrb[0].mxu0
        %8142 = vmatprep.mubr.f32.mxu0 0.0
        %8143 = vmatmul.mubr.f32.gmra.mrb[0].mxu0 %v6795
        %v8144 = vpop.f32.mrb[0].mxu0
        %v8145 = vadd.f32 0.0, %v8144
        %v8146 = vpop.f32.mrb[0].mxu0
        %8147 = vdwg.mxu0
        %v8148 = vmax.f32 %v8071, %v8140
        %v8149 = vmax.f32 %v8072, %v8145
        %8150 = vmatprep.subr.mxu0 0.0
        %8151 = vmatpush1.msra.mxu0 %v8148
        %8152 = vmatprep.subr.mxu0 0.0
        %8153 = vmatpush1.msra.mxu0 %v8149
        %8154 = vmatprep.subr.mxu0 0.0
        %8155 = vmatpush1.msra.mxu0 0.0
        %8156 = vmatprep.subr.mxu0 0.0
        %8157 = vmatpush1.msra.mxu0 0.0
        %8158 = vmatprep.subr.mxu0 0.0
        %8159 = vmatpush1.msra.mxu0 0.0
        %8160 = vmatprep.subr.mxu0 0.0
        %8161 = vmatpush1.msra.mxu0 0.0
        %8162 = vmatprep.subr.mxu0 0.0
        %8163 = vmatpush1.msra.mxu0 0.0
        %8164 = vmatprep.subr.mxu0 0.0
        %8165 = vmatpush1.msra.mxu0 0.0
        %8166 = vmatprep.subr.mxu0 0.0
        %8167 = vmatpush1.msra.mxu0 0.0
        %8168 = vmatprep.subr.mxu0 0.0
        %8169 = vmatpush1.msra.mxu0 0.0
        %8170 = vmatprep.subr.mxu0 0.0
        %8171 = vmatpush1.msra.mxu0 0.0
        %8172 = vmatprep.subr.mxu0 0.0
        %8173 = vmatpush1.msra.mxu0 0.0
        %8174 = vmatprep.subr.mxu0 0.0
        %8175 = vmatpush1.msra.mxu0 0.0
        %8176 = vmatprep.subr.mxu0 0.0
        %8177 = vmatpush1.msra.mxu0 0.0
        %8178 = vmatprep.subr.mxu0 0.0
        %8179 = vmatpush1.msra.mxu0 0.0
        %8180 = vmatprep.subr.mxu0 0.0
        %8181 = vmatpush1.msra.mxu0 0.0
        %8182 = vmatprep.subr.mxu0 0.0
        %8183 = vmatpush1.msra.mxu0 0.0
        %8184 = vmatprep.subr.mxu0 0.0
        %8185 = vmatpush1.msra.mxu0 0.0
        %8186 = vmatprep.subr.mxu0 0.0
        %8187 = vmatpush1.msra.mxu0 0.0
        %8188 = vmatprep.subr.mxu0 0.0
        %8189 = vmatpush1.msra.mxu0 0.0
        %8190 = vmatprep.subr.mxu0 0.0
        %8191 = vmatpush1.msra.mxu0 0.0
        %8192 = vmatprep.subr.mxu0 0.0
        %8193 = vmatpush1.msra.mxu0 0.0
        %8194 = vmatprep.subr.mxu0 0.0
        %8195 = vmatpush1.msra.mxu0 0.0
        %8196 = vmatprep.subr.mxu0 0.0
        %8197 = vmatpush1.msra.mxu0 0.0
        %8198 = vmatprep.subr.mxu0 0.0
        %8199 = vmatpush1.msra.mxu0 0.0
        %8200 = vmatprep.subr.mxu0 0.0
        %8201 = vmatpush1.msra.mxu0 0.0
        %8202 = vmatprep.subr.mxu0 0.0
        %8203 = vmatpush1.msra.mxu0 0.0
        %8204 = vmatprep.subr.mxu0 0.0
        %8205 = vmatpush1.msra.mxu0 0.0
        %8206 = vmatprep.subr.mxu0 0.0
        %8207 = vmatpush1.msra.mxu0 0.0
        %8208 = vmatprep.subr.mxu0 0.0
        %8209 = vmatpush1.msra.mxu0 0.0
        %8210 = vmatprep.subr.mxu0 0.0
        %8211 = vmatpush1.msra.mxu0 0.0
        %8212 = vmatprep.subr.mxu0 0.0
        %8213 = vmatpush1.msra.mxu0 0.0
        %8214 = vmatprep.mubr.f32.mxu0 0.0
        %8215 = vmatmul.mubr.f32.gmra.mrb[0].mxu0 %v6878
        %v8216 = vpop.f32.mrb[0].mxu0
        %v8217 = vadd.f32 0.0, %v8216
        %v8218 = vpop.f32.mrb[0].mxu0
        %8219 = vmatprep.mubr.f32.mxu0 0.0
        %8220 = vmatmul.mubr.f32.gmra.mrb[0].mxu0 %v6881
        %v8221 = vpop.f32.mrb[0].mxu0
        %v8222 = vadd.f32 0.0, %v8221
        %v8223 = vpop.f32.mrb[0].mxu0
        %8224 = vdwg.mxu0
        %v8225 = vmax.f32 %v8148, %v8217
        %v8226 = vmax.f32 %v8149, %v8222
        %8227 = vmatprep.subr.mxu0 0.0
        %8228 = vmatpush1.msra.mxu0 %v8148
        %8229 = vmatprep.subr.mxu0 0.0
        %8230 = vmatpush1.msra.mxu0 %v8149
        %8231 = vmatprep.subr.mxu0 0.0
        %8232 = vmatpush1.msra.mxu0 0.0
        %8233 = vmatprep.subr.mxu0 0.0
        %8234 = vmatpush1.msra.mxu0 0.0
        %8235 = vmatprep.subr.mxu0 0.0
        %8236 = vmatpush1.msra.mxu0 0.0
        %8237 = vmatprep.subr.mxu0 0.0
        %8238 = vmatpush1.msra.mxu0 0.0
        %8239 = vmatprep.subr.mxu0 0.0
        %8240 = vmatpush1.msra.mxu0 0.0
        %8241 = vmatprep.subr.mxu0 0.0
        %8242 = vmatpush1.msra.mxu0 0.0
        %8243 = vmatprep.subr.mxu0 0.0
        %8244 = vmatpush1.msra.mxu0 0.0
        %8245 = vmatprep.subr.mxu0 0.0
        %8246 = vmatpush1.msra.mxu0 0.0
        %8247 = vmatprep.subr.mxu0 0.0
        %8248 = vmatpush1.msra.mxu0 0.0
        %8249 = vmatprep.subr.mxu0 0.0
        %8250 = vmatpush1.msra.mxu0 0.0
        %8251 = vmatprep.subr.mxu0 0.0
        %8252 = vmatpush1.msra.mxu0 0.0
        %8253 = vmatprep.subr.mxu0 0.0
        %8254 = vmatpush1.msra.mxu0 0.0
        %8255 = vmatprep.subr.mxu0 0.0
        %8256 = vmatpush1.msra.mxu0 0.0
        %8257 = vmatprep.subr.mxu0 0.0
        %8258 = vmatpush1.msra.mxu0 0.0
        %8259 = vmatprep.subr.mxu0 0.0
        %8260 = vmatpush1.msra.mxu0 0.0
        %8261 = vmatprep.subr.mxu0 0.0
        %8262 = vmatpush1.msra.mxu0 0.0
        %8263 = vmatprep.subr.mxu0 0.0
        %8264 = vmatpush1.msra.mxu0 0.0
        %8265 = vmatprep.subr.mxu0 0.0
        %8266 = vmatpush1.msra.mxu0 0.0
        %8267 = vmatprep.subr.mxu0 0.0
        %8268 = vmatpush1.msra.mxu0 0.0
        %8269 = vmatprep.subr.mxu0 0.0
        %8270 = vmatpush1.msra.mxu0 0.0
        %8271 = vmatprep.subr.mxu0 0.0
        %8272 = vmatpush1.msra.mxu0 0.0
        %8273 = vmatprep.subr.mxu0 0.0
        %8274 = vmatpush1.msra.mxu0 0.0
        %8275 = vmatprep.subr.mxu0 0.0
        %8276 = vmatpush1.msra.mxu0 0.0
        %8277 = vmatprep.subr.mxu0 0.0
        %8278 = vmatpush1.msra.mxu0 0.0
        %8279 = vmatprep.subr.mxu0 0.0
        %8280 = vmatpush1.msra.mxu0 0.0
        %8281 = vmatprep.subr.mxu0 0.0
        %8282 = vmatpush1.msra.mxu0 0.0
        %8283 = vmatprep.subr.mxu0 0.0
        %8284 = vmatpush1.msra.mxu0 0.0
        %8285 = vmatprep.subr.mxu0 0.0
        %8286 = vmatpush1.msra.mxu0 0.0
        %8287 = vmatprep.subr.mxu0 0.0
        %8288 = vmatpush1.msra.mxu0 0.0
        %8289 = vmatprep.subr.mxu0 0.0
        %8290 = vmatpush1.msra.mxu0 0.0
        %8291 = vmatprep.mubr.f32.mxu0 0.0
        %8292 = vmatmul.mubr.f32.gmra.mrb[0].mxu0 %v6964
        %v8293 = vpop.f32.mrb[0].mxu0
        %v8294 = vadd.f32 0.0, %v8293
        %v8295 = vpop.f32.mrb[0].mxu0
        %8296 = vmatprep.mubr.f32.mxu0 0.0
        %8297 = vmatmul.mubr.f32.gmra.mrb[0].mxu0 %v6967
        %v8298 = vpop.f32.mrb[0].mxu0
        %v8299 = vadd.f32 0.0, %v8298
        %v8300 = vpop.f32.mrb[0].mxu0
        %8301 = vdwg.mxu0
        %v8302 = vmax.f32 %v8225, %v8294
        %v8303 = vmax.f32 %v8226, %v8299
        %8304 = vmatprep.subr.mxu0 0.0
        %8305 = vmatpush1.msra.mxu0 %v8148
        %8306 = vmatprep.subr.mxu0 0.0
        %8307 = vmatpush1.msra.mxu0 %v8149
        %8308 = vmatprep.subr.mxu0 0.0
        %8309 = vmatpush1.msra.mxu0 0.0
        %8310 = vmatprep.subr.mxu0 0.0
        %8311 = vmatpush1.msra.mxu0 0.0
        %8312 = vmatprep.subr.mxu0 0.0
        %8313 = vmatpush1.msra.mxu0 0.0
        %8314 = vmatprep.subr.mxu0 0.0
        %8315 = vmatpush1.msra.mxu0 0.0
        %8316 = vmatprep.subr.mxu0 0.0
        %8317 = vmatpush1.msra.mxu0 0.0
        %8318 = vmatprep.subr.mxu0 0.0
        %8319 = vmatpush1.msra.mxu0 0.0
        %8320 = vmatprep.subr.mxu0 0.0
        %8321 = vmatpush1.msra.mxu0 0.0
        %8322 = vmatprep.subr.mxu0 0.0
        %8323 = vmatpush1.msra.mxu0 0.0
        %8324 = vmatprep.subr.mxu0 0.0
        %8325 = vmatpush1.msra.mxu0 0.0
        %8326 = vmatprep.subr.mxu0 0.0
        %8327 = vmatpush1.msra.mxu0 0.0
        %8328 = vmatprep.subr.mxu0 0.0
        %8329 = vmatpush1.msra.mxu0 0.0
        %8330 = vmatprep.subr.mxu0 0.0
        %8331 = vmatpush1.msra.mxu0 0.0
        %8332 = vmatprep.subr.mxu0 0.0
        %8333 = vmatpush1.msra.mxu0 0.0
        %8334 = vmatprep.subr.mxu0 0.0
        %8335 = vmatpush1.msra.mxu0 0.0
        %8336 = vmatprep.subr.mxu0 0.0
        %8337 = vmatpush1.msra.mxu0 0.0
        %8338 = vmatprep.subr.mxu0 0.0
        %8339 = vmatpush1.msra.mxu0 0.0
        %8340 = vmatprep.subr.mxu0 0.0
        %8341 = vmatpush1.msra.mxu0 0.0
        %8342 = vmatprep.subr.mxu0 0.0
        %8343 = vmatpush1.msra.mxu0 0.0
        %8344 = vmatprep.subr.mxu0 0.0
        %8345 = vmatpush1.msra.mxu0 0.0
        %8346 = vmatprep.subr.mxu0 0.0
        %8347 = vmatpush1.msra.mxu0 0.0
        %8348 = vmatprep.subr.mxu0 0.0
        %8349 = vmatpush1.msra.mxu0 0.0
        %8350 = vmatprep.subr.mxu0 0.0
        %8351 = vmatpush1.msra.mxu0 0.0
        %8352 = vmatprep.subr.mxu0 0.0
        %8353 = vmatpush1.msra.mxu0 0.0
        %8354 = vmatprep.subr.mxu0 0.0
        %8355 = vmatpush1.msra.mxu0 0.0
        %8356 = vmatprep.subr.mxu0 0.0
        %8357 = vmatpush1.msra.mxu0 0.0
        %8358 = vmatprep.subr.mxu0 0.0
        %8359 = vmatpush1.msra.mxu0 0.0
        %8360 = vmatprep.subr.mxu0 0.0
        %8361 = vmatpush1.msra.mxu0 0.0
        %8362 = vmatprep.subr.mxu0 0.0
        %8363 = vmatpush1.msra.mxu0 0.0
        %8364 = vmatprep.subr.mxu0 0.0
        %8365 = vmatpush1.msra.mxu0 0.0
        %8366 = vmatprep.subr.mxu0 0.0
        %8367 = vmatpush1.msra.mxu0 0.0
        %8368 = vmatprep.mubr.f32.mxu0 0.0
        %8369 = vmatmul.mubr.f32.gmra.mrb[0].mxu0 %v7050
        %v8370 = vpop.f32.mrb[0].mxu0
        %v8371 = vadd.f32 0.0, %v8370
        %v8372 = vpop.f32.mrb[0].mxu0
        %8373 = vmatprep.mubr.f32.mxu0 0.0
        %8374 = vmatmul.mubr.f32.gmra.mrb[0].mxu0 %v7053
        %v8375 = vpop.f32.mrb[0].mxu0
        %v8376 = vadd.f32 0.0, %v8375
        %v8377 = vpop.f32.mrb[0].mxu0
        %8378 = vdwg.mxu0
        %v8379 = vmax.f32 %v8302, %v8371
        %v8380 = vmax.f32 %v8303, %v8376
        %8381 = vmatprep.subr.mxu0 0.0
        %8382 = vmatpush1.msra.mxu0 %v8148
        %8383 = vmatprep.subr.mxu0 0.0
        %8384 = vmatpush1.msra.mxu0 %v8149
        %8385 = vmatprep.subr.mxu0 0.0
        %8386 = vmatpush1.msra.mxu0 0.0
        %8387 = vmatprep.subr.mxu0 0.0
        %8388 = vmatpush1.msra.mxu0 0.0
        %8389 = vmatprep.subr.mxu0 0.0
        %8390 = vmatpush1.msra.mxu0 0.0
        %8391 = vmatprep.subr.mxu0 0.0
        %8392 = vmatpush1.msra.mxu0 0.0
        %8393 = vmatprep.subr.mxu0 0.0
        %8394 = vmatpush1.msra.mxu0 0.0
        %8395 = vmatprep.subr.mxu0 0.0
        %8396 = vmatpush1.msra.mxu0 0.0
        %8397 = vmatprep.subr.mxu0 0.0
        %8398 = vmatpush1.msra.mxu0 0.0
        %8399 = vmatprep.subr.mxu0 0.0
        %8400 = vmatpush1.msra.mxu0 0.0
        %8401 = vmatprep.subr.mxu0 0.0
        %8402 = vmatpush1.msra.mxu0 0.0
        %8403 = vmatprep.subr.mxu0 0.0
        %8404 = vmatpush1.msra.mxu0 0.0
        %8405 = vmatprep.subr.mxu0 0.0
        %8406 = vmatpush1.msra.mxu0 0.0
        %8407 = vmatprep.subr.mxu0 0.0
        %8408 = vmatpush1.msra.mxu0 0.0
        %8409 = vmatprep.subr.mxu0 0.0
        %8410 = vmatpush1.msra.mxu0 0.0
        %8411 = vmatprep.subr.mxu0 0.0
        %8412 = vmatpush1.msra.mxu0 0.0
        %8413 = vmatprep.subr.mxu0 0.0
        %8414 = vmatpush1.msra.mxu0 0.0
        %8415 = vmatprep.subr.mxu0 0.0
        %8416 = vmatpush1.msra.mxu0 0.0
        %8417 = vmatprep.subr.mxu0 0.0
        %8418 = vmatpush1.msra.mxu0 0.0
        %8419 = vmatprep.subr.mxu0 0.0
        %8420 = vmatpush1.msra.mxu0 0.0
        %8421 = vmatprep.subr.mxu0 0.0
        %8422 = vmatpush1.msra.mxu0 0.0
        %8423 = vmatprep.subr.mxu0 0.0
        %8424 = vmatpush1.msra.mxu0 0.0
        %8425 = vmatprep.subr.mxu0 0.0
        %8426 = vmatpush1.msra.mxu0 0.0
        %8427 = vmatprep.subr.mxu0 0.0
        %8428 = vmatpush1.msra.mxu0 0.0
        %8429 = vmatprep.subr.mxu0 0.0
        %8430 = vmatpush1.msra.mxu0 0.0
        %8431 = vmatprep.subr.mxu0 0.0
        %8432 = vmatpush1.msra.mxu0 0.0
        %8433 = vmatprep.subr.mxu0 0.0
        %8434 = vmatpush1.msra.mxu0 0.0
        %8435 = vmatprep.subr.mxu0 0.0
        %8436 = vmatpush1.msra.mxu0 0.0
        %8437 = vmatprep.subr.mxu0 0.0
        %8438 = vmatpush1.msra.mxu0 0.0
        %8439 = vmatprep.subr.mxu0 0.0
        %8440 = vmatpush1.msra.mxu0 0.0
        %8441 = vmatprep.subr.mxu0 0.0
        %8442 = vmatpush1.msra.mxu0 0.0
        %8443 = vmatprep.subr.mxu0 0.0
        %8444 = vmatpush1.msra.mxu0 0.0
        %8445 = vmatprep.mubr.f32.mxu0 0.0
        %8446 = vmatmul.mubr.f32.gmra.mrb[0].mxu0 %v7136
        %v8447 = vpop.f32.mrb[0].mxu0
        %v8448 = vadd.f32 0.0, %v8447
        %v8449 = vpop.f32.mrb[0].mxu0
        %8450 = vmatprep.mubr.f32.mxu0 0.0
        %8451 = vmatmul.mubr.f32.gmra.mrb[0].mxu0 %v7139
        %v8452 = vpop.f32.mrb[0].mxu0
        %v8453 = vadd.f32 0.0, %v8452
        %v8454 = vpop.f32.mrb[0].mxu0
        %8455 = vdwg.mxu0
        %v8456 = vmax.f32 %v8379, %v8448
        %v8457 = vmax.f32 %v8380, %v8453
        %v8458 = vsub.f32 %v8456, 1.0
        %v8459 = vsub.f32 %v8457, 1.0
        %s8460 = scalar_lea.vmem [#allocation8], 512
        %v8461 = vld [vmem:[%s8460] sm:$0xff]
        %v8462 = vld [vmem:[%s8460 + $0x8] sm:$0xff]
        %v8463 = vld [vmem:[%s8460 + $0x10] sm:$0xff]
        %v8464 = vld [vmem:[%s8460 + $0x18] sm:$0xff]
        %v8465 = vld [vmem:[%s8460 + $0x20] sm:$0xff]
        %v8466 = vld [vmem:[%s8460 + $0x28] sm:$0xff]
        %v8467 = vld [vmem:[%s8460 + $0x30] sm:$0xff]
        %v8468 = vld [vmem:[%s8460 + $0x38] sm:$0xff]
        %v8469 = vld [vmem:[%s8460 + $0x40] sm:$0xff]
        %v8470 = vld [vmem:[%s8460 + $0x48] sm:$0xff]
        %v8471 = vld [vmem:[%s8460 + $0x50] sm:$0xff]
        %v8472 = vld [vmem:[%s8460 + $0x58] sm:$0xff]
        %v8473 = vld [vmem:[%s8460 + $0x60] sm:$0xff]
        %v8474 = vld [vmem:[%s8460 + $0x68] sm:$0xff]
        %v8475 = vld [vmem:[%s8460 + $0x70] sm:$0xff]
        %v8476 = vld [vmem:[%s8460 + $0x78] sm:$0xff]
        %s8477 = scalar_lea.vmem [#allocation8], 640
        %v8478 = vld [vmem:[%s8477] sm:$0xff]
        %v8479 = vld [vmem:[%s8477 + $0x8] sm:$0xff]
        %v8480 = vld [vmem:[%s8477 + $0x10] sm:$0xff]
        %v8481 = vld [vmem:[%s8477 + $0x18] sm:$0xff]
        %v8482 = vld [vmem:[%s8477 + $0x20] sm:$0xff]
        %v8483 = vld [vmem:[%s8477 + $0x28] sm:$0xff]
        %v8484 = vld [vmem:[%s8477 + $0x30] sm:$0xff]
        %v8485 = vld [vmem:[%s8477 + $0x38] sm:$0xff]
        %v8486 = vld [vmem:[%s8477 + $0x40] sm:$0xff]
        %v8487 = vld [vmem:[%s8477 + $0x48] sm:$0xff]
        %v8488 = vld [vmem:[%s8477 + $0x50] sm:$0xff]
        %v8489 = vld [vmem:[%s8477 + $0x58] sm:$0xff]
        %v8490 = vld [vmem:[%s8477 + $0x60] sm:$0xff]
        %v8491 = vld [vmem:[%s8477 + $0x68] sm:$0xff]
        %v8492 = vld [vmem:[%s8477 + $0x70] sm:$0xff]
        %v8493 = vld [vmem:[%s8477 + $0x78] sm:$0xff]
        %8494 = vmatprep.subr.mxu0 0.0
        %8495 = vmatpush1.msra.mxu0 %v8478
        %8496 = vmatprep.subr.mxu0 0.0
        %8497 = vmatpush1.msra.mxu0 %v8479
        %8498 = vmatprep.subr.mxu0 0.0
        %8499 = vmatpush1.msra.mxu0 %v8480
        %8500 = vmatprep.subr.mxu0 0.0
        %8501 = vmatpush1.msra.mxu0 %v8481
        %8502 = vmatprep.subr.mxu0 0.0
        %8503 = vmatpush1.msra.mxu0 %v8482
        %8504 = vmatprep.subr.mxu0 0.0
        %8505 = vmatpush1.msra.mxu0 %v8483
        %8506 = vmatprep.subr.mxu0 0.0
        %8507 = vmatpush1.msra.mxu0 %v8484
        %8508 = vmatprep.subr.mxu0 0.0
        %8509 = vmatpush1.msra.mxu0 %v8485
        %8510 = vmatprep.subr.mxu0 0.0
        %8511 = vmatpush1.msra.mxu0 %v8486
        %8512 = vmatprep.subr.mxu0 0.0
        %8513 = vmatpush1.msra.mxu0 %v8487
        %8514 = vmatprep.subr.mxu0 0.0
        %8515 = vmatpush1.msra.mxu0 %v8488
        %8516 = vmatprep.subr.mxu0 0.0
        %8517 = vmatpush1.msra.mxu0 %v8489
        %8518 = vmatprep.subr.mxu0 0.0
        %8519 = vmatpush1.msra.mxu0 %v8490
        %8520 = vmatprep.subr.mxu0 0.0
        %8521 = vmatpush1.msra.mxu0 %v8491
        %8522 = vmatprep.subr.mxu0 0.0
        %8523 = vmatpush1.msra.mxu0 %v8492
        %8524 = vmatprep.subr.mxu0 0.0
        %8525 = vmatpush1.msra.mxu0 %v8493
        %8526 = vmatprep.subr.mxu0 0.0
        %8527 = vmatpush1.msra.mxu0 0.0
        %8528 = vmatprep.subr.mxu0 0.0
        %8529 = vmatpush1.msra.mxu0 0.0
        %8530 = vmatprep.subr.mxu0 0.0
        %8531 = vmatpush1.msra.mxu0 0.0
        %8532 = vmatprep.subr.mxu0 0.0
        %8533 = vmatpush1.msra.mxu0 0.0
        %8534 = vmatprep.subr.mxu0 0.0
        %8535 = vmatpush1.msra.mxu0 0.0
        %8536 = vmatprep.subr.mxu0 0.0
        %8537 = vmatpush1.msra.mxu0 0.0
        %8538 = vmatprep.subr.mxu0 0.0
        %8539 = vmatpush1.msra.mxu0 0.0
        %8540 = vmatprep.subr.mxu0 0.0
        %8541 = vmatpush1.msra.mxu0 0.0
        %8542 = vmatprep.subr.mxu0 0.0
        %8543 = vmatpush1.msra.mxu0 0.0
        %8544 = vmatprep.subr.mxu0 0.0
        %8545 = vmatpush1.msra.mxu0 0.0
        %8546 = vmatprep.subr.mxu0 0.0
        %8547 = vmatpush1.msra.mxu0 0.0
        %8548 = vmatprep.subr.mxu0 0.0
        %8549 = vmatpush1.msra.mxu0 0.0
        %8550 = vmatprep.subr.mxu0 0.0
        %8551 = vmatpush1.msra.mxu0 0.0
        %8552 = vmatprep.subr.mxu0 0.0
        %8553 = vmatpush1.msra.mxu0 0.0
        %8554 = vmatprep.subr.mxu0 0.0
        %8555 = vmatpush1.msra.mxu0 0.0
        %8556 = vmatprep.subr.mxu0 0.0
        %8557 = vmatpush1.msra.mxu0 0.0
        %8558 = vmatprep.mubr.f32.mxu0 0.0
        %8559 = vmatmul.mubr.f32.gmra.mrb[0].mxu0 %v7218
        %v8560 = vpop.f32.mrb[0].mxu0
        %v8561 = vadd.f32 0.0, %v8560
        %v8562 = vpop.f32.mrb[0].mxu0
        %8563 = vmatprep.mubr.f32.mxu0 0.0
        %8564 = vmatmul.mubr.f32.gmra.mrb[0].mxu0 %v7219
        %v8565 = vpop.f32.mrb[0].mxu0
        %v8566 = vadd.f32 0.0, %v8565
        %v8567 = vpop.f32.mrb[0].mxu0
        %8568 = vdwg.mxu0
        %8569 = vmatprep.subr.mxu0 0.0
        %8570 = vmatpush1.msra.mxu0 %v8461
        %8571 = vmatprep.subr.mxu0 0.0
        %8572 = vmatpush1.msra.mxu0 %v8462
        %8573 = vmatprep.subr.mxu0 0.0
        %8574 = vmatpush1.msra.mxu0 %v8463
        %8575 = vmatprep.subr.mxu0 0.0
        %8576 = vmatpush1.msra.mxu0 %v8464
        %8577 = vmatprep.subr.mxu0 0.0
        %8578 = vmatpush1.msra.mxu0 %v8465
        %8579 = vmatprep.subr.mxu0 0.0
        %8580 = vmatpush1.msra.mxu0 %v8466
        %8581 = vmatprep.subr.mxu0 0.0
        %8582 = vmatpush1.msra.mxu0 %v8467
        %8583 = vmatprep.subr.mxu0 0.0
        %8584 = vmatpush1.msra.mxu0 %v8468
        %8585 = vmatprep.subr.mxu0 0.0
        %8586 = vmatpush1.msra.mxu0 %v8469
        %8587 = vmatprep.subr.mxu0 0.0
        %8588 = vmatpush1.msra.mxu0 %v8470
        %8589 = vmatprep.subr.mxu0 0.0
        %8590 = vmatpush1.msra.mxu0 %v8471
        %8591 = vmatprep.subr.mxu0 0.0
        %8592 = vmatpush1.msra.mxu0 %v8472
        %8593 = vmatprep.subr.mxu0 0.0
        %8594 = vmatpush1.msra.mxu0 %v8473
        %8595 = vmatprep.subr.mxu0 0.0
        %8596 = vmatpush1.msra.mxu0 %v8474
        %8597 = vmatprep.subr.mxu0 0.0
        %8598 = vmatpush1.msra.mxu0 %v8475
        %8599 = vmatprep.subr.mxu0 0.0
        %8600 = vmatpush1.msra.mxu0 %v8476
        %8601 = vmatprep.subr.mxu0 0.0
        %8602 = vmatpush1.msra.mxu0 0.0
        %8603 = vmatprep.subr.mxu0 0.0
        %8604 = vmatpush1.msra.mxu0 0.0
        %8605 = vmatprep.subr.mxu0 0.0
        %8606 = vmatpush1.msra.mxu0 0.0
        %8607 = vmatprep.subr.mxu0 0.0
        %8608 = vmatpush1.msra.mxu0 0.0
        %8609 = vmatprep.subr.mxu0 0.0
        %8610 = vmatpush1.msra.mxu0 0.0
        %8611 = vmatprep.subr.mxu0 0.0
        %8612 = vmatpush1.msra.mxu0 0.0
        %8613 = vmatprep.subr.mxu0 0.0
        %8614 = vmatpush1.msra.mxu0 0.0
        %8615 = vmatprep.subr.mxu0 0.0
        %8616 = vmatpush1.msra.mxu0 0.0
        %8617 = vmatprep.subr.mxu0 0.0
        %8618 = vmatpush1.msra.mxu0 0.0
        %8619 = vmatprep.subr.mxu0 0.0
        %8620 = vmatpush1.msra.mxu0 0.0
        %8621 = vmatprep.subr.mxu0 0.0
        %8622 = vmatpush1.msra.mxu0 0.0
        %8623 = vmatprep.subr.mxu0 0.0
        %8624 = vmatpush1.msra.mxu0 0.0
        %8625 = vmatprep.subr.mxu0 0.0
        %8626 = vmatpush1.msra.mxu0 0.0
        %8627 = vmatprep.subr.mxu0 0.0
        %8628 = vmatpush1.msra.mxu0 0.0
        %8629 = vmatprep.subr.mxu0 0.0
        %8630 = vmatpush1.msra.mxu0 0.0
        %8631 = vmatprep.subr.mxu0 0.0
        %8632 = vmatpush1.msra.mxu0 0.0
        %8633 = vmatprep.mubr.f32.mxu0 0.0
        %8634 = vmatmul.mubr.f32.gmra.mrb[0].mxu0 %v6527
        %v8635 = vpop.f32.mrb[0].mxu0
        %v8636 = vadd.f32 %v8561, %v8635
        %v8637 = vpop.f32.mrb[0].mxu0
        %8638 = vmatprep.mubr.f32.mxu0 0.0
        %8639 = vmatmul.mubr.f32.gmra.mrb[0].mxu0 %v6528
        %v8640 = vpop.f32.mrb[0].mxu0
        %v8641 = vadd.f32 %v8566, %v8640
        %v8642 = vpop.f32.mrb[0].mxu0
        %8643 = vdwg.mxu0
        %s8644 = scalar_lea.vmem [#allocation8], 768
        %v8645 = vld [vmem:[%s8644] sm:$0xff]
        %v8646 = vld [vmem:[%s8644 + $0x8] sm:$0xff]
        %v8647 = vld [vmem:[%s8644 + $0x10] sm:$0xff]
        %v8648 = vld [vmem:[%s8644 + $0x18] sm:$0xff]
        %v8649 = vld [vmem:[%s8644 + $0x20] sm:$0xff]
        %v8650 = vld [vmem:[%s8644 + $0x28] sm:$0xff]
        %v8651 = vld [vmem:[%s8644 + $0x30] sm:$0xff]
        %v8652 = vld [vmem:[%s8644 + $0x38] sm:$0xff]
        %v8653 = vld [vmem:[%s8644 + $0x40] sm:$0xff]
        %v8654 = vld [vmem:[%s8644 + $0x48] sm:$0xff]
        %v8655 = vld [vmem:[%s8644 + $0x50] sm:$0xff]
        %v8656 = vld [vmem:[%s8644 + $0x58] sm:$0xff]
        %v8657 = vld [vmem:[%s8644 + $0x60] sm:$0xff]
        %v8658 = vld [vmem:[%s8644 + $0x68] sm:$0xff]
        %v8659 = vld [vmem:[%s8644 + $0x70] sm:$0xff]
        %v8660 = vld [vmem:[%s8644 + $0x78] sm:$0xff]
        %8661 = vmatprep.subr.mxu0 0.0
        %8662 = vmatpush1.msra.mxu0 %v8645
        %8663 = vmatprep.subr.mxu0 0.0
        %8664 = vmatpush1.msra.mxu0 %v8646
        %8665 = vmatprep.subr.mxu0 0.0
        %8666 = vmatpush1.msra.mxu0 %v8647
        %8667 = vmatprep.subr.mxu0 0.0
        %8668 = vmatpush1.msra.mxu0 %v8648
        %8669 = vmatprep.subr.mxu0 0.0
        %8670 = vmatpush1.msra.mxu0 %v8649
        %8671 = vmatprep.subr.mxu0 0.0
        %8672 = vmatpush1.msra.mxu0 %v8650
        %8673 = vmatprep.subr.mxu0 0.0
        %8674 = vmatpush1.msra.mxu0 %v8651
        %8675 = vmatprep.subr.mxu0 0.0
        %8676 = vmatpush1.msra.mxu0 %v8652
        %8677 = vmatprep.subr.mxu0 0.0
        %8678 = vmatpush1.msra.mxu0 %v8653
        %8679 = vmatprep.subr.mxu0 0.0
        %8680 = vmatpush1.msra.mxu0 %v8654
        %8681 = vmatprep.subr.mxu0 0.0
        %8682 = vmatpush1.msra.mxu0 %v8655
        %8683 = vmatprep.subr.mxu0 0.0
        %8684 = vmatpush1.msra.mxu0 %v8656
        %8685 = vmatprep.subr.mxu0 0.0
        %8686 = vmatpush1.msra.mxu0 %v8657
        %8687 = vmatprep.subr.mxu0 0.0
        %8688 = vmatpush1.msra.mxu0 %v8658
        %8689 = vmatprep.subr.mxu0 0.0
        %8690 = vmatpush1.msra.mxu0 %v8659
        %8691 = vmatprep.subr.mxu0 0.0
        %8692 = vmatpush1.msra.mxu0 %v8660
        %8693 = vmatprep.subr.mxu0 0.0
        %8694 = vmatpush1.msra.mxu0 0.0
        %8695 = vmatprep.subr.mxu0 0.0
        %8696 = vmatpush1.msra.mxu0 0.0
        %8697 = vmatprep.subr.mxu0 0.0
        %8698 = vmatpush1.msra.mxu0 0.0
        %8699 = vmatprep.subr.mxu0 0.0
        %8700 = vmatpush1.msra.mxu0 0.0
        %8701 = vmatprep.subr.mxu0 0.0
        %8702 = vmatpush1.msra.mxu0 0.0
        %8703 = vmatprep.subr.mxu0 0.0
        %8704 = vmatpush1.msra.mxu0 0.0
        %8705 = vmatprep.subr.mxu0 0.0
        %8706 = vmatpush1.msra.mxu0 0.0
        %8707 = vmatprep.subr.mxu0 0.0
        %8708 = vmatpush1.msra.mxu0 0.0
        %8709 = vmatprep.subr.mxu0 0.0
        %8710 = vmatpush1.msra.mxu0 0.0
        %8711 = vmatprep.subr.mxu0 0.0
        %8712 = vmatpush1.msra.mxu0 0.0
        %8713 = vmatprep.subr.mxu0 0.0
        %8714 = vmatpush1.msra.mxu0 0.0
        %8715 = vmatprep.subr.mxu0 0.0
        %8716 = vmatpush1.msra.mxu0 0.0
        %8717 = vmatprep.subr.mxu0 0.0
        %8718 = vmatpush1.msra.mxu0 0.0
        %8719 = vmatprep.subr.mxu0 0.0
        %8720 = vmatpush1.msra.mxu0 0.0
        %8721 = vmatprep.subr.mxu0 0.0
        %8722 = vmatpush1.msra.mxu0 0.0
        %8723 = vmatprep.subr.mxu0 0.0
        %8724 = vmatpush1.msra.mxu0 0.0
        %8725 = vmatprep.mubr.f32.mxu0 0.0
        %8726 = vmatmul.mubr.f32.gmra.mrb[0].mxu0 %v7838
        %v8727 = vpop.f32.mrb[0].mxu0
        %v8728 = vadd.f32 0.0, %v8727
        %v8729 = vpop.f32.mrb[0].mxu0
        %8730 = vmatprep.mubr.f32.mxu0 0.0
        %8731 = vmatmul.mubr.f32.gmra.mrb[0].mxu0 %v7839
        %v8732 = vpop.f32.mrb[0].mxu0
        %v8733 = vadd.f32 0.0, %v8732
        %v8734 = vpop.f32.mrb[0].mxu0
        %8735 = vdwg.mxu0
        %v8736 = vadd.f32 %v8636, %v8728
        %v8737 = vadd.f32 %v8641, %v8733
        %s8738 = scalar_lea.vmem [#allocation8], 896
        %v8739 = vld [vmem:[%s8738] sm:$0xff]
        %v8740 = vld [vmem:[%s8738 + $0x8] sm:$0xff]
        %v8741 = vld [vmem:[%s8738 + $0x10] sm:$0xff]
        %v8742 = vld [vmem:[%s8738 + $0x18] sm:$0xff]
        %v8743 = vld [vmem:[%s8738 + $0x20] sm:$0xff]
        %v8744 = vld [vmem:[%s8738 + $0x28] sm:$0xff]
        %v8745 = vld [vmem:[%s8738 + $0x30] sm:$0xff]
        %v8746 = vld [vmem:[%s8738 + $0x38] sm:$0xff]
        %v8747 = vld [vmem:[%s8738 + $0x40] sm:$0xff]
        %v8748 = vld [vmem:[%s8738 + $0x48] sm:$0xff]
        %v8749 = vld [vmem:[%s8738 + $0x50] sm:$0xff]
        %v8750 = vld [vmem:[%s8738 + $0x58] sm:$0xff]
        %v8751 = vld [vmem:[%s8738 + $0x60] sm:$0xff]
        %v8752 = vld [vmem:[%s8738 + $0x68] sm:$0xff]
        %v8753 = vld [vmem:[%s8738 + $0x70] sm:$0xff]
        %v8754 = vld [vmem:[%s8738 + $0x78] sm:$0xff]
        %8755 = vmatprep.subr.mxu0 0.0
        %8756 = vmatpush1.msra.mxu0 %v8739
        %8757 = vmatprep.subr.mxu0 0.0
        %8758 = vmatpush1.msra.mxu0 %v8740
        %8759 = vmatprep.subr.mxu0 0.0
        %8760 = vmatpush1.msra.mxu0 %v8741
        %8761 = vmatprep.subr.mxu0 0.0
        %8762 = vmatpush1.msra.mxu0 %v8742
        %8763 = vmatprep.subr.mxu0 0.0
        %8764 = vmatpush1.msra.mxu0 %v8743
        %8765 = vmatprep.subr.mxu0 0.0
        %8766 = vmatpush1.msra.mxu0 %v8744
        %8767 = vmatprep.subr.mxu0 0.0
        %8768 = vmatpush1.msra.mxu0 %v8745
        %8769 = vmatprep.subr.mxu0 0.0
        %8770 = vmatpush1.msra.mxu0 %v8746
        %8771 = vmatprep.subr.mxu0 0.0
        %8772 = vmatpush1.msra.mxu0 %v8747
        %8773 = vmatprep.subr.mxu0 0.0
        %8774 = vmatpush1.msra.mxu0 %v8748
        %8775 = vmatprep.subr.mxu0 0.0
        %8776 = vmatpush1.msra.mxu0 %v8749
        %8777 = vmatprep.subr.mxu0 0.0
        %8778 = vmatpush1.msra.mxu0 %v8750
        %8779 = vmatprep.subr.mxu0 0.0
        %8780 = vmatpush1.msra.mxu0 %v8751
        %8781 = vmatprep.subr.mxu0 0.0
        %8782 = vmatpush1.msra.mxu0 %v8752
        %8783 = vmatprep.subr.mxu0 0.0
        %8784 = vmatpush1.msra.mxu0 %v8753
        %8785 = vmatprep.subr.mxu0 0.0
        %8786 = vmatpush1.msra.mxu0 %v8754
        %8787 = vmatprep.subr.mxu0 0.0
        %8788 = vmatpush1.msra.mxu0 0.0
        %8789 = vmatprep.subr.mxu0 0.0
        %8790 = vmatpush1.msra.mxu0 0.0
        %8791 = vmatprep.subr.mxu0 0.0
        %8792 = vmatpush1.msra.mxu0 0.0
        %8793 = vmatprep.subr.mxu0 0.0
        %8794 = vmatpush1.msra.mxu0 0.0
        %8795 = vmatprep.subr.mxu0 0.0
        %8796 = vmatpush1.msra.mxu0 0.0
        %8797 = vmatprep.subr.mxu0 0.0
        %8798 = vmatpush1.msra.mxu0 0.0
        %8799 = vmatprep.subr.mxu0 0.0
        %8800 = vmatpush1.msra.mxu0 0.0
        %8801 = vmatprep.subr.mxu0 0.0
        %8802 = vmatpush1.msra.mxu0 0.0
        %8803 = vmatprep.subr.mxu0 0.0
        %8804 = vmatpush1.msra.mxu0 0.0
        %8805 = vmatprep.subr.mxu0 0.0
        %8806 = vmatpush1.msra.mxu0 0.0
        %8807 = vmatprep.subr.mxu0 0.0
        %8808 = vmatpush1.msra.mxu0 0.0
        %8809 = vmatprep.subr.mxu0 0.0
        %8810 = vmatpush1.msra.mxu0 0.0
        %8811 = vmatprep.subr.mxu0 0.0
        %8812 = vmatpush1.msra.mxu0 0.0
        %8813 = vmatprep.subr.mxu0 0.0
        %8814 = vmatpush1.msra.mxu0 0.0
        %8815 = vmatprep.subr.mxu0 0.0
        %8816 = vmatpush1.msra.mxu0 0.0
        %8817 = vmatprep.subr.mxu0 0.0
        %8818 = vmatpush1.msra.mxu0 0.0
        %8819 = vmatprep.mubr.f32.mxu0 0.0
        %8820 = vmatmul.mubr.f32.gmra.mrb[0].mxu0 %v8458
        %v8821 = vpop.f32.mrb[0].mxu0
        %v8822 = vadd.f32 0.0, %v8821
        %v8823 = vpop.f32.mrb[0].mxu0
        %8824 = vmatprep.mubr.f32.mxu0 0.0
        %8825 = vmatmul.mubr.f32.gmra.mrb[0].mxu0 %v8459
        %v8826 = vpop.f32.mrb[0].mxu0
        %v8827 = vadd.f32 0.0, %v8826
        %v8828 = vpop.f32.mrb[0].mxu0
        %8829 = vdwg.mxu0
        %v8830 = vadd.f32 %v8736, %v8822
        %v8831 = vadd.f32 %v8737, %v8827
        %s8832 = scalar_lea.vmem %s9, 7
        %v8833 = vld [vmem:[%s8832] sm:$0x1]
        %v8835 = vlaneseq
        %v8836 = vshrl.u32 %v8835, 7
        %v8837 = vsub.s32 0, %v8836
        %v8838 = vrot.slane %v8833, %v8837
        %v8840 = vadd.f32 %v8830, %v8838
        %v8841 = vadd.f32 %v8831, %v8838
        %v8842 = vand.u32 2147483647, %v8840
        %v8843 = vand.u32 2147483647, %v8841
        %v8844 = vsub.f32 0.0, %v8842
        %v8845 = vsub.f32 0.0, %v8843
        %v8846 = vmul.f32 %v8844, 1.442695
        %v8847 = vpow.pop %v8846
        %v8848 = vmul.f32 %v8845, 1.442695
        %v8849 = vpow.pop %v8848
        %v8850 = vadd.f32 %v8847, 1.0
        %v8851 = vadd.f32 %v8849, 1.0
        %v8852 = vrcp.pop %v8850
        %v8853 = vrcp.pop %v8851
        %v8854 = vmul.f32 %v8840, %v8852
        %v8855 = vmul.f32 %v8841, %v8853
        %vm8856 = vcmp.ge.f32.partialorder %v8840, 0.0
        %vm8857 = vcmp.ge.f32.partialorder %v8841, 0.0
        %v8858 = vsel %vm8856, 1.0, %v8847
        %v8859 = vsel %vm8857, 1.0, %v8849
        %v8860 = vmul.f32 %v8854, %v8858
        %v8861 = vmul.f32 %v8855, %v8859
        %8862 = vst [vmem:[%s411] sm:$0xff] %v8860
        %8863 = vst [vmem:[%s411 + $0x8] sm:$0xff] %v8861
        %s8864 = sand.u32 %s250, 1
        %s8865 = scalar_lea.sflag [#allocation4], %s8864
        %s8866 = sand.u32 %s250, 1
        %s8867 = smul.addr %s8866, 16
        %s8868 = scalar_lea.vmem [#allocation10], %s8867
        // Predicated region
        $region77: #{yolo_backbone_forward.1} parent=59 // pred_check
          %p8869 = pneg %p260
        $region78: #{yolo_backbone_forward.1} parent=59 // pred_check_branch
          %8871 = sbr.rel (%p8869) target = $region80
        $region79: #{yolo_backbone_forward.1} parent=59 // pred_region
          %s8873 = ssub.s32 256, 256
          %8874 = vsyncadd %s8865, %s8873
          %s8875 = smul.addr %s27, 2
          %s8876 = smul.addr %s8875, 128
          %s8877 = scalar_lea.hbm %s10, %s8876
          %s8878 = sshll.u32 %s8868, 4
          %s8879 = int_to_ptr.vmem [resolvable:$true] %s8878
          %8884 = dma.vmem_to_hbm [thread:$0]  %s8879, 256, %s8877, %s8865, 128, 128, 8
        $region80: #{yolo_backbone_forward.1} parent=59 // pred_fallthru
          _
      $region60: #{yolo_backbone_forward.1} parent=5 // pred_fallthru
        _
      %p8885 = scmp.le.s32.totalorder 2, %s22
      // Predicated region
      $region81: #{yolo_backbone_forward.1} parent=5 // pred_check
        %p8886 = pneg %p8885
      $region82: #{yolo_backbone_forward.1} parent=5 // pred_check_branch
        %8888 = sbr.rel (%p8886) target = $region84
      $region83: #{yolo_backbone_forward.1} parent=5 // pred_region
        %s8889 = ssub.s32 %s22, 2
        // Predicated region
        $region85: #{yolo_backbone_forward.1} parent=83 // pred_check
          %p8890 = pneg %p266
        $region86: #{yolo_backbone_forward.1} parent=83 // pred_check_branch
          %8892 = sbr.rel (%p8890) target = $region88
        $region87: #{yolo_backbone_forward.1} parent=83 // pred_region
          %s8893 = sand.u32 %s251, 1
          %s8894 = scalar_lea.sflag [#allocation4], %s8893
          %s8895 = sand.u32 %s251, 1
          %s8896 = smul.addr %s8895, 16
          %s8897 = scalar_lea.vmem [#allocation10], %s8896
          %8898 = dma.done %s8894, 256
        $region88: #{yolo_backbone_forward.1} parent=83 // pred_fallthru
          _
      $region84: #{yolo_backbone_forward.1} parent=5 // pred_fallthru
        _
    $region6: #{yolo_backbone_forward.1} parent=1 // loop_footer
      %s26 = sadd.s32 1, %s22
    $region7: #{yolo_backbone_forward.1} parent=1 // loop_footer_branch
      %21 = sbr.rel target = $region3
    $region8: #{yolo_backbone_forward.1} parent=1 // loop_exit
      _
    %8899 = vsyncpa [#allocation3], 1
    %s8900 = scalar_lea.sflag [#allocation3], 1
    %8901 = vsyncpa %s8900, 1
    %8902 = vsyncpa [#allocation6], 1
    %8903 = vsyncpa [#allocation9], 1
    %8904 = vsyncpa [#allocation4], 1
    %s8905 = scalar_lea.sflag [#allocation4], 1
    %8906 = vsyncpa %s8905, 1

</llo_original>
